<compile_context>
chip_gen: v6e
topology: v6e:2x2x1
jax: 0.10.0
libtpu: 0.0.40
codegen_flags: <defaults>
</compile_context>

<pallas_src>
import jax
import jax.numpy as jnp
from jax.experimental import pallas as pl
from jax.experimental.pallas import tpu as pltpu


# ----------------------------------------------------------------------------
# Pallas kernels
# ----------------------------------------------------------------------------
def _conv_pool_kernel(a_ref, w_ref, b_ref, o_ref):
    """Fused 3x3-conv (im2col GEMM) + bias + ReLU + 2x2 max-pool.

    a_ref: (4*TM, K) -- the four pool-offset im2col tiles row-stacked
           (rows ordered: pool-offset major, (m, ho, wo) minor).
    w_ref: (K, Cout); b_ref: (1, Cout); o_ref: (TM, Cout).
    pool(relu(conv + b)) == relu(max_i(A_i @ W) + b) (bias const, relu monotone).
    """
    tm = o_ref.shape[0]
    p = jnp.dot(a_ref[...], w_ref[...], preferred_element_type=jnp.float32)
    m = jnp.maximum(jnp.maximum(p[0:tm], p[tm:2 * tm]),
                    jnp.maximum(p[2 * tm:3 * tm], p[3 * tm:4 * tm]))
    o_ref[...] = jnp.maximum(m + b_ref[...], 0.0).astype(o_ref.dtype)


def _gnn_heads_kernel(h_ref, qw_ref, adj_ref,
                      wfc_ref, bfc_ref,
                      wg1a_ref, wg1b_ref, bg1_ref,
                      wg2_ref, bg2_ref,
                      wf1g_ref, wf1c_ref, wf1q_ref, bf1_ref,
                      wf2_ref, bf2_ref, o_ref):
    """Fused: cnn fc1 (bf16 x bf16 -> f32), concat([cnn_feat, q, weather]),
    2x (block-diag adj @ x -> linear -> relu), fc2(relu(fc1(cat([gnn, cnn]))))
    -- every concat is folded into row-split weight matmuls."""
    f32 = jnp.float32
    # cnn fc1: the 3.4 MB weight is stored bf16 (halved DMA); f32 accumulate.
    cnn = (jnp.dot(h_ref[...].astype(jnp.bfloat16), wfc_ref[...],
                   preferred_element_type=f32) + bfc_ref[...])          # (M, 246)
    qw = qw_ref[...]                                                    # (M, 10)
    adj = adj_ref[...]                                                  # (M, M)

    # GNN layer 1 on cnn_out = [cnn_feat | q | weather]; adj@[A|B] = [adj@A|adj@B]
    g = jnp.dot(adj, cnn, preferred_element_type=f32)
    gq = jnp.dot(adj, qw, preferred_element_type=f32)
    g = jnp.maximum(jnp.dot(g, wg1a_ref[...], preferred_element_type=f32)
                    + jnp.dot(gq, wg1b_ref[...], preferred_element_type=f32)
                    + bg1_ref[...], 0.0)                                # (M, 256)
    # GNN layer 2
    g = jnp.dot(adj, g, preferred_element_type=f32)
    g = jnp.maximum(jnp.dot(g, wg2_ref[...], preferred_element_type=f32)
                    + bg2_ref[...], 0.0)                                # (M, 256)

    # heads: fc1 on cat([gnn_out, cnn_feat, q, weather]) folded into 3 matmuls.
    hh = jnp.maximum(jnp.dot(g, wf1g_ref[...], preferred_element_type=f32)
                     + jnp.dot(cnn, wf1c_ref[...], preferred_element_type=f32)
                     + jnp.dot(qw, wf1q_ref[...], preferred_element_type=f32)
                     + bf1_ref[...], 0.0)                               # (M, 128)
    o_ref[...] = (jnp.dot(hh, wf2_ref[...], preferred_element_type=f32)
                  + bf2_ref[...]).astype(o_ref.dtype)                   # (M, 8)


# ----------------------------------------------------------------------------
# Kernel wrappers (no padding of GEMM dims, full-K/N blocks, M-tiled grids)
# ----------------------------------------------------------------------------
def _pick_nb(m, ho, wo):
    """Grid blocks per conv layer: 2 when the half-split is batch-divisible and
    sublane(8)-aligned (shards v7x's two TensorCores + double-buffers the input
    DMA; only 2 pipeline steps on v5e/v6e); else 1."""
    if m % 2 == 0 and ((m // 2) * ho * wo) % 8 == 0:
        return 2
    return 1


def conv_pool_matmul(a_stacked, w, b2, tm, nb):
    """a_stacked: (nb*4*tm, K); w: (K, Cout); b2: (1, Cout) -> (nb*tm, Cout)."""
    K, Cout = w.shape
    return pl.pallas_call(
        _conv_pool_kernel,
        out_shape=jax.ShapeDtypeStruct((nb * tm, Cout), jnp.float32),
        grid=(nb,),
        in_specs=[pl.BlockSpec((4 * tm, K), lambda i: (i, 0)),
                  pl.BlockSpec((K, Cout), lambda i: (0, 0)),
                  pl.BlockSpec((1, Cout), lambda i: (0, 0))],
        out_specs=pl.BlockSpec((tm, Cout), lambda i: (i, 0)),
        compiler_params=pltpu.CompilerParams(
            dimension_semantics=("parallel",)),
    )(a_stacked, w, b2)


def gnn_heads_fused(h, qw, adj_bd, kp):
    """h: (M, 3456) NHWC-flat conv2 output; qw: (M, 10); adj_bd: (M, M)."""
    M = h.shape[0]
    n_out = kp["fc2_w"].shape[1]
    args = (h, qw, adj_bd,
            kp["cnn_fc1_w"], kp["cnn_fc1_b"],
            kp["gnn_w1a"], kp["gnn_w1b"], kp["gnn_b1"],
            kp["gnn_w2"], kp["gnn_b2"],
            kp["fc1_wg"], kp["fc1_wc"], kp["fc1_wq"], kp["fc1_b"],
            kp["fc2_w"], kp["fc2_b"])
    in_specs = [pl.BlockSpec(a.shape, lambda i: (0, 0)) for a in args]
    return pl.pallas_call(
        _gnn_heads_kernel,
        out_shape=jax.ShapeDtypeStruct((M, n_out), jnp.float32),
        grid=(1,),
        in_specs=in_specs,
        out_specs=pl.BlockSpec((M, n_out), lambda i: (0, 0)),
    )(*args)


# ----------------------------------------------------------------------------
# Model glue
# ----------------------------------------------------------------------------
def _pooled_im2col_stacked(x_nhwc, ho, wo, nb):
    """Row-stacked pooled im2col for a 3x3/s1/p1 conv followed by a 2x2/s2
    floor-mode max-pool.  Returns ((nb*4*TM, 9*Cin), TM) with rows ordered
    (block, pool-offset, m, ho, wo); cols ordered (kh, kw, cin)."""
    M, H, W, Ci = x_nhwc.shape
    xp = jnp.pad(x_nhwc, ((0, 0), (1, 1), (1, 1), (0, 0)))
    # full conv im2col: cols[m, h, w, (kh, kw, ci)] = xp[m, h+kh, w+kw, ci]
    taps = [xp[:, kh:kh + H, kw:kw + W, :]
            for kh in range(3) for kw in range(3)]
    cols = jnp.concatenate(taps, axis=-1)                      # (M, H, W, 9*Ci)
    K = 9 * Ci
    tm = (M // nb) * ho * wo
    mats = []
    for dh in range(2):
        for dw in range(2):
            sel = cols[:, dh:dh + 2 * ho:2, dw:dw + 2 * wo:2, :]  # (M,ho,wo,K)
            mats.append(sel.reshape(nb, tm, K))
    a = jnp.stack(mats, axis=1).reshape(nb * 4 * tm, K)
    return a, tm


def conv3x3_relu_pool(x_nhwc, w9, b2):
    """3x3 conv (stride 1, pad 1) + bias + ReLU + 2x2/s2 max-pool, one launch.
    x_nhwc: (M, H, W, Cin); w9: (9*Cin, Cout); b2: (1, Cout)
    -> (M, H//2, W//2, Cout)."""
    M, H, W, _ = x_nhwc.shape
    ho, wo = H // 2, W // 2
    Cout = w9.shape[1]
    nb = _pick_nb(M, ho, wo)
    a, tm = _pooled_im2col_stacked(x_nhwc, ho, wo, nb)
    out = conv_pool_matmul(a, w9, b2, tm, nb)
    return out.reshape(M, ho, wo, Cout)


def init_params(key):
    """PyTorch-layout parameters, exactly as in the reference module."""
    ks = jax.random.split(key, 12)
    s = 0.05
    p = {
        "conv1_w": jax.random.normal(ks[0], (32, 2, 3, 3), jnp.float32) * s,
        "conv1_b": jax.random.normal(ks[1], (32,), jnp.float32) * s,
        "conv2_w": jax.random.normal(ks[2], (64, 32, 3, 3), jnp.float32) * s,
        "conv2_b": jax.random.normal(ks[3], (64,), jnp.float32) * s,
        "cnn_fc1_w": jax.random.normal(ks[4], (246, 3456), jnp.float32) * s,
        "cnn_fc1_b": jax.random.normal(ks[5], (246,), jnp.float32) * s,
        "gnn_w": [jax.random.normal(ks[6], (256, 256), jnp.float32) * s,
                  jax.random.normal(ks[7], (256, 256), jnp.float32) * s],
        "gnn_b": [jax.random.normal(ks[8], (256,), jnp.float32) * s,
                  jax.random.normal(ks[9], (256,), jnp.float32) * s],
        "emb": jax.random.normal(ks[10], (2, 2), jnp.float32) * s,
    }
    ks2 = jax.random.split(ks[11], 4)
    p["fc1_w"] = jax.random.normal(ks2[0], (128, 512), jnp.float32) * s
    p["fc1_b"] = jax.random.normal(ks2[1], (128,), jnp.float32) * s
    p["fc2_w"] = jax.random.normal(ks2[2], (8, 128), jnp.float32) * s
    p["fc2_b"] = jax.random.normal(ks2[3], (8,), jnp.float32) * s
    return p


def prepare_params(p):
    """One-time conversion to kernel-friendly layouts (no per-forward work):
      - conv weights -> (9*Cin, Cout) in (kh, kw, cin) x cout im2col order
      - linear weights -> (in, out); biases -> (1, out)
      - cnn fc1 weight row-permuted from NCHW-flatten to NHWC-flatten order
        and cast to bf16 (the DMA hotspot)
      - concat-consuming weights pre-split by row group:
          gnn layer1 input  = [cnn_feat(246) | q(8)+weather(2)]
          heads fc1 input   = [gnn_out(256) | cnn_feat(246) | q+weather(10)]."""
    kp = {}
    c1, c2 = p["conv1_w"], p["conv2_w"]
    kp["conv1_w"] = jnp.transpose(c1, (2, 3, 1, 0)).reshape(9 * c1.shape[1],
                                                            c1.shape[0])
    kp["conv1_b"] = p["conv1_b"].reshape(1, -1)
    kp["conv2_w"] = jnp.transpose(c2, (2, 3, 1, 0)).reshape(9 * c2.shape[1],
                                                            c2.shape[0])
    kp["conv2_b"] = p["conv2_b"].reshape(1, -1)

    # PyTorch fc1 input index is (c=64, h=3, w=18) (NCHW flatten); our pooled
    # activation is flattened (h, w, c) (NHWC) -> permute rows accordingly.
    C2, Ho2, Wo2 = 64, 3, 18
    wfc = (p["cnn_fc1_w"].reshape(246, C2, Ho2, Wo2)
           .transpose(2, 3, 1, 0).reshape(Ho2 * Wo2 * C2, 246))
    kp["cnn_fc1_w"] = wfc.astype(jnp.bfloat16)
    kp["cnn_fc1_b"] = p["cnn_fc1_b"].reshape(1, -1)

    wg1 = p["gnn_w"][0].T                      # (256, 256) (in, out)
    kp["gnn_w1a"] = wg1[:246, :]               # rows for cnn_feat
    kp["gnn_w1b"] = wg1[246:, :]               # rows for [q, weather]
    kp["gnn_b1"] = p["gnn_b"][0].reshape(1, -1)
    kp["gnn_w2"] = p["gnn_w"][1].T
    kp["gnn_b2"] = p["gnn_b"][1].reshape(1, -1)

    wf1 = p["fc1_w"].T                         # (512, 128) (in, out)
    kp["fc1_wg"] = wf1[:256, :]                # rows for gnn_out
    kp["fc1_wc"] = wf1[256:502, :]             # rows for cnn_feat
    kp["fc1_wq"] = wf1[502:, :]                # rows for [q, weather]
    kp["fc1_b"] = p["fc1_b"].reshape(1, -1)
    kp["fc2_w"] = p["fc2_w"].T                 # (128, 8)
    kp["fc2_b"] = p["fc2_b"].reshape(1, -1)
    kp["emb"] = p["emb"]
    return kp


def my_cnn_and_gnn2_forward(kparams, x, adj_matrix, weather, q):
    """
    x:          (B, S, 2, D, T)   (D=14 days, T=73 time slots)
    adj_matrix: (1, S, S)
    weather:    (B,) int32 in {0, 1}
    q:          (B, S, 2, 4)
    returns     (B, S, 2, 4)
    """
    B, S, C, D, T = x.shape
    M = B * S

    # ---- weather embedding gather + [q, weather] side features (glue) ----
    w_emb = kparams["emb"][weather]                              # (B, 2)
    w_emb = jnp.broadcast_to(w_emb[:, None, :], (B, S, 2))
    qw = jnp.concatenate([q.reshape(B, S, 8), w_emb], axis=-1).reshape(M, 10)

    # ---- CNN feature extractor: 2 fused conv+relu+pool launches ----
    xc = x.reshape(M, C, D, T).transpose(0, 2, 3, 1).astype(jnp.float32)  # NHWC
    h = conv3x3_relu_pool(xc, kparams["conv1_w"], kparams["conv1_b"])  # (M,7,36,32)
    h = conv3x3_relu_pool(h, kparams["conv2_w"], kparams["conv2_b"])   # (M,3,18,64)
    h = h.reshape(M, 3 * 18 * 64)      # free reshape; fc1 weight is pre-permuted

    # ---- adjacency normalization D^-1/2 A D^-1/2 (tiny, plain JAX glue) ----
    s = adj_matrix.shape[-1]
    adj2 = adj_matrix.reshape(s, s)
    dinv = 1.0 / jnp.sqrt(jnp.sum(adj2, axis=1))
    adj_norm = dinv[:, None] * adj2 * dinv[None, :]              # (S, S)
    # TODO(synk): for large B, batch the adjacency matmul per-image in-kernel
    # instead of the dense block-diagonal form (quadratic in B*S).
    adj_bd = jnp.kron(jnp.eye(B, dtype=adj_norm.dtype), adj_norm)  # (B*S, B*S)

    # ---- fused cnn_fc1 + concat + GNN x2 + fc1 + fc2 (single launch) ----
    out = gnn_heads_fused(h, qw, adj_bd, kparams)
    return out.reshape(B, S, 2, 4)


if __name__ == "__main__":
    key = jax.random.PRNGKey(0)
    k_p, k_x, k_a, k_w, k_q = jax.random.split(key, 5)

    B, S, D, T = 2, 4, 14, 73   # small batch / station count, real spatial dims
    params = init_params(k_p)
    kparams = prepare_params(params)   # one-time weight layout conversion

    x = jax.random.normal(k_x, (B, S, 2, D, T), jnp.float32)
    adj = jax.random.uniform(k_a, (1, S, S), jnp.float32, minval=0.1, maxval=1.0)
    weather = jax.random.randint(k_w, (B,), 0, 2)
    q = jax.random.normal(k_q, (B, S, 2, 4), jnp.float32)

    fwd = jax.jit(my_cnn_and_gnn2_forward)
    out = jax.block_until_ready(fwd(kparams, x, adj, weather, q))
    assert out.shape == (B, S, 2, 4)
    assert bool(jnp.all(jnp.isfinite(out)))
    print("KERNEL_OK")
</pallas_src>

<mosaic_0001>
module attributes {stable_mosaic.version = 11 : i64} {
  func.func @_conv_pool_kernel(%arg0: i32, %arg1: memref<4032x18xf32, #tpu.memory_space<vmem>>, %arg2: memref<18x32xf32, #tpu.memory_space<vmem>>, %arg3: memref<1x32xf32, #tpu.memory_space<vmem>>, %arg4: memref<1008x32xf32, #tpu.memory_space<vmem>>) attributes {dimension_semantics = [#tpu.dimension_semantics<parallel>], iteration_bounds = array<i64: 2>, scalar_prefetch = 0 : i64, scratch_operands = 0 : i64, tpu.core_type = #tpu.core_type<tc>, window_params = [{transform_indices = @transform_0, window_bounds = array<i64: 4032, 18>}, {pipeline_mode = #tpu.pipeline_mode<synchronous>, transform_indices = @transform_1, window_bounds = array<i64: 18, 32>}, {pipeline_mode = #tpu.pipeline_mode<synchronous>, transform_indices = @transform_2, window_bounds = array<i64: 1, 32>}, {transform_indices = @transform_3, window_bounds = array<i64: 1008, 32>}]} {
    %c0 = arith.constant 0 : index
    %c0_0 = arith.constant 0 : index
    %0 = vector.load %arg1[%c0, %c0_0] : memref<4032x18xf32, #tpu.memory_space<vmem>>, vector<4032x18xf32>
    %c0_1 = arith.constant 0 : index
    %c0_2 = arith.constant 0 : index
    %1 = vector.load %arg2[%c0_1, %c0_2] : memref<18x32xf32, #tpu.memory_space<vmem>>, vector<18x32xf32>
    %cst = arith.constant dense<0.000000e+00> : vector<4032x32xf32>
    %2 = tpu.matmul %0, %1, %cst {dimension_numbers = #tpu.dot_dimension_numbers<[1], [0], [0], [1], [0, 0, 1, 1], [], []>} : vector<4032x18xf32>, vector<18x32xf32>, vector<4032x32xf32> -> vector<4032x32xf32>
    %3 = vector.extract_strided_slice %2 {offsets = [0, 0], sizes = [1008, 32], strides = [1, 1]} : vector<4032x32xf32> to vector<1008x32xf32>
    %4 = vector.extract_strided_slice %2 {offsets = [1008, 0], sizes = [1008, 32], strides = [1, 1]} : vector<4032x32xf32> to vector<1008x32xf32>
    %5 = arith.maximumf %3, %4 : vector<1008x32xf32>
    %6 = vector.extract_strided_slice %2 {offsets = [2016, 0], sizes = [1008, 32], strides = [1, 1]} : vector<4032x32xf32> to vector<1008x32xf32>
    %7 = vector.extract_strided_slice %2 {offsets = [3024, 0], sizes = [1008, 32], strides = [1, 1]} : vector<4032x32xf32> to vector<1008x32xf32>
    %8 = arith.maximumf %6, %7 : vector<1008x32xf32>
    %9 = arith.maximumf %5, %8 : vector<1008x32xf32>
    %c0_3 = arith.constant 0 : index
    %c0_4 = arith.constant 0 : index
    %10 = vector.load %arg3[%c0_3, %c0_4] : memref<1x32xf32, #tpu.memory_space<vmem>>, vector<1x32xf32>
    %11 = vector.broadcast %10 : vector<1x32xf32> to vector<1008x32xf32>
    %12 = arith.addf %9, %11 : vector<1008x32xf32>
    %cst_5 = arith.constant 0.000000e+00 : f32
    %13 = vector.broadcast %cst_5 : f32 to vector<1008x32xf32>
    %14 = arith.maximumf %12, %13 : vector<1008x32xf32>
    %c0_6 = arith.constant 0 : index
    %c0_7 = arith.constant 0 : index
    %15 = vector.load %arg4[%c0_6, %c0_7] : memref<1008x32xf32, #tpu.memory_space<vmem>>, vector<1008x32xf32>
    tpu.vector_store %arg4[%c0_6, %c0_7], %14 {strides = array<i32>} : memref<1008x32xf32, #tpu.memory_space<vmem>>, vector<1008x32xf32>,
    return
  }
  func.func @transform_0(%arg0: i32) -> (i32, i32) {
    %c0_i32 = arith.constant 0 : i32
    %c0_i32_0 = arith.constant 0 : i32
    return %arg0, %c0_i32 : i32, i32
  }
  func.func @transform_1(%arg0: i32) -> (i32, i32) {
    %c0_i32 = arith.constant 0 : i32
    %c0_i32_0 = arith.constant 0 : i32
    %c0_i32_1 = arith.constant 0 : i32
    return %c0_i32, %c0_i32_0 : i32, i32
  }
  func.func @transform_2(%arg0: i32) -> (i32, i32) {
    %c0_i32 = arith.constant 0 : i32
    %c0_i32_0 = arith.constant 0 : i32
    %c0_i32_1 = arith.constant 0 : i32
    return %c0_i32, %c0_i32_0 : i32, i32
  }
  func.func @transform_3(%arg0: i32) -> (i32, i32) {
    %c0_i32 = arith.constant 0 : i32
    %c0_i32_0 = arith.constant 0 : i32
    return %arg0, %c0_i32 : i32, i32
  }
}

module attributes {stable_mosaic.version = 11 : i64} {
  func.func @_conv_pool_kernel(%arg0: i32, %arg1: memref<864x288xf32, #tpu.memory_space<vmem>>, %arg2: memref<288x64xf32, #tpu.memory_space<vmem>>, %arg3: memref<1x64xf32, #tpu.memory_space<vmem>>, %arg4: memref<216x64xf32, #tpu.memory_space<vmem>>) attributes {dimension_semantics = [#tpu.dimension_semantics<parallel>], iteration_bounds = array<i64: 2>, scalar_prefetch = 0 : i64, scratch_operands = 0 : i64, tpu.core_type = #tpu.core_type<tc>, window_params = [{transform_indices = @transform_0, window_bounds = array<i64: 864, 288>}, {pipeline_mode = #tpu.pipeline_mode<synchronous>, transform_indices = @transform_1, window_bounds = array<i64: 288, 64>}, {pipeline_mode = #tpu.pipeline_mode<synchronous>, transform_indices = @transform_2, window_bounds = array<i64: 1, 64>}, {transform_indices = @transform_3, window_bounds = array<i64: 216, 64>}]} {
    %c0 = arith.constant 0 : index
    %c0_0 = arith.constant 0 : index
    %0 = vector.load %arg1[%c0, %c0_0] : memref<864x288xf32, #tpu.memory_space<vmem>>, vector<864x288xf32>
    %c0_1 = arith.constant 0 : index
    %c0_2 = arith.constant 0 : index
    %1 = vector.load %arg2[%c0_1, %c0_2] : memref<288x64xf32, #tpu.memory_space<vmem>>, vector<288x64xf32>
    %cst = arith.constant dense<0.000000e+00> : vector<864x64xf32>
    %2 = tpu.matmul %0, %1, %cst {dimension_numbers = #tpu.dot_dimension_numbers<[1], [0], [0], [1], [0, 0, 1, 1], [], []>} : vector<864x288xf32>, vector<288x64xf32>, vector<864x64xf32> -> vector<864x64xf32>
    %3 = vector.extract_strided_slice %2 {offsets = [0, 0], sizes = [216, 64], strides = [1, 1]} : vector<864x64xf32> to vector<216x64xf32>
    %4 = vector.extract_strided_slice %2 {offsets = [216, 0], sizes = [216, 64], strides = [1, 1]} : vector<864x64xf32> to vector<216x64xf32>
    %5 = arith.maximumf %3, %4 : vector<216x64xf32>
    %6 = vector.extract_strided_slice %2 {offsets = [432, 0], sizes = [216, 64], strides = [1, 1]} : vector<864x64xf32> to vector<216x64xf32>
    %7 = vector.extract_strided_slice %2 {offsets = [648, 0], sizes = [216, 64], strides = [1, 1]} : vector<864x64xf32> to vector<216x64xf32>
    %8 = arith.maximumf %6, %7 : vector<216x64xf32>
    %9 = arith.maximumf %5, %8 : vector<216x64xf32>
    %c0_3 = arith.constant 0 : index
    %c0_4 = arith.constant 0 : index
    %10 = vector.load %arg3[%c0_3, %c0_4] : memref<1x64xf32, #tpu.memory_space<vmem>>, vector<1x64xf32>
    %11 = vector.broadcast %10 : vector<1x64xf32> to vector<216x64xf32>
    %12 = arith.addf %9, %11 : vector<216x64xf32>
    %cst_5 = arith.constant 0.000000e+00 : f32
    %13 = vector.broadcast %cst_5 : f32 to vector<216x64xf32>
    %14 = arith.maximumf %12, %13 : vector<216x64xf32>
    %c0_6 = arith.constant 0 : index
    %c0_7 = arith.constant 0 : index
    %15 = vector.load %arg4[%c0_6, %c0_7] : memref<216x64xf32, #tpu.memory_space<vmem>>, vector<216x64xf32>
    tpu.vector_store %arg4[%c0_6, %c0_7], %14 {strides = array<i32>} : memref<216x64xf32, #tpu.memory_space<vmem>>, vector<216x64xf32>,
    return
  }
  func.func @transform_0(%arg0: i32) -> (i32, i32) {
    %c0_i32 = arith.constant 0 : i32
    %c0_i32_0 = arith.constant 0 : i32
    return %arg0, %c0_i32 : i32, i32
  }
  func.func @transform_1(%arg0: i32) -> (i32, i32) {
    %c0_i32 = arith.constant 0 : i32
    %c0_i32_0 = arith.constant 0 : i32
    %c0_i32_1 = arith.constant 0 : i32
    return %c0_i32, %c0_i32_0 : i32, i32
  }
  func.func @transform_2(%arg0: i32) -> (i32, i32) {
    %c0_i32 = arith.constant 0 : i32
    %c0_i32_0 = arith.constant 0 : i32
    %c0_i32_1 = arith.constant 0 : i32
    return %c0_i32, %c0_i32_0 : i32, i32
  }
  func.func @transform_3(%arg0: i32) -> (i32, i32) {
    %c0_i32 = arith.constant 0 : i32
    %c0_i32_0 = arith.constant 0 : i32
    return %arg0, %c0_i32 : i32, i32
  }
}

module attributes {stable_mosaic.version = 11 : i64} {
  func.func @_gnn_heads_kernel(%arg0: i32, %arg1: memref<8x3456xf32, #tpu.memory_space<vmem>>, %arg2: memref<8x10xf32, #tpu.memory_space<vmem>>, %arg3: memref<8x8xf32, #tpu.memory_space<vmem>>, %arg4: memref<3456x246xbf16, #tpu.memory_space<vmem>>, %arg5: memref<1x246xf32, #tpu.memory_space<vmem>>, %arg6: memref<246x256xf32, #tpu.memory_space<vmem>>, %arg7: memref<10x256xf32, #tpu.memory_space<vmem>>, %arg8: memref<1x256xf32, #tpu.memory_space<vmem>>, %arg9: memref<256x256xf32, #tpu.memory_space<vmem>>, %arg10: memref<1x256xf32, #tpu.memory_space<vmem>>, %arg11: memref<256x128xf32, #tpu.memory_space<vmem>>, %arg12: memref<246x128xf32, #tpu.memory_space<vmem>>, %arg13: memref<10x128xf32, #tpu.memory_space<vmem>>, %arg14: memref<1x128xf32, #tpu.memory_space<vmem>>, %arg15: memref<128x8xf32, #tpu.memory_space<vmem>>, %arg16: memref<1x8xf32, #tpu.memory_space<vmem>>, %arg17: memref<8x8xf32, #tpu.memory_space<vmem>>) attributes {dimension_semantics = [#tpu.dimension_semantics<arbitrary>], iteration_bounds = array<i64: 1>, scalar_prefetch = 0 : i64, scratch_operands = 0 : i64, tpu.core_type = #tpu.core_type<tc>, window_params = [{pipeline_mode = #tpu.pipeline_mode<synchronous>, transform_indices = @transform_0, window_bounds = array<i64: 8, 3456>}, {pipeline_mode = #tpu.pipeline_mode<synchronous>, transform_indices = @transform_1, window_bounds = array<i64: 8, 10>}, {pipeline_mode = #tpu.pipeline_mode<synchronous>, transform_indices = @transform_2, window_bounds = array<i64: 8, 8>}, {pipeline_mode = #tpu.pipeline_mode<synchronous>, transform_indices = @transform_3, window_bounds = array<i64: 3456, 246>}, {pipeline_mode = #tpu.pipeline_mode<synchronous>, transform_indices = @transform_4, window_bounds = array<i64: 1, 246>}, {pipeline_mode = #tpu.pipeline_mode<synchronous>, transform_indices = @transform_5, window_bounds = array<i64: 246, 256>}, {pipeline_mode = #tpu.pipeline_mode<synchronous>, transform_indices = @transform_6, window_bounds = array<i64: 10, 256>}, {pipeline_mode = #tpu.pipeline_mode<synchronous>, transform_indices = @transform_7, window_bounds = array<i64: 1, 256>}, {pipeline_mode = #tpu.pipeline_mode<synchronous>, transform_indices = @transform_8, window_bounds = array<i64: 256, 256>}, {pipeline_mode = #tpu.pipeline_mode<synchronous>, transform_indices = @transform_9, window_bounds = array<i64: 1, 256>}, {pipeline_mode = #tpu.pipeline_mode<synchronous>, transform_indices = @transform_10, window_bounds = array<i64: 256, 128>}, {pipeline_mode = #tpu.pipeline_mode<synchronous>, transform_indices = @transform_11, window_bounds = array<i64: 246, 128>}, {pipeline_mode = #tpu.pipeline_mode<synchronous>, transform_indices = @transform_12, window_bounds = array<i64: 10, 128>}, {pipeline_mode = #tpu.pipeline_mode<synchronous>, transform_indices = @transform_13, window_bounds = array<i64: 1, 128>}, {pipeline_mode = #tpu.pipeline_mode<synchronous>, transform_indices = @transform_14, window_bounds = array<i64: 128, 8>}, {pipeline_mode = #tpu.pipeline_mode<synchronous>, transform_indices = @transform_15, window_bounds = array<i64: 1, 8>}, {pipeline_mode = #tpu.pipeline_mode<synchronous>, transform_indices = @transform_16, window_bounds = array<i64: 8, 8>}]} {
    %c0 = arith.constant 0 : index
    %c0_0 = arith.constant 0 : index
    %0 = vector.load %arg1[%c0, %c0_0] : memref<8x3456xf32, #tpu.memory_space<vmem>>, vector<8x3456xf32>
    %1 = arith.truncf %0 : vector<8x3456xf32> to vector<8x3456xbf16>
    %c0_1 = arith.constant 0 : index
    %c0_2 = arith.constant 0 : index
    %2 = vector.load %arg4[%c0_1, %c0_2] : memref<3456x246xbf16, #tpu.memory_space<vmem>>, vector<3456x246xbf16>
    %cst = arith.constant dense<0.000000e+00> : vector<8x246xf32>
    %3 = tpu.matmul %1, %2, %cst {dimension_numbers = #tpu.dot_dimension_numbers<[1], [0], [0], [1], [0, 0, 1, 1], [], []>} : vector<8x3456xbf16>, vector<3456x246xbf16>, vector<8x246xf32> -> vector<8x246xf32>
    %c0_3 = arith.constant 0 : index
    %c0_4 = arith.constant 0 : index
    %4 = vector.load %arg5[%c0_3, %c0_4] : memref<1x246xf32, #tpu.memory_space<vmem>>, vector<1x246xf32>
    %5 = vector.broadcast %4 : vector<1x246xf32> to vector<8x246xf32>
    %6 = arith.addf %3, %5 : vector<8x246xf32>
    %c0_5 = arith.constant 0 : index
    %c0_6 = arith.constant 0 : index
    %7 = vector.load %arg2[%c0_5, %c0_6] : memref<8x10xf32, #tpu.memory_space<vmem>>, vector<8x10xf32>
    %c0_7 = arith.constant 0 : index
    %c0_8 = arith.constant 0 : index
    %8 = vector.load %arg3[%c0_7, %c0_8] : memref<8x8xf32, #tpu.memory_space<vmem>>, vector<8x8xf32>
    %cst_9 = arith.constant dense<0.000000e+00> : vector<8x246xf32>
    %9 = tpu.matmul %8, %6, %cst_9 {dimension_numbers = #tpu.dot_dimension_numbers<[1], [0], [0], [1], [0, 0, 1, 1], [], []>} : vector<8x8xf32>, vector<8x246xf32>, vector<8x246xf32> -> vector<8x246xf32>
    %cst_10 = arith.constant dense<0.000000e+00> : vector<8x10xf32>
    %10 = tpu.matmul %8, %7, %cst_10 {dimension_numbers = #tpu.dot_dimension_numbers<[1], [0], [0], [1], [0, 0, 1, 1], [], []>} : vector<8x8xf32>, vector<8x10xf32>, vector<8x10xf32> -> vector<8x10xf32>
    %c0_11 = arith.constant 0 : index
    %c0_12 = arith.constant 0 : index
    %11 = vector.load %arg6[%c0_11, %c0_12] : memref<246x256xf32, #tpu.memory_space<vmem>>, vector<246x256xf32>
    %cst_13 = arith.constant dense<0.000000e+00> : vector<8x256xf32>
    %12 = tpu.matmul %9, %11, %cst_13 {dimension_numbers = #tpu.dot_dimension_numbers<[1], [0], [0], [1], [0, 0, 1, 1], [], []>} : vector<8x246xf32>, vector<246x256xf32>, vector<8x256xf32> -> vector<8x256xf32>
    %c0_14 = arith.constant 0 : index
    %c0_15 = arith.constant 0 : index
    %13 = vector.load %arg7[%c0_14, %c0_15] : memref<10x256xf32, #tpu.memory_space<vmem>>, vector<10x256xf32>
    %cst_16 = arith.constant dense<0.000000e+00> : vector<8x256xf32>
    %14 = tpu.matmul %10, %13, %cst_16 {dimension_numbers = #tpu.dot_dimension_numbers<[1], [0], [0], [1], [0, 0, 1, 1], [], []>} : vector<8x10xf32>, vector<10x256xf32>, vector<8x256xf32> -> vector<8x256xf32>
    %15 = arith.addf %12, %14 : vector<8x256xf32>
    %c0_17 = arith.constant 0 : index
    %c0_18 = arith.constant 0 : index
    %16 = vector.load %arg8[%c0_17, %c0_18] : memref<1x256xf32, #tpu.memory_space<vmem>>, vector<1x256xf32>
    %17 = vector.broadcast %16 : vector<1x256xf32> to vector<8x256xf32>
    %18 = arith.addf %15, %17 : vector<8x256xf32>
    %cst_19 = arith.constant 0.000000e+00 : f32
    %19 = vector.broadcast %cst_19 : f32 to vector<8x256xf32>
    %20 = arith.maximumf %18, %19 : vector<8x256xf32>
    %cst_20 = arith.constant dense<0.000000e+00> : vector<8x256xf32>
    %21 = tpu.matmul %8, %20, %cst_20 {dimension_numbers = #tpu.dot_dimension_numbers<[1], [0], [0], [1], [0, 0, 1, 1], [], []>} : vector<8x8xf32>, vector<8x256xf32>, vector<8x256xf32> -> vector<8x256xf32>
    %c0_21 = arith.constant 0 : index
    %c0_22 = arith.constant 0 : index
    %22 = vector.load %arg9[%c0_21, %c0_22] : memref<256x256xf32, #tpu.memory_space<vmem>>, vector<256x256xf32>
    %cst_23 = arith.constant dense<0.000000e+00> : vector<8x256xf32>
    %23 = tpu.matmul %21, %22, %cst_23 {dimension_numbers = #tpu.dot_dimension_numbers<[1], [0], [0], [1], [0, 0, 1, 1], [], []>} : vector<8x256xf32>, vector<256x256xf32>, vector<8x256xf32> -> vector<8x256xf32>
    %c0_24 = arith.constant 0 : index
    %c0_25 = arith.constant 0 : index
    %24 = vector.load %arg10[%c0_24, %c0_25] : memref<1x256xf32, #tpu.memory_space<vmem>>, vector<1x256xf32>
    %25 = vector.broadcast %24 : vector<1x256xf32> to vector<8x256xf32>
    %26 = arith.addf %23, %25 : vector<8x256xf32>
    %cst_26 = arith.constant 0.000000e+00 : f32
    %27 = vector.broadcast %cst_26 : f32 to vector<8x256xf32>
    %28 = arith.maximumf %26, %27 : vector<8x256xf32>
    %c0_27 = arith.constant 0 : index
    %c0_28 = arith.constant 0 : index
    %29 = vector.load %arg11[%c0_27, %c0_28] : memref<256x128xf32, #tpu.memory_space<vmem>>, vector<256x128xf32>
    %cst_29 = arith.constant dense<0.000000e+00> : vector<8x128xf32>
    %30 = tpu.matmul %28, %29, %cst_29 {dimension_numbers = #tpu.dot_dimension_numbers<[1], [0], [0], [1], [0, 0, 1, 1], [], []>} : vector<8x256xf32>, vector<256x128xf32>, vector<8x128xf32> -> vector<8x128xf32>
    %c0_30 = arith.constant 0 : index
    %c0_31 = arith.constant 0 : index
    %31 = vector.load %arg12[%c0_30, %c0_31] : memref<246x128xf32, #tpu.memory_space<vmem>>, vector<246x128xf32>
    %cst_32 = arith.constant dense<0.000000e+00> : vector<8x128xf32>
    %32 = tpu.matmul %6, %31, %cst_32 {dimension_numbers = #tpu.dot_dimension_numbers<[1], [0], [0], [1], [0, 0, 1, 1], [], []>} : vector<8x246xf32>, vector<246x128xf32>, vector<8x128xf32> -> vector<8x128xf32>
    %33 = arith.addf %30, %32 : vector<8x128xf32>
    %c0_33 = arith.constant 0 : index
    %c0_34 = arith.constant 0 : index
    %34 = vector.load %arg13[%c0_33, %c0_34] : memref<10x128xf32, #tpu.memory_space<vmem>>, vector<10x128xf32>
    %cst_35 = arith.constant dense<0.000000e+00> : vector<8x128xf32>
    %35 = tpu.matmul %7, %34, %cst_35 {dimension_numbers = #tpu.dot_dimension_numbers<[1], [0], [0], [1], [0, 0, 1, 1], [], []>} : vector<8x10xf32>, vector<10x128xf32>, vector<8x128xf32> -> vector<8x128xf32>
    %36 = arith.addf %33, %35 : vector<8x128xf32>
    %c0_36 = arith.constant 0 : index
    %c0_37 = arith.constant 0 : index
    %37 = vector.load %arg14[%c0_36, %c0_37] : memref<1x128xf32, #tpu.memory_space<vmem>>, vector<1x128xf32>
    %38 = vector.broadcast %37 : vector<1x128xf32> to vector<8x128xf32>
    %39 = arith.addf %36, %38 : vector<8x128xf32>
    %cst_38 = arith.constant 0.000000e+00 : f32
    %40 = vector.broadcast %cst_38 : f32 to vector<8x128xf32>
    %41 = arith.maximumf %39, %40 : vector<8x128xf32>
    %c0_39 = arith.constant 0 : index
    %c0_40 = arith.constant 0 : index
    %42 = vector.load %arg15[%c0_39, %c0_40] : memref<128x8xf32, #tpu.memory_space<vmem>>, vector<128x8xf32>
    %cst_41 = arith.constant dense<0.000000e+00> : vector<8x8xf32>
    %43 = tpu.matmul %41, %42, %cst_41 {dimension_numbers = #tpu.dot_dimension_numbers<[1], [0], [0], [1], [0, 0, 1, 1], [], []>} : vector<8x128xf32>, vector<128x8xf32>, vector<8x8xf32> -> vector<8x8xf32>
    %c0_42 = arith.constant 0 : index
    %c0_43 = arith.constant 0 : index
    %44 = vector.load %arg16[%c0_42, %c0_43] : memref<1x8xf32, #tpu.memory_space<vmem>>, vector<1x8xf32>
    %45 = vector.broadcast %44 : vector<1x8xf32> to vector<8x8xf32>
    %46 = arith.addf %43, %45 : vector<8x8xf32>
    %c0_44 = arith.constant 0 : index
    %c0_45 = arith.constant 0 : index
    %47 = vector.load %arg17[%c0_44, %c0_45] : memref<8x8xf32, #tpu.memory_space<vmem>>, vector<8x8xf32>
    tpu.vector_store %arg17[%c0_44, %c0_45], %46 {strides = array<i32>} : memref<8x8xf32, #tpu.memory_space<vmem>>, vector<8x8xf32>,
    return
  }
  func.func @transform_0(%arg0: i32) -> (i32, i32) {
    %c0_i32 = arith.constant 0 : i32
    %c0_i32_0 = arith.constant 0 : i32
    %c0_i32_1 = arith.constant 0 : i32
    return %c0_i32, %c0_i32_0 : i32, i32
  }
  func.func @transform_1(%arg0: i32) -> (i32, i32) {
    %c0_i32 = arith.constant 0 : i32
    %c0_i32_0 = arith.constant 0 : i32
    %c0_i32_1 = arith.constant 0 : i32
    return %c0_i32, %c0_i32_0 : i32, i32
  }
  func.func @transform_2(%arg0: i32) -> (i32, i32) {
    %c0_i32 = arith.constant 0 : i32
    %c0_i32_0 = arith.constant 0 : i32
    %c0_i32_1 = arith.constant 0 : i32
    return %c0_i32, %c0_i32_0 : i32, i32
  }
  func.func @transform_3(%arg0: i32) -> (i32, i32) {
    %c0_i32 = arith.constant 0 : i32
    %c0_i32_0 = arith.constant 0 : i32
    %c0_i32_1 = arith.constant 0 : i32
    return %c0_i32, %c0_i32_0 : i32, i32
  }
  func.func @transform_4(%arg0: i32) -> (i32, i32) {
    %c0_i32 = arith.constant 0 : i32
    %c0_i32_0 = arith.constant 0 : i32
    %c0_i32_1 = arith.constant 0 : i32
    return %c0_i32, %c0_i32_0 : i32, i32
  }
  func.func @transform_5(%arg0: i32) -> (i32, i32) {
    %c0_i32 = arith.constant 0 : i32
    %c0_i32_0 = arith.constant 0 : i32
    %c0_i32_1 = arith.constant 0 : i32
    return %c0_i32, %c0_i32_0 : i32, i32
  }
  func.func @transform_6(%arg0: i32) -> (i32, i32) {
    %c0_i32 = arith.constant 0 : i32
    %c0_i32_0 = arith.constant 0 : i32
    %c0_i32_1 = arith.constant 0 : i32
    return %c0_i32, %c0_i32_0 : i32, i32
  }
  func.func @transform_7(%arg0: i32) -> (i32, i32) {
    %c0_i32 = arith.constant 0 : i32
    %c0_i32_0 = arith.constant 0 : i32
    %c0_i32_1 = arith.constant 0 : i32
    return %c0_i32, %c0_i32_0 : i32, i32
  }
  func.func @transform_8(%arg0: i32) -> (i32, i32) {
    %c0_i32 = arith.constant 0 : i32
    %c0_i32_0 = arith.constant 0 : i32
    %c0_i32_1 = arith.constant 0 : i32
    return %c0_i32, %c0_i32_0 : i32, i32
  }
  func.func @transform_9(%arg0: i32) -> (i32, i32) {
    %c0_i32 = arith.constant 0 : i32
    %c0_i32_0 = arith.constant 0 : i32
    %c0_i32_1 = arith.constant 0 : i32
    return %c0_i32, %c0_i32_0 : i32, i32
  }
  func.func @transform_10(%arg0: i32) -> (i32, i32) {
    %c0_i32 = arith.constant 0 : i32
    %c0_i32_0 = arith.constant 0 : i32
    %c0_i32_1 = arith.constant 0 : i32
    return %c0_i32, %c0_i32_0 : i32, i32
  }
  func.func @transform_11(%arg0: i32) -> (i32, i32) {
    %c0_i32 = arith.constant 0 : i32
    %c0_i32_0 = arith.constant 0 : i32
    %c0_i32_1 = arith.constant 0 : i32
    return %c0_i32, %c0_i32_0 : i32, i32
  }
  func.func @transform_12(%arg0: i32) -> (i32, i32) {
    %c0_i32 = arith.constant 0 : i32
    %c0_i32_0 = arith.constant 0 : i32
    %c0_i32_1 = arith.constant 0 : i32
    return %c0_i32, %c0_i32_0 : i32, i32
  }
  func.func @transform_13(%arg0: i32) -> (i32, i32) {
    %c0_i32 = arith.constant 0 : i32
    %c0_i32_0 = arith.constant 0 : i32
    %c0_i32_1 = arith.constant 0 : i32
    return %c0_i32, %c0_i32_0 : i32, i32
  }
  func.func @transform_14(%arg0: i32) -> (i32, i32) {
    %c0_i32 = arith.constant 0 : i32
    %c0_i32_0 = arith.constant 0 : i32
    %c0_i32_1 = arith.constant 0 : i32
    return %c0_i32, %c0_i32_0 : i32, i32
  }
  func.func @transform_15(%arg0: i32) -> (i32, i32) {
    %c0_i32 = arith.constant 0 : i32
    %c0_i32_0 = arith.constant 0 : i32
    %c0_i32_1 = arith.constant 0 : i32
    return %c0_i32, %c0_i32_0 : i32, i32
  }
  func.func @transform_16(%arg0: i32) -> (i32, i32) {
    %c0_i32 = arith.constant 0 : i32
    %c0_i32_0 = arith.constant 0 : i32
    %c0_i32_1 = arith.constant 0 : i32
    return %c0_i32, %c0_i32_0 : i32, i32
  }
}

</mosaic_0001>

<llo_original>
// kernel: my_cnn_and_gnn2_forward.3
$region0: #{my_cnn_and_gnn2_forward.3}
  #allocation0 [shape = 'u32[]', space=smem, size = 0x4, offset = 0x4, fixed_abs, tag = 'smem constant byte address 0x4 - core index']
  #allocation1 [shape = 'u32[144,128]{1,0:T(1,128)}', space=vmem, size = 0x12000, scoped, tag = 'internal scratch']
  %s0 = inlined_call_operand.vmem [shape: f32[8064,18], index: 0, kind: input, shape index: {}]
  %s1 = inlined_call_operand.vmem [shape: f32[18,32], index: 1, kind: input, shape index: {}]
  %s2 = inlined_call_operand.vmem [shape: f32[1,32], index: 2, kind: input, shape index: {}]
  %s3 = inlined_call_operand.vmem [shape: f32[2016,32], index: 3, kind: output, shape index: {}]
  %s4 = sld [smem:[#allocation0]]
  $region45: #{my_cnn_and_gnn2_forward.3} parent=0
    _
  %s6 = ssub.s32 1, %s4
  %s7 = scalar_select 0, %s6, %s4
  loop: start=0, step=1, limit=4
  $region2: #{my_cnn_and_gnn2_forward.3} parent=0 // loop_pre_header
    _
  $region3: #{my_cnn_and_gnn2_forward.3} parent=0 // loop_header
    %s9 = sphi 0, %s13
    %p10 = scmp.ge.s32.totalorder %s9, 4
    %s19 = sphi 0, %s21
    %s22 = sphi 0, %s19
    %s23 = sphi 0, %s22
    %s39 = sphi 0, %s23
    %s43 = sphi 0, %s43
    %s45 = sphi 0, %s43
    %s46 = sphi 0, %s45
    %s60 = sphi 0, %s46
    %s64 = sphi 0, %s64
    %s66 = sphi 0, %s64
    %s67 = sphi 0, %s66
    %s81 = sphi 0, %s67
    %s87 = sphi 0, %s89
    %s90 = sphi 0, %s87
    %s91 = sphi 0, %s90
    %s107 = sphi 0, %s91
  $region4: #{my_cnn_and_gnn2_forward.3} parent=0 // loop_header_branch
    %12 = sbr.rel (%p10) target = $region8
  $region5: #{my_cnn_and_gnn2_forward.3} parent=0 // loop_body
    %s14 = ssub.s32 %s9, 1
    %s15 = ssub.s32 %s9, 2
    %s16 = sadd.s32 %s9, 1
    %s17 = ssub.s32 %s9, %s16
    %p18 = scmp.eq.s32.totalorder %s17, 0
    %s20 = sadd.s32 %s19, 1
    %s21 = scalar_select %p18, %s19, %s20
    %p24 = pneg %p18
    %p25 = scmp.eq.s32.totalorder %s9, 1
    %p26 = por %p24, %p25
    %p27 = scmp.ne.s32.totalorder %s19, %s22
    %p28 = scmp.eq.s32.totalorder %s9, 0
    %p29 = por %p27, %p28
    %p30 = scmp.ne.s32.totalorder %s19, %s22
    %p31 = scmp.eq.s32.totalorder %s14, 1
    %p32 = por %p30, %p31
    %p33 = scmp.ne.s32.totalorder %s22, %s23
    %p34 = scmp.eq.s32.totalorder %s14, 0
    %p35 = por %p33, %p34
    %p36 = scmp.ne.s32.totalorder %s22, %s23
    %p37 = scmp.eq.s32.totalorder %s15, 1
    %p38 = por %p36, %p37
    %p40 = scmp.ne.s32.totalorder %s23, %s39
    %p41 = scmp.eq.s32.totalorder %s15, 0
    %p42 = por %p40, %p41
    %s44 = sadd.s32 %s43, 1
    %p47 = scmp.eq.s32.totalorder %s9, 1
    %p48 = scmp.ne.s32.totalorder %s43, %s45
    %p49 = scmp.eq.s32.totalorder %s9, 0
    %p50 = por %p48, %p49
    %p51 = scmp.ne.s32.totalorder %s43, %s45
    %p52 = scmp.eq.s32.totalorder %s14, 1
    %p53 = por %p51, %p52
    %p54 = scmp.ne.s32.totalorder %s45, %s46
    %p55 = scmp.eq.s32.totalorder %s14, 0
    %p56 = por %p54, %p55
    %p57 = scmp.ne.s32.totalorder %s45, %s46
    %p58 = scmp.eq.s32.totalorder %s15, 1
    %p59 = por %p57, %p58
    %p61 = scmp.ne.s32.totalorder %s46, %s60
    %p62 = scmp.eq.s32.totalorder %s15, 0
    %p63 = por %p61, %p62
    %s65 = sadd.s32 %s64, 1
    %p68 = scmp.eq.s32.totalorder %s9, 1
    %p69 = scmp.ne.s32.totalorder %s64, %s66
    %p70 = scmp.eq.s32.totalorder %s9, 0
    %p71 = por %p69, %p70
    %p72 = scmp.ne.s32.totalorder %s64, %s66
    %p73 = scmp.eq.s32.totalorder %s14, 1
    %p74 = por %p72, %p73
    %p75 = scmp.ne.s32.totalorder %s66, %s67
    %p76 = scmp.eq.s32.totalorder %s14, 0
    %p77 = por %p75, %p76
    %p78 = scmp.ne.s32.totalorder %s66, %s67
    %p79 = scmp.eq.s32.totalorder %s15, 1
    %p80 = por %p78, %p79
    %p82 = scmp.ne.s32.totalorder %s67, %s81
    %p83 = scmp.eq.s32.totalorder %s15, 0
    %p84 = por %p82, %p83
    %s85 = ssub.s32 %s9, %s16
    %p86 = scmp.eq.s32.totalorder %s85, 0
    %s88 = sadd.s32 %s87, 1
    %s89 = scalar_select %p86, %s87, %s88
    %p92 = pneg %p86
    %p93 = scmp.eq.s32.totalorder %s9, 1
    %p94 = por %p92, %p93
    %p95 = scmp.ne.s32.totalorder %s87, %s90
    %p96 = scmp.eq.s32.totalorder %s9, 0
    %p97 = por %p95, %p96
    %p98 = scmp.ne.s32.totalorder %s87, %s90
    %p99 = scmp.eq.s32.totalorder %s14, 1
    %p100 = por %p98, %p99
    %p101 = scmp.ne.s32.totalorder %s90, %s91
    %p102 = scmp.eq.s32.totalorder %s14, 0
    %p103 = por %p101, %p102
    %p104 = scmp.ne.s32.totalorder %s90, %s91
    %p105 = scmp.eq.s32.totalorder %s15, 1
    %p106 = por %p104, %p105
    %p108 = scmp.ne.s32.totalorder %s91, %s107
    %p109 = scmp.eq.s32.totalorder %s15, 0
    %p110 = por %p108, %p109
    %p111 = scmp.le.s32.totalorder 1, %s9
    %p112 = scmp.lt.s32.totalorder %s9, 3
    %p113 = pnand %p111, %p112
    %p114 = pneg %p113
    // Predicated region
    $region9: #{my_cnn_and_gnn2_forward.3} parent=5 // pred_check
      _
    $region10: #{my_cnn_and_gnn2_forward.3} parent=5 // pred_check_branch
      %116 = sbr.rel (%p113) target = $region12
    $region11: #{my_cnn_and_gnn2_forward.3} parent=5 // pred_region
      %s117 = ssub.s32 %s9, 1
      // Predicated region
      $region13: #{my_cnn_and_gnn2_forward.3} parent=11 // pred_check
        %p118 = pneg %p56
      $region14: #{my_cnn_and_gnn2_forward.3} parent=11 // pred_check_branch
        %120 = sbr.rel (%p118) target = $region16
      $region15: #{my_cnn_and_gnn2_forward.3} parent=11 // pred_region
        _
      $region16: #{my_cnn_and_gnn2_forward.3} parent=11 // pred_fallthru
        _
      // Predicated region
      $region17: #{my_cnn_and_gnn2_forward.3} parent=11 // pred_check
        %p121 = pneg %p77
      $region18: #{my_cnn_and_gnn2_forward.3} parent=11 // pred_check_branch
        %123 = sbr.rel (%p121) target = $region20
      $region19: #{my_cnn_and_gnn2_forward.3} parent=11 // pred_region
        _
      $region20: #{my_cnn_and_gnn2_forward.3} parent=11 // pred_fallthru
        _
    $region12: #{my_cnn_and_gnn2_forward.3} parent=5 // pred_fallthru
      _
    %p124 = scmp.lt.s32.totalorder %s9, 2
    // Predicated region
    $region21: #{my_cnn_and_gnn2_forward.3} parent=5 // pred_check
      %p125 = pneg %p124
    $region22: #{my_cnn_and_gnn2_forward.3} parent=5 // pred_check_branch
      %127 = sbr.rel (%p125) target = $region24
    $region23: #{my_cnn_and_gnn2_forward.3} parent=5 // pred_region
      // Predicated region
      $region25: #{my_cnn_and_gnn2_forward.3} parent=23 // pred_check
        %p128 = pneg %p29
      $region26: #{my_cnn_and_gnn2_forward.3} parent=23 // pred_check_branch
        %130 = sbr.rel (%p128) target = $region28
      $region27: #{my_cnn_and_gnn2_forward.3} parent=23 // pred_region
        %s131 = smul.u32 504, %s9
        %p132 = scmp.lt.s32.totalorder %s131, 1007
        %s133 = scalar_select %p132, %s131, 1007
        %s134 = smul.addr %s133, 8
        %s135 = scalar_lea.vmem %s0, %s134
        %s136 = smul.u32 504, %s9
      $region28: #{my_cnn_and_gnn2_forward.3} parent=23 // pred_fallthru
        _
    $region24: #{my_cnn_and_gnn2_forward.3} parent=5 // pred_fallthru
      _
    %p137 = scmp.le.s32.totalorder 1, %s9
    %p138 = scmp.lt.s32.totalorder %s9, 3
    %p139 = pnand %p137, %p138
    %p140 = pneg %p139
    // Predicated region
    $region29: #{my_cnn_and_gnn2_forward.3} parent=5 // pred_check
      _
    $region30: #{my_cnn_and_gnn2_forward.3} parent=5 // pred_check_branch
      %142 = sbr.rel (%p139) target = $region32
    $region31: #{my_cnn_and_gnn2_forward.3} parent=5 // pred_region
      %s143 = ssub.s32 %s9, 1
      %s144 = smul.u32 504, %s14
      %p145 = scmp.lt.s32.totalorder %s144, 1007
      %s146 = scalar_select %p145, %s144, 1007
      %s147 = smul.addr %s146, 8
      %s148 = scalar_lea.vmem %s0, %s147
      %p149 = pneg %p35
      %p150 = pneg %p32
      %p151 = pneg %p56
      %p152 = pneg %p53
      %p153 = pneg %p77
      %p154 = pneg %p74
      %p155 = pneg %p103
      %p156 = pneg %p100
      %s157 = smul.u32 126, %s14
      %p158 = scmp.lt.s32.totalorder %s157, 251
      %s159 = scalar_select %p158, %s157, 251
      %s160 = smul.addr %s159, 8
      %s161 = scalar_lea.vmem %s3, %s160
      %s162 = smul.u32 504, %s14
      %p163 = scmp.lt.s32.totalorder %s162, 1007
      %s164 = scalar_select %p163, %s162, 1007
      %s165 = smul.addr %s164, 8
      %s166 = scalar_lea.vmem %s0, %s165
      %s167 = smul.u32 504, %s14
      %s168 = smul.u32 126, %s14
      %p169 = scmp.lt.s32.totalorder %s168, 251
      %s170 = scalar_select %p169, %s168, 251
      %s171 = smul.addr %s170, 8
      %s172 = scalar_lea.vmem %s3, %s171
      %s173 = smul.u32 126, %s14
      %v174 = vld [vmem:[%s166] sm:$0xff]
      %v175 = vld [vmem:[%s166 + $0x8] sm:$0xff]
      %v176 = vld [vmem:[%s166 + $0x10] sm:$0xff]
      %v177 = vld [vmem:[%s166 + $0x18] sm:$0xff]
      %v178 = vld [vmem:[%s166 + $0x20] sm:$0xff]
      %v179 = vld [vmem:[%s166 + $0x28] sm:$0xff]
      %v180 = vld [vmem:[%s166 + $0x30] sm:$0xff]
      %v181 = vld [vmem:[%s166 + $0x38] sm:$0xff]
      %v182 = vld [vmem:[%s166 + $0x40] sm:$0xff]
      %v183 = vld [vmem:[%s166 + $0x48] sm:$0xff]
      %v184 = vld [vmem:[%s166 + $0x50] sm:$0xff]
      %v185 = vld [vmem:[%s166 + $0x58] sm:$0xff]
      %v186 = vld [vmem:[%s166 + $0x60] sm:$0xff]
      %v187 = vld [vmem:[%s166 + $0x68] sm:$0xff]
      %v188 = vld [vmem:[%s166 + $0x70] sm:$0xff]
      %v189 = vld [vmem:[%s166 + $0x78] sm:$0xff]
      %v190 = vld [vmem:[%s166 + $0x80] sm:$0xff]
      %v191 = vld [vmem:[%s166 + $0x88] sm:$0xff]
      %v192 = vld [vmem:[%s166 + $0x90] sm:$0xff]
      %v193 = vld [vmem:[%s166 + $0x98] sm:$0xff]
      %v194 = vld [vmem:[%s166 + $0xa0] sm:$0xff]
      %v195 = vld [vmem:[%s166 + $0xa8] sm:$0xff]
      %v196 = vld [vmem:[%s166 + $0xb0] sm:$0xff]
      %v197 = vld [vmem:[%s166 + $0xb8] sm:$0xff]
      %v198 = vld [vmem:[%s166 + $0xc0] sm:$0xff]
      %v199 = vld [vmem:[%s166 + $0xc8] sm:$0xff]
      %v200 = vld [vmem:[%s166 + $0xd0] sm:$0xff]
      %v201 = vld [vmem:[%s166 + $0xd8] sm:$0xff]
      %v202 = vld [vmem:[%s166 + $0xe0] sm:$0xff]
      %v203 = vld [vmem:[%s166 + $0xe8] sm:$0xff]
      %v204 = vld [vmem:[%s166 + $0xf0] sm:$0xff]
      %v205 = vld [vmem:[%s166 + $0xf8] sm:$0xff]
      %v206 = vld [vmem:[%s166 + $0x100] sm:$0xff]
      %v207 = vld [vmem:[%s166 + $0x108] sm:$0xff]
      %v208 = vld [vmem:[%s166 + $0x110] sm:$0xff]
      %v209 = vld [vmem:[%s166 + $0x118] sm:$0xff]
      %v210 = vld [vmem:[%s166 + $0x120] sm:$0xff]
      %v211 = vld [vmem:[%s166 + $0x128] sm:$0xff]
      %v212 = vld [vmem:[%s166 + $0x130] sm:$0xff]
      %v213 = vld [vmem:[%s166 + $0x138] sm:$0xff]
      %v214 = vld [vmem:[%s166 + $0x140] sm:$0xff]
      %v215 = vld [vmem:[%s166 + $0x148] sm:$0xff]
      %v216 = vld [vmem:[%s166 + $0x150] sm:$0xff]
      %v217 = vld [vmem:[%s166 + $0x158] sm:$0xff]
      %v218 = vld [vmem:[%s166 + $0x160] sm:$0xff]
      %v219 = vld [vmem:[%s166 + $0x168] sm:$0xff]
      %v220 = vld [vmem:[%s166 + $0x170] sm:$0xff]
      %v221 = vld [vmem:[%s166 + $0x178] sm:$0xff]
      %v222 = vld [vmem:[%s166 + $0x180] sm:$0xff]
      %v223 = vld [vmem:[%s166 + $0x188] sm:$0xff]
      %v224 = vld [vmem:[%s166 + $0x190] sm:$0xff]
      %v225 = vld [vmem:[%s166 + $0x198] sm:$0xff]
      %v226 = vld [vmem:[%s166 + $0x1a0] sm:$0xff]
      %v227 = vld [vmem:[%s166 + $0x1a8] sm:$0xff]
      %v228 = vld [vmem:[%s166 + $0x1b0] sm:$0xff]
      %v229 = vld [vmem:[%s166 + $0x1b8] sm:$0xff]
      %v230 = vld [vmem:[%s166 + $0x1c0] sm:$0xff]
      %v231 = vld [vmem:[%s166 + $0x1c8] sm:$0xff]
      %v232 = vld [vmem:[%s166 + $0x1d0] sm:$0xff]
      %v233 = vld [vmem:[%s166 + $0x1d8] sm:$0xff]
      %v234 = vld [vmem:[%s166 + $0x1e0] sm:$0xff]
      %v235 = vld [vmem:[%s166 + $0x1e8] sm:$0xff]
      %v236 = vld [vmem:[%s166 + $0x1f0] sm:$0xff]
      %v237 = vld [vmem:[%s166 + $0x1f8] sm:$0xff]
      %v238 = vld [vmem:[%s166 + $0x200] sm:$0xff]
      %v239 = vld [vmem:[%s166 + $0x208] sm:$0xff]
      %v240 = vld [vmem:[%s166 + $0x210] sm:$0xff]
      %v241 = vld [vmem:[%s166 + $0x218] sm:$0xff]
      %v242 = vld [vmem:[%s166 + $0x220] sm:$0xff]
      %v243 = vld [vmem:[%s166 + $0x228] sm:$0xff]
      %v244 = vld [vmem:[%s166 + $0x230] sm:$0xff]
      %v245 = vld [vmem:[%s166 + $0x238] sm:$0xff]
      %v246 = vld [vmem:[%s166 + $0x240] sm:$0xff]
      %v247 = vld [vmem:[%s166 + $0x248] sm:$0xff]
      %v248 = vld [vmem:[%s166 + $0x250] sm:$0xff]
      %v249 = vld [vmem:[%s166 + $0x258] sm:$0xff]
      %v250 = vld [vmem:[%s166 + $0x260] sm:$0xff]
      %v251 = vld [vmem:[%s166 + $0x268] sm:$0xff]
      %v252 = vld [vmem:[%s166 + $0x270] sm:$0xff]
      %v253 = vld [vmem:[%s166 + $0x278] sm:$0xff]
      %v254 = vld [vmem:[%s166 + $0x280] sm:$0xff]
      %v255 = vld [vmem:[%s166 + $0x288] sm:$0xff]
      %v256 = vld [vmem:[%s166 + $0x290] sm:$0xff]
      %v257 = vld [vmem:[%s166 + $0x298] sm:$0xff]
      %v258 = vld [vmem:[%s166 + $0x2a0] sm:$0xff]
      %v259 = vld [vmem:[%s166 + $0x2a8] sm:$0xff]
      %v260 = vld [vmem:[%s166 + $0x2b0] sm:$0xff]
      %v261 = vld [vmem:[%s166 + $0x2b8] sm:$0xff]
      %v262 = vld [vmem:[%s166 + $0x2c0] sm:$0xff]
      %v263 = vld [vmem:[%s166 + $0x2c8] sm:$0xff]
      %v264 = vld [vmem:[%s166 + $0x2d0] sm:$0xff]
      %v265 = vld [vmem:[%s166 + $0x2d8] sm:$0xff]
      %v266 = vld [vmem:[%s166 + $0x2e0] sm:$0xff]
      %v267 = vld [vmem:[%s166 + $0x2e8] sm:$0xff]
      %v268 = vld [vmem:[%s166 + $0x2f0] sm:$0xff]
      %v269 = vld [vmem:[%s166 + $0x2f8] sm:$0xff]
      %v270 = vld [vmem:[%s166 + $0x300] sm:$0xff]
      %v271 = vld [vmem:[%s166 + $0x308] sm:$0xff]
      %v272 = vld [vmem:[%s166 + $0x310] sm:$0xff]
      %v273 = vld [vmem:[%s166 + $0x318] sm:$0xff]
      %v274 = vld [vmem:[%s166 + $0x320] sm:$0xff]
      %v275 = vld [vmem:[%s166 + $0x328] sm:$0xff]
      %v276 = vld [vmem:[%s166 + $0x330] sm:$0xff]
      %v277 = vld [vmem:[%s166 + $0x338] sm:$0xff]
      %v278 = vld [vmem:[%s166 + $0x340] sm:$0xff]
      %v279 = vld [vmem:[%s166 + $0x348] sm:$0xff]
      %v280 = vld [vmem:[%s166 + $0x350] sm:$0xff]
      %v281 = vld [vmem:[%s166 + $0x358] sm:$0xff]
      %v282 = vld [vmem:[%s166 + $0x360] sm:$0xff]
      %v283 = vld [vmem:[%s166 + $0x368] sm:$0xff]
      %v284 = vld [vmem:[%s166 + $0x370] sm:$0xff]
      %v285 = vld [vmem:[%s166 + $0x378] sm:$0xff]
      %v286 = vld [vmem:[%s166 + $0x380] sm:$0xff]
      %v287 = vld [vmem:[%s166 + $0x388] sm:$0xff]
      %v288 = vld [vmem:[%s166 + $0x390] sm:$0xff]
      %v289 = vld [vmem:[%s166 + $0x398] sm:$0xff]
      %v290 = vld [vmem:[%s166 + $0x3a0] sm:$0xff]
      %v291 = vld [vmem:[%s166 + $0x3a8] sm:$0xff]
      %v292 = vld [vmem:[%s166 + $0x3b0] sm:$0xff]
      %v293 = vld [vmem:[%s166 + $0x3b8] sm:$0xff]
      %v294 = vld [vmem:[%s166 + $0x3c0] sm:$0xff]
      %v295 = vld [vmem:[%s166 + $0x3c8] sm:$0xff]
      %v296 = vld [vmem:[%s166 + $0x3d0] sm:$0xff]
      %v297 = vld [vmem:[%s166 + $0x3d8] sm:$0xff]
      %v298 = vld [vmem:[%s166 + $0x3e0] sm:$0xff]
      %v299 = vld [vmem:[%s166 + $0x3e8] sm:$0xff]
      %v300 = vld [vmem:[%s166 + $0x3f0] sm:$0xff]
      %v301 = vld [vmem:[%s166 + $0x3f8] sm:$0xff]
      %v302 = vld [vmem:[%s166 + $0x400] sm:$0xff]
      %v303 = vld [vmem:[%s166 + $0x408] sm:$0xff]
      %v304 = vld [vmem:[%s166 + $0x410] sm:$0xff]
      %v305 = vld [vmem:[%s166 + $0x418] sm:$0xff]
      %v306 = vld [vmem:[%s166 + $0x420] sm:$0xff]
      %v307 = vld [vmem:[%s166 + $0x428] sm:$0xff]
      %v308 = vld [vmem:[%s166 + $0x430] sm:$0xff]
      %v309 = vld [vmem:[%s166 + $0x438] sm:$0xff]
      %v310 = vld [vmem:[%s166 + $0x440] sm:$0xff]
      %v311 = vld [vmem:[%s166 + $0x448] sm:$0xff]
      %v312 = vld [vmem:[%s166 + $0x450] sm:$0xff]
      %v313 = vld [vmem:[%s166 + $0x458] sm:$0xff]
      %v314 = vld [vmem:[%s166 + $0x460] sm:$0xff]
      %v315 = vld [vmem:[%s166 + $0x468] sm:$0xff]
      %v316 = vld [vmem:[%s166 + $0x470] sm:$0xff]
      %v317 = vld [vmem:[%s166 + $0x478] sm:$0xff]
      %v318 = vld [vmem:[%s166 + $0x480] sm:$0xff]
      %v319 = vld [vmem:[%s166 + $0x488] sm:$0xff]
      %v320 = vld [vmem:[%s166 + $0x490] sm:$0xff]
      %v321 = vld [vmem:[%s166 + $0x498] sm:$0xff]
      %v322 = vld [vmem:[%s166 + $0x4a0] sm:$0xff]
      %v323 = vld [vmem:[%s166 + $0x4a8] sm:$0xff]
      %v324 = vld [vmem:[%s166 + $0x4b0] sm:$0xff]
      %v325 = vld [vmem:[%s166 + $0x4b8] sm:$0xff]
      %v326 = vld [vmem:[%s166 + $0x4c0] sm:$0xff]
      %v327 = vld [vmem:[%s166 + $0x4c8] sm:$0xff]
      %v328 = vld [vmem:[%s166 + $0x4d0] sm:$0xff]
      %v329 = vld [vmem:[%s166 + $0x4d8] sm:$0xff]
      %v330 = vld [vmem:[%s166 + $0x4e0] sm:$0xff]
      %v331 = vld [vmem:[%s166 + $0x4e8] sm:$0xff]
      %v332 = vld [vmem:[%s166 + $0x4f0] sm:$0xff]
      %v333 = vld [vmem:[%s166 + $0x4f8] sm:$0xff]
      %v334 = vld [vmem:[%s166 + $0x500] sm:$0xff]
      %v335 = vld [vmem:[%s166 + $0x508] sm:$0xff]
      %v336 = vld [vmem:[%s166 + $0x510] sm:$0xff]
      %v337 = vld [vmem:[%s166 + $0x518] sm:$0xff]
      %v338 = vld [vmem:[%s166 + $0x520] sm:$0xff]
      %v339 = vld [vmem:[%s166 + $0x528] sm:$0xff]
      %v340 = vld [vmem:[%s166 + $0x530] sm:$0xff]
      %v341 = vld [vmem:[%s166 + $0x538] sm:$0xff]
      %v342 = vld [vmem:[%s166 + $0x540] sm:$0xff]
      %v343 = vld [vmem:[%s166 + $0x548] sm:$0xff]
      %v344 = vld [vmem:[%s166 + $0x550] sm:$0xff]
      %v345 = vld [vmem:[%s166 + $0x558] sm:$0xff]
      %v346 = vld [vmem:[%s166 + $0x560] sm:$0xff]
      %v347 = vld [vmem:[%s166 + $0x568] sm:$0xff]
      %v348 = vld [vmem:[%s166 + $0x570] sm:$0xff]
      %v349 = vld [vmem:[%s166 + $0x578] sm:$0xff]
      %v350 = vld [vmem:[%s166 + $0x580] sm:$0xff]
      %v351 = vld [vmem:[%s166 + $0x588] sm:$0xff]
      %v352 = vld [vmem:[%s166 + $0x590] sm:$0xff]
      %v353 = vld [vmem:[%s166 + $0x598] sm:$0xff]
      %v354 = vld [vmem:[%s166 + $0x5a0] sm:$0xff]
      %v355 = vld [vmem:[%s166 + $0x5a8] sm:$0xff]
      %v356 = vld [vmem:[%s166 + $0x5b0] sm:$0xff]
      %v357 = vld [vmem:[%s166 + $0x5b8] sm:$0xff]
      %v358 = vld [vmem:[%s166 + $0x5c0] sm:$0xff]
      %v359 = vld [vmem:[%s166 + $0x5c8] sm:$0xff]
      %v360 = vld [vmem:[%s166 + $0x5d0] sm:$0xff]
      %v361 = vld [vmem:[%s166 + $0x5d8] sm:$0xff]
      %v362 = vld [vmem:[%s166 + $0x5e0] sm:$0xff]
      %v363 = vld [vmem:[%s166 + $0x5e8] sm:$0xff]
      %v364 = vld [vmem:[%s166 + $0x5f0] sm:$0xff]
      %v365 = vld [vmem:[%s166 + $0x5f8] sm:$0xff]
      %v366 = vld [vmem:[%s166 + $0x600] sm:$0xff]
      %v367 = vld [vmem:[%s166 + $0x608] sm:$0xff]
      %v368 = vld [vmem:[%s166 + $0x610] sm:$0xff]
      %v369 = vld [vmem:[%s166 + $0x618] sm:$0xff]
      %v370 = vld [vmem:[%s166 + $0x620] sm:$0xff]
      %v371 = vld [vmem:[%s166 + $0x628] sm:$0xff]
      %v372 = vld [vmem:[%s166 + $0x630] sm:$0xff]
      %v373 = vld [vmem:[%s166 + $0x638] sm:$0xff]
      %v374 = vld [vmem:[%s166 + $0x640] sm:$0xff]
      %v375 = vld [vmem:[%s166 + $0x648] sm:$0xff]
      %v376 = vld [vmem:[%s166 + $0x650] sm:$0xff]
      %v377 = vld [vmem:[%s166 + $0x658] sm:$0xff]
      %v378 = vld [vmem:[%s166 + $0x660] sm:$0xff]
      %v379 = vld [vmem:[%s166 + $0x668] sm:$0xff]
      %v380 = vld [vmem:[%s166 + $0x670] sm:$0xff]
      %v381 = vld [vmem:[%s166 + $0x678] sm:$0xff]
      %v382 = vld [vmem:[%s166 + $0x680] sm:$0xff]
      %v383 = vld [vmem:[%s166 + $0x688] sm:$0xff]
      %v384 = vld [vmem:[%s166 + $0x690] sm:$0xff]
      %v385 = vld [vmem:[%s166 + $0x698] sm:$0xff]
      %v386 = vld [vmem:[%s166 + $0x6a0] sm:$0xff]
      %v387 = vld [vmem:[%s166 + $0x6a8] sm:$0xff]
      %v388 = vld [vmem:[%s166 + $0x6b0] sm:$0xff]
      %v389 = vld [vmem:[%s166 + $0x6b8] sm:$0xff]
      %v390 = vld [vmem:[%s166 + $0x6c0] sm:$0xff]
      %v391 = vld [vmem:[%s166 + $0x6c8] sm:$0xff]
      %v392 = vld [vmem:[%s166 + $0x6d0] sm:$0xff]
      %v393 = vld [vmem:[%s166 + $0x6d8] sm:$0xff]
      %v394 = vld [vmem:[%s166 + $0x6e0] sm:$0xff]
      %v395 = vld [vmem:[%s166 + $0x6e8] sm:$0xff]
      %v396 = vld [vmem:[%s166 + $0x6f0] sm:$0xff]
      %v397 = vld [vmem:[%s166 + $0x6f8] sm:$0xff]
      %v398 = vld [vmem:[%s166 + $0x700] sm:$0xff]
      %v399 = vld [vmem:[%s166 + $0x708] sm:$0xff]
      %v400 = vld [vmem:[%s166 + $0x710] sm:$0xff]
      %v401 = vld [vmem:[%s166 + $0x718] sm:$0xff]
      %v402 = vld [vmem:[%s166 + $0x720] sm:$0xff]
      %v403 = vld [vmem:[%s166 + $0x728] sm:$0xff]
      %v404 = vld [vmem:[%s166 + $0x730] sm:$0xff]
      %v405 = vld [vmem:[%s166 + $0x738] sm:$0xff]
      %v406 = vld [vmem:[%s166 + $0x740] sm:$0xff]
      %v407 = vld [vmem:[%s166 + $0x748] sm:$0xff]
      %v408 = vld [vmem:[%s166 + $0x750] sm:$0xff]
      %v409 = vld [vmem:[%s166 + $0x758] sm:$0xff]
      %v410 = vld [vmem:[%s166 + $0x760] sm:$0xff]
      %v411 = vld [vmem:[%s166 + $0x768] sm:$0xff]
      %v412 = vld [vmem:[%s166 + $0x770] sm:$0xff]
      %v413 = vld [vmem:[%s166 + $0x778] sm:$0xff]
      %v414 = vld [vmem:[%s166 + $0x780] sm:$0xff]
      %v415 = vld [vmem:[%s166 + $0x788] sm:$0xff]
      %v416 = vld [vmem:[%s166 + $0x790] sm:$0xff]
      %v417 = vld [vmem:[%s166 + $0x798] sm:$0xff]
      %v418 = vld [vmem:[%s166 + $0x7a0] sm:$0xff]
      %v419 = vld [vmem:[%s166 + $0x7a8] sm:$0xff]
      %v420 = vld [vmem:[%s166 + $0x7b0] sm:$0xff]
      %v421 = vld [vmem:[%s166 + $0x7b8] sm:$0xff]
      %v422 = vld [vmem:[%s166 + $0x7c0] sm:$0xff]
      %v423 = vld [vmem:[%s166 + $0x7c8] sm:$0xff]
      %v424 = vld [vmem:[%s166 + $0x7d0] sm:$0xff]
      %v425 = vld [vmem:[%s166 + $0x7d8] sm:$0xff]
      %v426 = vld [vmem:[%s166 + $0x7e0] sm:$0xff]
      %v427 = vld [vmem:[%s166 + $0x7e8] sm:$0xff]
      %v428 = vld [vmem:[%s166 + $0x7f0] sm:$0xff]
      %v429 = vld [vmem:[%s166 + $0x7f8] sm:$0xff]
      %v430 = vld [vmem:[%s166 + $0x800] sm:$0xff]
      %v431 = vld [vmem:[%s166 + $0x808] sm:$0xff]
      %v432 = vld [vmem:[%s166 + $0x810] sm:$0xff]
      %v433 = vld [vmem:[%s166 + $0x818] sm:$0xff]
      %v434 = vld [vmem:[%s166 + $0x820] sm:$0xff]
      %v435 = vld [vmem:[%s166 + $0x828] sm:$0xff]
      %v436 = vld [vmem:[%s166 + $0x830] sm:$0xff]
      %v437 = vld [vmem:[%s166 + $0x838] sm:$0xff]
      %v438 = vld [vmem:[%s166 + $0x840] sm:$0xff]
      %v439 = vld [vmem:[%s166 + $0x848] sm:$0xff]
      %v440 = vld [vmem:[%s166 + $0x850] sm:$0xff]
      %v441 = vld [vmem:[%s166 + $0x858] sm:$0xff]
      %v442 = vld [vmem:[%s166 + $0x860] sm:$0xff]
      %v443 = vld [vmem:[%s166 + $0x868] sm:$0xff]
      %v444 = vld [vmem:[%s166 + $0x870] sm:$0xff]
      %v445 = vld [vmem:[%s166 + $0x878] sm:$0xff]
      %v446 = vld [vmem:[%s166 + $0x880] sm:$0xff]
      %v447 = vld [vmem:[%s166 + $0x888] sm:$0xff]
      %v448 = vld [vmem:[%s166 + $0x890] sm:$0xff]
      %v449 = vld [vmem:[%s166 + $0x898] sm:$0xff]
      %v450 = vld [vmem:[%s166 + $0x8a0] sm:$0xff]
      %v451 = vld [vmem:[%s166 + $0x8a8] sm:$0xff]
      %v452 = vld [vmem:[%s166 + $0x8b0] sm:$0xff]
      %v453 = vld [vmem:[%s166 + $0x8b8] sm:$0xff]
      %v454 = vld [vmem:[%s166 + $0x8c0] sm:$0xff]
      %v455 = vld [vmem:[%s166 + $0x8c8] sm:$0xff]
      %v456 = vld [vmem:[%s166 + $0x8d0] sm:$0xff]
      %v457 = vld [vmem:[%s166 + $0x8d8] sm:$0xff]
      %v458 = vld [vmem:[%s166 + $0x8e0] sm:$0xff]
      %v459 = vld [vmem:[%s166 + $0x8e8] sm:$0xff]
      %v460 = vld [vmem:[%s166 + $0x8f0] sm:$0xff]
      %v461 = vld [vmem:[%s166 + $0x8f8] sm:$0xff]
      %v462 = vld [vmem:[%s166 + $0x900] sm:$0xff]
      %v463 = vld [vmem:[%s166 + $0x908] sm:$0xff]
      %v464 = vld [vmem:[%s166 + $0x910] sm:$0xff]
      %v465 = vld [vmem:[%s166 + $0x918] sm:$0xff]
      %v466 = vld [vmem:[%s166 + $0x920] sm:$0xff]
      %v467 = vld [vmem:[%s166 + $0x928] sm:$0xff]
      %v468 = vld [vmem:[%s166 + $0x930] sm:$0xff]
      %v469 = vld [vmem:[%s166 + $0x938] sm:$0xff]
      %v470 = vld [vmem:[%s166 + $0x940] sm:$0xff]
      %v471 = vld [vmem:[%s166 + $0x948] sm:$0xff]
      %v472 = vld [vmem:[%s166 + $0x950] sm:$0xff]
      %v473 = vld [vmem:[%s166 + $0x958] sm:$0xff]
      %v474 = vld [vmem:[%s166 + $0x960] sm:$0xff]
      %v475 = vld [vmem:[%s166 + $0x968] sm:$0xff]
      %v476 = vld [vmem:[%s166 + $0x970] sm:$0xff]
      %v477 = vld [vmem:[%s166 + $0x978] sm:$0xff]
      %v478 = vld [vmem:[%s166 + $0x980] sm:$0xff]
      %v479 = vld [vmem:[%s166 + $0x988] sm:$0xff]
      %v480 = vld [vmem:[%s166 + $0x990] sm:$0xff]
      %v481 = vld [vmem:[%s166 + $0x998] sm:$0xff]
      %v482 = vld [vmem:[%s166 + $0x9a0] sm:$0xff]
      %v483 = vld [vmem:[%s166 + $0x9a8] sm:$0xff]
      %v484 = vld [vmem:[%s166 + $0x9b0] sm:$0xff]
      %v485 = vld [vmem:[%s166 + $0x9b8] sm:$0xff]
      %v486 = vld [vmem:[%s166 + $0x9c0] sm:$0xff]
      %v487 = vld [vmem:[%s166 + $0x9c8] sm:$0xff]
      %v488 = vld [vmem:[%s166 + $0x9d0] sm:$0xff]
      %v489 = vld [vmem:[%s166 + $0x9d8] sm:$0xff]
      %v490 = vld [vmem:[%s166 + $0x9e0] sm:$0xff]
      %v491 = vld [vmem:[%s166 + $0x9e8] sm:$0xff]
      %v492 = vld [vmem:[%s166 + $0x9f0] sm:$0xff]
      %v493 = vld [vmem:[%s166 + $0x9f8] sm:$0xff]
      %v494 = vld [vmem:[%s166 + $0xa00] sm:$0xff]
      %v495 = vld [vmem:[%s166 + $0xa08] sm:$0xff]
      %v496 = vld [vmem:[%s166 + $0xa10] sm:$0xff]
      %v497 = vld [vmem:[%s166 + $0xa18] sm:$0xff]
      %v498 = vld [vmem:[%s166 + $0xa20] sm:$0xff]
      %v499 = vld [vmem:[%s166 + $0xa28] sm:$0xff]
      %v500 = vld [vmem:[%s166 + $0xa30] sm:$0xff]
      %v501 = vld [vmem:[%s166 + $0xa38] sm:$0xff]
      %v502 = vld [vmem:[%s166 + $0xa40] sm:$0xff]
      %v503 = vld [vmem:[%s166 + $0xa48] sm:$0xff]
      %v504 = vld [vmem:[%s166 + $0xa50] sm:$0xff]
      %v505 = vld [vmem:[%s166 + $0xa58] sm:$0xff]
      %v506 = vld [vmem:[%s166 + $0xa60] sm:$0xff]
      %v507 = vld [vmem:[%s166 + $0xa68] sm:$0xff]
      %v508 = vld [vmem:[%s166 + $0xa70] sm:$0xff]
      %v509 = vld [vmem:[%s166 + $0xa78] sm:$0xff]
      %v510 = vld [vmem:[%s166 + $0xa80] sm:$0xff]
      %v511 = vld [vmem:[%s166 + $0xa88] sm:$0xff]
      %v512 = vld [vmem:[%s166 + $0xa90] sm:$0xff]
      %v513 = vld [vmem:[%s166 + $0xa98] sm:$0xff]
      %v514 = vld [vmem:[%s166 + $0xaa0] sm:$0xff]
      %v515 = vld [vmem:[%s166 + $0xaa8] sm:$0xff]
      %v516 = vld [vmem:[%s166 + $0xab0] sm:$0xff]
      %v517 = vld [vmem:[%s166 + $0xab8] sm:$0xff]
      %v518 = vld [vmem:[%s166 + $0xac0] sm:$0xff]
      %v519 = vld [vmem:[%s166 + $0xac8] sm:$0xff]
      %v520 = vld [vmem:[%s166 + $0xad0] sm:$0xff]
      %v521 = vld [vmem:[%s166 + $0xad8] sm:$0xff]
      %v522 = vld [vmem:[%s166 + $0xae0] sm:$0xff]
      %v523 = vld [vmem:[%s166 + $0xae8] sm:$0xff]
      %v524 = vld [vmem:[%s166 + $0xaf0] sm:$0xff]
      %v525 = vld [vmem:[%s166 + $0xaf8] sm:$0xff]
      %v526 = vld [vmem:[%s166 + $0xb00] sm:$0xff]
      %v527 = vld [vmem:[%s166 + $0xb08] sm:$0xff]
      %v528 = vld [vmem:[%s166 + $0xb10] sm:$0xff]
      %v529 = vld [vmem:[%s166 + $0xb18] sm:$0xff]
      %v530 = vld [vmem:[%s166 + $0xb20] sm:$0xff]
      %v531 = vld [vmem:[%s166 + $0xb28] sm:$0xff]
      %v532 = vld [vmem:[%s166 + $0xb30] sm:$0xff]
      %v533 = vld [vmem:[%s166 + $0xb38] sm:$0xff]
      %v534 = vld [vmem:[%s166 + $0xb40] sm:$0xff]
      %v535 = vld [vmem:[%s166 + $0xb48] sm:$0xff]
      %v536 = vld [vmem:[%s166 + $0xb50] sm:$0xff]
      %v537 = vld [vmem:[%s166 + $0xb58] sm:$0xff]
      %v538 = vld [vmem:[%s166 + $0xb60] sm:$0xff]
      %v539 = vld [vmem:[%s166 + $0xb68] sm:$0xff]
      %v540 = vld [vmem:[%s166 + $0xb70] sm:$0xff]
      %v541 = vld [vmem:[%s166 + $0xb78] sm:$0xff]
      %v542 = vld [vmem:[%s166 + $0xb80] sm:$0xff]
      %v543 = vld [vmem:[%s166 + $0xb88] sm:$0xff]
      %v544 = vld [vmem:[%s166 + $0xb90] sm:$0xff]
      %v545 = vld [vmem:[%s166 + $0xb98] sm:$0xff]
      %v546 = vld [vmem:[%s166 + $0xba0] sm:$0xff]
      %v547 = vld [vmem:[%s166 + $0xba8] sm:$0xff]
      %v548 = vld [vmem:[%s166 + $0xbb0] sm:$0xff]
      %v549 = vld [vmem:[%s166 + $0xbb8] sm:$0xff]
      %v550 = vld [vmem:[%s166 + $0xbc0] sm:$0xff]
      %v551 = vld [vmem:[%s166 + $0xbc8] sm:$0xff]
      %v552 = vld [vmem:[%s166 + $0xbd0] sm:$0xff]
      %v553 = vld [vmem:[%s166 + $0xbd8] sm:$0xff]
      %v554 = vld [vmem:[%s166 + $0xbe0] sm:$0xff]
      %v555 = vld [vmem:[%s166 + $0xbe8] sm:$0xff]
      %v556 = vld [vmem:[%s166 + $0xbf0] sm:$0xff]
      %v557 = vld [vmem:[%s166 + $0xbf8] sm:$0xff]
      %v558 = vld [vmem:[%s166 + $0xc00] sm:$0xff]
      %v559 = vld [vmem:[%s166 + $0xc08] sm:$0xff]
      %v560 = vld [vmem:[%s166 + $0xc10] sm:$0xff]
      %v561 = vld [vmem:[%s166 + $0xc18] sm:$0xff]
      %v562 = vld [vmem:[%s166 + $0xc20] sm:$0xff]
      %v563 = vld [vmem:[%s166 + $0xc28] sm:$0xff]
      %v564 = vld [vmem:[%s166 + $0xc30] sm:$0xff]
      %v565 = vld [vmem:[%s166 + $0xc38] sm:$0xff]
      %v566 = vld [vmem:[%s166 + $0xc40] sm:$0xff]
      %v567 = vld [vmem:[%s166 + $0xc48] sm:$0xff]
      %v568 = vld [vmem:[%s166 + $0xc50] sm:$0xff]
      %v569 = vld [vmem:[%s166 + $0xc58] sm:$0xff]
      %v570 = vld [vmem:[%s166 + $0xc60] sm:$0xff]
      %v571 = vld [vmem:[%s166 + $0xc68] sm:$0xff]
      %v572 = vld [vmem:[%s166 + $0xc70] sm:$0xff]
      %v573 = vld [vmem:[%s166 + $0xc78] sm:$0xff]
      %v574 = vld [vmem:[%s166 + $0xc80] sm:$0xff]
      %v575 = vld [vmem:[%s166 + $0xc88] sm:$0xff]
      %v576 = vld [vmem:[%s166 + $0xc90] sm:$0xff]
      %v577 = vld [vmem:[%s166 + $0xc98] sm:$0xff]
      %v578 = vld [vmem:[%s166 + $0xca0] sm:$0xff]
      %v579 = vld [vmem:[%s166 + $0xca8] sm:$0xff]
      %v580 = vld [vmem:[%s166 + $0xcb0] sm:$0xff]
      %v581 = vld [vmem:[%s166 + $0xcb8] sm:$0xff]
      %v582 = vld [vmem:[%s166 + $0xcc0] sm:$0xff]
      %v583 = vld [vmem:[%s166 + $0xcc8] sm:$0xff]
      %v584 = vld [vmem:[%s166 + $0xcd0] sm:$0xff]
      %v585 = vld [vmem:[%s166 + $0xcd8] sm:$0xff]
      %v586 = vld [vmem:[%s166 + $0xce0] sm:$0xff]
      %v587 = vld [vmem:[%s166 + $0xce8] sm:$0xff]
      %v588 = vld [vmem:[%s166 + $0xcf0] sm:$0xff]
      %v589 = vld [vmem:[%s166 + $0xcf8] sm:$0xff]
      %v590 = vld [vmem:[%s166 + $0xd00] sm:$0xff]
      %v591 = vld [vmem:[%s166 + $0xd08] sm:$0xff]
      %v592 = vld [vmem:[%s166 + $0xd10] sm:$0xff]
      %v593 = vld [vmem:[%s166 + $0xd18] sm:$0xff]
      %v594 = vld [vmem:[%s166 + $0xd20] sm:$0xff]
      %v595 = vld [vmem:[%s166 + $0xd28] sm:$0xff]
      %v596 = vld [vmem:[%s166 + $0xd30] sm:$0xff]
      %v597 = vld [vmem:[%s166 + $0xd38] sm:$0xff]
      %v598 = vld [vmem:[%s166 + $0xd40] sm:$0xff]
      %v599 = vld [vmem:[%s166 + $0xd48] sm:$0xff]
      %v600 = vld [vmem:[%s166 + $0xd50] sm:$0xff]
      %v601 = vld [vmem:[%s166 + $0xd58] sm:$0xff]
      %v602 = vld [vmem:[%s166 + $0xd60] sm:$0xff]
      %v603 = vld [vmem:[%s166 + $0xd68] sm:$0xff]
      %v604 = vld [vmem:[%s166 + $0xd70] sm:$0xff]
      %v605 = vld [vmem:[%s166 + $0xd78] sm:$0xff]
      %v606 = vld [vmem:[%s166 + $0xd80] sm:$0xff]
      %v607 = vld [vmem:[%s166 + $0xd88] sm:$0xff]
      %v608 = vld [vmem:[%s166 + $0xd90] sm:$0xff]
      %v609 = vld [vmem:[%s166 + $0xd98] sm:$0xff]
      %v610 = vld [vmem:[%s166 + $0xda0] sm:$0xff]
      %v611 = vld [vmem:[%s166 + $0xda8] sm:$0xff]
      %v612 = vld [vmem:[%s166 + $0xdb0] sm:$0xff]
      %v613 = vld [vmem:[%s166 + $0xdb8] sm:$0xff]
      %v614 = vld [vmem:[%s166 + $0xdc0] sm:$0xff]
      %v615 = vld [vmem:[%s166 + $0xdc8] sm:$0xff]
      %v616 = vld [vmem:[%s166 + $0xdd0] sm:$0xff]
      %v617 = vld [vmem:[%s166 + $0xdd8] sm:$0xff]
      %v618 = vld [vmem:[%s166 + $0xde0] sm:$0xff]
      %v619 = vld [vmem:[%s166 + $0xde8] sm:$0xff]
      %v620 = vld [vmem:[%s166 + $0xdf0] sm:$0xff]
      %v621 = vld [vmem:[%s166 + $0xdf8] sm:$0xff]
      %v622 = vld [vmem:[%s166 + $0xe00] sm:$0xff]
      %v623 = vld [vmem:[%s166 + $0xe08] sm:$0xff]
      %v624 = vld [vmem:[%s166 + $0xe10] sm:$0xff]
      %v625 = vld [vmem:[%s166 + $0xe18] sm:$0xff]
      %v626 = vld [vmem:[%s166 + $0xe20] sm:$0xff]
      %v627 = vld [vmem:[%s166 + $0xe28] sm:$0xff]
      %v628 = vld [vmem:[%s166 + $0xe30] sm:$0xff]
      %v629 = vld [vmem:[%s166 + $0xe38] sm:$0xff]
      %v630 = vld [vmem:[%s166 + $0xe40] sm:$0xff]
      %v631 = vld [vmem:[%s166 + $0xe48] sm:$0xff]
      %v632 = vld [vmem:[%s166 + $0xe50] sm:$0xff]
      %v633 = vld [vmem:[%s166 + $0xe58] sm:$0xff]
      %v634 = vld [vmem:[%s166 + $0xe60] sm:$0xff]
      %v635 = vld [vmem:[%s166 + $0xe68] sm:$0xff]
      %v636 = vld [vmem:[%s166 + $0xe70] sm:$0xff]
      %v637 = vld [vmem:[%s166 + $0xe78] sm:$0xff]
      %v638 = vld [vmem:[%s166 + $0xe80] sm:$0xff]
      %v639 = vld [vmem:[%s166 + $0xe88] sm:$0xff]
      %v640 = vld [vmem:[%s166 + $0xe90] sm:$0xff]
      %v641 = vld [vmem:[%s166 + $0xe98] sm:$0xff]
      %v642 = vld [vmem:[%s166 + $0xea0] sm:$0xff]
      %v643 = vld [vmem:[%s166 + $0xea8] sm:$0xff]
      %v644 = vld [vmem:[%s166 + $0xeb0] sm:$0xff]
      %v645 = vld [vmem:[%s166 + $0xeb8] sm:$0xff]
      %v646 = vld [vmem:[%s166 + $0xec0] sm:$0xff]
      %v647 = vld [vmem:[%s166 + $0xec8] sm:$0xff]
      %v648 = vld [vmem:[%s166 + $0xed0] sm:$0xff]
      %v649 = vld [vmem:[%s166 + $0xed8] sm:$0xff]
      %v650 = vld [vmem:[%s166 + $0xee0] sm:$0xff]
      %v651 = vld [vmem:[%s166 + $0xee8] sm:$0xff]
      %v652 = vld [vmem:[%s166 + $0xef0] sm:$0xff]
      %v653 = vld [vmem:[%s166 + $0xef8] sm:$0xff]
      %v654 = vld [vmem:[%s166 + $0xf00] sm:$0xff]
      %v655 = vld [vmem:[%s166 + $0xf08] sm:$0xff]
      %v656 = vld [vmem:[%s166 + $0xf10] sm:$0xff]
      %v657 = vld [vmem:[%s166 + $0xf18] sm:$0xff]
      %v658 = vld [vmem:[%s166 + $0xf20] sm:$0xff]
      %v659 = vld [vmem:[%s166 + $0xf28] sm:$0xff]
      %v660 = vld [vmem:[%s166 + $0xf30] sm:$0xff]
      %v661 = vld [vmem:[%s166 + $0xf38] sm:$0xff]
      %v662 = vld [vmem:[%s166 + $0xf40] sm:$0xff]
      %v663 = vld [vmem:[%s166 + $0xf48] sm:$0xff]
      %v664 = vld [vmem:[%s166 + $0xf50] sm:$0xff]
      %v665 = vld [vmem:[%s166 + $0xf58] sm:$0xff]
      %v666 = vld [vmem:[%s166 + $0xf60] sm:$0xff]
      %v667 = vld [vmem:[%s166 + $0xf68] sm:$0xff]
      %v668 = vld [vmem:[%s166 + $0xf70] sm:$0xff]
      %v669 = vld [vmem:[%s166 + $0xf78] sm:$0xff]
      %v670 = vld [vmem:[%s166 + $0xf80] sm:$0xff]
      %v671 = vld [vmem:[%s166 + $0xf88] sm:$0xff]
      %v672 = vld [vmem:[%s166 + $0xf90] sm:$0xff]
      %v673 = vld [vmem:[%s166 + $0xf98] sm:$0xff]
      %v674 = vld [vmem:[%s166 + $0xfa0] sm:$0xff]
      %v675 = vld [vmem:[%s166 + $0xfa8] sm:$0xff]
      %v676 = vld [vmem:[%s166 + $0xfb0] sm:$0xff]
      %v677 = vld [vmem:[%s166 + $0xfb8] sm:$0xff]
      %v678 = vld [vmem:[%s1] sm:$0xff]
      %v679 = vld [vmem:[%s1 + $0x8] sm:$0xff]
      %v680 = vld [vmem:[%s1 + $0x10] sm:$0x3]
      %vm681 = vcmask 146432
      %v683 = vsel %vm681, %v174, 0
      %v686 = vsel %vm681, %v175, 0
      %v689 = vsel %vm681, %v176, 0
      %v692 = vsel %vm681, %v177, 0
      %v695 = vsel %vm681, %v178, 0
      %v698 = vsel %vm681, %v179, 0
      %v701 = vsel %vm681, %v180, 0
      %v704 = vsel %vm681, %v181, 0
      %v707 = vsel %vm681, %v182, 0
      %v710 = vsel %vm681, %v183, 0
      %v713 = vsel %vm681, %v184, 0
      %v716 = vsel %vm681, %v185, 0
      %v719 = vsel %vm681, %v186, 0
      %v722 = vsel %vm681, %v187, 0
      %v725 = vsel %vm681, %v188, 0
      %v728 = vsel %vm681, %v189, 0
      %v731 = vsel %vm681, %v190, 0
      %v734 = vsel %vm681, %v191, 0
      %v737 = vsel %vm681, %v192, 0
      %v740 = vsel %vm681, %v193, 0
      %v743 = vsel %vm681, %v194, 0
      %v746 = vsel %vm681, %v195, 0
      %v749 = vsel %vm681, %v196, 0
      %v752 = vsel %vm681, %v197, 0
      %v755 = vsel %vm681, %v198, 0
      %v758 = vsel %vm681, %v199, 0
      %v761 = vsel %vm681, %v200, 0
      %v764 = vsel %vm681, %v201, 0
      %v767 = vsel %vm681, %v202, 0
      %v770 = vsel %vm681, %v203, 0
      %v773 = vsel %vm681, %v204, 0
      %v776 = vsel %vm681, %v205, 0
      %v779 = vsel %vm681, %v206, 0
      %v782 = vsel %vm681, %v207, 0
      %v785 = vsel %vm681, %v208, 0
      %v788 = vsel %vm681, %v209, 0
      %v791 = vsel %vm681, %v210, 0
      %v794 = vsel %vm681, %v211, 0
      %v797 = vsel %vm681, %v212, 0
      %v800 = vsel %vm681, %v213, 0
      %v803 = vsel %vm681, %v214, 0
      %v806 = vsel %vm681, %v215, 0
      %v809 = vsel %vm681, %v216, 0
      %v812 = vsel %vm681, %v217, 0
      %v815 = vsel %vm681, %v218, 0
      %v818 = vsel %vm681, %v219, 0
      %v821 = vsel %vm681, %v220, 0
      %v824 = vsel %vm681, %v221, 0
      %v827 = vsel %vm681, %v222, 0
      %v830 = vsel %vm681, %v223, 0
      %v833 = vsel %vm681, %v224, 0
      %v836 = vsel %vm681, %v225, 0
      %v839 = vsel %vm681, %v226, 0
      %v842 = vsel %vm681, %v227, 0
      %v845 = vsel %vm681, %v228, 0
      %v848 = vsel %vm681, %v229, 0
      %v851 = vsel %vm681, %v230, 0
      %v854 = vsel %vm681, %v231, 0
      %v857 = vsel %vm681, %v232, 0
      %v860 = vsel %vm681, %v233, 0
      %v863 = vsel %vm681, %v234, 0
      %v866 = vsel %vm681, %v235, 0
      %v869 = vsel %vm681, %v236, 0
      %v872 = vsel %vm681, %v237, 0
      %v875 = vsel %vm681, %v238, 0
      %v878 = vsel %vm681, %v239, 0
      %v881 = vsel %vm681, %v240, 0
      %v884 = vsel %vm681, %v241, 0
      %v887 = vsel %vm681, %v242, 0
      %v890 = vsel %vm681, %v243, 0
      %v893 = vsel %vm681, %v244, 0
      %v896 = vsel %vm681, %v245, 0
      %v899 = vsel %vm681, %v246, 0
      %v902 = vsel %vm681, %v247, 0
      %v905 = vsel %vm681, %v248, 0
      %v908 = vsel %vm681, %v249, 0
      %v911 = vsel %vm681, %v250, 0
      %v914 = vsel %vm681, %v251, 0
      %v917 = vsel %vm681, %v252, 0
      %v920 = vsel %vm681, %v253, 0
      %v923 = vsel %vm681, %v254, 0
      %v926 = vsel %vm681, %v255, 0
      %v929 = vsel %vm681, %v256, 0
      %v932 = vsel %vm681, %v257, 0
      %v935 = vsel %vm681, %v258, 0
      %v938 = vsel %vm681, %v259, 0
      %v941 = vsel %vm681, %v260, 0
      %v944 = vsel %vm681, %v261, 0
      %v947 = vsel %vm681, %v262, 0
      %v950 = vsel %vm681, %v263, 0
      %v953 = vsel %vm681, %v264, 0
      %v956 = vsel %vm681, %v265, 0
      %v959 = vsel %vm681, %v266, 0
      %v962 = vsel %vm681, %v267, 0
      %v965 = vsel %vm681, %v268, 0
      %v968 = vsel %vm681, %v269, 0
      %v971 = vsel %vm681, %v270, 0
      %v974 = vsel %vm681, %v271, 0
      %v977 = vsel %vm681, %v272, 0
      %v980 = vsel %vm681, %v273, 0
      %v983 = vsel %vm681, %v274, 0
      %v986 = vsel %vm681, %v275, 0
      %v989 = vsel %vm681, %v276, 0
      %v992 = vsel %vm681, %v277, 0
      %v995 = vsel %vm681, %v278, 0
      %v998 = vsel %vm681, %v279, 0
      %v1001 = vsel %vm681, %v280, 0
      %v1004 = vsel %vm681, %v281, 0
      %v1007 = vsel %vm681, %v282, 0
      %v1010 = vsel %vm681, %v283, 0
      %v1013 = vsel %vm681, %v284, 0
      %v1016 = vsel %vm681, %v285, 0
      %v1019 = vsel %vm681, %v286, 0
      %v1022 = vsel %vm681, %v287, 0
      %v1025 = vsel %vm681, %v288, 0
      %v1028 = vsel %vm681, %v289, 0
      %v1031 = vsel %vm681, %v290, 0
      %v1034 = vsel %vm681, %v291, 0
      %v1037 = vsel %vm681, %v292, 0
      %v1040 = vsel %vm681, %v293, 0
      %v1043 = vsel %vm681, %v294, 0
      %v1046 = vsel %vm681, %v295, 0
      %v1049 = vsel %vm681, %v296, 0
      %v1052 = vsel %vm681, %v297, 0
      %v1055 = vsel %vm681, %v298, 0
      %v1058 = vsel %vm681, %v299, 0
      %v1061 = vsel %vm681, %v300, 0
      %v1064 = vsel %vm681, %v301, 0
      %v1067 = vsel %vm681, %v302, 0
      %v1070 = vsel %vm681, %v303, 0
      %v1073 = vsel %vm681, %v304, 0
      %v1076 = vsel %vm681, %v305, 0
      %v1079 = vsel %vm681, %v306, 0
      %v1082 = vsel %vm681, %v307, 0
      %v1085 = vsel %vm681, %v308, 0
      %v1088 = vsel %vm681, %v309, 0
      %v1091 = vsel %vm681, %v310, 0
      %v1094 = vsel %vm681, %v311, 0
      %v1097 = vsel %vm681, %v312, 0
      %v1100 = vsel %vm681, %v313, 0
      %v1103 = vsel %vm681, %v314, 0
      %v1106 = vsel %vm681, %v315, 0
      %v1109 = vsel %vm681, %v316, 0
      %v1112 = vsel %vm681, %v317, 0
      %v1115 = vsel %vm681, %v318, 0
      %v1118 = vsel %vm681, %v319, 0
      %v1121 = vsel %vm681, %v320, 0
      %v1124 = vsel %vm681, %v321, 0
      %v1127 = vsel %vm681, %v322, 0
      %v1130 = vsel %vm681, %v323, 0
      %v1133 = vsel %vm681, %v324, 0
      %v1136 = vsel %vm681, %v325, 0
      %v1139 = vsel %vm681, %v326, 0
      %v1142 = vsel %vm681, %v327, 0
      %v1145 = vsel %vm681, %v328, 0
      %v1148 = vsel %vm681, %v329, 0
      %v1151 = vsel %vm681, %v330, 0
      %v1154 = vsel %vm681, %v331, 0
      %v1157 = vsel %vm681, %v332, 0
      %v1160 = vsel %vm681, %v333, 0
      %v1163 = vsel %vm681, %v334, 0
      %v1166 = vsel %vm681, %v335, 0
      %v1169 = vsel %vm681, %v336, 0
      %v1172 = vsel %vm681, %v337, 0
      %v1175 = vsel %vm681, %v338, 0
      %v1178 = vsel %vm681, %v339, 0
      %v1181 = vsel %vm681, %v340, 0
      %v1184 = vsel %vm681, %v341, 0
      %v1187 = vsel %vm681, %v342, 0
      %v1190 = vsel %vm681, %v343, 0
      %v1193 = vsel %vm681, %v344, 0
      %v1196 = vsel %vm681, %v345, 0
      %v1199 = vsel %vm681, %v346, 0
      %v1202 = vsel %vm681, %v347, 0
      %v1205 = vsel %vm681, %v348, 0
      %v1208 = vsel %vm681, %v349, 0
      %v1211 = vsel %vm681, %v350, 0
      %v1214 = vsel %vm681, %v351, 0
      %v1217 = vsel %vm681, %v352, 0
      %v1220 = vsel %vm681, %v353, 0
      %v1223 = vsel %vm681, %v354, 0
      %v1226 = vsel %vm681, %v355, 0
      %v1229 = vsel %vm681, %v356, 0
      %v1232 = vsel %vm681, %v357, 0
      %v1235 = vsel %vm681, %v358, 0
      %v1238 = vsel %vm681, %v359, 0
      %v1241 = vsel %vm681, %v360, 0
      %v1244 = vsel %vm681, %v361, 0
      %v1247 = vsel %vm681, %v362, 0
      %v1250 = vsel %vm681, %v363, 0
      %v1253 = vsel %vm681, %v364, 0
      %v1256 = vsel %vm681, %v365, 0
      %v1259 = vsel %vm681, %v366, 0
      %v1262 = vsel %vm681, %v367, 0
      %v1265 = vsel %vm681, %v368, 0
      %v1268 = vsel %vm681, %v369, 0
      %v1271 = vsel %vm681, %v370, 0
      %v1274 = vsel %vm681, %v371, 0
      %v1277 = vsel %vm681, %v372, 0
      %v1280 = vsel %vm681, %v373, 0
      %v1283 = vsel %vm681, %v374, 0
      %v1286 = vsel %vm681, %v375, 0
      %v1289 = vsel %vm681, %v376, 0
      %v1292 = vsel %vm681, %v377, 0
      %v1295 = vsel %vm681, %v378, 0
      %v1298 = vsel %vm681, %v379, 0
      %v1301 = vsel %vm681, %v380, 0
      %v1304 = vsel %vm681, %v381, 0
      %v1307 = vsel %vm681, %v382, 0
      %v1310 = vsel %vm681, %v383, 0
      %v1313 = vsel %vm681, %v384, 0
      %v1316 = vsel %vm681, %v385, 0
      %v1319 = vsel %vm681, %v386, 0
      %v1322 = vsel %vm681, %v387, 0
      %v1325 = vsel %vm681, %v388, 0
      %v1328 = vsel %vm681, %v389, 0
      %v1331 = vsel %vm681, %v390, 0
      %v1334 = vsel %vm681, %v391, 0
      %v1337 = vsel %vm681, %v392, 0
      %v1340 = vsel %vm681, %v393, 0
      %v1343 = vsel %vm681, %v394, 0
      %v1346 = vsel %vm681, %v395, 0
      %v1349 = vsel %vm681, %v396, 0
      %v1352 = vsel %vm681, %v397, 0
      %v1355 = vsel %vm681, %v398, 0
      %v1358 = vsel %vm681, %v399, 0
      %v1361 = vsel %vm681, %v400, 0
      %v1364 = vsel %vm681, %v401, 0
      %v1367 = vsel %vm681, %v402, 0
      %v1370 = vsel %vm681, %v403, 0
      %v1373 = vsel %vm681, %v404, 0
      %v1376 = vsel %vm681, %v405, 0
      %v1379 = vsel %vm681, %v406, 0
      %v1382 = vsel %vm681, %v407, 0
      %v1385 = vsel %vm681, %v408, 0
      %v1388 = vsel %vm681, %v409, 0
      %v1391 = vsel %vm681, %v410, 0
      %v1394 = vsel %vm681, %v411, 0
      %v1397 = vsel %vm681, %v412, 0
      %v1400 = vsel %vm681, %v413, 0
      %v1403 = vsel %vm681, %v414, 0
      %v1406 = vsel %vm681, %v415, 0
      %v1409 = vsel %vm681, %v416, 0
      %v1412 = vsel %vm681, %v417, 0
      %v1415 = vsel %vm681, %v418, 0
      %v1418 = vsel %vm681, %v419, 0
      %v1421 = vsel %vm681, %v420, 0
      %v1424 = vsel %vm681, %v421, 0
      %v1427 = vsel %vm681, %v422, 0
      %v1430 = vsel %vm681, %v423, 0
      %v1433 = vsel %vm681, %v424, 0
      %v1436 = vsel %vm681, %v425, 0
      %v1439 = vsel %vm681, %v426, 0
      %v1442 = vsel %vm681, %v427, 0
      %v1445 = vsel %vm681, %v428, 0
      %v1448 = vsel %vm681, %v429, 0
      %v1451 = vsel %vm681, %v430, 0
      %v1454 = vsel %vm681, %v431, 0
      %v1457 = vsel %vm681, %v432, 0
      %v1460 = vsel %vm681, %v433, 0
      %v1463 = vsel %vm681, %v434, 0
      %v1466 = vsel %vm681, %v435, 0
      %v1469 = vsel %vm681, %v436, 0
      %v1472 = vsel %vm681, %v437, 0
      %v1475 = vsel %vm681, %v438, 0
      %v1478 = vsel %vm681, %v439, 0
      %v1481 = vsel %vm681, %v440, 0
      %v1484 = vsel %vm681, %v441, 0
      %v1487 = vsel %vm681, %v442, 0
      %v1490 = vsel %vm681, %v443, 0
      %v1493 = vsel %vm681, %v444, 0
      %v1496 = vsel %vm681, %v445, 0
      %v1499 = vsel %vm681, %v446, 0
      %v1502 = vsel %vm681, %v447, 0
      %v1505 = vsel %vm681, %v448, 0
      %v1508 = vsel %vm681, %v449, 0
      %v1511 = vsel %vm681, %v450, 0
      %v1514 = vsel %vm681, %v451, 0
      %v1517 = vsel %vm681, %v452, 0
      %v1520 = vsel %vm681, %v453, 0
      %v1523 = vsel %vm681, %v454, 0
      %v1526 = vsel %vm681, %v455, 0
      %v1529 = vsel %vm681, %v456, 0
      %v1532 = vsel %vm681, %v457, 0
      %v1535 = vsel %vm681, %v458, 0
      %v1538 = vsel %vm681, %v459, 0
      %v1541 = vsel %vm681, %v460, 0
      %v1544 = vsel %vm681, %v461, 0
      %v1547 = vsel %vm681, %v462, 0
      %v1550 = vsel %vm681, %v463, 0
      %v1553 = vsel %vm681, %v464, 0
      %v1556 = vsel %vm681, %v465, 0
      %v1559 = vsel %vm681, %v466, 0
      %v1562 = vsel %vm681, %v467, 0
      %v1565 = vsel %vm681, %v468, 0
      %v1568 = vsel %vm681, %v469, 0
      %v1571 = vsel %vm681, %v470, 0
      %v1574 = vsel %vm681, %v471, 0
      %v1577 = vsel %vm681, %v472, 0
      %v1580 = vsel %vm681, %v473, 0
      %v1583 = vsel %vm681, %v474, 0
      %v1586 = vsel %vm681, %v475, 0
      %v1589 = vsel %vm681, %v476, 0
      %v1592 = vsel %vm681, %v477, 0
      %v1595 = vsel %vm681, %v478, 0
      %v1598 = vsel %vm681, %v479, 0
      %v1601 = vsel %vm681, %v480, 0
      %v1604 = vsel %vm681, %v481, 0
      %v1607 = vsel %vm681, %v482, 0
      %v1610 = vsel %vm681, %v483, 0
      %v1613 = vsel %vm681, %v484, 0
      %v1616 = vsel %vm681, %v485, 0
      %v1619 = vsel %vm681, %v486, 0
      %v1622 = vsel %vm681, %v487, 0
      %v1625 = vsel %vm681, %v488, 0
      %v1628 = vsel %vm681, %v489, 0
      %v1631 = vsel %vm681, %v490, 0
      %v1634 = vsel %vm681, %v491, 0
      %v1637 = vsel %vm681, %v492, 0
      %v1640 = vsel %vm681, %v493, 0
      %v1643 = vsel %vm681, %v494, 0
      %v1646 = vsel %vm681, %v495, 0
      %v1649 = vsel %vm681, %v496, 0
      %v1652 = vsel %vm681, %v497, 0
      %v1655 = vsel %vm681, %v498, 0
      %v1658 = vsel %vm681, %v499, 0
      %v1661 = vsel %vm681, %v500, 0
      %v1664 = vsel %vm681, %v501, 0
      %v1667 = vsel %vm681, %v502, 0
      %v1670 = vsel %vm681, %v503, 0
      %v1673 = vsel %vm681, %v504, 0
      %v1676 = vsel %vm681, %v505, 0
      %v1679 = vsel %vm681, %v506, 0
      %v1682 = vsel %vm681, %v507, 0
      %v1685 = vsel %vm681, %v508, 0
      %v1688 = vsel %vm681, %v509, 0
      %v1691 = vsel %vm681, %v510, 0
      %v1694 = vsel %vm681, %v511, 0
      %v1697 = vsel %vm681, %v512, 0
      %v1700 = vsel %vm681, %v513, 0
      %v1703 = vsel %vm681, %v514, 0
      %v1706 = vsel %vm681, %v515, 0
      %v1709 = vsel %vm681, %v516, 0
      %v1712 = vsel %vm681, %v517, 0
      %v1715 = vsel %vm681, %v518, 0
      %v1718 = vsel %vm681, %v519, 0
      %v1721 = vsel %vm681, %v520, 0
      %v1724 = vsel %vm681, %v521, 0
      %v1727 = vsel %vm681, %v522, 0
      %v1730 = vsel %vm681, %v523, 0
      %v1733 = vsel %vm681, %v524, 0
      %v1736 = vsel %vm681, %v525, 0
      %v1739 = vsel %vm681, %v526, 0
      %v1742 = vsel %vm681, %v527, 0
      %v1745 = vsel %vm681, %v528, 0
      %v1748 = vsel %vm681, %v529, 0
      %v1751 = vsel %vm681, %v530, 0
      %v1754 = vsel %vm681, %v531, 0
      %v1757 = vsel %vm681, %v532, 0
      %v1760 = vsel %vm681, %v533, 0
      %v1763 = vsel %vm681, %v534, 0
      %v1766 = vsel %vm681, %v535, 0
      %v1769 = vsel %vm681, %v536, 0
      %v1772 = vsel %vm681, %v537, 0
      %v1775 = vsel %vm681, %v538, 0
      %v1778 = vsel %vm681, %v539, 0
      %v1781 = vsel %vm681, %v540, 0
      %v1784 = vsel %vm681, %v541, 0
      %v1787 = vsel %vm681, %v542, 0
      %v1790 = vsel %vm681, %v543, 0
      %v1793 = vsel %vm681, %v544, 0
      %v1796 = vsel %vm681, %v545, 0
      %v1799 = vsel %vm681, %v546, 0
      %v1802 = vsel %vm681, %v547, 0
      %v1805 = vsel %vm681, %v548, 0
      %v1808 = vsel %vm681, %v549, 0
      %v1811 = vsel %vm681, %v550, 0
      %v1814 = vsel %vm681, %v551, 0
      %v1817 = vsel %vm681, %v552, 0
      %v1820 = vsel %vm681, %v553, 0
      %v1823 = vsel %vm681, %v554, 0
      %v1826 = vsel %vm681, %v555, 0
      %v1829 = vsel %vm681, %v556, 0
      %v1832 = vsel %vm681, %v557, 0
      %v1835 = vsel %vm681, %v558, 0
      %v1838 = vsel %vm681, %v559, 0
      %v1841 = vsel %vm681, %v560, 0
      %v1844 = vsel %vm681, %v561, 0
      %v1847 = vsel %vm681, %v562, 0
      %v1850 = vsel %vm681, %v563, 0
      %v1853 = vsel %vm681, %v564, 0
      %v1856 = vsel %vm681, %v565, 0
      %v1859 = vsel %vm681, %v566, 0
      %v1862 = vsel %vm681, %v567, 0
      %v1865 = vsel %vm681, %v568, 0
      %v1868 = vsel %vm681, %v569, 0
      %v1871 = vsel %vm681, %v570, 0
      %v1874 = vsel %vm681, %v571, 0
      %v1877 = vsel %vm681, %v572, 0
      %v1880 = vsel %vm681, %v573, 0
      %v1883 = vsel %vm681, %v574, 0
      %v1886 = vsel %vm681, %v575, 0
      %v1889 = vsel %vm681, %v576, 0
      %v1892 = vsel %vm681, %v577, 0
      %v1895 = vsel %vm681, %v578, 0
      %v1898 = vsel %vm681, %v579, 0
      %v1901 = vsel %vm681, %v580, 0
      %v1904 = vsel %vm681, %v581, 0
      %v1907 = vsel %vm681, %v582, 0
      %v1910 = vsel %vm681, %v583, 0
      %v1913 = vsel %vm681, %v584, 0
      %v1916 = vsel %vm681, %v585, 0
      %v1919 = vsel %vm681, %v586, 0
      %v1922 = vsel %vm681, %v587, 0
      %v1925 = vsel %vm681, %v588, 0
      %v1928 = vsel %vm681, %v589, 0
      %v1931 = vsel %vm681, %v590, 0
      %v1934 = vsel %vm681, %v591, 0
      %v1937 = vsel %vm681, %v592, 0
      %v1940 = vsel %vm681, %v593, 0
      %v1943 = vsel %vm681, %v594, 0
      %v1946 = vsel %vm681, %v595, 0
      %v1949 = vsel %vm681, %v596, 0
      %v1952 = vsel %vm681, %v597, 0
      %v1955 = vsel %vm681, %v598, 0
      %v1958 = vsel %vm681, %v599, 0
      %v1961 = vsel %vm681, %v600, 0
      %v1964 = vsel %vm681, %v601, 0
      %v1967 = vsel %vm681, %v602, 0
      %v1970 = vsel %vm681, %v603, 0
      %v1973 = vsel %vm681, %v604, 0
      %v1976 = vsel %vm681, %v605, 0
      %v1979 = vsel %vm681, %v606, 0
      %v1982 = vsel %vm681, %v607, 0
      %v1985 = vsel %vm681, %v608, 0
      %v1988 = vsel %vm681, %v609, 0
      %v1991 = vsel %vm681, %v610, 0
      %v1994 = vsel %vm681, %v611, 0
      %v1997 = vsel %vm681, %v612, 0
      %v2000 = vsel %vm681, %v613, 0
      %v2003 = vsel %vm681, %v614, 0
      %v2006 = vsel %vm681, %v615, 0
      %v2009 = vsel %vm681, %v616, 0
      %v2012 = vsel %vm681, %v617, 0
      %v2015 = vsel %vm681, %v618, 0
      %v2018 = vsel %vm681, %v619, 0
      %v2021 = vsel %vm681, %v620, 0
      %v2024 = vsel %vm681, %v621, 0
      %v2027 = vsel %vm681, %v622, 0
      %v2030 = vsel %vm681, %v623, 0
      %v2033 = vsel %vm681, %v624, 0
      %v2036 = vsel %vm681, %v625, 0
      %v2039 = vsel %vm681, %v626, 0
      %v2042 = vsel %vm681, %v627, 0
      %v2045 = vsel %vm681, %v628, 0
      %v2048 = vsel %vm681, %v629, 0
      %v2051 = vsel %vm681, %v630, 0
      %v2054 = vsel %vm681, %v631, 0
      %v2057 = vsel %vm681, %v632, 0
      %v2060 = vsel %vm681, %v633, 0
      %v2063 = vsel %vm681, %v634, 0
      %v2066 = vsel %vm681, %v635, 0
      %v2069 = vsel %vm681, %v636, 0
      %v2072 = vsel %vm681, %v637, 0
      %v2075 = vsel %vm681, %v638, 0
      %v2078 = vsel %vm681, %v639, 0
      %v2081 = vsel %vm681, %v640, 0
      %v2084 = vsel %vm681, %v641, 0
      %v2087 = vsel %vm681, %v642, 0
      %v2090 = vsel %vm681, %v643, 0
      %v2093 = vsel %vm681, %v644, 0
      %v2096 = vsel %vm681, %v645, 0
      %v2099 = vsel %vm681, %v646, 0
      %v2102 = vsel %vm681, %v647, 0
      %v2105 = vsel %vm681, %v648, 0
      %v2108 = vsel %vm681, %v649, 0
      %v2111 = vsel %vm681, %v650, 0
      %v2114 = vsel %vm681, %v651, 0
      %v2117 = vsel %vm681, %v652, 0
      %v2120 = vsel %vm681, %v653, 0
      %v2123 = vsel %vm681, %v654, 0
      %v2126 = vsel %vm681, %v655, 0
      %v2129 = vsel %vm681, %v656, 0
      %v2132 = vsel %vm681, %v657, 0
      %v2135 = vsel %vm681, %v658, 0
      %v2138 = vsel %vm681, %v659, 0
      %v2141 = vsel %vm681, %v660, 0
      %v2144 = vsel %vm681, %v661, 0
      %v2147 = vsel %vm681, %v662, 0
      %v2150 = vsel %vm681, %v663, 0
      %v2153 = vsel %vm681, %v664, 0
      %v2156 = vsel %vm681, %v665, 0
      %v2159 = vsel %vm681, %v666, 0
      %v2162 = vsel %vm681, %v667, 0
      %v2165 = vsel %vm681, %v668, 0
      %v2168 = vsel %vm681, %v669, 0
      %v2171 = vsel %vm681, %v670, 0
      %v2174 = vsel %vm681, %v671, 0
      %v2177 = vsel %vm681, %v672, 0
      %v2180 = vsel %vm681, %v673, 0
      %v2183 = vsel %vm681, %v674, 0
      %v2186 = vsel %vm681, %v675, 0
      %v2189 = vsel %vm681, %v676, 0
      %v2192 = vsel %vm681, %v677, 0
      %vm2194 = vcmask 1041408
      %v2196 = vsel %vm2194, %v680, 0
      %2198 = vmatprep.subr.mxu0 0.0
      %2199 = vmatpush1.msra.mxu0 0.0
      %2200 = vmatprep.subr.mxu0 0.0
      %2201 = vmatpush1.msra.mxu0 0.0
      %2202 = vmatprep.subr.mxu0 0.0
      %2203 = vmatpush1.msra.mxu0 0.0
      %2204 = vmatprep.subr.mxu0 0.0
      %2205 = vmatpush1.msra.mxu0 0.0
      %2206 = vmatprep.subr.mxu0 0.0
      %2207 = vmatpush1.msra.mxu0 0.0
      %2208 = vmatprep.subr.mxu0 0.0
      %2209 = vmatpush1.msra.mxu0 0.0
      %2210 = vmatprep.subr.mxu0 0.0
      %2211 = vmatpush1.msra.mxu0 0.0
      %2212 = vmatprep.subr.mxu0 0.0
      %2213 = vmatpush1.msra.mxu0 0.0
      %2214 = vmatprep.subr.mxu0 0.0
      %2215 = vmatpush1.msra.mxu0 0.0
      %2216 = vmatprep.subr.mxu0 0.0
      %2217 = vmatpush1.msra.mxu0 0.0
      %2218 = vmatprep.subr.mxu0 0.0
      %2219 = vmatpush1.msra.mxu0 0.0
      %2220 = vmatprep.subr.mxu0 0.0
      %2221 = vmatpush1.msra.mxu0 0.0
      %2222 = vmatprep.subr.mxu0 0.0
      %2223 = vmatpush1.msra.mxu0 0.0
      %2224 = vmatprep.subr.mxu0 0.0
      %2225 = vmatpush1.msra.mxu0 %v2196
      %2226 = vmatprep.subr.mxu0 0.0
      %2227 = vmatpush1.msra.mxu0 %v679
      %2228 = vmatprep.subr.mxu0 0.0
      %2229 = vmatpush1.msra.mxu0 %v678
      %2230 = vmatprep.subr.mxu0 0.0
      %2231 = vmatpush2.msra.mxu0 0.0
      %2232 = vmatprep.subr.mxu0 0.0
      %2233 = vmatpush2.msra.mxu0 0.0
      %2234 = vmatprep.subr.mxu0 0.0
      %2235 = vmatpush2.msra.mxu0 0.0
      %2236 = vmatprep.subr.mxu0 0.0
      %2237 = vmatpush2.msra.mxu0 0.0
      %2238 = vmatprep.subr.mxu0 0.0
      %2239 = vmatpush2.msra.mxu0 0.0
      %2240 = vmatprep.subr.mxu0 0.0
      %2241 = vmatpush2.msra.mxu0 0.0
      %2242 = vmatprep.subr.mxu0 0.0
      %2243 = vmatpush2.msra.mxu0 0.0
      %2244 = vmatprep.subr.mxu0 0.0
      %2245 = vmatpush2.msra.mxu0 0.0
      %2246 = vmatprep.subr.mxu0 0.0
      %2247 = vmatpush2.msra.mxu0 0.0
      %2248 = vmatprep.subr.mxu0 0.0
      %2249 = vmatpush2.msra.mxu0 0.0
      %2250 = vmatprep.subr.mxu0 0.0
      %2251 = vmatpush2.msra.mxu0 0.0
      %2252 = vmatprep.subr.mxu0 0.0
      %2253 = vmatpush2.msra.mxu0 0.0
      %2254 = vmatprep.subr.mxu0 0.0
      %2255 = vmatpush2.msra.mxu0 0.0
      %2256 = vmatprep.subr.mxu0 0.0
      %2257 = vmatpush2.msra.mxu0 0.0
      %2258 = vmatprep.subr.mxu0 0.0
      %2259 = vmatpush2.msra.mxu0 0.0
      %2260 = vmatprep.subr.mxu0 0.0
      %2261 = vmatpush2.msra.mxu0 0.0
      %2262 = vmatprep.mubr.f32.mxu0 0.0
      %2263 = vmatmul.mubr.f32.gmra.mxu0 %v683
      %v2264 = vpop.f32.mrf.mxu0
      %v2265 = vadd.f32 0.0, %v2264
      %v2266 = vpop.f32.mrf.mxu0
      %2267 = vmatprep.mubr.f32.mxu0 0.0
      %2268 = vmatmul.mubr.f32.gmra.mxu0 %v686
      %v2269 = vpop.f32.mrf.mxu0
      %v2270 = vadd.f32 0.0, %v2269
      %v2271 = vpop.f32.mrf.mxu0
      %2272 = vmatprep.mubr.f32.mxu0 0.0
      %2273 = vmatmul.mubr.f32.gmra.mxu0 %v689
      %v2274 = vpop.f32.mrf.mxu0
      %v2275 = vadd.f32 0.0, %v2274
      %v2276 = vpop.f32.mrf.mxu0
      %2277 = vmatprep.mubr.f32.mxu0 0.0
      %2278 = vmatmul.mubr.f32.gmra.mxu0 %v692
      %v2279 = vpop.f32.mrf.mxu0
      %v2280 = vadd.f32 0.0, %v2279
      %v2281 = vpop.f32.mrf.mxu0
      %2282 = vmatprep.mubr.f32.mxu0 0.0
      %2283 = vmatmul.mubr.f32.gmra.mxu0 %v695
      %v2284 = vpop.f32.mrf.mxu0
      %v2285 = vadd.f32 0.0, %v2284
      %v2286 = vpop.f32.mrf.mxu0
      %2287 = vmatprep.mubr.f32.mxu0 0.0
      %2288 = vmatmul.mubr.f32.gmra.mxu0 %v698
      %v2289 = vpop.f32.mrf.mxu0
      %v2290 = vadd.f32 0.0, %v2289
      %v2291 = vpop.f32.mrf.mxu0
      %2292 = vmatprep.mubr.f32.mxu0 0.0
      %2293 = vmatmul.mubr.f32.gmra.mxu0 %v701
      %v2294 = vpop.f32.mrf.mxu0
      %v2295 = vadd.f32 0.0, %v2294
      %v2296 = vpop.f32.mrf.mxu0
      %2297 = vmatprep.mubr.f32.mxu0 0.0
      %2298 = vmatmul.mubr.f32.gmra.mxu0 %v704
      %v2299 = vpop.f32.mrf.mxu0
      %v2300 = vadd.f32 0.0, %v2299
      %v2301 = vpop.f32.mrf.mxu0
      %2302 = vmatprep.mubr.f32.mxu0 0.0
      %2303 = vmatmul.mubr.f32.gmra.mxu0 %v707
      %v2304 = vpop.f32.mrf.mxu0
      %v2305 = vadd.f32 0.0, %v2304
      %v2306 = vpop.f32.mrf.mxu0
      %2307 = vmatprep.mubr.f32.mxu0 0.0
      %2308 = vmatmul.mubr.f32.gmra.mxu0 %v710
      %v2309 = vpop.f32.mrf.mxu0
      %v2310 = vadd.f32 0.0, %v2309
      %v2311 = vpop.f32.mrf.mxu0
      %2312 = vmatprep.mubr.f32.mxu0 0.0
      %2313 = vmatmul.mubr.f32.gmra.mxu0 %v713
      %v2314 = vpop.f32.mrf.mxu0
      %v2315 = vadd.f32 0.0, %v2314
      %v2316 = vpop.f32.mrf.mxu0
      %2317 = vmatprep.mubr.f32.mxu0 0.0
      %2318 = vmatmul.mubr.f32.gmra.mxu0 %v716
      %v2319 = vpop.f32.mrf.mxu0
      %v2320 = vadd.f32 0.0, %v2319
      %v2321 = vpop.f32.mrf.mxu0
      %2322 = vmatprep.mubr.f32.mxu0 0.0
      %2323 = vmatmul.mubr.f32.gmra.mxu0 %v719
      %v2324 = vpop.f32.mrf.mxu0
      %v2325 = vadd.f32 0.0, %v2324
      %v2326 = vpop.f32.mrf.mxu0
      %2327 = vmatprep.mubr.f32.mxu0 0.0
      %2328 = vmatmul.mubr.f32.gmra.mxu0 %v722
      %v2329 = vpop.f32.mrf.mxu0
      %v2330 = vadd.f32 0.0, %v2329
      %v2331 = vpop.f32.mrf.mxu0
      %2332 = vmatprep.mubr.f32.mxu0 0.0
      %2333 = vmatmul.mubr.f32.gmra.mxu0 %v725
      %v2334 = vpop.f32.mrf.mxu0
      %v2335 = vadd.f32 0.0, %v2334
      %v2336 = vpop.f32.mrf.mxu0
      %2337 = vmatprep.mubr.f32.mxu0 0.0
      %2338 = vmatmul.mubr.f32.gmra.mxu0 %v728
      %v2339 = vpop.f32.mrf.mxu0
      %v2340 = vadd.f32 0.0, %v2339
      %v2341 = vpop.f32.mrf.mxu0
      %2342 = vmatprep.mubr.f32.mxu0 0.0
      %2343 = vmatmul.mubr.f32.gmra.mxu0 %v731
      %v2344 = vpop.f32.mrf.mxu0
      %v2345 = vadd.f32 0.0, %v2344
      %v2346 = vpop.f32.mrf.mxu0
      %2347 = vmatprep.mubr.f32.mxu0 0.0
      %2348 = vmatmul.mubr.f32.gmra.mxu0 %v734
      %v2349 = vpop.f32.mrf.mxu0
      %v2350 = vadd.f32 0.0, %v2349
      %v2351 = vpop.f32.mrf.mxu0
      %2352 = vmatprep.mubr.f32.mxu0 0.0
      %2353 = vmatmul.mubr.f32.gmra.mxu0 %v737
      %v2354 = vpop.f32.mrf.mxu0
      %v2355 = vadd.f32 0.0, %v2354
      %v2356 = vpop.f32.mrf.mxu0
      %2357 = vmatprep.mubr.f32.mxu0 0.0
      %2358 = vmatmul.mubr.f32.gmra.mxu0 %v740
      %v2359 = vpop.f32.mrf.mxu0
      %v2360 = vadd.f32 0.0, %v2359
      %v2361 = vpop.f32.mrf.mxu0
      %2362 = vmatprep.mubr.f32.mxu0 0.0
      %2363 = vmatmul.mubr.f32.gmra.mxu0 %v743
      %v2364 = vpop.f32.mrf.mxu0
      %v2365 = vadd.f32 0.0, %v2364
      %v2366 = vpop.f32.mrf.mxu0
      %2367 = vmatprep.mubr.f32.mxu0 0.0
      %2368 = vmatmul.mubr.f32.gmra.mxu0 %v746
      %v2369 = vpop.f32.mrf.mxu0
      %v2370 = vadd.f32 0.0, %v2369
      %v2371 = vpop.f32.mrf.mxu0
      %2372 = vmatprep.mubr.f32.mxu0 0.0
      %2373 = vmatmul.mubr.f32.gmra.mxu0 %v749
      %v2374 = vpop.f32.mrf.mxu0
      %v2375 = vadd.f32 0.0, %v2374
      %v2376 = vpop.f32.mrf.mxu0
      %2377 = vmatprep.mubr.f32.mxu0 0.0
      %2378 = vmatmul.mubr.f32.gmra.mxu0 %v752
      %v2379 = vpop.f32.mrf.mxu0
      %v2380 = vadd.f32 0.0, %v2379
      %v2381 = vpop.f32.mrf.mxu0
      %2382 = vmatprep.mubr.f32.mxu0 0.0
      %2383 = vmatmul.mubr.f32.gmra.mxu0 %v755
      %v2384 = vpop.f32.mrf.mxu0
      %v2385 = vadd.f32 0.0, %v2384
      %v2386 = vpop.f32.mrf.mxu0
      %2387 = vmatprep.mubr.f32.mxu0 0.0
      %2388 = vmatmul.mubr.f32.gmra.mxu0 %v758
      %v2389 = vpop.f32.mrf.mxu0
      %v2390 = vadd.f32 0.0, %v2389
      %v2391 = vpop.f32.mrf.mxu0
      %2392 = vmatprep.mubr.f32.mxu0 0.0
      %2393 = vmatmul.mubr.f32.gmra.mxu0 %v761
      %v2394 = vpop.f32.mrf.mxu0
      %v2395 = vadd.f32 0.0, %v2394
      %v2396 = vpop.f32.mrf.mxu0
      %2397 = vmatprep.mubr.f32.mxu0 0.0
      %2398 = vmatmul.mubr.f32.gmra.mxu0 %v764
      %v2399 = vpop.f32.mrf.mxu0
      %v2400 = vadd.f32 0.0, %v2399
      %v2401 = vpop.f32.mrf.mxu0
      %2402 = vmatprep.mubr.f32.mxu0 0.0
      %2403 = vmatmul.mubr.f32.gmra.mxu0 %v767
      %v2404 = vpop.f32.mrf.mxu0
      %v2405 = vadd.f32 0.0, %v2404
      %v2406 = vpop.f32.mrf.mxu0
      %2407 = vmatprep.mubr.f32.mxu0 0.0
      %2408 = vmatmul.mubr.f32.gmra.mxu0 %v770
      %v2409 = vpop.f32.mrf.mxu0
      %v2410 = vadd.f32 0.0, %v2409
      %v2411 = vpop.f32.mrf.mxu0
      %2412 = vmatprep.mubr.f32.mxu0 0.0
      %2413 = vmatmul.mubr.f32.gmra.mxu0 %v773
      %v2414 = vpop.f32.mrf.mxu0
      %v2415 = vadd.f32 0.0, %v2414
      %v2416 = vpop.f32.mrf.mxu0
      %2417 = vmatprep.mubr.f32.mxu0 0.0
      %2418 = vmatmul.mubr.f32.gmra.mxu0 %v776
      %v2419 = vpop.f32.mrf.mxu0
      %v2420 = vadd.f32 0.0, %v2419
      %v2421 = vpop.f32.mrf.mxu0
      %2422 = vmatprep.mubr.f32.mxu0 0.0
      %2423 = vmatmul.mubr.f32.gmra.mxu0 %v779
      %v2424 = vpop.f32.mrf.mxu0
      %v2425 = vadd.f32 0.0, %v2424
      %v2426 = vpop.f32.mrf.mxu0
      %2427 = vmatprep.mubr.f32.mxu0 0.0
      %2428 = vmatmul.mubr.f32.gmra.mxu0 %v782
      %v2429 = vpop.f32.mrf.mxu0
      %v2430 = vadd.f32 0.0, %v2429
      %v2431 = vpop.f32.mrf.mxu0
      %2432 = vmatprep.mubr.f32.mxu0 0.0
      %2433 = vmatmul.mubr.f32.gmra.mxu0 %v785
      %v2434 = vpop.f32.mrf.mxu0
      %v2435 = vadd.f32 0.0, %v2434
      %v2436 = vpop.f32.mrf.mxu0
      %2437 = vmatprep.mubr.f32.mxu0 0.0
      %2438 = vmatmul.mubr.f32.gmra.mxu0 %v788
      %v2439 = vpop.f32.mrf.mxu0
      %v2440 = vadd.f32 0.0, %v2439
      %v2441 = vpop.f32.mrf.mxu0
      %2442 = vmatprep.mubr.f32.mxu0 0.0
      %2443 = vmatmul.mubr.f32.gmra.mxu0 %v791
      %v2444 = vpop.f32.mrf.mxu0
      %v2445 = vadd.f32 0.0, %v2444
      %v2446 = vpop.f32.mrf.mxu0
      %2447 = vmatprep.mubr.f32.mxu0 0.0
      %2448 = vmatmul.mubr.f32.gmra.mxu0 %v794
      %v2449 = vpop.f32.mrf.mxu0
      %v2450 = vadd.f32 0.0, %v2449
      %v2451 = vpop.f32.mrf.mxu0
      %2452 = vmatprep.mubr.f32.mxu0 0.0
      %2453 = vmatmul.mubr.f32.gmra.mxu0 %v797
      %v2454 = vpop.f32.mrf.mxu0
      %v2455 = vadd.f32 0.0, %v2454
      %v2456 = vpop.f32.mrf.mxu0
      %2457 = vmatprep.mubr.f32.mxu0 0.0
      %2458 = vmatmul.mubr.f32.gmra.mxu0 %v800
      %v2459 = vpop.f32.mrf.mxu0
      %v2460 = vadd.f32 0.0, %v2459
      %v2461 = vpop.f32.mrf.mxu0
      %2462 = vmatprep.mubr.f32.mxu0 0.0
      %2463 = vmatmul.mubr.f32.gmra.mxu0 %v803
      %v2464 = vpop.f32.mrf.mxu0
      %v2465 = vadd.f32 0.0, %v2464
      %v2466 = vpop.f32.mrf.mxu0
      %2467 = vmatprep.mubr.f32.mxu0 0.0
      %2468 = vmatmul.mubr.f32.gmra.mxu0 %v806
      %v2469 = vpop.f32.mrf.mxu0
      %v2470 = vadd.f32 0.0, %v2469
      %v2471 = vpop.f32.mrf.mxu0
      %2472 = vmatprep.mubr.f32.mxu0 0.0
      %2473 = vmatmul.mubr.f32.gmra.mxu0 %v809
      %v2474 = vpop.f32.mrf.mxu0
      %v2475 = vadd.f32 0.0, %v2474
      %v2476 = vpop.f32.mrf.mxu0
      %2477 = vmatprep.mubr.f32.mxu0 0.0
      %2478 = vmatmul.mubr.f32.gmra.mxu0 %v812
      %v2479 = vpop.f32.mrf.mxu0
      %v2480 = vadd.f32 0.0, %v2479
      %v2481 = vpop.f32.mrf.mxu0
      %2482 = vmatprep.mubr.f32.mxu0 0.0
      %2483 = vmatmul.mubr.f32.gmra.mxu0 %v815
      %v2484 = vpop.f32.mrf.mxu0
      %v2485 = vadd.f32 0.0, %v2484
      %v2486 = vpop.f32.mrf.mxu0
      %2487 = vmatprep.mubr.f32.mxu0 0.0
      %2488 = vmatmul.mubr.f32.gmra.mxu0 %v818
      %v2489 = vpop.f32.mrf.mxu0
      %v2490 = vadd.f32 0.0, %v2489
      %v2491 = vpop.f32.mrf.mxu0
      %2492 = vmatprep.mubr.f32.mxu0 0.0
      %2493 = vmatmul.mubr.f32.gmra.mxu0 %v821
      %v2494 = vpop.f32.mrf.mxu0
      %v2495 = vadd.f32 0.0, %v2494
      %v2496 = vpop.f32.mrf.mxu0
      %2497 = vmatprep.mubr.f32.mxu0 0.0
      %2498 = vmatmul.mubr.f32.gmra.mxu0 %v824
      %v2499 = vpop.f32.mrf.mxu0
      %v2500 = vadd.f32 0.0, %v2499
      %v2501 = vpop.f32.mrf.mxu0
      %2502 = vmatprep.mubr.f32.mxu0 0.0
      %2503 = vmatmul.mubr.f32.gmra.mxu0 %v827
      %v2504 = vpop.f32.mrf.mxu0
      %v2505 = vadd.f32 0.0, %v2504
      %v2506 = vpop.f32.mrf.mxu0
      %2507 = vmatprep.mubr.f32.mxu0 0.0
      %2508 = vmatmul.mubr.f32.gmra.mxu0 %v830
      %v2509 = vpop.f32.mrf.mxu0
      %v2510 = vadd.f32 0.0, %v2509
      %v2511 = vpop.f32.mrf.mxu0
      %2512 = vmatprep.mubr.f32.mxu0 0.0
      %2513 = vmatmul.mubr.f32.gmra.mxu0 %v833
      %v2514 = vpop.f32.mrf.mxu0
      %v2515 = vadd.f32 0.0, %v2514
      %v2516 = vpop.f32.mrf.mxu0
      %2517 = vmatprep.mubr.f32.mxu0 0.0
      %2518 = vmatmul.mubr.f32.gmra.mxu0 %v836
      %v2519 = vpop.f32.mrf.mxu0
      %v2520 = vadd.f32 0.0, %v2519
      %v2521 = vpop.f32.mrf.mxu0
      %2522 = vmatprep.mubr.f32.mxu0 0.0
      %2523 = vmatmul.mubr.f32.gmra.mxu0 %v839
      %v2524 = vpop.f32.mrf.mxu0
      %v2525 = vadd.f32 0.0, %v2524
      %v2526 = vpop.f32.mrf.mxu0
      %2527 = vmatprep.mubr.f32.mxu0 0.0
      %2528 = vmatmul.mubr.f32.gmra.mxu0 %v842
      %v2529 = vpop.f32.mrf.mxu0
      %v2530 = vadd.f32 0.0, %v2529
      %v2531 = vpop.f32.mrf.mxu0
      %2532 = vmatprep.mubr.f32.mxu0 0.0
      %2533 = vmatmul.mubr.f32.gmra.mxu0 %v845
      %v2534 = vpop.f32.mrf.mxu0
      %v2535 = vadd.f32 0.0, %v2534
      %v2536 = vpop.f32.mrf.mxu0
      %2537 = vmatprep.mubr.f32.mxu0 0.0
      %2538 = vmatmul.mubr.f32.gmra.mxu0 %v848
      %v2539 = vpop.f32.mrf.mxu0
      %v2540 = vadd.f32 0.0, %v2539
      %v2541 = vpop.f32.mrf.mxu0
      %2542 = vmatprep.mubr.f32.mxu0 0.0
      %2543 = vmatmul.mubr.f32.gmra.mxu0 %v851
      %v2544 = vpop.f32.mrf.mxu0
      %v2545 = vadd.f32 0.0, %v2544
      %v2546 = vpop.f32.mrf.mxu0
      %2547 = vmatprep.mubr.f32.mxu0 0.0
      %2548 = vmatmul.mubr.f32.gmra.mxu0 %v854
      %v2549 = vpop.f32.mrf.mxu0
      %v2550 = vadd.f32 0.0, %v2549
      %v2551 = vpop.f32.mrf.mxu0
      %2552 = vmatprep.mubr.f32.mxu0 0.0
      %2553 = vmatmul.mubr.f32.gmra.mxu0 %v857
      %v2554 = vpop.f32.mrf.mxu0
      %v2555 = vadd.f32 0.0, %v2554
      %v2556 = vpop.f32.mrf.mxu0
      %2557 = vmatprep.mubr.f32.mxu0 0.0
      %2558 = vmatmul.mubr.f32.gmra.mxu0 %v860
      %v2559 = vpop.f32.mrf.mxu0
      %v2560 = vadd.f32 0.0, %v2559
      %v2561 = vpop.f32.mrf.mxu0
      %2562 = vmatprep.mubr.f32.mxu0 0.0
      %2563 = vmatmul.mubr.f32.gmra.mxu0 %v863
      %v2564 = vpop.f32.mrf.mxu0
      %v2565 = vadd.f32 0.0, %v2564
      %v2566 = vpop.f32.mrf.mxu0
      %2567 = vmatprep.mubr.f32.mxu0 0.0
      %2568 = vmatmul.mubr.f32.gmra.mxu0 %v866
      %v2569 = vpop.f32.mrf.mxu0
      %v2570 = vadd.f32 0.0, %v2569
      %v2571 = vpop.f32.mrf.mxu0
      %2572 = vmatprep.mubr.f32.mxu0 0.0
      %2573 = vmatmul.mubr.f32.gmra.mxu0 %v869
      %v2574 = vpop.f32.mrf.mxu0
      %v2575 = vadd.f32 0.0, %v2574
      %v2576 = vpop.f32.mrf.mxu0
      %2577 = vmatprep.mubr.f32.mxu0 0.0
      %2578 = vmatmul.mubr.f32.gmra.mxu0 %v872
      %v2579 = vpop.f32.mrf.mxu0
      %v2580 = vadd.f32 0.0, %v2579
      %v2581 = vpop.f32.mrf.mxu0
      %2582 = vmatprep.mubr.f32.mxu0 0.0
      %2583 = vmatmul.mubr.f32.gmra.mxu0 %v875
      %v2584 = vpop.f32.mrf.mxu0
      %v2585 = vadd.f32 0.0, %v2584
      %v2586 = vpop.f32.mrf.mxu0
      %2587 = vmatprep.mubr.f32.mxu0 0.0
      %2588 = vmatmul.mubr.f32.gmra.mxu0 %v878
      %v2589 = vpop.f32.mrf.mxu0
      %v2590 = vadd.f32 0.0, %v2589
      %v2591 = vpop.f32.mrf.mxu0
      %2592 = vmatprep.mubr.f32.mxu0 0.0
      %2593 = vmatmul.mubr.f32.gmra.mxu0 %v881
      %v2594 = vpop.f32.mrf.mxu0
      %v2595 = vadd.f32 0.0, %v2594
      %v2596 = vpop.f32.mrf.mxu0
      %2597 = vmatprep.mubr.f32.mxu0 0.0
      %2598 = vmatmul.mubr.f32.gmra.mxu0 %v884
      %v2599 = vpop.f32.mrf.mxu0
      %v2600 = vadd.f32 0.0, %v2599
      %v2601 = vpop.f32.mrf.mxu0
      %2602 = vmatprep.mubr.f32.mxu0 0.0
      %2603 = vmatmul.mubr.f32.gmra.mxu0 %v887
      %v2604 = vpop.f32.mrf.mxu0
      %v2605 = vadd.f32 0.0, %v2604
      %v2606 = vpop.f32.mrf.mxu0
      %2607 = vmatprep.mubr.f32.mxu0 0.0
      %2608 = vmatmul.mubr.f32.gmra.mxu0 %v890
      %v2609 = vpop.f32.mrf.mxu0
      %v2610 = vadd.f32 0.0, %v2609
      %v2611 = vpop.f32.mrf.mxu0
      %2612 = vmatprep.mubr.f32.mxu0 0.0
      %2613 = vmatmul.mubr.f32.gmra.mxu0 %v893
      %v2614 = vpop.f32.mrf.mxu0
      %v2615 = vadd.f32 0.0, %v2614
      %v2616 = vpop.f32.mrf.mxu0
      %2617 = vmatprep.mubr.f32.mxu0 0.0
      %2618 = vmatmul.mubr.f32.gmra.mxu0 %v896
      %v2619 = vpop.f32.mrf.mxu0
      %v2620 = vadd.f32 0.0, %v2619
      %v2621 = vpop.f32.mrf.mxu0
      %2622 = vmatprep.mubr.f32.mxu0 0.0
      %2623 = vmatmul.mubr.f32.gmra.mxu0 %v899
      %v2624 = vpop.f32.mrf.mxu0
      %v2625 = vadd.f32 0.0, %v2624
      %v2626 = vpop.f32.mrf.mxu0
      %2627 = vmatprep.mubr.f32.mxu0 0.0
      %2628 = vmatmul.mubr.f32.gmra.mxu0 %v902
      %v2629 = vpop.f32.mrf.mxu0
      %v2630 = vadd.f32 0.0, %v2629
      %v2631 = vpop.f32.mrf.mxu0
      %2632 = vmatprep.mubr.f32.mxu0 0.0
      %2633 = vmatmul.mubr.f32.gmra.mxu0 %v905
      %v2634 = vpop.f32.mrf.mxu0
      %v2635 = vadd.f32 0.0, %v2634
      %v2636 = vpop.f32.mrf.mxu0
      %2637 = vmatprep.mubr.f32.mxu0 0.0
      %2638 = vmatmul.mubr.f32.gmra.mxu0 %v908
      %v2639 = vpop.f32.mrf.mxu0
      %v2640 = vadd.f32 0.0, %v2639
      %v2641 = vpop.f32.mrf.mxu0
      %2642 = vmatprep.mubr.f32.mxu0 0.0
      %2643 = vmatmul.mubr.f32.gmra.mxu0 %v911
      %v2644 = vpop.f32.mrf.mxu0
      %v2645 = vadd.f32 0.0, %v2644
      %v2646 = vpop.f32.mrf.mxu0
      %2647 = vmatprep.mubr.f32.mxu0 0.0
      %2648 = vmatmul.mubr.f32.gmra.mxu0 %v914
      %v2649 = vpop.f32.mrf.mxu0
      %v2650 = vadd.f32 0.0, %v2649
      %v2651 = vpop.f32.mrf.mxu0
      %2652 = vmatprep.mubr.f32.mxu0 0.0
      %2653 = vmatmul.mubr.f32.gmra.mxu0 %v917
      %v2654 = vpop.f32.mrf.mxu0
      %v2655 = vadd.f32 0.0, %v2654
      %v2656 = vpop.f32.mrf.mxu0
      %2657 = vmatprep.mubr.f32.mxu0 0.0
      %2658 = vmatmul.mubr.f32.gmra.mxu0 %v920
      %v2659 = vpop.f32.mrf.mxu0
      %v2660 = vadd.f32 0.0, %v2659
      %v2661 = vpop.f32.mrf.mxu0
      %2662 = vmatprep.mubr.f32.mxu0 0.0
      %2663 = vmatmul.mubr.f32.gmra.mxu0 %v923
      %v2664 = vpop.f32.mrf.mxu0
      %v2665 = vadd.f32 0.0, %v2664
      %v2666 = vpop.f32.mrf.mxu0
      %2667 = vmatprep.mubr.f32.mxu0 0.0
      %2668 = vmatmul.mubr.f32.gmra.mxu0 %v926
      %v2669 = vpop.f32.mrf.mxu0
      %v2670 = vadd.f32 0.0, %v2669
      %v2671 = vpop.f32.mrf.mxu0
      %2672 = vmatprep.mubr.f32.mxu0 0.0
      %2673 = vmatmul.mubr.f32.gmra.mxu0 %v929
      %v2674 = vpop.f32.mrf.mxu0
      %v2675 = vadd.f32 0.0, %v2674
      %v2676 = vpop.f32.mrf.mxu0
      %2677 = vmatprep.mubr.f32.mxu0 0.0
      %2678 = vmatmul.mubr.f32.gmra.mxu0 %v932
      %v2679 = vpop.f32.mrf.mxu0
      %v2680 = vadd.f32 0.0, %v2679
      %v2681 = vpop.f32.mrf.mxu0
      %2682 = vmatprep.mubr.f32.mxu0 0.0
      %2683 = vmatmul.mubr.f32.gmra.mxu0 %v935
      %v2684 = vpop.f32.mrf.mxu0
      %v2685 = vadd.f32 0.0, %v2684
      %v2686 = vpop.f32.mrf.mxu0
      %2687 = vmatprep.mubr.f32.mxu0 0.0
      %2688 = vmatmul.mubr.f32.gmra.mxu0 %v938
      %v2689 = vpop.f32.mrf.mxu0
      %v2690 = vadd.f32 0.0, %v2689
      %v2691 = vpop.f32.mrf.mxu0
      %2692 = vmatprep.mubr.f32.mxu0 0.0
      %2693 = vmatmul.mubr.f32.gmra.mxu0 %v941
      %v2694 = vpop.f32.mrf.mxu0
      %v2695 = vadd.f32 0.0, %v2694
      %v2696 = vpop.f32.mrf.mxu0
      %2697 = vmatprep.mubr.f32.mxu0 0.0
      %2698 = vmatmul.mubr.f32.gmra.mxu0 %v944
      %v2699 = vpop.f32.mrf.mxu0
      %v2700 = vadd.f32 0.0, %v2699
      %v2701 = vpop.f32.mrf.mxu0
      %2702 = vmatprep.mubr.f32.mxu0 0.0
      %2703 = vmatmul.mubr.f32.gmra.mxu0 %v947
      %v2704 = vpop.f32.mrf.mxu0
      %v2705 = vadd.f32 0.0, %v2704
      %v2706 = vpop.f32.mrf.mxu0
      %2707 = vmatprep.mubr.f32.mxu0 0.0
      %2708 = vmatmul.mubr.f32.gmra.mxu0 %v950
      %v2709 = vpop.f32.mrf.mxu0
      %v2710 = vadd.f32 0.0, %v2709
      %v2711 = vpop.f32.mrf.mxu0
      %2712 = vmatprep.mubr.f32.mxu0 0.0
      %2713 = vmatmul.mubr.f32.gmra.mxu0 %v953
      %v2714 = vpop.f32.mrf.mxu0
      %v2715 = vadd.f32 0.0, %v2714
      %v2716 = vpop.f32.mrf.mxu0
      %2717 = vmatprep.mubr.f32.mxu0 0.0
      %2718 = vmatmul.mubr.f32.gmra.mxu0 %v956
      %v2719 = vpop.f32.mrf.mxu0
      %v2720 = vadd.f32 0.0, %v2719
      %v2721 = vpop.f32.mrf.mxu0
      %2722 = vmatprep.mubr.f32.mxu0 0.0
      %2723 = vmatmul.mubr.f32.gmra.mxu0 %v959
      %v2724 = vpop.f32.mrf.mxu0
      %v2725 = vadd.f32 0.0, %v2724
      %v2726 = vpop.f32.mrf.mxu0
      %2727 = vmatprep.mubr.f32.mxu0 0.0
      %2728 = vmatmul.mubr.f32.gmra.mxu0 %v962
      %v2729 = vpop.f32.mrf.mxu0
      %v2730 = vadd.f32 0.0, %v2729
      %v2731 = vpop.f32.mrf.mxu0
      %2732 = vmatprep.mubr.f32.mxu0 0.0
      %2733 = vmatmul.mubr.f32.gmra.mxu0 %v965
      %v2734 = vpop.f32.mrf.mxu0
      %v2735 = vadd.f32 0.0, %v2734
      %v2736 = vpop.f32.mrf.mxu0
      %2737 = vmatprep.mubr.f32.mxu0 0.0
      %2738 = vmatmul.mubr.f32.gmra.mxu0 %v968
      %v2739 = vpop.f32.mrf.mxu0
      %v2740 = vadd.f32 0.0, %v2739
      %v2741 = vpop.f32.mrf.mxu0
      %2742 = vmatprep.mubr.f32.mxu0 0.0
      %2743 = vmatmul.mubr.f32.gmra.mxu0 %v971
      %v2744 = vpop.f32.mrf.mxu0
      %v2745 = vadd.f32 0.0, %v2744
      %v2746 = vpop.f32.mrf.mxu0
      %2747 = vmatprep.mubr.f32.mxu0 0.0
      %2748 = vmatmul.mubr.f32.gmra.mxu0 %v974
      %v2749 = vpop.f32.mrf.mxu0
      %v2750 = vadd.f32 0.0, %v2749
      %v2751 = vpop.f32.mrf.mxu0
      %2752 = vmatprep.mubr.f32.mxu0 0.0
      %2753 = vmatmul.mubr.f32.gmra.mxu0 %v977
      %v2754 = vpop.f32.mrf.mxu0
      %v2755 = vadd.f32 0.0, %v2754
      %v2756 = vpop.f32.mrf.mxu0
      %2757 = vmatprep.mubr.f32.mxu0 0.0
      %2758 = vmatmul.mubr.f32.gmra.mxu0 %v980
      %v2759 = vpop.f32.mrf.mxu0
      %v2760 = vadd.f32 0.0, %v2759
      %v2761 = vpop.f32.mrf.mxu0
      %2762 = vmatprep.mubr.f32.mxu0 0.0
      %2763 = vmatmul.mubr.f32.gmra.mxu0 %v983
      %v2764 = vpop.f32.mrf.mxu0
      %v2765 = vadd.f32 0.0, %v2764
      %v2766 = vpop.f32.mrf.mxu0
      %2767 = vmatprep.mubr.f32.mxu0 0.0
      %2768 = vmatmul.mubr.f32.gmra.mxu0 %v986
      %v2769 = vpop.f32.mrf.mxu0
      %v2770 = vadd.f32 0.0, %v2769
      %v2771 = vpop.f32.mrf.mxu0
      %2772 = vmatprep.mubr.f32.mxu0 0.0
      %2773 = vmatmul.mubr.f32.gmra.mxu0 %v989
      %v2774 = vpop.f32.mrf.mxu0
      %v2775 = vadd.f32 0.0, %v2774
      %v2776 = vpop.f32.mrf.mxu0
      %2777 = vmatprep.mubr.f32.mxu0 0.0
      %2778 = vmatmul.mubr.f32.gmra.mxu0 %v992
      %v2779 = vpop.f32.mrf.mxu0
      %v2780 = vadd.f32 0.0, %v2779
      %v2781 = vpop.f32.mrf.mxu0
      %2782 = vmatprep.mubr.f32.mxu0 0.0
      %2783 = vmatmul.mubr.f32.gmra.mxu0 %v995
      %v2784 = vpop.f32.mrf.mxu0
      %v2785 = vadd.f32 0.0, %v2784
      %v2786 = vpop.f32.mrf.mxu0
      %2787 = vmatprep.mubr.f32.mxu0 0.0
      %2788 = vmatmul.mubr.f32.gmra.mxu0 %v998
      %v2789 = vpop.f32.mrf.mxu0
      %v2790 = vadd.f32 0.0, %v2789
      %v2791 = vpop.f32.mrf.mxu0
      %2792 = vmatprep.mubr.f32.mxu0 0.0
      %2793 = vmatmul.mubr.f32.gmra.mxu0 %v1001
      %v2794 = vpop.f32.mrf.mxu0
      %v2795 = vadd.f32 0.0, %v2794
      %v2796 = vpop.f32.mrf.mxu0
      %2797 = vmatprep.mubr.f32.mxu0 0.0
      %2798 = vmatmul.mubr.f32.gmra.mxu0 %v1004
      %v2799 = vpop.f32.mrf.mxu0
      %v2800 = vadd.f32 0.0, %v2799
      %v2801 = vpop.f32.mrf.mxu0
      %2802 = vmatprep.mubr.f32.mxu0 0.0
      %2803 = vmatmul.mubr.f32.gmra.mxu0 %v1007
      %v2804 = vpop.f32.mrf.mxu0
      %v2805 = vadd.f32 0.0, %v2804
      %v2806 = vpop.f32.mrf.mxu0
      %2807 = vmatprep.mubr.f32.mxu0 0.0
      %2808 = vmatmul.mubr.f32.gmra.mxu0 %v1010
      %v2809 = vpop.f32.mrf.mxu0
      %v2810 = vadd.f32 0.0, %v2809
      %v2811 = vpop.f32.mrf.mxu0
      %2812 = vmatprep.mubr.f32.mxu0 0.0
      %2813 = vmatmul.mubr.f32.gmra.mxu0 %v1013
      %v2814 = vpop.f32.mrf.mxu0
      %v2815 = vadd.f32 0.0, %v2814
      %v2816 = vpop.f32.mrf.mxu0
      %2817 = vmatprep.mubr.f32.mxu0 0.0
      %2818 = vmatmul.mubr.f32.gmra.mxu0 %v1016
      %v2819 = vpop.f32.mrf.mxu0
      %v2820 = vadd.f32 0.0, %v2819
      %v2821 = vpop.f32.mrf.mxu0
      %2822 = vmatprep.mubr.f32.mxu0 0.0
      %2823 = vmatmul.mubr.f32.gmra.mxu0 %v1019
      %v2824 = vpop.f32.mrf.mxu0
      %v2825 = vadd.f32 0.0, %v2824
      %v2826 = vpop.f32.mrf.mxu0
      %2827 = vmatprep.mubr.f32.mxu0 0.0
      %2828 = vmatmul.mubr.f32.gmra.mxu0 %v1022
      %v2829 = vpop.f32.mrf.mxu0
      %v2830 = vadd.f32 0.0, %v2829
      %v2831 = vpop.f32.mrf.mxu0
      %2832 = vmatprep.mubr.f32.mxu0 0.0
      %2833 = vmatmul.mubr.f32.gmra.mxu0 %v1025
      %v2834 = vpop.f32.mrf.mxu0
      %v2835 = vadd.f32 0.0, %v2834
      %v2836 = vpop.f32.mrf.mxu0
      %2837 = vmatprep.mubr.f32.mxu0 0.0
      %2838 = vmatmul.mubr.f32.gmra.mxu0 %v1028
      %v2839 = vpop.f32.mrf.mxu0
      %v2840 = vadd.f32 0.0, %v2839
      %v2841 = vpop.f32.mrf.mxu0
      %2842 = vmatprep.mubr.f32.mxu0 0.0
      %2843 = vmatmul.mubr.f32.gmra.mxu0 %v1031
      %v2844 = vpop.f32.mrf.mxu0
      %v2845 = vadd.f32 0.0, %v2844
      %v2846 = vpop.f32.mrf.mxu0
      %2847 = vmatprep.mubr.f32.mxu0 0.0
      %2848 = vmatmul.mubr.f32.gmra.mxu0 %v1034
      %v2849 = vpop.f32.mrf.mxu0
      %v2850 = vadd.f32 0.0, %v2849
      %v2851 = vpop.f32.mrf.mxu0
      %2852 = vmatprep.mubr.f32.mxu0 0.0
      %2853 = vmatmul.mubr.f32.gmra.mxu0 %v1037
      %v2854 = vpop.f32.mrf.mxu0
      %v2855 = vadd.f32 0.0, %v2854
      %v2856 = vpop.f32.mrf.mxu0
      %2857 = vmatprep.mubr.f32.mxu0 0.0
      %2858 = vmatmul.mubr.f32.gmra.mxu0 %v1040
      %v2859 = vpop.f32.mrf.mxu0
      %v2860 = vadd.f32 0.0, %v2859
      %v2861 = vpop.f32.mrf.mxu0
      %2862 = vmatprep.mubr.f32.mxu0 0.0
      %2863 = vmatmul.mubr.f32.gmra.mxu0 %v1043
      %v2864 = vpop.f32.mrf.mxu0
      %v2865 = vadd.f32 0.0, %v2864
      %v2866 = vpop.f32.mrf.mxu0
      %2867 = vmatprep.mubr.f32.mxu0 0.0
      %2868 = vmatmul.mubr.f32.gmra.mxu0 %v1046
      %v2869 = vpop.f32.mrf.mxu0
      %v2870 = vadd.f32 0.0, %v2869
      %v2871 = vpop.f32.mrf.mxu0
      %2872 = vmatprep.mubr.f32.mxu0 0.0
      %2873 = vmatmul.mubr.f32.gmra.mxu0 %v1049
      %v2874 = vpop.f32.mrf.mxu0
      %v2875 = vadd.f32 0.0, %v2874
      %v2876 = vpop.f32.mrf.mxu0
      %2877 = vmatprep.mubr.f32.mxu0 0.0
      %2878 = vmatmul.mubr.f32.gmra.mxu0 %v1052
      %v2879 = vpop.f32.mrf.mxu0
      %v2880 = vadd.f32 0.0, %v2879
      %v2881 = vpop.f32.mrf.mxu0
      %2882 = vmatprep.mubr.f32.mxu0 0.0
      %2883 = vmatmul.mubr.f32.gmra.mxu0 %v1055
      %v2884 = vpop.f32.mrf.mxu0
      %v2885 = vadd.f32 0.0, %v2884
      %v2886 = vpop.f32.mrf.mxu0
      %2887 = vmatprep.mubr.f32.mxu0 0.0
      %2888 = vmatmul.mubr.f32.gmra.mxu0 %v1058
      %v2889 = vpop.f32.mrf.mxu0
      %v2890 = vadd.f32 0.0, %v2889
      %v2891 = vpop.f32.mrf.mxu0
      %2892 = vmatprep.mubr.f32.mxu0 0.0
      %2893 = vmatmul.mubr.f32.gmra.mxu0 %v1061
      %v2894 = vpop.f32.mrf.mxu0
      %v2895 = vadd.f32 0.0, %v2894
      %v2896 = vpop.f32.mrf.mxu0
      %2897 = vmatprep.mubr.f32.mxu0 0.0
      %2898 = vmatmul.mubr.f32.gmra.mxu0 %v1064
      %v2899 = vpop.f32.mrf.mxu0
      %v2900 = vadd.f32 0.0, %v2899
      %v2901 = vpop.f32.mrf.mxu0
      %2902 = vmatprep.mubr.f32.mxu0 0.0
      %2903 = vmatmul.mubr.f32.gmra.mxu0 %v1067
      %v2904 = vpop.f32.mrf.mxu0
      %v2905 = vadd.f32 0.0, %v2904
      %v2906 = vpop.f32.mrf.mxu0
      %2907 = vmatprep.mubr.f32.mxu0 0.0
      %2908 = vmatmul.mubr.f32.gmra.mxu0 %v1070
      %v2909 = vpop.f32.mrf.mxu0
      %v2910 = vadd.f32 0.0, %v2909
      %v2911 = vpop.f32.mrf.mxu0
      %2912 = vmatprep.mubr.f32.mxu0 0.0
      %2913 = vmatmul.mubr.f32.gmra.mxu0 %v1073
      %v2914 = vpop.f32.mrf.mxu0
      %v2915 = vadd.f32 0.0, %v2914
      %v2916 = vpop.f32.mrf.mxu0
      %2917 = vmatprep.mubr.f32.mxu0 0.0
      %2918 = vmatmul.mubr.f32.gmra.mxu0 %v1076
      %v2919 = vpop.f32.mrf.mxu0
      %v2920 = vadd.f32 0.0, %v2919
      %v2921 = vpop.f32.mrf.mxu0
      %2922 = vmatprep.mubr.f32.mxu0 0.0
      %2923 = vmatmul.mubr.f32.gmra.mxu0 %v1079
      %v2924 = vpop.f32.mrf.mxu0
      %v2925 = vadd.f32 0.0, %v2924
      %v2926 = vpop.f32.mrf.mxu0
      %2927 = vmatprep.mubr.f32.mxu0 0.0
      %2928 = vmatmul.mubr.f32.gmra.mxu0 %v1082
      %v2929 = vpop.f32.mrf.mxu0
      %v2930 = vadd.f32 0.0, %v2929
      %v2931 = vpop.f32.mrf.mxu0
      %2932 = vmatprep.mubr.f32.mxu0 0.0
      %2933 = vmatmul.mubr.f32.gmra.mxu0 %v1085
      %v2934 = vpop.f32.mrf.mxu0
      %v2935 = vadd.f32 0.0, %v2934
      %v2936 = vpop.f32.mrf.mxu0
      %2937 = vmatprep.mubr.f32.mxu0 0.0
      %2938 = vmatmul.mubr.f32.gmra.mxu0 %v1088
      %v2939 = vpop.f32.mrf.mxu0
      %v2940 = vadd.f32 0.0, %v2939
      %v2941 = vpop.f32.mrf.mxu0
      %2942 = vmatprep.mubr.f32.mxu0 0.0
      %2943 = vmatmul.mubr.f32.gmra.mxu0 %v1091
      %v2944 = vpop.f32.mrf.mxu0
      %v2945 = vadd.f32 0.0, %v2944
      %v2946 = vpop.f32.mrf.mxu0
      %2947 = vmatprep.mubr.f32.mxu0 0.0
      %2948 = vmatmul.mubr.f32.gmra.mxu0 %v1094
      %v2949 = vpop.f32.mrf.mxu0
      %v2950 = vadd.f32 0.0, %v2949
      %v2951 = vpop.f32.mrf.mxu0
      %2952 = vmatprep.mubr.f32.mxu0 0.0
      %2953 = vmatmul.mubr.f32.gmra.mxu0 %v1097
      %v2954 = vpop.f32.mrf.mxu0
      %v2955 = vadd.f32 0.0, %v2954
      %v2956 = vpop.f32.mrf.mxu0
      %2957 = vmatprep.mubr.f32.mxu0 0.0
      %2958 = vmatmul.mubr.f32.gmra.mxu0 %v1100
      %v2959 = vpop.f32.mrf.mxu0
      %v2960 = vadd.f32 0.0, %v2959
      %v2961 = vpop.f32.mrf.mxu0
      %2962 = vmatprep.mubr.f32.mxu0 0.0
      %2963 = vmatmul.mubr.f32.gmra.mxu0 %v1103
      %v2964 = vpop.f32.mrf.mxu0
      %v2965 = vadd.f32 0.0, %v2964
      %v2966 = vpop.f32.mrf.mxu0
      %2967 = vmatprep.mubr.f32.mxu0 0.0
      %2968 = vmatmul.mubr.f32.gmra.mxu0 %v1106
      %v2969 = vpop.f32.mrf.mxu0
      %v2970 = vadd.f32 0.0, %v2969
      %v2971 = vpop.f32.mrf.mxu0
      %2972 = vmatprep.mubr.f32.mxu0 0.0
      %2973 = vmatmul.mubr.f32.gmra.mxu0 %v1109
      %v2974 = vpop.f32.mrf.mxu0
      %v2975 = vadd.f32 0.0, %v2974
      %v2976 = vpop.f32.mrf.mxu0
      %2977 = vmatprep.mubr.f32.mxu0 0.0
      %2978 = vmatmul.mubr.f32.gmra.mxu0 %v1112
      %v2979 = vpop.f32.mrf.mxu0
      %v2980 = vadd.f32 0.0, %v2979
      %v2981 = vpop.f32.mrf.mxu0
      %2982 = vmatprep.mubr.f32.mxu0 0.0
      %2983 = vmatmul.mubr.f32.gmra.mxu0 %v1115
      %v2984 = vpop.f32.mrf.mxu0
      %v2985 = vadd.f32 0.0, %v2984
      %v2986 = vpop.f32.mrf.mxu0
      %2987 = vmatprep.mubr.f32.mxu0 0.0
      %2988 = vmatmul.mubr.f32.gmra.mxu0 %v1118
      %v2989 = vpop.f32.mrf.mxu0
      %v2990 = vadd.f32 0.0, %v2989
      %v2991 = vpop.f32.mrf.mxu0
      %2992 = vmatprep.mubr.f32.mxu0 0.0
      %2993 = vmatmul.mubr.f32.gmra.mxu0 %v1121
      %v2994 = vpop.f32.mrf.mxu0
      %v2995 = vadd.f32 0.0, %v2994
      %v2996 = vpop.f32.mrf.mxu0
      %2997 = vmatprep.mubr.f32.mxu0 0.0
      %2998 = vmatmul.mubr.f32.gmra.mxu0 %v1124
      %v2999 = vpop.f32.mrf.mxu0
      %v3000 = vadd.f32 0.0, %v2999
      %v3001 = vpop.f32.mrf.mxu0
      %3002 = vmatprep.mubr.f32.mxu0 0.0
      %3003 = vmatmul.mubr.f32.gmra.mxu0 %v1127
      %v3004 = vpop.f32.mrf.mxu0
      %v3005 = vadd.f32 0.0, %v3004
      %v3006 = vpop.f32.mrf.mxu0
      %3007 = vmatprep.mubr.f32.mxu0 0.0
      %3008 = vmatmul.mubr.f32.gmra.mxu0 %v1130
      %v3009 = vpop.f32.mrf.mxu0
      %v3010 = vadd.f32 0.0, %v3009
      %v3011 = vpop.f32.mrf.mxu0
      %3012 = vmatprep.mubr.f32.mxu0 0.0
      %3013 = vmatmul.mubr.f32.gmra.mxu0 %v1133
      %v3014 = vpop.f32.mrf.mxu0
      %v3015 = vadd.f32 0.0, %v3014
      %v3016 = vpop.f32.mrf.mxu0
      %3017 = vmatprep.mubr.f32.mxu0 0.0
      %3018 = vmatmul.mubr.f32.gmra.mxu0 %v1136
      %v3019 = vpop.f32.mrf.mxu0
      %v3020 = vadd.f32 0.0, %v3019
      %v3021 = vpop.f32.mrf.mxu0
      %3022 = vmatprep.mubr.f32.mxu0 0.0
      %3023 = vmatmul.mubr.f32.gmra.mxu0 %v1139
      %v3024 = vpop.f32.mrf.mxu0
      %v3025 = vadd.f32 0.0, %v3024
      %v3026 = vpop.f32.mrf.mxu0
      %3027 = vmatprep.mubr.f32.mxu0 0.0
      %3028 = vmatmul.mubr.f32.gmra.mxu0 %v1142
      %v3029 = vpop.f32.mrf.mxu0
      %v3030 = vadd.f32 0.0, %v3029
      %v3031 = vpop.f32.mrf.mxu0
      %3032 = vmatprep.mubr.f32.mxu0 0.0
      %3033 = vmatmul.mubr.f32.gmra.mxu0 %v1145
      %v3034 = vpop.f32.mrf.mxu0
      %v3035 = vadd.f32 0.0, %v3034
      %v3036 = vpop.f32.mrf.mxu0
      %3037 = vmatprep.mubr.f32.mxu0 0.0
      %3038 = vmatmul.mubr.f32.gmra.mxu0 %v1148
      %v3039 = vpop.f32.mrf.mxu0
      %v3040 = vadd.f32 0.0, %v3039
      %v3041 = vpop.f32.mrf.mxu0
      %3042 = vmatprep.mubr.f32.mxu0 0.0
      %3043 = vmatmul.mubr.f32.gmra.mxu0 %v1151
      %v3044 = vpop.f32.mrf.mxu0
      %v3045 = vadd.f32 0.0, %v3044
      %v3046 = vpop.f32.mrf.mxu0
      %3047 = vmatprep.mubr.f32.mxu0 0.0
      %3048 = vmatmul.mubr.f32.gmra.mxu0 %v1154
      %v3049 = vpop.f32.mrf.mxu0
      %v3050 = vadd.f32 0.0, %v3049
      %v3051 = vpop.f32.mrf.mxu0
      %3052 = vmatprep.mubr.f32.mxu0 0.0
      %3053 = vmatmul.mubr.f32.gmra.mxu0 %v1157
      %v3054 = vpop.f32.mrf.mxu0
      %v3055 = vadd.f32 0.0, %v3054
      %v3056 = vpop.f32.mrf.mxu0
      %3057 = vmatprep.mubr.f32.mxu0 0.0
      %3058 = vmatmul.mubr.f32.gmra.mxu0 %v1160
      %v3059 = vpop.f32.mrf.mxu0
      %v3060 = vadd.f32 0.0, %v3059
      %v3061 = vpop.f32.mrf.mxu0
      %3062 = vmatprep.mubr.f32.mxu0 0.0
      %3063 = vmatmul.mubr.f32.gmra.mxu0 %v1163
      %v3064 = vpop.f32.mrf.mxu0
      %v3065 = vadd.f32 0.0, %v3064
      %v3066 = vpop.f32.mrf.mxu0
      %3067 = vmatprep.mubr.f32.mxu0 0.0
      %3068 = vmatmul.mubr.f32.gmra.mxu0 %v1166
      %v3069 = vpop.f32.mrf.mxu0
      %v3070 = vadd.f32 0.0, %v3069
      %v3071 = vpop.f32.mrf.mxu0
      %3072 = vmatprep.mubr.f32.mxu0 0.0
      %3073 = vmatmul.mubr.f32.gmra.mxu0 %v1169
      %v3074 = vpop.f32.mrf.mxu0
      %v3075 = vadd.f32 0.0, %v3074
      %v3076 = vpop.f32.mrf.mxu0
      %3077 = vmatprep.mubr.f32.mxu0 0.0
      %3078 = vmatmul.mubr.f32.gmra.mxu0 %v1172
      %v3079 = vpop.f32.mrf.mxu0
      %v3080 = vadd.f32 0.0, %v3079
      %v3081 = vpop.f32.mrf.mxu0
      %3082 = vmatprep.mubr.f32.mxu0 0.0
      %3083 = vmatmul.mubr.f32.gmra.mxu0 %v1175
      %v3084 = vpop.f32.mrf.mxu0
      %v3085 = vadd.f32 0.0, %v3084
      %v3086 = vpop.f32.mrf.mxu0
      %3087 = vmatprep.mubr.f32.mxu0 0.0
      %3088 = vmatmul.mubr.f32.gmra.mxu0 %v1178
      %v3089 = vpop.f32.mrf.mxu0
      %v3090 = vadd.f32 0.0, %v3089
      %v3091 = vpop.f32.mrf.mxu0
      %3092 = vmatprep.mubr.f32.mxu0 0.0
      %3093 = vmatmul.mubr.f32.gmra.mxu0 %v1181
      %v3094 = vpop.f32.mrf.mxu0
      %v3095 = vadd.f32 0.0, %v3094
      %v3096 = vpop.f32.mrf.mxu0
      %3097 = vmatprep.mubr.f32.mxu0 0.0
      %3098 = vmatmul.mubr.f32.gmra.mxu0 %v1184
      %v3099 = vpop.f32.mrf.mxu0
      %v3100 = vadd.f32 0.0, %v3099
      %v3101 = vpop.f32.mrf.mxu0
      %3102 = vmatprep.mubr.f32.mxu0 0.0
      %3103 = vmatmul.mubr.f32.gmra.mxu0 %v1187
      %v3104 = vpop.f32.mrf.mxu0
      %v3105 = vadd.f32 0.0, %v3104
      %v3106 = vpop.f32.mrf.mxu0
      %3107 = vmatprep.mubr.f32.mxu0 0.0
      %3108 = vmatmul.mubr.f32.gmra.mxu0 %v1190
      %v3109 = vpop.f32.mrf.mxu0
      %v3110 = vadd.f32 0.0, %v3109
      %v3111 = vpop.f32.mrf.mxu0
      %3112 = vmatprep.mubr.f32.mxu0 0.0
      %3113 = vmatmul.mubr.f32.gmra.mxu0 %v1193
      %v3114 = vpop.f32.mrf.mxu0
      %v3115 = vadd.f32 0.0, %v3114
      %v3116 = vpop.f32.mrf.mxu0
      %3117 = vmatprep.mubr.f32.mxu0 0.0
      %3118 = vmatmul.mubr.f32.gmra.mxu0 %v1196
      %v3119 = vpop.f32.mrf.mxu0
      %v3120 = vadd.f32 0.0, %v3119
      %v3121 = vpop.f32.mrf.mxu0
      %3122 = vmatprep.mubr.f32.mxu0 0.0
      %3123 = vmatmul.mubr.f32.gmra.mxu0 %v1199
      %v3124 = vpop.f32.mrf.mxu0
      %v3125 = vadd.f32 0.0, %v3124
      %v3126 = vpop.f32.mrf.mxu0
      %3127 = vmatprep.mubr.f32.mxu0 0.0
      %3128 = vmatmul.mubr.f32.gmra.mxu0 %v1202
      %v3129 = vpop.f32.mrf.mxu0
      %v3130 = vadd.f32 0.0, %v3129
      %v3131 = vpop.f32.mrf.mxu0
      %3132 = vmatprep.mubr.f32.mxu0 0.0
      %3133 = vmatmul.mubr.f32.gmra.mxu0 %v1205
      %v3134 = vpop.f32.mrf.mxu0
      %v3135 = vadd.f32 0.0, %v3134
      %v3136 = vpop.f32.mrf.mxu0
      %3137 = vmatprep.mubr.f32.mxu0 0.0
      %3138 = vmatmul.mubr.f32.gmra.mxu0 %v1208
      %v3139 = vpop.f32.mrf.mxu0
      %v3140 = vadd.f32 0.0, %v3139
      %v3141 = vpop.f32.mrf.mxu0
      %3142 = vmatprep.mubr.f32.mxu0 0.0
      %3143 = vmatmul.mubr.f32.gmra.mxu0 %v1211
      %v3144 = vpop.f32.mrf.mxu0
      %v3145 = vadd.f32 0.0, %v3144
      %v3146 = vpop.f32.mrf.mxu0
      %3147 = vmatprep.mubr.f32.mxu0 0.0
      %3148 = vmatmul.mubr.f32.gmra.mxu0 %v1214
      %v3149 = vpop.f32.mrf.mxu0
      %v3150 = vadd.f32 0.0, %v3149
      %v3151 = vpop.f32.mrf.mxu0
      %3152 = vmatprep.mubr.f32.mxu0 0.0
      %3153 = vmatmul.mubr.f32.gmra.mxu0 %v1217
      %v3154 = vpop.f32.mrf.mxu0
      %v3155 = vadd.f32 0.0, %v3154
      %v3156 = vpop.f32.mrf.mxu0
      %3157 = vmatprep.mubr.f32.mxu0 0.0
      %3158 = vmatmul.mubr.f32.gmra.mxu0 %v1220
      %v3159 = vpop.f32.mrf.mxu0
      %v3160 = vadd.f32 0.0, %v3159
      %v3161 = vpop.f32.mrf.mxu0
      %3162 = vmatprep.mubr.f32.mxu0 0.0
      %3163 = vmatmul.mubr.f32.gmra.mxu0 %v1223
      %v3164 = vpop.f32.mrf.mxu0
      %v3165 = vadd.f32 0.0, %v3164
      %v3166 = vpop.f32.mrf.mxu0
      %3167 = vmatprep.mubr.f32.mxu0 0.0
      %3168 = vmatmul.mubr.f32.gmra.mxu0 %v1226
      %v3169 = vpop.f32.mrf.mxu0
      %v3170 = vadd.f32 0.0, %v3169
      %v3171 = vpop.f32.mrf.mxu0
      %3172 = vmatprep.mubr.f32.mxu0 0.0
      %3173 = vmatmul.mubr.f32.gmra.mxu0 %v1229
      %v3174 = vpop.f32.mrf.mxu0
      %v3175 = vadd.f32 0.0, %v3174
      %v3176 = vpop.f32.mrf.mxu0
      %3177 = vmatprep.mubr.f32.mxu0 0.0
      %3178 = vmatmul.mubr.f32.gmra.mxu0 %v1232
      %v3179 = vpop.f32.mrf.mxu0
      %v3180 = vadd.f32 0.0, %v3179
      %v3181 = vpop.f32.mrf.mxu0
      %3182 = vmatprep.mubr.f32.mxu0 0.0
      %3183 = vmatmul.mubr.f32.gmra.mxu0 %v1235
      %v3184 = vpop.f32.mrf.mxu0
      %v3185 = vadd.f32 0.0, %v3184
      %v3186 = vpop.f32.mrf.mxu0
      %3187 = vmatprep.mubr.f32.mxu0 0.0
      %3188 = vmatmul.mubr.f32.gmra.mxu0 %v1238
      %v3189 = vpop.f32.mrf.mxu0
      %v3190 = vadd.f32 0.0, %v3189
      %v3191 = vpop.f32.mrf.mxu0
      %3192 = vmatprep.mubr.f32.mxu0 0.0
      %3193 = vmatmul.mubr.f32.gmra.mxu0 %v1241
      %v3194 = vpop.f32.mrf.mxu0
      %v3195 = vadd.f32 0.0, %v3194
      %v3196 = vpop.f32.mrf.mxu0
      %3197 = vmatprep.mubr.f32.mxu0 0.0
      %3198 = vmatmul.mubr.f32.gmra.mxu0 %v1244
      %v3199 = vpop.f32.mrf.mxu0
      %v3200 = vadd.f32 0.0, %v3199
      %v3201 = vpop.f32.mrf.mxu0
      %3202 = vmatprep.mubr.f32.mxu0 0.0
      %3203 = vmatmul.mubr.f32.gmra.mxu0 %v1247
      %v3204 = vpop.f32.mrf.mxu0
      %v3205 = vadd.f32 0.0, %v3204
      %v3206 = vpop.f32.mrf.mxu0
      %3207 = vmatprep.mubr.f32.mxu0 0.0
      %3208 = vmatmul.mubr.f32.gmra.mxu0 %v1250
      %v3209 = vpop.f32.mrf.mxu0
      %v3210 = vadd.f32 0.0, %v3209
      %v3211 = vpop.f32.mrf.mxu0
      %3212 = vmatprep.mubr.f32.mxu0 0.0
      %3213 = vmatmul.mubr.f32.gmra.mxu0 %v1253
      %v3214 = vpop.f32.mrf.mxu0
      %v3215 = vadd.f32 0.0, %v3214
      %v3216 = vpop.f32.mrf.mxu0
      %3217 = vmatprep.mubr.f32.mxu0 0.0
      %3218 = vmatmul.mubr.f32.gmra.mxu0 %v1256
      %v3219 = vpop.f32.mrf.mxu0
      %v3220 = vadd.f32 0.0, %v3219
      %v3221 = vpop.f32.mrf.mxu0
      %3222 = vmatprep.mubr.f32.mxu0 0.0
      %3223 = vmatmul.mubr.f32.gmra.mxu0 %v1259
      %v3224 = vpop.f32.mrf.mxu0
      %v3225 = vadd.f32 0.0, %v3224
      %v3226 = vpop.f32.mrf.mxu0
      %3227 = vmatprep.mubr.f32.mxu0 0.0
      %3228 = vmatmul.mubr.f32.gmra.mxu0 %v1262
      %v3229 = vpop.f32.mrf.mxu0
      %v3230 = vadd.f32 0.0, %v3229
      %v3231 = vpop.f32.mrf.mxu0
      %3232 = vmatprep.mubr.f32.mxu0 0.0
      %3233 = vmatmul.mubr.f32.gmra.mxu0 %v1265
      %v3234 = vpop.f32.mrf.mxu0
      %v3235 = vadd.f32 0.0, %v3234
      %v3236 = vpop.f32.mrf.mxu0
      %3237 = vmatprep.mubr.f32.mxu0 0.0
      %3238 = vmatmul.mubr.f32.gmra.mxu0 %v1268
      %v3239 = vpop.f32.mrf.mxu0
      %v3240 = vadd.f32 0.0, %v3239
      %v3241 = vpop.f32.mrf.mxu0
      %3242 = vmatprep.mubr.f32.mxu0 0.0
      %3243 = vmatmul.mubr.f32.gmra.mxu0 %v1271
      %v3244 = vpop.f32.mrf.mxu0
      %v3245 = vadd.f32 0.0, %v3244
      %v3246 = vpop.f32.mrf.mxu0
      %3247 = vmatprep.mubr.f32.mxu0 0.0
      %3248 = vmatmul.mubr.f32.gmra.mxu0 %v1274
      %v3249 = vpop.f32.mrf.mxu0
      %v3250 = vadd.f32 0.0, %v3249
      %v3251 = vpop.f32.mrf.mxu0
      %3252 = vmatprep.mubr.f32.mxu0 0.0
      %3253 = vmatmul.mubr.f32.gmra.mxu0 %v1277
      %v3254 = vpop.f32.mrf.mxu0
      %v3255 = vadd.f32 0.0, %v3254
      %v3256 = vpop.f32.mrf.mxu0
      %3257 = vmatprep.mubr.f32.mxu0 0.0
      %3258 = vmatmul.mubr.f32.gmra.mxu0 %v1280
      %v3259 = vpop.f32.mrf.mxu0
      %v3260 = vadd.f32 0.0, %v3259
      %v3261 = vpop.f32.mrf.mxu0
      %3262 = vmatprep.mubr.f32.mxu0 0.0
      %3263 = vmatmul.mubr.f32.gmra.mxu0 %v1283
      %v3264 = vpop.f32.mrf.mxu0
      %v3265 = vadd.f32 0.0, %v3264
      %v3266 = vpop.f32.mrf.mxu0
      %3267 = vmatprep.mubr.f32.mxu0 0.0
      %3268 = vmatmul.mubr.f32.gmra.mxu0 %v1286
      %v3269 = vpop.f32.mrf.mxu0
      %v3270 = vadd.f32 0.0, %v3269
      %v3271 = vpop.f32.mrf.mxu0
      %3272 = vmatprep.mubr.f32.mxu0 0.0
      %3273 = vmatmul.mubr.f32.gmra.mxu0 %v1289
      %v3274 = vpop.f32.mrf.mxu0
      %v3275 = vadd.f32 0.0, %v3274
      %v3276 = vpop.f32.mrf.mxu0
      %3277 = vmatprep.mubr.f32.mxu0 0.0
      %3278 = vmatmul.mubr.f32.gmra.mxu0 %v1292
      %v3279 = vpop.f32.mrf.mxu0
      %v3280 = vadd.f32 0.0, %v3279
      %v3281 = vpop.f32.mrf.mxu0
      %3282 = vmatprep.mubr.f32.mxu0 0.0
      %3283 = vmatmul.mubr.f32.gmra.mxu0 %v1295
      %v3284 = vpop.f32.mrf.mxu0
      %v3285 = vadd.f32 0.0, %v3284
      %v3286 = vpop.f32.mrf.mxu0
      %3287 = vmatprep.mubr.f32.mxu0 0.0
      %3288 = vmatmul.mubr.f32.gmra.mxu0 %v1298
      %v3289 = vpop.f32.mrf.mxu0
      %v3290 = vadd.f32 0.0, %v3289
      %v3291 = vpop.f32.mrf.mxu0
      %3292 = vmatprep.mubr.f32.mxu0 0.0
      %3293 = vmatmul.mubr.f32.gmra.mxu0 %v1301
      %v3294 = vpop.f32.mrf.mxu0
      %v3295 = vadd.f32 0.0, %v3294
      %v3296 = vpop.f32.mrf.mxu0
      %3297 = vmatprep.mubr.f32.mxu0 0.0
      %3298 = vmatmul.mubr.f32.gmra.mxu0 %v1304
      %v3299 = vpop.f32.mrf.mxu0
      %v3300 = vadd.f32 0.0, %v3299
      %v3301 = vpop.f32.mrf.mxu0
      %3302 = vmatprep.mubr.f32.mxu0 0.0
      %3303 = vmatmul.mubr.f32.gmra.mxu0 %v1307
      %v3304 = vpop.f32.mrf.mxu0
      %v3305 = vadd.f32 0.0, %v3304
      %v3306 = vpop.f32.mrf.mxu0
      %3307 = vmatprep.mubr.f32.mxu0 0.0
      %3308 = vmatmul.mubr.f32.gmra.mxu0 %v1310
      %v3309 = vpop.f32.mrf.mxu0
      %v3310 = vadd.f32 0.0, %v3309
      %v3311 = vpop.f32.mrf.mxu0
      %3312 = vmatprep.mubr.f32.mxu0 0.0
      %3313 = vmatmul.mubr.f32.gmra.mxu0 %v1313
      %v3314 = vpop.f32.mrf.mxu0
      %v3315 = vadd.f32 0.0, %v3314
      %v3316 = vpop.f32.mrf.mxu0
      %3317 = vmatprep.mubr.f32.mxu0 0.0
      %3318 = vmatmul.mubr.f32.gmra.mxu0 %v1316
      %v3319 = vpop.f32.mrf.mxu0
      %v3320 = vadd.f32 0.0, %v3319
      %v3321 = vpop.f32.mrf.mxu0
      %3322 = vmatprep.mubr.f32.mxu0 0.0
      %3323 = vmatmul.mubr.f32.gmra.mxu0 %v1319
      %v3324 = vpop.f32.mrf.mxu0
      %v3325 = vadd.f32 0.0, %v3324
      %v3326 = vpop.f32.mrf.mxu0
      %3327 = vmatprep.mubr.f32.mxu0 0.0
      %3328 = vmatmul.mubr.f32.gmra.mxu0 %v1322
      %v3329 = vpop.f32.mrf.mxu0
      %v3330 = vadd.f32 0.0, %v3329
      %v3331 = vpop.f32.mrf.mxu0
      %3332 = vmatprep.mubr.f32.mxu0 0.0
      %3333 = vmatmul.mubr.f32.gmra.mxu0 %v1325
      %v3334 = vpop.f32.mrf.mxu0
      %v3335 = vadd.f32 0.0, %v3334
      %v3336 = vpop.f32.mrf.mxu0
      %3337 = vmatprep.mubr.f32.mxu0 0.0
      %3338 = vmatmul.mubr.f32.gmra.mxu0 %v1328
      %v3339 = vpop.f32.mrf.mxu0
      %v3340 = vadd.f32 0.0, %v3339
      %v3341 = vpop.f32.mrf.mxu0
      %3342 = vmatprep.mubr.f32.mxu0 0.0
      %3343 = vmatmul.mubr.f32.gmra.mxu0 %v1331
      %v3344 = vpop.f32.mrf.mxu0
      %v3345 = vadd.f32 0.0, %v3344
      %v3346 = vpop.f32.mrf.mxu0
      %3347 = vmatprep.mubr.f32.mxu0 0.0
      %3348 = vmatmul.mubr.f32.gmra.mxu0 %v1334
      %v3349 = vpop.f32.mrf.mxu0
      %v3350 = vadd.f32 0.0, %v3349
      %v3351 = vpop.f32.mrf.mxu0
      %3352 = vmatprep.mubr.f32.mxu0 0.0
      %3353 = vmatmul.mubr.f32.gmra.mxu0 %v1337
      %v3354 = vpop.f32.mrf.mxu0
      %v3355 = vadd.f32 0.0, %v3354
      %v3356 = vpop.f32.mrf.mxu0
      %3357 = vmatprep.mubr.f32.mxu0 0.0
      %3358 = vmatmul.mubr.f32.gmra.mxu0 %v1340
      %v3359 = vpop.f32.mrf.mxu0
      %v3360 = vadd.f32 0.0, %v3359
      %v3361 = vpop.f32.mrf.mxu0
      %3362 = vmatprep.mubr.f32.mxu0 0.0
      %3363 = vmatmul.mubr.f32.gmra.mxu0 %v1343
      %v3364 = vpop.f32.mrf.mxu0
      %v3365 = vadd.f32 0.0, %v3364
      %v3366 = vpop.f32.mrf.mxu0
      %3367 = vmatprep.mubr.f32.mxu0 0.0
      %3368 = vmatmul.mubr.f32.gmra.mxu0 %v1346
      %v3369 = vpop.f32.mrf.mxu0
      %v3370 = vadd.f32 0.0, %v3369
      %v3371 = vpop.f32.mrf.mxu0
      %3372 = vmatprep.mubr.f32.mxu0 0.0
      %3373 = vmatmul.mubr.f32.gmra.mxu0 %v1349
      %v3374 = vpop.f32.mrf.mxu0
      %v3375 = vadd.f32 0.0, %v3374
      %v3376 = vpop.f32.mrf.mxu0
      %3377 = vmatprep.mubr.f32.mxu0 0.0
      %3378 = vmatmul.mubr.f32.gmra.mxu0 %v1352
      %v3379 = vpop.f32.mrf.mxu0
      %v3380 = vadd.f32 0.0, %v3379
      %v3381 = vpop.f32.mrf.mxu0
      %3382 = vmatprep.mubr.f32.mxu0 0.0
      %3383 = vmatmul.mubr.f32.gmra.mxu0 %v1355
      %v3384 = vpop.f32.mrf.mxu0
      %v3385 = vadd.f32 0.0, %v3384
      %v3386 = vpop.f32.mrf.mxu0
      %3387 = vmatprep.mubr.f32.mxu0 0.0
      %3388 = vmatmul.mubr.f32.gmra.mxu0 %v1358
      %v3389 = vpop.f32.mrf.mxu0
      %v3390 = vadd.f32 0.0, %v3389
      %v3391 = vpop.f32.mrf.mxu0
      %3392 = vmatprep.mubr.f32.mxu0 0.0
      %3393 = vmatmul.mubr.f32.gmra.mxu0 %v1361
      %v3394 = vpop.f32.mrf.mxu0
      %v3395 = vadd.f32 0.0, %v3394
      %v3396 = vpop.f32.mrf.mxu0
      %3397 = vmatprep.mubr.f32.mxu0 0.0
      %3398 = vmatmul.mubr.f32.gmra.mxu0 %v1364
      %v3399 = vpop.f32.mrf.mxu0
      %v3400 = vadd.f32 0.0, %v3399
      %v3401 = vpop.f32.mrf.mxu0
      %3402 = vmatprep.mubr.f32.mxu0 0.0
      %3403 = vmatmul.mubr.f32.gmra.mxu0 %v1367
      %v3404 = vpop.f32.mrf.mxu0
      %v3405 = vadd.f32 0.0, %v3404
      %v3406 = vpop.f32.mrf.mxu0
      %3407 = vmatprep.mubr.f32.mxu0 0.0
      %3408 = vmatmul.mubr.f32.gmra.mxu0 %v1370
      %v3409 = vpop.f32.mrf.mxu0
      %v3410 = vadd.f32 0.0, %v3409
      %v3411 = vpop.f32.mrf.mxu0
      %3412 = vmatprep.mubr.f32.mxu0 0.0
      %3413 = vmatmul.mubr.f32.gmra.mxu0 %v1373
      %v3414 = vpop.f32.mrf.mxu0
      %v3415 = vadd.f32 0.0, %v3414
      %v3416 = vpop.f32.mrf.mxu0
      %3417 = vmatprep.mubr.f32.mxu0 0.0
      %3418 = vmatmul.mubr.f32.gmra.mxu0 %v1376
      %v3419 = vpop.f32.mrf.mxu0
      %v3420 = vadd.f32 0.0, %v3419
      %v3421 = vpop.f32.mrf.mxu0
      %3422 = vmatprep.mubr.f32.mxu0 0.0
      %3423 = vmatmul.mubr.f32.gmra.mxu0 %v1379
      %v3424 = vpop.f32.mrf.mxu0
      %v3425 = vadd.f32 0.0, %v3424
      %v3426 = vpop.f32.mrf.mxu0
      %3427 = vmatprep.mubr.f32.mxu0 0.0
      %3428 = vmatmul.mubr.f32.gmra.mxu0 %v1382
      %v3429 = vpop.f32.mrf.mxu0
      %v3430 = vadd.f32 0.0, %v3429
      %v3431 = vpop.f32.mrf.mxu0
      %3432 = vmatprep.mubr.f32.mxu0 0.0
      %3433 = vmatmul.mubr.f32.gmra.mxu0 %v1385
      %v3434 = vpop.f32.mrf.mxu0
      %v3435 = vadd.f32 0.0, %v3434
      %v3436 = vpop.f32.mrf.mxu0
      %3437 = vmatprep.mubr.f32.mxu0 0.0
      %3438 = vmatmul.mubr.f32.gmra.mxu0 %v1388
      %v3439 = vpop.f32.mrf.mxu0
      %v3440 = vadd.f32 0.0, %v3439
      %v3441 = vpop.f32.mrf.mxu0
      %3442 = vmatprep.mubr.f32.mxu0 0.0
      %3443 = vmatmul.mubr.f32.gmra.mxu0 %v1391
      %v3444 = vpop.f32.mrf.mxu0
      %v3445 = vadd.f32 0.0, %v3444
      %v3446 = vpop.f32.mrf.mxu0
      %3447 = vmatprep.mubr.f32.mxu0 0.0
      %3448 = vmatmul.mubr.f32.gmra.mxu0 %v1394
      %v3449 = vpop.f32.mrf.mxu0
      %v3450 = vadd.f32 0.0, %v3449
      %v3451 = vpop.f32.mrf.mxu0
      %3452 = vmatprep.mubr.f32.mxu0 0.0
      %3453 = vmatmul.mubr.f32.gmra.mxu0 %v1397
      %v3454 = vpop.f32.mrf.mxu0
      %v3455 = vadd.f32 0.0, %v3454
      %v3456 = vpop.f32.mrf.mxu0
      %3457 = vmatprep.mubr.f32.mxu0 0.0
      %3458 = vmatmul.mubr.f32.gmra.mxu0 %v1400
      %v3459 = vpop.f32.mrf.mxu0
      %v3460 = vadd.f32 0.0, %v3459
      %v3461 = vpop.f32.mrf.mxu0
      %3462 = vmatprep.mubr.f32.mxu0 0.0
      %3463 = vmatmul.mubr.f32.gmra.mxu0 %v1403
      %v3464 = vpop.f32.mrf.mxu0
      %v3465 = vadd.f32 0.0, %v3464
      %v3466 = vpop.f32.mrf.mxu0
      %3467 = vmatprep.mubr.f32.mxu0 0.0
      %3468 = vmatmul.mubr.f32.gmra.mxu0 %v1406
      %v3469 = vpop.f32.mrf.mxu0
      %v3470 = vadd.f32 0.0, %v3469
      %v3471 = vpop.f32.mrf.mxu0
      %3472 = vmatprep.mubr.f32.mxu0 0.0
      %3473 = vmatmul.mubr.f32.gmra.mxu0 %v1409
      %v3474 = vpop.f32.mrf.mxu0
      %v3475 = vadd.f32 0.0, %v3474
      %v3476 = vpop.f32.mrf.mxu0
      %3477 = vmatprep.mubr.f32.mxu0 0.0
      %3478 = vmatmul.mubr.f32.gmra.mxu0 %v1412
      %v3479 = vpop.f32.mrf.mxu0
      %v3480 = vadd.f32 0.0, %v3479
      %v3481 = vpop.f32.mrf.mxu0
      %3482 = vmatprep.mubr.f32.mxu0 0.0
      %3483 = vmatmul.mubr.f32.gmra.mxu0 %v1415
      %v3484 = vpop.f32.mrf.mxu0
      %v3485 = vadd.f32 0.0, %v3484
      %v3486 = vpop.f32.mrf.mxu0
      %3487 = vmatprep.mubr.f32.mxu0 0.0
      %3488 = vmatmul.mubr.f32.gmra.mxu0 %v1418
      %v3489 = vpop.f32.mrf.mxu0
      %v3490 = vadd.f32 0.0, %v3489
      %v3491 = vpop.f32.mrf.mxu0
      %3492 = vmatprep.mubr.f32.mxu0 0.0
      %3493 = vmatmul.mubr.f32.gmra.mxu0 %v1421
      %v3494 = vpop.f32.mrf.mxu0
      %v3495 = vadd.f32 0.0, %v3494
      %v3496 = vpop.f32.mrf.mxu0
      %3497 = vmatprep.mubr.f32.mxu0 0.0
      %3498 = vmatmul.mubr.f32.gmra.mxu0 %v1424
      %v3499 = vpop.f32.mrf.mxu0
      %v3500 = vadd.f32 0.0, %v3499
      %v3501 = vpop.f32.mrf.mxu0
      %3502 = vmatprep.mubr.f32.mxu0 0.0
      %3503 = vmatmul.mubr.f32.gmra.mxu0 %v1427
      %v3504 = vpop.f32.mrf.mxu0
      %v3505 = vadd.f32 0.0, %v3504
      %v3506 = vpop.f32.mrf.mxu0
      %3507 = vmatprep.mubr.f32.mxu0 0.0
      %3508 = vmatmul.mubr.f32.gmra.mxu0 %v1430
      %v3509 = vpop.f32.mrf.mxu0
      %v3510 = vadd.f32 0.0, %v3509
      %v3511 = vpop.f32.mrf.mxu0
      %3512 = vmatprep.mubr.f32.mxu0 0.0
      %3513 = vmatmul.mubr.f32.gmra.mxu0 %v1433
      %v3514 = vpop.f32.mrf.mxu0
      %v3515 = vadd.f32 0.0, %v3514
      %v3516 = vpop.f32.mrf.mxu0
      %3517 = vmatprep.mubr.f32.mxu0 0.0
      %3518 = vmatmul.mubr.f32.gmra.mxu0 %v1436
      %v3519 = vpop.f32.mrf.mxu0
      %v3520 = vadd.f32 0.0, %v3519
      %v3521 = vpop.f32.mrf.mxu0
      %3522 = vmatprep.mubr.f32.mxu0 0.0
      %3523 = vmatmul.mubr.f32.gmra.mxu0 %v1439
      %v3524 = vpop.f32.mrf.mxu0
      %v3525 = vadd.f32 0.0, %v3524
      %v3526 = vpop.f32.mrf.mxu0
      %3527 = vmatprep.mubr.f32.mxu0 0.0
      %3528 = vmatmul.mubr.f32.gmra.mxu0 %v1442
      %v3529 = vpop.f32.mrf.mxu0
      %v3530 = vadd.f32 0.0, %v3529
      %v3531 = vpop.f32.mrf.mxu0
      %3532 = vmatprep.mubr.f32.mxu0 0.0
      %3533 = vmatmul.mubr.f32.gmra.mxu0 %v1445
      %v3534 = vpop.f32.mrf.mxu0
      %v3535 = vadd.f32 0.0, %v3534
      %v3536 = vpop.f32.mrf.mxu0
      %3537 = vmatprep.mubr.f32.mxu0 0.0
      %3538 = vmatmul.mubr.f32.gmra.mxu0 %v1448
      %v3539 = vpop.f32.mrf.mxu0
      %v3540 = vadd.f32 0.0, %v3539
      %v3541 = vpop.f32.mrf.mxu0
      %3542 = vmatprep.mubr.f32.mxu0 0.0
      %3543 = vmatmul.mubr.f32.gmra.mxu0 %v1451
      %v3544 = vpop.f32.mrf.mxu0
      %v3545 = vadd.f32 0.0, %v3544
      %v3546 = vpop.f32.mrf.mxu0
      %3547 = vmatprep.mubr.f32.mxu0 0.0
      %3548 = vmatmul.mubr.f32.gmra.mxu0 %v1454
      %v3549 = vpop.f32.mrf.mxu0
      %v3550 = vadd.f32 0.0, %v3549
      %v3551 = vpop.f32.mrf.mxu0
      %3552 = vmatprep.mubr.f32.mxu0 0.0
      %3553 = vmatmul.mubr.f32.gmra.mxu0 %v1457
      %v3554 = vpop.f32.mrf.mxu0
      %v3555 = vadd.f32 0.0, %v3554
      %v3556 = vpop.f32.mrf.mxu0
      %3557 = vmatprep.mubr.f32.mxu0 0.0
      %3558 = vmatmul.mubr.f32.gmra.mxu0 %v1460
      %v3559 = vpop.f32.mrf.mxu0
      %v3560 = vadd.f32 0.0, %v3559
      %v3561 = vpop.f32.mrf.mxu0
      %3562 = vmatprep.mubr.f32.mxu0 0.0
      %3563 = vmatmul.mubr.f32.gmra.mxu0 %v1463
      %v3564 = vpop.f32.mrf.mxu0
      %v3565 = vadd.f32 0.0, %v3564
      %v3566 = vpop.f32.mrf.mxu0
      %3567 = vmatprep.mubr.f32.mxu0 0.0
      %3568 = vmatmul.mubr.f32.gmra.mxu0 %v1466
      %v3569 = vpop.f32.mrf.mxu0
      %v3570 = vadd.f32 0.0, %v3569
      %v3571 = vpop.f32.mrf.mxu0
      %3572 = vmatprep.mubr.f32.mxu0 0.0
      %3573 = vmatmul.mubr.f32.gmra.mxu0 %v1469
      %v3574 = vpop.f32.mrf.mxu0
      %v3575 = vadd.f32 0.0, %v3574
      %v3576 = vpop.f32.mrf.mxu0
      %3577 = vmatprep.mubr.f32.mxu0 0.0
      %3578 = vmatmul.mubr.f32.gmra.mxu0 %v1472
      %v3579 = vpop.f32.mrf.mxu0
      %v3580 = vadd.f32 0.0, %v3579
      %v3581 = vpop.f32.mrf.mxu0
      %3582 = vmatprep.mubr.f32.mxu0 0.0
      %3583 = vmatmul.mubr.f32.gmra.mxu0 %v1475
      %v3584 = vpop.f32.mrf.mxu0
      %v3585 = vadd.f32 0.0, %v3584
      %v3586 = vpop.f32.mrf.mxu0
      %3587 = vmatprep.mubr.f32.mxu0 0.0
      %3588 = vmatmul.mubr.f32.gmra.mxu0 %v1478
      %v3589 = vpop.f32.mrf.mxu0
      %v3590 = vadd.f32 0.0, %v3589
      %v3591 = vpop.f32.mrf.mxu0
      %3592 = vmatprep.mubr.f32.mxu0 0.0
      %3593 = vmatmul.mubr.f32.gmra.mxu0 %v1481
      %v3594 = vpop.f32.mrf.mxu0
      %v3595 = vadd.f32 0.0, %v3594
      %v3596 = vpop.f32.mrf.mxu0
      %3597 = vmatprep.mubr.f32.mxu0 0.0
      %3598 = vmatmul.mubr.f32.gmra.mxu0 %v1484
      %v3599 = vpop.f32.mrf.mxu0
      %v3600 = vadd.f32 0.0, %v3599
      %v3601 = vpop.f32.mrf.mxu0
      %3602 = vmatprep.mubr.f32.mxu0 0.0
      %3603 = vmatmul.mubr.f32.gmra.mxu0 %v1487
      %v3604 = vpop.f32.mrf.mxu0
      %v3605 = vadd.f32 0.0, %v3604
      %v3606 = vpop.f32.mrf.mxu0
      %3607 = vmatprep.mubr.f32.mxu0 0.0
      %3608 = vmatmul.mubr.f32.gmra.mxu0 %v1490
      %v3609 = vpop.f32.mrf.mxu0
      %v3610 = vadd.f32 0.0, %v3609
      %v3611 = vpop.f32.mrf.mxu0
      %3612 = vmatprep.mubr.f32.mxu0 0.0
      %3613 = vmatmul.mubr.f32.gmra.mxu0 %v1493
      %v3614 = vpop.f32.mrf.mxu0
      %v3615 = vadd.f32 0.0, %v3614
      %v3616 = vpop.f32.mrf.mxu0
      %3617 = vmatprep.mubr.f32.mxu0 0.0
      %3618 = vmatmul.mubr.f32.gmra.mxu0 %v1496
      %v3619 = vpop.f32.mrf.mxu0
      %v3620 = vadd.f32 0.0, %v3619
      %v3621 = vpop.f32.mrf.mxu0
      %3622 = vmatprep.mubr.f32.mxu0 0.0
      %3623 = vmatmul.mubr.f32.gmra.mxu0 %v1499
      %v3624 = vpop.f32.mrf.mxu0
      %v3625 = vadd.f32 0.0, %v3624
      %v3626 = vpop.f32.mrf.mxu0
      %3627 = vmatprep.mubr.f32.mxu0 0.0
      %3628 = vmatmul.mubr.f32.gmra.mxu0 %v1502
      %v3629 = vpop.f32.mrf.mxu0
      %v3630 = vadd.f32 0.0, %v3629
      %v3631 = vpop.f32.mrf.mxu0
      %3632 = vmatprep.mubr.f32.mxu0 0.0
      %3633 = vmatmul.mubr.f32.gmra.mxu0 %v1505
      %v3634 = vpop.f32.mrf.mxu0
      %v3635 = vadd.f32 0.0, %v3634
      %v3636 = vpop.f32.mrf.mxu0
      %3637 = vmatprep.mubr.f32.mxu0 0.0
      %3638 = vmatmul.mubr.f32.gmra.mxu0 %v1508
      %v3639 = vpop.f32.mrf.mxu0
      %v3640 = vadd.f32 0.0, %v3639
      %v3641 = vpop.f32.mrf.mxu0
      %3642 = vmatprep.mubr.f32.mxu0 0.0
      %3643 = vmatmul.mubr.f32.gmra.mxu0 %v1511
      %v3644 = vpop.f32.mrf.mxu0
      %v3645 = vadd.f32 0.0, %v3644
      %v3646 = vpop.f32.mrf.mxu0
      %3647 = vmatprep.mubr.f32.mxu0 0.0
      %3648 = vmatmul.mubr.f32.gmra.mxu0 %v1514
      %v3649 = vpop.f32.mrf.mxu0
      %v3650 = vadd.f32 0.0, %v3649
      %v3651 = vpop.f32.mrf.mxu0
      %3652 = vmatprep.mubr.f32.mxu0 0.0
      %3653 = vmatmul.mubr.f32.gmra.mxu0 %v1517
      %v3654 = vpop.f32.mrf.mxu0
      %v3655 = vadd.f32 0.0, %v3654
      %v3656 = vpop.f32.mrf.mxu0
      %3657 = vmatprep.mubr.f32.mxu0 0.0
      %3658 = vmatmul.mubr.f32.gmra.mxu0 %v1520
      %v3659 = vpop.f32.mrf.mxu0
      %v3660 = vadd.f32 0.0, %v3659
      %v3661 = vpop.f32.mrf.mxu0
      %3662 = vmatprep.mubr.f32.mxu0 0.0
      %3663 = vmatmul.mubr.f32.gmra.mxu0 %v1523
      %v3664 = vpop.f32.mrf.mxu0
      %v3665 = vadd.f32 0.0, %v3664
      %v3666 = vpop.f32.mrf.mxu0
      %3667 = vmatprep.mubr.f32.mxu0 0.0
      %3668 = vmatmul.mubr.f32.gmra.mxu0 %v1526
      %v3669 = vpop.f32.mrf.mxu0
      %v3670 = vadd.f32 0.0, %v3669
      %v3671 = vpop.f32.mrf.mxu0
      %3672 = vmatprep.mubr.f32.mxu0 0.0
      %3673 = vmatmul.mubr.f32.gmra.mxu0 %v1529
      %v3674 = vpop.f32.mrf.mxu0
      %v3675 = vadd.f32 0.0, %v3674
      %v3676 = vpop.f32.mrf.mxu0
      %3677 = vmatprep.mubr.f32.mxu0 0.0
      %3678 = vmatmul.mubr.f32.gmra.mxu0 %v1532
      %v3679 = vpop.f32.mrf.mxu0
      %v3680 = vadd.f32 0.0, %v3679
      %v3681 = vpop.f32.mrf.mxu0
      %3682 = vmatprep.mubr.f32.mxu0 0.0
      %3683 = vmatmul.mubr.f32.gmra.mxu0 %v1535
      %v3684 = vpop.f32.mrf.mxu0
      %v3685 = vadd.f32 0.0, %v3684
      %v3686 = vpop.f32.mrf.mxu0
      %3687 = vmatprep.mubr.f32.mxu0 0.0
      %3688 = vmatmul.mubr.f32.gmra.mxu0 %v1538
      %v3689 = vpop.f32.mrf.mxu0
      %v3690 = vadd.f32 0.0, %v3689
      %v3691 = vpop.f32.mrf.mxu0
      %3692 = vmatprep.mubr.f32.mxu0 0.0
      %3693 = vmatmul.mubr.f32.gmra.mxu0 %v1541
      %v3694 = vpop.f32.mrf.mxu0
      %v3695 = vadd.f32 0.0, %v3694
      %v3696 = vpop.f32.mrf.mxu0
      %3697 = vmatprep.mubr.f32.mxu0 0.0
      %3698 = vmatmul.mubr.f32.gmra.mxu0 %v1544
      %v3699 = vpop.f32.mrf.mxu0
      %v3700 = vadd.f32 0.0, %v3699
      %v3701 = vpop.f32.mrf.mxu0
      %3702 = vmatprep.mubr.f32.mxu0 0.0
      %3703 = vmatmul.mubr.f32.gmra.mxu0 %v1547
      %v3704 = vpop.f32.mrf.mxu0
      %v3705 = vadd.f32 0.0, %v3704
      %v3706 = vpop.f32.mrf.mxu0
      %3707 = vmatprep.mubr.f32.mxu0 0.0
      %3708 = vmatmul.mubr.f32.gmra.mxu0 %v1550
      %v3709 = vpop.f32.mrf.mxu0
      %v3710 = vadd.f32 0.0, %v3709
      %v3711 = vpop.f32.mrf.mxu0
      %3712 = vmatprep.mubr.f32.mxu0 0.0
      %3713 = vmatmul.mubr.f32.gmra.mxu0 %v1553
      %v3714 = vpop.f32.mrf.mxu0
      %v3715 = vadd.f32 0.0, %v3714
      %v3716 = vpop.f32.mrf.mxu0
      %3717 = vmatprep.mubr.f32.mxu0 0.0
      %3718 = vmatmul.mubr.f32.gmra.mxu0 %v1556
      %v3719 = vpop.f32.mrf.mxu0
      %v3720 = vadd.f32 0.0, %v3719
      %v3721 = vpop.f32.mrf.mxu0
      %3722 = vmatprep.mubr.f32.mxu0 0.0
      %3723 = vmatmul.mubr.f32.gmra.mxu0 %v1559
      %v3724 = vpop.f32.mrf.mxu0
      %v3725 = vadd.f32 0.0, %v3724
      %v3726 = vpop.f32.mrf.mxu0
      %3727 = vmatprep.mubr.f32.mxu0 0.0
      %3728 = vmatmul.mubr.f32.gmra.mxu0 %v1562
      %v3729 = vpop.f32.mrf.mxu0
      %v3730 = vadd.f32 0.0, %v3729
      %v3731 = vpop.f32.mrf.mxu0
      %3732 = vmatprep.mubr.f32.mxu0 0.0
      %3733 = vmatmul.mubr.f32.gmra.mxu0 %v1565
      %v3734 = vpop.f32.mrf.mxu0
      %v3735 = vadd.f32 0.0, %v3734
      %v3736 = vpop.f32.mrf.mxu0
      %3737 = vmatprep.mubr.f32.mxu0 0.0
      %3738 = vmatmul.mubr.f32.gmra.mxu0 %v1568
      %v3739 = vpop.f32.mrf.mxu0
      %v3740 = vadd.f32 0.0, %v3739
      %v3741 = vpop.f32.mrf.mxu0
      %3742 = vmatprep.mubr.f32.mxu0 0.0
      %3743 = vmatmul.mubr.f32.gmra.mxu0 %v1571
      %v3744 = vpop.f32.mrf.mxu0
      %v3745 = vadd.f32 0.0, %v3744
      %v3746 = vpop.f32.mrf.mxu0
      %3747 = vmatprep.mubr.f32.mxu0 0.0
      %3748 = vmatmul.mubr.f32.gmra.mxu0 %v1574
      %v3749 = vpop.f32.mrf.mxu0
      %v3750 = vadd.f32 0.0, %v3749
      %v3751 = vpop.f32.mrf.mxu0
      %3752 = vmatprep.mubr.f32.mxu0 0.0
      %3753 = vmatmul.mubr.f32.gmra.mxu0 %v1577
      %v3754 = vpop.f32.mrf.mxu0
      %v3755 = vadd.f32 0.0, %v3754
      %v3756 = vpop.f32.mrf.mxu0
      %3757 = vmatprep.mubr.f32.mxu0 0.0
      %3758 = vmatmul.mubr.f32.gmra.mxu0 %v1580
      %v3759 = vpop.f32.mrf.mxu0
      %v3760 = vadd.f32 0.0, %v3759
      %v3761 = vpop.f32.mrf.mxu0
      %3762 = vmatprep.mubr.f32.mxu0 0.0
      %3763 = vmatmul.mubr.f32.gmra.mxu0 %v1583
      %v3764 = vpop.f32.mrf.mxu0
      %v3765 = vadd.f32 0.0, %v3764
      %v3766 = vpop.f32.mrf.mxu0
      %3767 = vmatprep.mubr.f32.mxu0 0.0
      %3768 = vmatmul.mubr.f32.gmra.mxu0 %v1586
      %v3769 = vpop.f32.mrf.mxu0
      %v3770 = vadd.f32 0.0, %v3769
      %v3771 = vpop.f32.mrf.mxu0
      %3772 = vmatprep.mubr.f32.mxu0 0.0
      %3773 = vmatmul.mubr.f32.gmra.mxu0 %v1589
      %v3774 = vpop.f32.mrf.mxu0
      %v3775 = vadd.f32 0.0, %v3774
      %v3776 = vpop.f32.mrf.mxu0
      %3777 = vmatprep.mubr.f32.mxu0 0.0
      %3778 = vmatmul.mubr.f32.gmra.mxu0 %v1592
      %v3779 = vpop.f32.mrf.mxu0
      %v3780 = vadd.f32 0.0, %v3779
      %v3781 = vpop.f32.mrf.mxu0
      %3782 = vmatprep.mubr.f32.mxu0 0.0
      %3783 = vmatmul.mubr.f32.gmra.mxu0 %v1595
      %v3784 = vpop.f32.mrf.mxu0
      %v3785 = vadd.f32 0.0, %v3784
      %v3786 = vpop.f32.mrf.mxu0
      %3787 = vmatprep.mubr.f32.mxu0 0.0
      %3788 = vmatmul.mubr.f32.gmra.mxu0 %v1598
      %v3789 = vpop.f32.mrf.mxu0
      %v3790 = vadd.f32 0.0, %v3789
      %v3791 = vpop.f32.mrf.mxu0
      %3792 = vmatprep.mubr.f32.mxu0 0.0
      %3793 = vmatmul.mubr.f32.gmra.mxu0 %v1601
      %v3794 = vpop.f32.mrf.mxu0
      %v3795 = vadd.f32 0.0, %v3794
      %v3796 = vpop.f32.mrf.mxu0
      %3797 = vmatprep.mubr.f32.mxu0 0.0
      %3798 = vmatmul.mubr.f32.gmra.mxu0 %v1604
      %v3799 = vpop.f32.mrf.mxu0
      %v3800 = vadd.f32 0.0, %v3799
      %v3801 = vpop.f32.mrf.mxu0
      %3802 = vmatprep.mubr.f32.mxu0 0.0
      %3803 = vmatmul.mubr.f32.gmra.mxu0 %v1607
      %v3804 = vpop.f32.mrf.mxu0
      %v3805 = vadd.f32 0.0, %v3804
      %v3806 = vpop.f32.mrf.mxu0
      %3807 = vmatprep.mubr.f32.mxu0 0.0
      %3808 = vmatmul.mubr.f32.gmra.mxu0 %v1610
      %v3809 = vpop.f32.mrf.mxu0
      %v3810 = vadd.f32 0.0, %v3809
      %v3811 = vpop.f32.mrf.mxu0
      %3812 = vmatprep.mubr.f32.mxu0 0.0
      %3813 = vmatmul.mubr.f32.gmra.mxu0 %v1613
      %v3814 = vpop.f32.mrf.mxu0
      %v3815 = vadd.f32 0.0, %v3814
      %v3816 = vpop.f32.mrf.mxu0
      %3817 = vmatprep.mubr.f32.mxu0 0.0
      %3818 = vmatmul.mubr.f32.gmra.mxu0 %v1616
      %v3819 = vpop.f32.mrf.mxu0
      %v3820 = vadd.f32 0.0, %v3819
      %v3821 = vpop.f32.mrf.mxu0
      %3822 = vmatprep.mubr.f32.mxu0 0.0
      %3823 = vmatmul.mubr.f32.gmra.mxu0 %v1619
      %v3824 = vpop.f32.mrf.mxu0
      %v3825 = vadd.f32 0.0, %v3824
      %v3826 = vpop.f32.mrf.mxu0
      %3827 = vmatprep.mubr.f32.mxu0 0.0
      %3828 = vmatmul.mubr.f32.gmra.mxu0 %v1622
      %v3829 = vpop.f32.mrf.mxu0
      %v3830 = vadd.f32 0.0, %v3829
      %v3831 = vpop.f32.mrf.mxu0
      %3832 = vmatprep.mubr.f32.mxu0 0.0
      %3833 = vmatmul.mubr.f32.gmra.mxu0 %v1625
      %v3834 = vpop.f32.mrf.mxu0
      %v3835 = vadd.f32 0.0, %v3834
      %v3836 = vpop.f32.mrf.mxu0
      %3837 = vmatprep.mubr.f32.mxu0 0.0
      %3838 = vmatmul.mubr.f32.gmra.mxu0 %v1628
      %v3839 = vpop.f32.mrf.mxu0
      %v3840 = vadd.f32 0.0, %v3839
      %v3841 = vpop.f32.mrf.mxu0
      %3842 = vmatprep.mubr.f32.mxu0 0.0
      %3843 = vmatmul.mubr.f32.gmra.mxu0 %v1631
      %v3844 = vpop.f32.mrf.mxu0
      %v3845 = vadd.f32 0.0, %v3844
      %v3846 = vpop.f32.mrf.mxu0
      %3847 = vmatprep.mubr.f32.mxu0 0.0
      %3848 = vmatmul.mubr.f32.gmra.mxu0 %v1634
      %v3849 = vpop.f32.mrf.mxu0
      %v3850 = vadd.f32 0.0, %v3849
      %v3851 = vpop.f32.mrf.mxu0
      %3852 = vmatprep.mubr.f32.mxu0 0.0
      %3853 = vmatmul.mubr.f32.gmra.mxu0 %v1637
      %v3854 = vpop.f32.mrf.mxu0
      %v3855 = vadd.f32 0.0, %v3854
      %v3856 = vpop.f32.mrf.mxu0
      %3857 = vmatprep.mubr.f32.mxu0 0.0
      %3858 = vmatmul.mubr.f32.gmra.mxu0 %v1640
      %v3859 = vpop.f32.mrf.mxu0
      %v3860 = vadd.f32 0.0, %v3859
      %v3861 = vpop.f32.mrf.mxu0
      %3862 = vmatprep.mubr.f32.mxu0 0.0
      %3863 = vmatmul.mubr.f32.gmra.mxu0 %v1643
      %v3864 = vpop.f32.mrf.mxu0
      %v3865 = vadd.f32 0.0, %v3864
      %v3866 = vpop.f32.mrf.mxu0
      %3867 = vmatprep.mubr.f32.mxu0 0.0
      %3868 = vmatmul.mubr.f32.gmra.mxu0 %v1646
      %v3869 = vpop.f32.mrf.mxu0
      %v3870 = vadd.f32 0.0, %v3869
      %v3871 = vpop.f32.mrf.mxu0
      %3872 = vmatprep.mubr.f32.mxu0 0.0
      %3873 = vmatmul.mubr.f32.gmra.mxu0 %v1649
      %v3874 = vpop.f32.mrf.mxu0
      %v3875 = vadd.f32 0.0, %v3874
      %v3876 = vpop.f32.mrf.mxu0
      %3877 = vmatprep.mubr.f32.mxu0 0.0
      %3878 = vmatmul.mubr.f32.gmra.mxu0 %v1652
      %v3879 = vpop.f32.mrf.mxu0
      %v3880 = vadd.f32 0.0, %v3879
      %v3881 = vpop.f32.mrf.mxu0
      %3882 = vmatprep.mubr.f32.mxu0 0.0
      %3883 = vmatmul.mubr.f32.gmra.mxu0 %v1655
      %v3884 = vpop.f32.mrf.mxu0
      %v3885 = vadd.f32 0.0, %v3884
      %v3886 = vpop.f32.mrf.mxu0
      %3887 = vmatprep.mubr.f32.mxu0 0.0
      %3888 = vmatmul.mubr.f32.gmra.mxu0 %v1658
      %v3889 = vpop.f32.mrf.mxu0
      %v3890 = vadd.f32 0.0, %v3889
      %v3891 = vpop.f32.mrf.mxu0
      %3892 = vmatprep.mubr.f32.mxu0 0.0
      %3893 = vmatmul.mubr.f32.gmra.mxu0 %v1661
      %v3894 = vpop.f32.mrf.mxu0
      %v3895 = vadd.f32 0.0, %v3894
      %v3896 = vpop.f32.mrf.mxu0
      %3897 = vmatprep.mubr.f32.mxu0 0.0
      %3898 = vmatmul.mubr.f32.gmra.mxu0 %v1664
      %v3899 = vpop.f32.mrf.mxu0
      %v3900 = vadd.f32 0.0, %v3899
      %v3901 = vpop.f32.mrf.mxu0
      %3902 = vmatprep.mubr.f32.mxu0 0.0
      %3903 = vmatmul.mubr.f32.gmra.mxu0 %v1667
      %v3904 = vpop.f32.mrf.mxu0
      %v3905 = vadd.f32 0.0, %v3904
      %v3906 = vpop.f32.mrf.mxu0
      %3907 = vmatprep.mubr.f32.mxu0 0.0
      %3908 = vmatmul.mubr.f32.gmra.mxu0 %v1670
      %v3909 = vpop.f32.mrf.mxu0
      %v3910 = vadd.f32 0.0, %v3909
      %v3911 = vpop.f32.mrf.mxu0
      %3912 = vmatprep.mubr.f32.mxu0 0.0
      %3913 = vmatmul.mubr.f32.gmra.mxu0 %v1673
      %v3914 = vpop.f32.mrf.mxu0
      %v3915 = vadd.f32 0.0, %v3914
      %v3916 = vpop.f32.mrf.mxu0
      %3917 = vmatprep.mubr.f32.mxu0 0.0
      %3918 = vmatmul.mubr.f32.gmra.mxu0 %v1676
      %v3919 = vpop.f32.mrf.mxu0
      %v3920 = vadd.f32 0.0, %v3919
      %v3921 = vpop.f32.mrf.mxu0
      %3922 = vmatprep.mubr.f32.mxu0 0.0
      %3923 = vmatmul.mubr.f32.gmra.mxu0 %v1679
      %v3924 = vpop.f32.mrf.mxu0
      %v3925 = vadd.f32 0.0, %v3924
      %v3926 = vpop.f32.mrf.mxu0
      %3927 = vmatprep.mubr.f32.mxu0 0.0
      %3928 = vmatmul.mubr.f32.gmra.mxu0 %v1682
      %v3929 = vpop.f32.mrf.mxu0
      %v3930 = vadd.f32 0.0, %v3929
      %v3931 = vpop.f32.mrf.mxu0
      %3932 = vmatprep.mubr.f32.mxu0 0.0
      %3933 = vmatmul.mubr.f32.gmra.mxu0 %v1685
      %v3934 = vpop.f32.mrf.mxu0
      %v3935 = vadd.f32 0.0, %v3934
      %v3936 = vpop.f32.mrf.mxu0
      %3937 = vmatprep.mubr.f32.mxu0 0.0
      %3938 = vmatmul.mubr.f32.gmra.mxu0 %v1688
      %v3939 = vpop.f32.mrf.mxu0
      %v3940 = vadd.f32 0.0, %v3939
      %v3941 = vpop.f32.mrf.mxu0
      %3942 = vmatprep.mubr.f32.mxu0 0.0
      %3943 = vmatmul.mubr.f32.gmra.mxu0 %v1691
      %v3944 = vpop.f32.mrf.mxu0
      %v3945 = vadd.f32 0.0, %v3944
      %v3946 = vpop.f32.mrf.mxu0
      %3947 = vmatprep.mubr.f32.mxu0 0.0
      %3948 = vmatmul.mubr.f32.gmra.mxu0 %v1694
      %v3949 = vpop.f32.mrf.mxu0
      %v3950 = vadd.f32 0.0, %v3949
      %v3951 = vpop.f32.mrf.mxu0
      %3952 = vmatprep.mubr.f32.mxu0 0.0
      %3953 = vmatmul.mubr.f32.gmra.mxu0 %v1697
      %v3954 = vpop.f32.mrf.mxu0
      %v3955 = vadd.f32 0.0, %v3954
      %v3956 = vpop.f32.mrf.mxu0
      %3957 = vmatprep.mubr.f32.mxu0 0.0
      %3958 = vmatmul.mubr.f32.gmra.mxu0 %v1700
      %v3959 = vpop.f32.mrf.mxu0
      %v3960 = vadd.f32 0.0, %v3959
      %v3961 = vpop.f32.mrf.mxu0
      %3962 = vmatprep.mubr.f32.mxu0 0.0
      %3963 = vmatmul.mubr.f32.gmra.mxu0 %v1703
      %v3964 = vpop.f32.mrf.mxu0
      %v3965 = vadd.f32 0.0, %v3964
      %v3966 = vpop.f32.mrf.mxu0
      %3967 = vmatprep.mubr.f32.mxu0 0.0
      %3968 = vmatmul.mubr.f32.gmra.mxu0 %v1706
      %v3969 = vpop.f32.mrf.mxu0
      %v3970 = vadd.f32 0.0, %v3969
      %v3971 = vpop.f32.mrf.mxu0
      %3972 = vmatprep.mubr.f32.mxu0 0.0
      %3973 = vmatmul.mubr.f32.gmra.mxu0 %v1709
      %v3974 = vpop.f32.mrf.mxu0
      %v3975 = vadd.f32 0.0, %v3974
      %v3976 = vpop.f32.mrf.mxu0
      %3977 = vmatprep.mubr.f32.mxu0 0.0
      %3978 = vmatmul.mubr.f32.gmra.mxu0 %v1712
      %v3979 = vpop.f32.mrf.mxu0
      %v3980 = vadd.f32 0.0, %v3979
      %v3981 = vpop.f32.mrf.mxu0
      %3982 = vmatprep.mubr.f32.mxu0 0.0
      %3983 = vmatmul.mubr.f32.gmra.mxu0 %v1715
      %v3984 = vpop.f32.mrf.mxu0
      %v3985 = vadd.f32 0.0, %v3984
      %v3986 = vpop.f32.mrf.mxu0
      %3987 = vmatprep.mubr.f32.mxu0 0.0
      %3988 = vmatmul.mubr.f32.gmra.mxu0 %v1718
      %v3989 = vpop.f32.mrf.mxu0
      %v3990 = vadd.f32 0.0, %v3989
      %v3991 = vpop.f32.mrf.mxu0
      %3992 = vmatprep.mubr.f32.mxu0 0.0
      %3993 = vmatmul.mubr.f32.gmra.mxu0 %v1721
      %v3994 = vpop.f32.mrf.mxu0
      %v3995 = vadd.f32 0.0, %v3994
      %v3996 = vpop.f32.mrf.mxu0
      %3997 = vmatprep.mubr.f32.mxu0 0.0
      %3998 = vmatmul.mubr.f32.gmra.mxu0 %v1724
      %v3999 = vpop.f32.mrf.mxu0
      %v4000 = vadd.f32 0.0, %v3999
      %v4001 = vpop.f32.mrf.mxu0
      %4002 = vmatprep.mubr.f32.mxu0 0.0
      %4003 = vmatmul.mubr.f32.gmra.mxu0 %v1727
      %v4004 = vpop.f32.mrf.mxu0
      %v4005 = vadd.f32 0.0, %v4004
      %v4006 = vpop.f32.mrf.mxu0
      %4007 = vmatprep.mubr.f32.mxu0 0.0
      %4008 = vmatmul.mubr.f32.gmra.mxu0 %v1730
      %v4009 = vpop.f32.mrf.mxu0
      %v4010 = vadd.f32 0.0, %v4009
      %v4011 = vpop.f32.mrf.mxu0
      %4012 = vmatprep.mubr.f32.mxu0 0.0
      %4013 = vmatmul.mubr.f32.gmra.mxu0 %v1733
      %v4014 = vpop.f32.mrf.mxu0
      %v4015 = vadd.f32 0.0, %v4014
      %v4016 = vpop.f32.mrf.mxu0
      %4017 = vmatprep.mubr.f32.mxu0 0.0
      %4018 = vmatmul.mubr.f32.gmra.mxu0 %v1736
      %v4019 = vpop.f32.mrf.mxu0
      %v4020 = vadd.f32 0.0, %v4019
      %v4021 = vpop.f32.mrf.mxu0
      %4022 = vmatprep.mubr.f32.mxu0 0.0
      %4023 = vmatmul.mubr.f32.gmra.mxu0 %v1739
      %v4024 = vpop.f32.mrf.mxu0
      %v4025 = vadd.f32 0.0, %v4024
      %v4026 = vpop.f32.mrf.mxu0
      %4027 = vmatprep.mubr.f32.mxu0 0.0
      %4028 = vmatmul.mubr.f32.gmra.mxu0 %v1742
      %v4029 = vpop.f32.mrf.mxu0
      %v4030 = vadd.f32 0.0, %v4029
      %v4031 = vpop.f32.mrf.mxu0
      %4032 = vmatprep.mubr.f32.mxu0 0.0
      %4033 = vmatmul.mubr.f32.gmra.mxu0 %v1745
      %v4034 = vpop.f32.mrf.mxu0
      %v4035 = vadd.f32 0.0, %v4034
      %v4036 = vpop.f32.mrf.mxu0
      %4037 = vmatprep.mubr.f32.mxu0 0.0
      %4038 = vmatmul.mubr.f32.gmra.mxu0 %v1748
      %v4039 = vpop.f32.mrf.mxu0
      %v4040 = vadd.f32 0.0, %v4039
      %v4041 = vpop.f32.mrf.mxu0
      %4042 = vmatprep.mubr.f32.mxu0 0.0
      %4043 = vmatmul.mubr.f32.gmra.mxu0 %v1751
      %v4044 = vpop.f32.mrf.mxu0
      %v4045 = vadd.f32 0.0, %v4044
      %v4046 = vpop.f32.mrf.mxu0
      %4047 = vmatprep.mubr.f32.mxu0 0.0
      %4048 = vmatmul.mubr.f32.gmra.mxu0 %v1754
      %v4049 = vpop.f32.mrf.mxu0
      %v4050 = vadd.f32 0.0, %v4049
      %v4051 = vpop.f32.mrf.mxu0
      %4052 = vmatprep.mubr.f32.mxu0 0.0
      %4053 = vmatmul.mubr.f32.gmra.mxu0 %v1757
      %v4054 = vpop.f32.mrf.mxu0
      %v4055 = vadd.f32 0.0, %v4054
      %v4056 = vpop.f32.mrf.mxu0
      %4057 = vmatprep.mubr.f32.mxu0 0.0
      %4058 = vmatmul.mubr.f32.gmra.mxu0 %v1760
      %v4059 = vpop.f32.mrf.mxu0
      %v4060 = vadd.f32 0.0, %v4059
      %v4061 = vpop.f32.mrf.mxu0
      %4062 = vmatprep.mubr.f32.mxu0 0.0
      %4063 = vmatmul.mubr.f32.gmra.mxu0 %v1763
      %v4064 = vpop.f32.mrf.mxu0
      %v4065 = vadd.f32 0.0, %v4064
      %v4066 = vpop.f32.mrf.mxu0
      %4067 = vmatprep.mubr.f32.mxu0 0.0
      %4068 = vmatmul.mubr.f32.gmra.mxu0 %v1766
      %v4069 = vpop.f32.mrf.mxu0
      %v4070 = vadd.f32 0.0, %v4069
      %v4071 = vpop.f32.mrf.mxu0
      %4072 = vmatprep.mubr.f32.mxu0 0.0
      %4073 = vmatmul.mubr.f32.gmra.mxu0 %v1769
      %v4074 = vpop.f32.mrf.mxu0
      %v4075 = vadd.f32 0.0, %v4074
      %v4076 = vpop.f32.mrf.mxu0
      %4077 = vmatprep.mubr.f32.mxu0 0.0
      %4078 = vmatmul.mubr.f32.gmra.mxu0 %v1772
      %v4079 = vpop.f32.mrf.mxu0
      %v4080 = vadd.f32 0.0, %v4079
      %v4081 = vpop.f32.mrf.mxu0
      %4082 = vmatprep.mubr.f32.mxu0 0.0
      %4083 = vmatmul.mubr.f32.gmra.mxu0 %v1775
      %v4084 = vpop.f32.mrf.mxu0
      %v4085 = vadd.f32 0.0, %v4084
      %v4086 = vpop.f32.mrf.mxu0
      %4087 = vmatprep.mubr.f32.mxu0 0.0
      %4088 = vmatmul.mubr.f32.gmra.mxu0 %v1778
      %v4089 = vpop.f32.mrf.mxu0
      %v4090 = vadd.f32 0.0, %v4089
      %v4091 = vpop.f32.mrf.mxu0
      %4092 = vmatprep.mubr.f32.mxu0 0.0
      %4093 = vmatmul.mubr.f32.gmra.mxu0 %v1781
      %v4094 = vpop.f32.mrf.mxu0
      %v4095 = vadd.f32 0.0, %v4094
      %v4096 = vpop.f32.mrf.mxu0
      %4097 = vmatprep.mubr.f32.mxu0 0.0
      %4098 = vmatmul.mubr.f32.gmra.mxu0 %v1784
      %v4099 = vpop.f32.mrf.mxu0
      %v4100 = vadd.f32 0.0, %v4099
      %v4101 = vpop.f32.mrf.mxu0
      %4102 = vmatprep.mubr.f32.mxu0 0.0
      %4103 = vmatmul.mubr.f32.gmra.mxu0 %v1787
      %v4104 = vpop.f32.mrf.mxu0
      %v4105 = vadd.f32 0.0, %v4104
      %v4106 = vpop.f32.mrf.mxu0
      %4107 = vmatprep.mubr.f32.mxu0 0.0
      %4108 = vmatmul.mubr.f32.gmra.mxu0 %v1790
      %v4109 = vpop.f32.mrf.mxu0
      %v4110 = vadd.f32 0.0, %v4109
      %v4111 = vpop.f32.mrf.mxu0
      %4112 = vmatprep.mubr.f32.mxu0 0.0
      %4113 = vmatmul.mubr.f32.gmra.mxu0 %v1793
      %v4114 = vpop.f32.mrf.mxu0
      %v4115 = vadd.f32 0.0, %v4114
      %v4116 = vpop.f32.mrf.mxu0
      %4117 = vmatprep.mubr.f32.mxu0 0.0
      %4118 = vmatmul.mubr.f32.gmra.mxu0 %v1796
      %v4119 = vpop.f32.mrf.mxu0
      %v4120 = vadd.f32 0.0, %v4119
      %v4121 = vpop.f32.mrf.mxu0
      %4122 = vmatprep.mubr.f32.mxu0 0.0
      %4123 = vmatmul.mubr.f32.gmra.mxu0 %v1799
      %v4124 = vpop.f32.mrf.mxu0
      %v4125 = vadd.f32 0.0, %v4124
      %v4126 = vpop.f32.mrf.mxu0
      %4127 = vmatprep.mubr.f32.mxu0 0.0
      %4128 = vmatmul.mubr.f32.gmra.mxu0 %v1802
      %v4129 = vpop.f32.mrf.mxu0
      %v4130 = vadd.f32 0.0, %v4129
      %v4131 = vpop.f32.mrf.mxu0
      %4132 = vmatprep.mubr.f32.mxu0 0.0
      %4133 = vmatmul.mubr.f32.gmra.mxu0 %v1805
      %v4134 = vpop.f32.mrf.mxu0
      %v4135 = vadd.f32 0.0, %v4134
      %v4136 = vpop.f32.mrf.mxu0
      %4137 = vmatprep.mubr.f32.mxu0 0.0
      %4138 = vmatmul.mubr.f32.gmra.mxu0 %v1808
      %v4139 = vpop.f32.mrf.mxu0
      %v4140 = vadd.f32 0.0, %v4139
      %v4141 = vpop.f32.mrf.mxu0
      %4142 = vmatprep.mubr.f32.mxu0 0.0
      %4143 = vmatmul.mubr.f32.gmra.mxu0 %v1811
      %v4144 = vpop.f32.mrf.mxu0
      %v4145 = vadd.f32 0.0, %v4144
      %v4146 = vpop.f32.mrf.mxu0
      %4147 = vmatprep.mubr.f32.mxu0 0.0
      %4148 = vmatmul.mubr.f32.gmra.mxu0 %v1814
      %v4149 = vpop.f32.mrf.mxu0
      %v4150 = vadd.f32 0.0, %v4149
      %v4151 = vpop.f32.mrf.mxu0
      %4152 = vmatprep.mubr.f32.mxu0 0.0
      %4153 = vmatmul.mubr.f32.gmra.mxu0 %v1817
      %v4154 = vpop.f32.mrf.mxu0
      %v4155 = vadd.f32 0.0, %v4154
      %v4156 = vpop.f32.mrf.mxu0
      %4157 = vmatprep.mubr.f32.mxu0 0.0
      %4158 = vmatmul.mubr.f32.gmra.mxu0 %v1820
      %v4159 = vpop.f32.mrf.mxu0
      %v4160 = vadd.f32 0.0, %v4159
      %v4161 = vpop.f32.mrf.mxu0
      %4162 = vmatprep.mubr.f32.mxu0 0.0
      %4163 = vmatmul.mubr.f32.gmra.mxu0 %v1823
      %v4164 = vpop.f32.mrf.mxu0
      %v4165 = vadd.f32 0.0, %v4164
      %v4166 = vpop.f32.mrf.mxu0
      %4167 = vmatprep.mubr.f32.mxu0 0.0
      %4168 = vmatmul.mubr.f32.gmra.mxu0 %v1826
      %v4169 = vpop.f32.mrf.mxu0
      %v4170 = vadd.f32 0.0, %v4169
      %v4171 = vpop.f32.mrf.mxu0
      %4172 = vmatprep.mubr.f32.mxu0 0.0
      %4173 = vmatmul.mubr.f32.gmra.mxu0 %v1829
      %v4174 = vpop.f32.mrf.mxu0
      %v4175 = vadd.f32 0.0, %v4174
      %v4176 = vpop.f32.mrf.mxu0
      %4177 = vmatprep.mubr.f32.mxu0 0.0
      %4178 = vmatmul.mubr.f32.gmra.mxu0 %v1832
      %v4179 = vpop.f32.mrf.mxu0
      %v4180 = vadd.f32 0.0, %v4179
      %v4181 = vpop.f32.mrf.mxu0
      %4182 = vmatprep.mubr.f32.mxu0 0.0
      %4183 = vmatmul.mubr.f32.gmra.mxu0 %v1835
      %v4184 = vpop.f32.mrf.mxu0
      %v4185 = vadd.f32 0.0, %v4184
      %v4186 = vpop.f32.mrf.mxu0
      %4187 = vmatprep.mubr.f32.mxu0 0.0
      %4188 = vmatmul.mubr.f32.gmra.mxu0 %v1838
      %v4189 = vpop.f32.mrf.mxu0
      %v4190 = vadd.f32 0.0, %v4189
      %v4191 = vpop.f32.mrf.mxu0
      %4192 = vmatprep.mubr.f32.mxu0 0.0
      %4193 = vmatmul.mubr.f32.gmra.mxu0 %v1841
      %v4194 = vpop.f32.mrf.mxu0
      %v4195 = vadd.f32 0.0, %v4194
      %v4196 = vpop.f32.mrf.mxu0
      %4197 = vmatprep.mubr.f32.mxu0 0.0
      %4198 = vmatmul.mubr.f32.gmra.mxu0 %v1844
      %v4199 = vpop.f32.mrf.mxu0
      %v4200 = vadd.f32 0.0, %v4199
      %v4201 = vpop.f32.mrf.mxu0
      %4202 = vmatprep.mubr.f32.mxu0 0.0
      %4203 = vmatmul.mubr.f32.gmra.mxu0 %v1847
      %v4204 = vpop.f32.mrf.mxu0
      %v4205 = vadd.f32 0.0, %v4204
      %v4206 = vpop.f32.mrf.mxu0
      %4207 = vmatprep.mubr.f32.mxu0 0.0
      %4208 = vmatmul.mubr.f32.gmra.mxu0 %v1850
      %v4209 = vpop.f32.mrf.mxu0
      %v4210 = vadd.f32 0.0, %v4209
      %v4211 = vpop.f32.mrf.mxu0
      %4212 = vmatprep.mubr.f32.mxu0 0.0
      %4213 = vmatmul.mubr.f32.gmra.mxu0 %v1853
      %v4214 = vpop.f32.mrf.mxu0
      %v4215 = vadd.f32 0.0, %v4214
      %v4216 = vpop.f32.mrf.mxu0
      %4217 = vmatprep.mubr.f32.mxu0 0.0
      %4218 = vmatmul.mubr.f32.gmra.mxu0 %v1856
      %v4219 = vpop.f32.mrf.mxu0
      %v4220 = vadd.f32 0.0, %v4219
      %v4221 = vpop.f32.mrf.mxu0
      %4222 = vmatprep.mubr.f32.mxu0 0.0
      %4223 = vmatmul.mubr.f32.gmra.mxu0 %v1859
      %v4224 = vpop.f32.mrf.mxu0
      %v4225 = vadd.f32 0.0, %v4224
      %v4226 = vpop.f32.mrf.mxu0
      %4227 = vmatprep.mubr.f32.mxu0 0.0
      %4228 = vmatmul.mubr.f32.gmra.mxu0 %v1862
      %v4229 = vpop.f32.mrf.mxu0
      %v4230 = vadd.f32 0.0, %v4229
      %v4231 = vpop.f32.mrf.mxu0
      %4232 = vmatprep.mubr.f32.mxu0 0.0
      %4233 = vmatmul.mubr.f32.gmra.mxu0 %v1865
      %v4234 = vpop.f32.mrf.mxu0
      %v4235 = vadd.f32 0.0, %v4234
      %v4236 = vpop.f32.mrf.mxu0
      %4237 = vmatprep.mubr.f32.mxu0 0.0
      %4238 = vmatmul.mubr.f32.gmra.mxu0 %v1868
      %v4239 = vpop.f32.mrf.mxu0
      %v4240 = vadd.f32 0.0, %v4239
      %v4241 = vpop.f32.mrf.mxu0
      %4242 = vmatprep.mubr.f32.mxu0 0.0
      %4243 = vmatmul.mubr.f32.gmra.mxu0 %v1871
      %v4244 = vpop.f32.mrf.mxu0
      %v4245 = vadd.f32 0.0, %v4244
      %v4246 = vpop.f32.mrf.mxu0
      %4247 = vmatprep.mubr.f32.mxu0 0.0
      %4248 = vmatmul.mubr.f32.gmra.mxu0 %v1874
      %v4249 = vpop.f32.mrf.mxu0
      %v4250 = vadd.f32 0.0, %v4249
      %v4251 = vpop.f32.mrf.mxu0
      %4252 = vmatprep.mubr.f32.mxu0 0.0
      %4253 = vmatmul.mubr.f32.gmra.mxu0 %v1877
      %v4254 = vpop.f32.mrf.mxu0
      %v4255 = vadd.f32 0.0, %v4254
      %v4256 = vpop.f32.mrf.mxu0
      %4257 = vmatprep.mubr.f32.mxu0 0.0
      %4258 = vmatmul.mubr.f32.gmra.mxu0 %v1880
      %v4259 = vpop.f32.mrf.mxu0
      %v4260 = vadd.f32 0.0, %v4259
      %v4261 = vpop.f32.mrf.mxu0
      %4262 = vmatprep.mubr.f32.mxu0 0.0
      %4263 = vmatmul.mubr.f32.gmra.mxu0 %v1883
      %v4264 = vpop.f32.mrf.mxu0
      %v4265 = vadd.f32 0.0, %v4264
      %v4266 = vpop.f32.mrf.mxu0
      %4267 = vmatprep.mubr.f32.mxu0 0.0
      %4268 = vmatmul.mubr.f32.gmra.mxu0 %v1886
      %v4269 = vpop.f32.mrf.mxu0
      %v4270 = vadd.f32 0.0, %v4269
      %v4271 = vpop.f32.mrf.mxu0
      %4272 = vmatprep.mubr.f32.mxu0 0.0
      %4273 = vmatmul.mubr.f32.gmra.mxu0 %v1889
      %v4274 = vpop.f32.mrf.mxu0
      %v4275 = vadd.f32 0.0, %v4274
      %v4276 = vpop.f32.mrf.mxu0
      %4277 = vmatprep.mubr.f32.mxu0 0.0
      %4278 = vmatmul.mubr.f32.gmra.mxu0 %v1892
      %v4279 = vpop.f32.mrf.mxu0
      %v4280 = vadd.f32 0.0, %v4279
      %v4281 = vpop.f32.mrf.mxu0
      %4282 = vmatprep.mubr.f32.mxu0 0.0
      %4283 = vmatmul.mubr.f32.gmra.mxu0 %v1895
      %v4284 = vpop.f32.mrf.mxu0
      %v4285 = vadd.f32 0.0, %v4284
      %v4286 = vpop.f32.mrf.mxu0
      %4287 = vmatprep.mubr.f32.mxu0 0.0
      %4288 = vmatmul.mubr.f32.gmra.mxu0 %v1898
      %v4289 = vpop.f32.mrf.mxu0
      %v4290 = vadd.f32 0.0, %v4289
      %v4291 = vpop.f32.mrf.mxu0
      %4292 = vmatprep.mubr.f32.mxu0 0.0
      %4293 = vmatmul.mubr.f32.gmra.mxu0 %v1901
      %v4294 = vpop.f32.mrf.mxu0
      %v4295 = vadd.f32 0.0, %v4294
      %v4296 = vpop.f32.mrf.mxu0
      %4297 = vmatprep.mubr.f32.mxu0 0.0
      %4298 = vmatmul.mubr.f32.gmra.mxu0 %v1904
      %v4299 = vpop.f32.mrf.mxu0
      %v4300 = vadd.f32 0.0, %v4299
      %v4301 = vpop.f32.mrf.mxu0
      %4302 = vmatprep.mubr.f32.mxu0 0.0
      %4303 = vmatmul.mubr.f32.gmra.mxu0 %v1907
      %v4304 = vpop.f32.mrf.mxu0
      %v4305 = vadd.f32 0.0, %v4304
      %v4306 = vpop.f32.mrf.mxu0
      %4307 = vmatprep.mubr.f32.mxu0 0.0
      %4308 = vmatmul.mubr.f32.gmra.mxu0 %v1910
      %v4309 = vpop.f32.mrf.mxu0
      %v4310 = vadd.f32 0.0, %v4309
      %v4311 = vpop.f32.mrf.mxu0
      %4312 = vmatprep.mubr.f32.mxu0 0.0
      %4313 = vmatmul.mubr.f32.gmra.mxu0 %v1913
      %v4314 = vpop.f32.mrf.mxu0
      %v4315 = vadd.f32 0.0, %v4314
      %v4316 = vpop.f32.mrf.mxu0
      %4317 = vmatprep.mubr.f32.mxu0 0.0
      %4318 = vmatmul.mubr.f32.gmra.mxu0 %v1916
      %v4319 = vpop.f32.mrf.mxu0
      %v4320 = vadd.f32 0.0, %v4319
      %v4321 = vpop.f32.mrf.mxu0
      %4322 = vmatprep.mubr.f32.mxu0 0.0
      %4323 = vmatmul.mubr.f32.gmra.mxu0 %v1919
      %v4324 = vpop.f32.mrf.mxu0
      %v4325 = vadd.f32 0.0, %v4324
      %v4326 = vpop.f32.mrf.mxu0
      %4327 = vmatprep.mubr.f32.mxu0 0.0
      %4328 = vmatmul.mubr.f32.gmra.mxu0 %v1922
      %v4329 = vpop.f32.mrf.mxu0
      %v4330 = vadd.f32 0.0, %v4329
      %v4331 = vpop.f32.mrf.mxu0
      %4332 = vmatprep.mubr.f32.mxu0 0.0
      %4333 = vmatmul.mubr.f32.gmra.mxu0 %v1925
      %v4334 = vpop.f32.mrf.mxu0
      %v4335 = vadd.f32 0.0, %v4334
      %v4336 = vpop.f32.mrf.mxu0
      %4337 = vmatprep.mubr.f32.mxu0 0.0
      %4338 = vmatmul.mubr.f32.gmra.mxu0 %v1928
      %v4339 = vpop.f32.mrf.mxu0
      %v4340 = vadd.f32 0.0, %v4339
      %v4341 = vpop.f32.mrf.mxu0
      %4342 = vmatprep.mubr.f32.mxu0 0.0
      %4343 = vmatmul.mubr.f32.gmra.mxu0 %v1931
      %v4344 = vpop.f32.mrf.mxu0
      %v4345 = vadd.f32 0.0, %v4344
      %v4346 = vpop.f32.mrf.mxu0
      %4347 = vmatprep.mubr.f32.mxu0 0.0
      %4348 = vmatmul.mubr.f32.gmra.mxu0 %v1934
      %v4349 = vpop.f32.mrf.mxu0
      %v4350 = vadd.f32 0.0, %v4349
      %v4351 = vpop.f32.mrf.mxu0
      %4352 = vmatprep.mubr.f32.mxu0 0.0
      %4353 = vmatmul.mubr.f32.gmra.mxu0 %v1937
      %v4354 = vpop.f32.mrf.mxu0
      %v4355 = vadd.f32 0.0, %v4354
      %v4356 = vpop.f32.mrf.mxu0
      %4357 = vmatprep.mubr.f32.mxu0 0.0
      %4358 = vmatmul.mubr.f32.gmra.mxu0 %v1940
      %v4359 = vpop.f32.mrf.mxu0
      %v4360 = vadd.f32 0.0, %v4359
      %v4361 = vpop.f32.mrf.mxu0
      %4362 = vmatprep.mubr.f32.mxu0 0.0
      %4363 = vmatmul.mubr.f32.gmra.mxu0 %v1943
      %v4364 = vpop.f32.mrf.mxu0
      %v4365 = vadd.f32 0.0, %v4364
      %v4366 = vpop.f32.mrf.mxu0
      %4367 = vmatprep.mubr.f32.mxu0 0.0
      %4368 = vmatmul.mubr.f32.gmra.mxu0 %v1946
      %v4369 = vpop.f32.mrf.mxu0
      %v4370 = vadd.f32 0.0, %v4369
      %v4371 = vpop.f32.mrf.mxu0
      %4372 = vmatprep.mubr.f32.mxu0 0.0
      %4373 = vmatmul.mubr.f32.gmra.mxu0 %v1949
      %v4374 = vpop.f32.mrf.mxu0
      %v4375 = vadd.f32 0.0, %v4374
      %v4376 = vpop.f32.mrf.mxu0
      %4377 = vmatprep.mubr.f32.mxu0 0.0
      %4378 = vmatmul.mubr.f32.gmra.mxu0 %v1952
      %v4379 = vpop.f32.mrf.mxu0
      %v4380 = vadd.f32 0.0, %v4379
      %v4381 = vpop.f32.mrf.mxu0
      %4382 = vmatprep.mubr.f32.mxu0 0.0
      %4383 = vmatmul.mubr.f32.gmra.mxu0 %v1955
      %v4384 = vpop.f32.mrf.mxu0
      %v4385 = vadd.f32 0.0, %v4384
      %v4386 = vpop.f32.mrf.mxu0
      %4387 = vmatprep.mubr.f32.mxu0 0.0
      %4388 = vmatmul.mubr.f32.gmra.mxu0 %v1958
      %v4389 = vpop.f32.mrf.mxu0
      %v4390 = vadd.f32 0.0, %v4389
      %v4391 = vpop.f32.mrf.mxu0
      %4392 = vmatprep.mubr.f32.mxu0 0.0
      %4393 = vmatmul.mubr.f32.gmra.mxu0 %v1961
      %v4394 = vpop.f32.mrf.mxu0
      %v4395 = vadd.f32 0.0, %v4394
      %v4396 = vpop.f32.mrf.mxu0
      %4397 = vmatprep.mubr.f32.mxu0 0.0
      %4398 = vmatmul.mubr.f32.gmra.mxu0 %v1964
      %v4399 = vpop.f32.mrf.mxu0
      %v4400 = vadd.f32 0.0, %v4399
      %v4401 = vpop.f32.mrf.mxu0
      %4402 = vmatprep.mubr.f32.mxu0 0.0
      %4403 = vmatmul.mubr.f32.gmra.mxu0 %v1967
      %v4404 = vpop.f32.mrf.mxu0
      %v4405 = vadd.f32 0.0, %v4404
      %v4406 = vpop.f32.mrf.mxu0
      %4407 = vmatprep.mubr.f32.mxu0 0.0
      %4408 = vmatmul.mubr.f32.gmra.mxu0 %v1970
      %v4409 = vpop.f32.mrf.mxu0
      %v4410 = vadd.f32 0.0, %v4409
      %v4411 = vpop.f32.mrf.mxu0
      %4412 = vmatprep.mubr.f32.mxu0 0.0
      %4413 = vmatmul.mubr.f32.gmra.mxu0 %v1973
      %v4414 = vpop.f32.mrf.mxu0
      %v4415 = vadd.f32 0.0, %v4414
      %v4416 = vpop.f32.mrf.mxu0
      %4417 = vmatprep.mubr.f32.mxu0 0.0
      %4418 = vmatmul.mubr.f32.gmra.mxu0 %v1976
      %v4419 = vpop.f32.mrf.mxu0
      %v4420 = vadd.f32 0.0, %v4419
      %v4421 = vpop.f32.mrf.mxu0
      %4422 = vmatprep.mubr.f32.mxu0 0.0
      %4423 = vmatmul.mubr.f32.gmra.mxu0 %v1979
      %v4424 = vpop.f32.mrf.mxu0
      %v4425 = vadd.f32 0.0, %v4424
      %v4426 = vpop.f32.mrf.mxu0
      %4427 = vmatprep.mubr.f32.mxu0 0.0
      %4428 = vmatmul.mubr.f32.gmra.mxu0 %v1982
      %v4429 = vpop.f32.mrf.mxu0
      %v4430 = vadd.f32 0.0, %v4429
      %v4431 = vpop.f32.mrf.mxu0
      %4432 = vmatprep.mubr.f32.mxu0 0.0
      %4433 = vmatmul.mubr.f32.gmra.mxu0 %v1985
      %v4434 = vpop.f32.mrf.mxu0
      %v4435 = vadd.f32 0.0, %v4434
      %v4436 = vpop.f32.mrf.mxu0
      %4437 = vmatprep.mubr.f32.mxu0 0.0
      %4438 = vmatmul.mubr.f32.gmra.mxu0 %v1988
      %v4439 = vpop.f32.mrf.mxu0
      %v4440 = vadd.f32 0.0, %v4439
      %v4441 = vpop.f32.mrf.mxu0
      %4442 = vmatprep.mubr.f32.mxu0 0.0
      %4443 = vmatmul.mubr.f32.gmra.mxu0 %v1991
      %v4444 = vpop.f32.mrf.mxu0
      %v4445 = vadd.f32 0.0, %v4444
      %v4446 = vpop.f32.mrf.mxu0
      %4447 = vmatprep.mubr.f32.mxu0 0.0
      %4448 = vmatmul.mubr.f32.gmra.mxu0 %v1994
      %v4449 = vpop.f32.mrf.mxu0
      %v4450 = vadd.f32 0.0, %v4449
      %v4451 = vpop.f32.mrf.mxu0
      %4452 = vmatprep.mubr.f32.mxu0 0.0
      %4453 = vmatmul.mubr.f32.gmra.mxu0 %v1997
      %v4454 = vpop.f32.mrf.mxu0
      %v4455 = vadd.f32 0.0, %v4454
      %v4456 = vpop.f32.mrf.mxu0
      %4457 = vmatprep.mubr.f32.mxu0 0.0
      %4458 = vmatmul.mubr.f32.gmra.mxu0 %v2000
      %v4459 = vpop.f32.mrf.mxu0
      %v4460 = vadd.f32 0.0, %v4459
      %v4461 = vpop.f32.mrf.mxu0
      %4462 = vmatprep.mubr.f32.mxu0 0.0
      %4463 = vmatmul.mubr.f32.gmra.mxu0 %v2003
      %v4464 = vpop.f32.mrf.mxu0
      %v4465 = vadd.f32 0.0, %v4464
      %v4466 = vpop.f32.mrf.mxu0
      %4467 = vmatprep.mubr.f32.mxu0 0.0
      %4468 = vmatmul.mubr.f32.gmra.mxu0 %v2006
      %v4469 = vpop.f32.mrf.mxu0
      %v4470 = vadd.f32 0.0, %v4469
      %v4471 = vpop.f32.mrf.mxu0
      %4472 = vmatprep.mubr.f32.mxu0 0.0
      %4473 = vmatmul.mubr.f32.gmra.mxu0 %v2009
      %v4474 = vpop.f32.mrf.mxu0
      %v4475 = vadd.f32 0.0, %v4474
      %v4476 = vpop.f32.mrf.mxu0
      %4477 = vmatprep.mubr.f32.mxu0 0.0
      %4478 = vmatmul.mubr.f32.gmra.mxu0 %v2012
      %v4479 = vpop.f32.mrf.mxu0
      %v4480 = vadd.f32 0.0, %v4479
      %v4481 = vpop.f32.mrf.mxu0
      %4482 = vmatprep.mubr.f32.mxu0 0.0
      %4483 = vmatmul.mubr.f32.gmra.mxu0 %v2015
      %v4484 = vpop.f32.mrf.mxu0
      %v4485 = vadd.f32 0.0, %v4484
      %v4486 = vpop.f32.mrf.mxu0
      %4487 = vmatprep.mubr.f32.mxu0 0.0
      %4488 = vmatmul.mubr.f32.gmra.mxu0 %v2018
      %v4489 = vpop.f32.mrf.mxu0
      %v4490 = vadd.f32 0.0, %v4489
      %v4491 = vpop.f32.mrf.mxu0
      %4492 = vmatprep.mubr.f32.mxu0 0.0
      %4493 = vmatmul.mubr.f32.gmra.mxu0 %v2021
      %v4494 = vpop.f32.mrf.mxu0
      %v4495 = vadd.f32 0.0, %v4494
      %v4496 = vpop.f32.mrf.mxu0
      %4497 = vmatprep.mubr.f32.mxu0 0.0
      %4498 = vmatmul.mubr.f32.gmra.mxu0 %v2024
      %v4499 = vpop.f32.mrf.mxu0
      %v4500 = vadd.f32 0.0, %v4499
      %v4501 = vpop.f32.mrf.mxu0
      %4502 = vmatprep.mubr.f32.mxu0 0.0
      %4503 = vmatmul.mubr.f32.gmra.mxu0 %v2027
      %v4504 = vpop.f32.mrf.mxu0
      %v4505 = vadd.f32 0.0, %v4504
      %v4506 = vpop.f32.mrf.mxu0
      %4507 = vmatprep.mubr.f32.mxu0 0.0
      %4508 = vmatmul.mubr.f32.gmra.mxu0 %v2030
      %v4509 = vpop.f32.mrf.mxu0
      %v4510 = vadd.f32 0.0, %v4509
      %v4511 = vpop.f32.mrf.mxu0
      %4512 = vmatprep.mubr.f32.mxu0 0.0
      %4513 = vmatmul.mubr.f32.gmra.mxu0 %v2033
      %v4514 = vpop.f32.mrf.mxu0
      %v4515 = vadd.f32 0.0, %v4514
      %v4516 = vpop.f32.mrf.mxu0
      %4517 = vmatprep.mubr.f32.mxu0 0.0
      %4518 = vmatmul.mubr.f32.gmra.mxu0 %v2036
      %v4519 = vpop.f32.mrf.mxu0
      %v4520 = vadd.f32 0.0, %v4519
      %v4521 = vpop.f32.mrf.mxu0
      %4522 = vmatprep.mubr.f32.mxu0 0.0
      %4523 = vmatmul.mubr.f32.gmra.mxu0 %v2039
      %v4524 = vpop.f32.mrf.mxu0
      %v4525 = vadd.f32 0.0, %v4524
      %v4526 = vpop.f32.mrf.mxu0
      %4527 = vmatprep.mubr.f32.mxu0 0.0
      %4528 = vmatmul.mubr.f32.gmra.mxu0 %v2042
      %v4529 = vpop.f32.mrf.mxu0
      %v4530 = vadd.f32 0.0, %v4529
      %v4531 = vpop.f32.mrf.mxu0
      %4532 = vmatprep.mubr.f32.mxu0 0.0
      %4533 = vmatmul.mubr.f32.gmra.mxu0 %v2045
      %v4534 = vpop.f32.mrf.mxu0
      %v4535 = vadd.f32 0.0, %v4534
      %v4536 = vpop.f32.mrf.mxu0
      %4537 = vmatprep.mubr.f32.mxu0 0.0
      %4538 = vmatmul.mubr.f32.gmra.mxu0 %v2048
      %v4539 = vpop.f32.mrf.mxu0
      %v4540 = vadd.f32 0.0, %v4539
      %v4541 = vpop.f32.mrf.mxu0
      %4542 = vmatprep.mubr.f32.mxu0 0.0
      %4543 = vmatmul.mubr.f32.gmra.mxu0 %v2051
      %v4544 = vpop.f32.mrf.mxu0
      %v4545 = vadd.f32 0.0, %v4544
      %v4546 = vpop.f32.mrf.mxu0
      %4547 = vmatprep.mubr.f32.mxu0 0.0
      %4548 = vmatmul.mubr.f32.gmra.mxu0 %v2054
      %v4549 = vpop.f32.mrf.mxu0
      %v4550 = vadd.f32 0.0, %v4549
      %v4551 = vpop.f32.mrf.mxu0
      %4552 = vmatprep.mubr.f32.mxu0 0.0
      %4553 = vmatmul.mubr.f32.gmra.mxu0 %v2057
      %v4554 = vpop.f32.mrf.mxu0
      %v4555 = vadd.f32 0.0, %v4554
      %v4556 = vpop.f32.mrf.mxu0
      %4557 = vmatprep.mubr.f32.mxu0 0.0
      %4558 = vmatmul.mubr.f32.gmra.mxu0 %v2060
      %v4559 = vpop.f32.mrf.mxu0
      %v4560 = vadd.f32 0.0, %v4559
      %v4561 = vpop.f32.mrf.mxu0
      %4562 = vmatprep.mubr.f32.mxu0 0.0
      %4563 = vmatmul.mubr.f32.gmra.mxu0 %v2063
      %v4564 = vpop.f32.mrf.mxu0
      %v4565 = vadd.f32 0.0, %v4564
      %v4566 = vpop.f32.mrf.mxu0
      %4567 = vmatprep.mubr.f32.mxu0 0.0
      %4568 = vmatmul.mubr.f32.gmra.mxu0 %v2066
      %v4569 = vpop.f32.mrf.mxu0
      %v4570 = vadd.f32 0.0, %v4569
      %v4571 = vpop.f32.mrf.mxu0
      %4572 = vmatprep.mubr.f32.mxu0 0.0
      %4573 = vmatmul.mubr.f32.gmra.mxu0 %v2069
      %v4574 = vpop.f32.mrf.mxu0
      %v4575 = vadd.f32 0.0, %v4574
      %v4576 = vpop.f32.mrf.mxu0
      %4577 = vmatprep.mubr.f32.mxu0 0.0
      %4578 = vmatmul.mubr.f32.gmra.mxu0 %v2072
      %v4579 = vpop.f32.mrf.mxu0
      %v4580 = vadd.f32 0.0, %v4579
      %v4581 = vpop.f32.mrf.mxu0
      %4582 = vmatprep.mubr.f32.mxu0 0.0
      %4583 = vmatmul.mubr.f32.gmra.mxu0 %v2075
      %v4584 = vpop.f32.mrf.mxu0
      %v4585 = vadd.f32 0.0, %v4584
      %v4586 = vpop.f32.mrf.mxu0
      %4587 = vmatprep.mubr.f32.mxu0 0.0
      %4588 = vmatmul.mubr.f32.gmra.mxu0 %v2078
      %v4589 = vpop.f32.mrf.mxu0
      %v4590 = vadd.f32 0.0, %v4589
      %v4591 = vpop.f32.mrf.mxu0
      %4592 = vmatprep.mubr.f32.mxu0 0.0
      %4593 = vmatmul.mubr.f32.gmra.mxu0 %v2081
      %v4594 = vpop.f32.mrf.mxu0
      %v4595 = vadd.f32 0.0, %v4594
      %v4596 = vpop.f32.mrf.mxu0
      %4597 = vmatprep.mubr.f32.mxu0 0.0
      %4598 = vmatmul.mubr.f32.gmra.mxu0 %v2084
      %v4599 = vpop.f32.mrf.mxu0
      %v4600 = vadd.f32 0.0, %v4599
      %v4601 = vpop.f32.mrf.mxu0
      %4602 = vmatprep.mubr.f32.mxu0 0.0
      %4603 = vmatmul.mubr.f32.gmra.mxu0 %v2087
      %v4604 = vpop.f32.mrf.mxu0
      %v4605 = vadd.f32 0.0, %v4604
      %v4606 = vpop.f32.mrf.mxu0
      %4607 = vmatprep.mubr.f32.mxu0 0.0
      %4608 = vmatmul.mubr.f32.gmra.mxu0 %v2090
      %v4609 = vpop.f32.mrf.mxu0
      %v4610 = vadd.f32 0.0, %v4609
      %v4611 = vpop.f32.mrf.mxu0
      %4612 = vmatprep.mubr.f32.mxu0 0.0
      %4613 = vmatmul.mubr.f32.gmra.mxu0 %v2093
      %v4614 = vpop.f32.mrf.mxu0
      %v4615 = vadd.f32 0.0, %v4614
      %v4616 = vpop.f32.mrf.mxu0
      %4617 = vmatprep.mubr.f32.mxu0 0.0
      %4618 = vmatmul.mubr.f32.gmra.mxu0 %v2096
      %v4619 = vpop.f32.mrf.mxu0
      %v4620 = vadd.f32 0.0, %v4619
      %v4621 = vpop.f32.mrf.mxu0
      %4622 = vmatprep.mubr.f32.mxu0 0.0
      %4623 = vmatmul.mubr.f32.gmra.mxu0 %v2099
      %v4624 = vpop.f32.mrf.mxu0
      %v4625 = vadd.f32 0.0, %v4624
      %v4626 = vpop.f32.mrf.mxu0
      %4627 = vmatprep.mubr.f32.mxu0 0.0
      %4628 = vmatmul.mubr.f32.gmra.mxu0 %v2102
      %v4629 = vpop.f32.mrf.mxu0
      %v4630 = vadd.f32 0.0, %v4629
      %v4631 = vpop.f32.mrf.mxu0
      %4632 = vmatprep.mubr.f32.mxu0 0.0
      %4633 = vmatmul.mubr.f32.gmra.mxu0 %v2105
      %v4634 = vpop.f32.mrf.mxu0
      %v4635 = vadd.f32 0.0, %v4634
      %v4636 = vpop.f32.mrf.mxu0
      %4637 = vmatprep.mubr.f32.mxu0 0.0
      %4638 = vmatmul.mubr.f32.gmra.mxu0 %v2108
      %v4639 = vpop.f32.mrf.mxu0
      %v4640 = vadd.f32 0.0, %v4639
      %v4641 = vpop.f32.mrf.mxu0
      %4642 = vmatprep.mubr.f32.mxu0 0.0
      %4643 = vmatmul.mubr.f32.gmra.mxu0 %v2111
      %v4644 = vpop.f32.mrf.mxu0
      %v4645 = vadd.f32 0.0, %v4644
      %v4646 = vpop.f32.mrf.mxu0
      %4647 = vmatprep.mubr.f32.mxu0 0.0
      %4648 = vmatmul.mubr.f32.gmra.mxu0 %v2114
      %v4649 = vpop.f32.mrf.mxu0
      %v4650 = vadd.f32 0.0, %v4649
      %v4651 = vpop.f32.mrf.mxu0
      %4652 = vmatprep.mubr.f32.mxu0 0.0
      %4653 = vmatmul.mubr.f32.gmra.mxu0 %v2117
      %v4654 = vpop.f32.mrf.mxu0
      %v4655 = vadd.f32 0.0, %v4654
      %v4656 = vpop.f32.mrf.mxu0
      %4657 = vmatprep.mubr.f32.mxu0 0.0
      %4658 = vmatmul.mubr.f32.gmra.mxu0 %v2120
      %v4659 = vpop.f32.mrf.mxu0
      %v4660 = vadd.f32 0.0, %v4659
      %v4661 = vpop.f32.mrf.mxu0
      %4662 = vmatprep.mubr.f32.mxu0 0.0
      %4663 = vmatmul.mubr.f32.gmra.mxu0 %v2123
      %v4664 = vpop.f32.mrf.mxu0
      %v4665 = vadd.f32 0.0, %v4664
      %v4666 = vpop.f32.mrf.mxu0
      %4667 = vmatprep.mubr.f32.mxu0 0.0
      %4668 = vmatmul.mubr.f32.gmra.mxu0 %v2126
      %v4669 = vpop.f32.mrf.mxu0
      %v4670 = vadd.f32 0.0, %v4669
      %v4671 = vpop.f32.mrf.mxu0
      %4672 = vmatprep.mubr.f32.mxu0 0.0
      %4673 = vmatmul.mubr.f32.gmra.mxu0 %v2129
      %v4674 = vpop.f32.mrf.mxu0
      %v4675 = vadd.f32 0.0, %v4674
      %v4676 = vpop.f32.mrf.mxu0
      %4677 = vmatprep.mubr.f32.mxu0 0.0
      %4678 = vmatmul.mubr.f32.gmra.mxu0 %v2132
      %v4679 = vpop.f32.mrf.mxu0
      %v4680 = vadd.f32 0.0, %v4679
      %v4681 = vpop.f32.mrf.mxu0
      %4682 = vmatprep.mubr.f32.mxu0 0.0
      %4683 = vmatmul.mubr.f32.gmra.mxu0 %v2135
      %v4684 = vpop.f32.mrf.mxu0
      %v4685 = vadd.f32 0.0, %v4684
      %v4686 = vpop.f32.mrf.mxu0
      %4687 = vmatprep.mubr.f32.mxu0 0.0
      %4688 = vmatmul.mubr.f32.gmra.mxu0 %v2138
      %v4689 = vpop.f32.mrf.mxu0
      %v4690 = vadd.f32 0.0, %v4689
      %v4691 = vpop.f32.mrf.mxu0
      %4692 = vmatprep.mubr.f32.mxu0 0.0
      %4693 = vmatmul.mubr.f32.gmra.mxu0 %v2141
      %v4694 = vpop.f32.mrf.mxu0
      %v4695 = vadd.f32 0.0, %v4694
      %v4696 = vpop.f32.mrf.mxu0
      %4697 = vmatprep.mubr.f32.mxu0 0.0
      %4698 = vmatmul.mubr.f32.gmra.mxu0 %v2144
      %v4699 = vpop.f32.mrf.mxu0
      %v4700 = vadd.f32 0.0, %v4699
      %v4701 = vpop.f32.mrf.mxu0
      %4702 = vmatprep.mubr.f32.mxu0 0.0
      %4703 = vmatmul.mubr.f32.gmra.mxu0 %v2147
      %v4704 = vpop.f32.mrf.mxu0
      %v4705 = vadd.f32 0.0, %v4704
      %v4706 = vpop.f32.mrf.mxu0
      %4707 = vmatprep.mubr.f32.mxu0 0.0
      %4708 = vmatmul.mubr.f32.gmra.mxu0 %v2150
      %v4709 = vpop.f32.mrf.mxu0
      %v4710 = vadd.f32 0.0, %v4709
      %v4711 = vpop.f32.mrf.mxu0
      %4712 = vmatprep.mubr.f32.mxu0 0.0
      %4713 = vmatmul.mubr.f32.gmra.mxu0 %v2153
      %v4714 = vpop.f32.mrf.mxu0
      %v4715 = vadd.f32 0.0, %v4714
      %v4716 = vpop.f32.mrf.mxu0
      %4717 = vmatprep.mubr.f32.mxu0 0.0
      %4718 = vmatmul.mubr.f32.gmra.mxu0 %v2156
      %v4719 = vpop.f32.mrf.mxu0
      %v4720 = vadd.f32 0.0, %v4719
      %v4721 = vpop.f32.mrf.mxu0
      %4722 = vmatprep.mubr.f32.mxu0 0.0
      %4723 = vmatmul.mubr.f32.gmra.mxu0 %v2159
      %v4724 = vpop.f32.mrf.mxu0
      %v4725 = vadd.f32 0.0, %v4724
      %v4726 = vpop.f32.mrf.mxu0
      %4727 = vmatprep.mubr.f32.mxu0 0.0
      %4728 = vmatmul.mubr.f32.gmra.mxu0 %v2162
      %v4729 = vpop.f32.mrf.mxu0
      %v4730 = vadd.f32 0.0, %v4729
      %v4731 = vpop.f32.mrf.mxu0
      %4732 = vmatprep.mubr.f32.mxu0 0.0
      %4733 = vmatmul.mubr.f32.gmra.mxu0 %v2165
      %v4734 = vpop.f32.mrf.mxu0
      %v4735 = vadd.f32 0.0, %v4734
      %v4736 = vpop.f32.mrf.mxu0
      %4737 = vmatprep.mubr.f32.mxu0 0.0
      %4738 = vmatmul.mubr.f32.gmra.mxu0 %v2168
      %v4739 = vpop.f32.mrf.mxu0
      %v4740 = vadd.f32 0.0, %v4739
      %v4741 = vpop.f32.mrf.mxu0
      %4742 = vmatprep.mubr.f32.mxu0 0.0
      %4743 = vmatmul.mubr.f32.gmra.mxu0 %v2171
      %v4744 = vpop.f32.mrf.mxu0
      %v4745 = vadd.f32 0.0, %v4744
      %v4746 = vpop.f32.mrf.mxu0
      %4747 = vmatprep.mubr.f32.mxu0 0.0
      %4748 = vmatmul.mubr.f32.gmra.mxu0 %v2174
      %v4749 = vpop.f32.mrf.mxu0
      %v4750 = vadd.f32 0.0, %v4749
      %v4751 = vpop.f32.mrf.mxu0
      %4752 = vmatprep.mubr.f32.mxu0 0.0
      %4753 = vmatmul.mubr.f32.gmra.mxu0 %v2177
      %v4754 = vpop.f32.mrf.mxu0
      %v4755 = vadd.f32 0.0, %v4754
      %v4756 = vpop.f32.mrf.mxu0
      %4757 = vmatprep.mubr.f32.mxu0 0.0
      %4758 = vmatmul.mubr.f32.gmra.mxu0 %v2180
      %v4759 = vpop.f32.mrf.mxu0
      %v4760 = vadd.f32 0.0, %v4759
      %v4761 = vpop.f32.mrf.mxu0
      %4762 = vmatprep.mubr.f32.mxu0 0.0
      %4763 = vmatmul.mubr.f32.gmra.mxu0 %v2183
      %v4764 = vpop.f32.mrf.mxu0
      %v4765 = vadd.f32 0.0, %v4764
      %v4766 = vpop.f32.mrf.mxu0
      %4767 = vmatprep.mubr.f32.mxu0 0.0
      %4768 = vmatmul.mubr.f32.gmra.mxu0 %v2186
      %v4769 = vpop.f32.mrf.mxu0
      %v4770 = vadd.f32 0.0, %v4769
      %v4771 = vpop.f32.mrf.mxu0
      %4772 = vmatprep.mubr.f32.mxu0 0.0
      %4773 = vmatmul.mubr.f32.gmra.mxu0 %v2189
      %v4774 = vpop.f32.mrf.mxu0
      %v4775 = vadd.f32 0.0, %v4774
      %v4776 = vpop.f32.mrf.mxu0
      %4777 = vmatprep.mubr.f32.mxu0 0.0
      %4778 = vmatmul.mubr.f32.gmra.mxu0 %v2192
      %v4779 = vpop.f32.mrf.mxu0
      %v4780 = vadd.f32 0.0, %v4779
      %v4781 = vpop.f32.mrf.mxu0
      %4782 = vdwg.mxu0
      %v4783 = vmax.f32 %v2265, %v2895
      %v4784 = vmax.f32 %v2270, %v2900
      %v4785 = vmax.f32 %v2275, %v2905
      %v4786 = vmax.f32 %v2280, %v2910
      %v4787 = vmax.f32 %v2285, %v2915
      %v4788 = vmax.f32 %v2290, %v2920
      %v4789 = vmax.f32 %v2295, %v2925
      %v4790 = vmax.f32 %v2300, %v2930
      %v4791 = vmax.f32 %v2305, %v2935
      %v4792 = vmax.f32 %v2310, %v2940
      %v4793 = vmax.f32 %v2315, %v2945
      %v4794 = vmax.f32 %v2320, %v2950
      %v4795 = vmax.f32 %v2325, %v2955
      %v4796 = vmax.f32 %v2330, %v2960
      %v4797 = vmax.f32 %v2335, %v2965
      %v4798 = vmax.f32 %v2340, %v2970
      %v4799 = vmax.f32 %v2345, %v2975
      %v4800 = vmax.f32 %v2350, %v2980
      %v4801 = vmax.f32 %v2355, %v2985
      %v4802 = vmax.f32 %v2360, %v2990
      %v4803 = vmax.f32 %v2365, %v2995
      %v4804 = vmax.f32 %v2370, %v3000
      %v4805 = vmax.f32 %v2375, %v3005
      %v4806 = vmax.f32 %v2380, %v3010
      %v4807 = vmax.f32 %v2385, %v3015
      %v4808 = vmax.f32 %v2390, %v3020
      %v4809 = vmax.f32 %v2395, %v3025
      %v4810 = vmax.f32 %v2400, %v3030
      %v4811 = vmax.f32 %v2405, %v3035
      %v4812 = vmax.f32 %v2410, %v3040
      %v4813 = vmax.f32 %v2415, %v3045
      %v4814 = vmax.f32 %v2420, %v3050
      %v4815 = vmax.f32 %v2425, %v3055
      %v4816 = vmax.f32 %v2430, %v3060
      %v4817 = vmax.f32 %v2435, %v3065
      %v4818 = vmax.f32 %v2440, %v3070
      %v4819 = vmax.f32 %v2445, %v3075
      %v4820 = vmax.f32 %v2450, %v3080
      %v4821 = vmax.f32 %v2455, %v3085
      %v4822 = vmax.f32 %v2460, %v3090
      %v4823 = vmax.f32 %v2465, %v3095
      %v4824 = vmax.f32 %v2470, %v3100
      %v4825 = vmax.f32 %v2475, %v3105
      %v4826 = vmax.f32 %v2480, %v3110
      %v4827 = vmax.f32 %v2485, %v3115
      %v4828 = vmax.f32 %v2490, %v3120
      %v4829 = vmax.f32 %v2495, %v3125
      %v4830 = vmax.f32 %v2500, %v3130
      %v4831 = vmax.f32 %v2505, %v3135
      %v4832 = vmax.f32 %v2510, %v3140
      %v4833 = vmax.f32 %v2515, %v3145
      %v4834 = vmax.f32 %v2520, %v3150
      %v4835 = vmax.f32 %v2525, %v3155
      %v4836 = vmax.f32 %v2530, %v3160
      %v4837 = vmax.f32 %v2535, %v3165
      %v4838 = vmax.f32 %v2540, %v3170
      %v4839 = vmax.f32 %v2545, %v3175
      %v4840 = vmax.f32 %v2550, %v3180
      %v4841 = vmax.f32 %v2555, %v3185
      %v4842 = vmax.f32 %v2560, %v3190
      %v4843 = vmax.f32 %v2565, %v3195
      %v4844 = vmax.f32 %v2570, %v3200
      %v4845 = vmax.f32 %v2575, %v3205
      %v4846 = vmax.f32 %v2580, %v3210
      %v4847 = vmax.f32 %v2585, %v3215
      %v4848 = vmax.f32 %v2590, %v3220
      %v4849 = vmax.f32 %v2595, %v3225
      %v4850 = vmax.f32 %v2600, %v3230
      %v4851 = vmax.f32 %v2605, %v3235
      %v4852 = vmax.f32 %v2610, %v3240
      %v4853 = vmax.f32 %v2615, %v3245
      %v4854 = vmax.f32 %v2620, %v3250
      %v4855 = vmax.f32 %v2625, %v3255
      %v4856 = vmax.f32 %v2630, %v3260
      %v4857 = vmax.f32 %v2635, %v3265
      %v4858 = vmax.f32 %v2640, %v3270
      %v4859 = vmax.f32 %v2645, %v3275
      %v4860 = vmax.f32 %v2650, %v3280
      %v4861 = vmax.f32 %v2655, %v3285
      %v4862 = vmax.f32 %v2660, %v3290
      %v4863 = vmax.f32 %v2665, %v3295
      %v4864 = vmax.f32 %v2670, %v3300
      %v4865 = vmax.f32 %v2675, %v3305
      %v4866 = vmax.f32 %v2680, %v3310
      %v4867 = vmax.f32 %v2685, %v3315
      %v4868 = vmax.f32 %v2690, %v3320
      %v4869 = vmax.f32 %v2695, %v3325
      %v4870 = vmax.f32 %v2700, %v3330
      %v4871 = vmax.f32 %v2705, %v3335
      %v4872 = vmax.f32 %v2710, %v3340
      %v4873 = vmax.f32 %v2715, %v3345
      %v4874 = vmax.f32 %v2720, %v3350
      %v4875 = vmax.f32 %v2725, %v3355
      %v4876 = vmax.f32 %v2730, %v3360
      %v4877 = vmax.f32 %v2735, %v3365
      %v4878 = vmax.f32 %v2740, %v3370
      %v4879 = vmax.f32 %v2745, %v3375
      %v4880 = vmax.f32 %v2750, %v3380
      %v4881 = vmax.f32 %v2755, %v3385
      %v4882 = vmax.f32 %v2760, %v3390
      %v4883 = vmax.f32 %v2765, %v3395
      %v4884 = vmax.f32 %v2770, %v3400
      %v4885 = vmax.f32 %v2775, %v3405
      %v4886 = vmax.f32 %v2780, %v3410
      %v4887 = vmax.f32 %v2785, %v3415
      %v4888 = vmax.f32 %v2790, %v3420
      %v4889 = vmax.f32 %v2795, %v3425
      %v4890 = vmax.f32 %v2800, %v3430
      %v4891 = vmax.f32 %v2805, %v3435
      %v4892 = vmax.f32 %v2810, %v3440
      %v4893 = vmax.f32 %v2815, %v3445
      %v4894 = vmax.f32 %v2820, %v3450
      %v4895 = vmax.f32 %v2825, %v3455
      %v4896 = vmax.f32 %v2830, %v3460
      %v4897 = vmax.f32 %v2835, %v3465
      %v4898 = vmax.f32 %v2840, %v3470
      %v4899 = vmax.f32 %v2845, %v3475
      %v4900 = vmax.f32 %v2850, %v3480
      %v4901 = vmax.f32 %v2855, %v3485
      %v4902 = vmax.f32 %v2860, %v3490
      %v4903 = vmax.f32 %v2865, %v3495
      %v4904 = vmax.f32 %v2870, %v3500
      %v4905 = vmax.f32 %v2875, %v3505
      %v4906 = vmax.f32 %v2880, %v3510
      %v4907 = vmax.f32 %v2885, %v3515
      %v4908 = vmax.f32 %v2890, %v3520
      %v4909 = vmax.f32 %v3525, %v4155
      %v4910 = vmax.f32 %v3530, %v4160
      %v4911 = vmax.f32 %v3535, %v4165
      %v4912 = vmax.f32 %v3540, %v4170
      %v4913 = vmax.f32 %v3545, %v4175
      %v4914 = vmax.f32 %v3550, %v4180
      %v4915 = vmax.f32 %v3555, %v4185
      %v4916 = vmax.f32 %v3560, %v4190
      %v4917 = vmax.f32 %v3565, %v4195
      %v4918 = vmax.f32 %v3570, %v4200
      %v4919 = vmax.f32 %v3575, %v4205
      %v4920 = vmax.f32 %v3580, %v4210
      %v4921 = vmax.f32 %v3585, %v4215
      %v4922 = vmax.f32 %v3590, %v4220
      %v4923 = vmax.f32 %v3595, %v4225
      %v4924 = vmax.f32 %v3600, %v4230
      %v4925 = vmax.f32 %v3605, %v4235
      %v4926 = vmax.f32 %v3610, %v4240
      %v4927 = vmax.f32 %v3615, %v4245
      %v4928 = vmax.f32 %v3620, %v4250
      %v4929 = vmax.f32 %v3625, %v4255
      %v4930 = vmax.f32 %v3630, %v4260
      %v4931 = vmax.f32 %v3635, %v4265
      %v4932 = vmax.f32 %v3640, %v4270
      %v4933 = vmax.f32 %v3645, %v4275
      %v4934 = vmax.f32 %v3650, %v4280
      %v4935 = vmax.f32 %v3655, %v4285
      %v4936 = vmax.f32 %v3660, %v4290
      %v4937 = vmax.f32 %v3665, %v4295
      %v4938 = vmax.f32 %v3670, %v4300
      %v4939 = vmax.f32 %v3675, %v4305
      %v4940 = vmax.f32 %v3680, %v4310
      %v4941 = vmax.f32 %v3685, %v4315
      %v4942 = vmax.f32 %v3690, %v4320
      %v4943 = vmax.f32 %v3695, %v4325
      %v4944 = vmax.f32 %v3700, %v4330
      %v4945 = vmax.f32 %v3705, %v4335
      %v4946 = vmax.f32 %v3710, %v4340
      %v4947 = vmax.f32 %v3715, %v4345
      %v4948 = vmax.f32 %v3720, %v4350
      %v4949 = vmax.f32 %v3725, %v4355
      %v4950 = vmax.f32 %v3730, %v4360
      %v4951 = vmax.f32 %v3735, %v4365
      %v4952 = vmax.f32 %v3740, %v4370
      %v4953 = vmax.f32 %v3745, %v4375
      %v4954 = vmax.f32 %v3750, %v4380
      %v4955 = vmax.f32 %v3755, %v4385
      %v4956 = vmax.f32 %v3760, %v4390
      %v4957 = vmax.f32 %v3765, %v4395
      %v4958 = vmax.f32 %v3770, %v4400
      %v4959 = vmax.f32 %v3775, %v4405
      %v4960 = vmax.f32 %v3780, %v4410
      %v4961 = vmax.f32 %v3785, %v4415
      %v4962 = vmax.f32 %v3790, %v4420
      %v4963 = vmax.f32 %v3795, %v4425
      %v4964 = vmax.f32 %v3800, %v4430
      %v4965 = vmax.f32 %v3805, %v4435
      %v4966 = vmax.f32 %v3810, %v4440
      %v4967 = vmax.f32 %v3815, %v4445
      %v4968 = vmax.f32 %v3820, %v4450
      %v4969 = vmax.f32 %v3825, %v4455
      %v4970 = vmax.f32 %v3830, %v4460
      %v4971 = vmax.f32 %v3835, %v4465
      %v4972 = vmax.f32 %v3840, %v4470
      %v4973 = vmax.f32 %v3845, %v4475
      %v4974 = vmax.f32 %v3850, %v4480
      %v4975 = vmax.f32 %v3855, %v4485
      %v4976 = vmax.f32 %v3860, %v4490
      %v4977 = vmax.f32 %v3865, %v4495
      %v4978 = vmax.f32 %v3870, %v4500
      %v4979 = vmax.f32 %v3875, %v4505
      %v4980 = vmax.f32 %v3880, %v4510
      %v4981 = vmax.f32 %v3885, %v4515
      %v4982 = vmax.f32 %v3890, %v4520
      %v4983 = vmax.f32 %v3895, %v4525
      %v4984 = vmax.f32 %v3900, %v4530
      %v4985 = vmax.f32 %v3905, %v4535
      %v4986 = vmax.f32 %v3910, %v4540
      %v4987 = vmax.f32 %v3915, %v4545
      %v4988 = vmax.f32 %v3920, %v4550
      %v4989 = vmax.f32 %v3925, %v4555
      %v4990 = vmax.f32 %v3930, %v4560
      %v4991 = vmax.f32 %v3935, %v4565
      %v4992 = vmax.f32 %v3940, %v4570
      %v4993 = vmax.f32 %v3945, %v4575
      %v4994 = vmax.f32 %v3950, %v4580
      %v4995 = vmax.f32 %v3955, %v4585
      %v4996 = vmax.f32 %v3960, %v4590
      %v4997 = vmax.f32 %v3965, %v4595
      %v4998 = vmax.f32 %v3970, %v4600
      %v4999 = vmax.f32 %v3975, %v4605
      %v5000 = vmax.f32 %v3980, %v4610
      %v5001 = vmax.f32 %v3985, %v4615
      %v5002 = vmax.f32 %v3990, %v4620
      %v5003 = vmax.f32 %v3995, %v4625
      %v5004 = vmax.f32 %v4000, %v4630
      %v5005 = vmax.f32 %v4005, %v4635
      %v5006 = vmax.f32 %v4010, %v4640
      %v5007 = vmax.f32 %v4015, %v4645
      %v5008 = vmax.f32 %v4020, %v4650
      %v5009 = vmax.f32 %v4025, %v4655
      %v5010 = vmax.f32 %v4030, %v4660
      %v5011 = vmax.f32 %v4035, %v4665
      %v5012 = vmax.f32 %v4040, %v4670
      %v5013 = vmax.f32 %v4045, %v4675
      %v5014 = vmax.f32 %v4050, %v4680
      %v5015 = vmax.f32 %v4055, %v4685
      %v5016 = vmax.f32 %v4060, %v4690
      %v5017 = vmax.f32 %v4065, %v4695
      %v5018 = vmax.f32 %v4070, %v4700
      %v5019 = vmax.f32 %v4075, %v4705
      %v5020 = vmax.f32 %v4080, %v4710
      %v5021 = vmax.f32 %v4085, %v4715
      %v5022 = vmax.f32 %v4090, %v4720
      %v5023 = vmax.f32 %v4095, %v4725
      %v5024 = vmax.f32 %v4100, %v4730
      %v5025 = vmax.f32 %v4105, %v4735
      %v5026 = vmax.f32 %v4110, %v4740
      %v5027 = vmax.f32 %v4115, %v4745
      %v5028 = vmax.f32 %v4120, %v4750
      %v5029 = vmax.f32 %v4125, %v4755
      %v5030 = vmax.f32 %v4130, %v4760
      %v5031 = vmax.f32 %v4135, %v4765
      %v5032 = vmax.f32 %v4140, %v4770
      %v5033 = vmax.f32 %v4145, %v4775
      %v5034 = vmax.f32 %v4150, %v4780
      %v5035 = vmax.f32 %v4783, %v4909
      %v5036 = vmax.f32 %v4784, %v4910
      %v5037 = vmax.f32 %v4785, %v4911
      %v5038 = vmax.f32 %v4786, %v4912
      %v5039 = vmax.f32 %v4787, %v4913
      %v5040 = vmax.f32 %v4788, %v4914
      %v5041 = vmax.f32 %v4789, %v4915
      %v5042 = vmax.f32 %v4790, %v4916
      %v5043 = vmax.f32 %v4791, %v4917
      %v5044 = vmax.f32 %v4792, %v4918
      %v5045 = vmax.f32 %v4793, %v4919
      %v5046 = vmax.f32 %v4794, %v4920
      %v5047 = vmax.f32 %v4795, %v4921
      %v5048 = vmax.f32 %v4796, %v4922
      %v5049 = vmax.f32 %v4797, %v4923
      %v5050 = vmax.f32 %v4798, %v4924
      %v5051 = vmax.f32 %v4799, %v4925
      %v5052 = vmax.f32 %v4800, %v4926
      %v5053 = vmax.f32 %v4801, %v4927
      %v5054 = vmax.f32 %v4802, %v4928
      %v5055 = vmax.f32 %v4803, %v4929
      %v5056 = vmax.f32 %v4804, %v4930
      %v5057 = vmax.f32 %v4805, %v4931
      %v5058 = vmax.f32 %v4806, %v4932
      %v5059 = vmax.f32 %v4807, %v4933
      %v5060 = vmax.f32 %v4808, %v4934
      %v5061 = vmax.f32 %v4809, %v4935
      %v5062 = vmax.f32 %v4810, %v4936
      %v5063 = vmax.f32 %v4811, %v4937
      %v5064 = vmax.f32 %v4812, %v4938
      %v5065 = vmax.f32 %v4813, %v4939
      %v5066 = vmax.f32 %v4814, %v4940
      %v5067 = vmax.f32 %v4815, %v4941
      %v5068 = vmax.f32 %v4816, %v4942
      %v5069 = vmax.f32 %v4817, %v4943
      %v5070 = vmax.f32 %v4818, %v4944
      %v5071 = vmax.f32 %v4819, %v4945
      %v5072 = vmax.f32 %v4820, %v4946
      %v5073 = vmax.f32 %v4821, %v4947
      %v5074 = vmax.f32 %v4822, %v4948
      %v5075 = vmax.f32 %v4823, %v4949
      %v5076 = vmax.f32 %v4824, %v4950
      %v5077 = vmax.f32 %v4825, %v4951
      %v5078 = vmax.f32 %v4826, %v4952
      %v5079 = vmax.f32 %v4827, %v4953
      %v5080 = vmax.f32 %v4828, %v4954
      %v5081 = vmax.f32 %v4829, %v4955
      %v5082 = vmax.f32 %v4830, %v4956
      %v5083 = vmax.f32 %v4831, %v4957
      %v5084 = vmax.f32 %v4832, %v4958
      %v5085 = vmax.f32 %v4833, %v4959
      %v5086 = vmax.f32 %v4834, %v4960
      %v5087 = vmax.f32 %v4835, %v4961
      %v5088 = vmax.f32 %v4836, %v4962
      %v5089 = vmax.f32 %v4837, %v4963
      %v5090 = vmax.f32 %v4838, %v4964
      %v5091 = vmax.f32 %v4839, %v4965
      %v5092 = vmax.f32 %v4840, %v4966
      %v5093 = vmax.f32 %v4841, %v4967
      %v5094 = vmax.f32 %v4842, %v4968
      %v5095 = vmax.f32 %v4843, %v4969
      %v5096 = vmax.f32 %v4844, %v4970
      %v5097 = vmax.f32 %v4845, %v4971
      %v5098 = vmax.f32 %v4846, %v4972
      %v5099 = vmax.f32 %v4847, %v4973
      %v5100 = vmax.f32 %v4848, %v4974
      %v5101 = vmax.f32 %v4849, %v4975
      %v5102 = vmax.f32 %v4850, %v4976
      %v5103 = vmax.f32 %v4851, %v4977
      %v5104 = vmax.f32 %v4852, %v4978
      %v5105 = vmax.f32 %v4853, %v4979
      %v5106 = vmax.f32 %v4854, %v4980
      %v5107 = vmax.f32 %v4855, %v4981
      %v5108 = vmax.f32 %v4856, %v4982
      %v5109 = vmax.f32 %v4857, %v4983
      %v5110 = vmax.f32 %v4858, %v4984
      %v5111 = vmax.f32 %v4859, %v4985
      %v5112 = vmax.f32 %v4860, %v4986
      %v5113 = vmax.f32 %v4861, %v4987
      %v5114 = vmax.f32 %v4862, %v4988
      %v5115 = vmax.f32 %v4863, %v4989
      %v5116 = vmax.f32 %v4864, %v4990
      %v5117 = vmax.f32 %v4865, %v4991
      %v5118 = vmax.f32 %v4866, %v4992
      %v5119 = vmax.f32 %v4867, %v4993
      %v5120 = vmax.f32 %v4868, %v4994
      %v5121 = vmax.f32 %v4869, %v4995
      %v5122 = vmax.f32 %v4870, %v4996
      %v5123 = vmax.f32 %v4871, %v4997
      %v5124 = vmax.f32 %v4872, %v4998
      %v5125 = vmax.f32 %v4873, %v4999
      %v5126 = vmax.f32 %v4874, %v5000
      %v5127 = vmax.f32 %v4875, %v5001
      %v5128 = vmax.f32 %v4876, %v5002
      %v5129 = vmax.f32 %v4877, %v5003
      %v5130 = vmax.f32 %v4878, %v5004
      %v5131 = vmax.f32 %v4879, %v5005
      %v5132 = vmax.f32 %v4880, %v5006
      %v5133 = vmax.f32 %v4881, %v5007
      %v5134 = vmax.f32 %v4882, %v5008
      %v5135 = vmax.f32 %v4883, %v5009
      %v5136 = vmax.f32 %v4884, %v5010
      %v5137 = vmax.f32 %v4885, %v5011
      %v5138 = vmax.f32 %v4886, %v5012
      %v5139 = vmax.f32 %v4887, %v5013
      %v5140 = vmax.f32 %v4888, %v5014
      %v5141 = vmax.f32 %v4889, %v5015
      %v5142 = vmax.f32 %v4890, %v5016
      %v5143 = vmax.f32 %v4891, %v5017
      %v5144 = vmax.f32 %v4892, %v5018
      %v5145 = vmax.f32 %v4893, %v5019
      %v5146 = vmax.f32 %v4894, %v5020
      %v5147 = vmax.f32 %v4895, %v5021
      %v5148 = vmax.f32 %v4896, %v5022
      %v5149 = vmax.f32 %v4897, %v5023
      %v5150 = vmax.f32 %v4898, %v5024
      %v5151 = vmax.f32 %v4899, %v5025
      %v5152 = vmax.f32 %v4900, %v5026
      %v5153 = vmax.f32 %v4901, %v5027
      %v5154 = vmax.f32 %v4902, %v5028
      %v5155 = vmax.f32 %v4903, %v5029
      %v5156 = vmax.f32 %v4904, %v5030
      %v5157 = vmax.f32 %v4905, %v5031
      %v5158 = vmax.f32 %v4906, %v5032
      %v5159 = vmax.f32 %v4907, %v5033
      %v5160 = vmax.f32 %v4908, %v5034
      %v5161 = vld [vmem:[%s2] sm:$0x1]
      %v5163 = vlaneseq
      %v5164 = vshrl.u32 %v5163, 7
      %v5165 = vsub.s32 0, %v5164
      %v5166 = vrot.slane %v5161, %v5165
      %v5168 = vadd.f32 %v5035, %v5166
      %v5169 = vadd.f32 %v5036, %v5166
      %v5170 = vadd.f32 %v5037, %v5166
      %v5171 = vadd.f32 %v5038, %v5166
      %v5172 = vadd.f32 %v5039, %v5166
      %v5173 = vadd.f32 %v5040, %v5166
      %v5174 = vadd.f32 %v5041, %v5166
      %v5175 = vadd.f32 %v5042, %v5166
      %v5176 = vadd.f32 %v5043, %v5166
      %v5177 = vadd.f32 %v5044, %v5166
      %v5178 = vadd.f32 %v5045, %v5166
      %v5179 = vadd.f32 %v5046, %v5166
      %v5180 = vadd.f32 %v5047, %v5166
      %v5181 = vadd.f32 %v5048, %v5166
      %v5182 = vadd.f32 %v5049, %v5166
      %v5183 = vadd.f32 %v5050, %v5166
      %v5184 = vadd.f32 %v5051, %v5166
      %v5185 = vadd.f32 %v5052, %v5166
      %v5186 = vadd.f32 %v5053, %v5166
      %v5187 = vadd.f32 %v5054, %v5166
      %v5188 = vadd.f32 %v5055, %v5166
      %v5189 = vadd.f32 %v5056, %v5166
      %v5190 = vadd.f32 %v5057, %v5166
      %v5191 = vadd.f32 %v5058, %v5166
      %v5192 = vadd.f32 %v5059, %v5166
      %v5193 = vadd.f32 %v5060, %v5166
      %v5194 = vadd.f32 %v5061, %v5166
      %v5195 = vadd.f32 %v5062, %v5166
      %v5196 = vadd.f32 %v5063, %v5166
      %v5197 = vadd.f32 %v5064, %v5166
      %v5198 = vadd.f32 %v5065, %v5166
      %v5199 = vadd.f32 %v5066, %v5166
      %v5200 = vadd.f32 %v5067, %v5166
      %v5201 = vadd.f32 %v5068, %v5166
      %v5202 = vadd.f32 %v5069, %v5166
      %v5203 = vadd.f32 %v5070, %v5166
      %v5204 = vadd.f32 %v5071, %v5166
      %v5205 = vadd.f32 %v5072, %v5166
      %v5206 = vadd.f32 %v5073, %v5166
      %v5207 = vadd.f32 %v5074, %v5166
      %v5208 = vadd.f32 %v5075, %v5166
      %v5209 = vadd.f32 %v5076, %v5166
      %v5210 = vadd.f32 %v5077, %v5166
      %v5211 = vadd.f32 %v5078, %v5166
      %v5212 = vadd.f32 %v5079, %v5166
      %v5213 = vadd.f32 %v5080, %v5166
      %v5214 = vadd.f32 %v5081, %v5166
      %v5215 = vadd.f32 %v5082, %v5166
      %v5216 = vadd.f32 %v5083, %v5166
      %v5217 = vadd.f32 %v5084, %v5166
      %v5218 = vadd.f32 %v5085, %v5166
      %v5219 = vadd.f32 %v5086, %v5166
      %v5220 = vadd.f32 %v5087, %v5166
      %v5221 = vadd.f32 %v5088, %v5166
      %v5222 = vadd.f32 %v5089, %v5166
      %v5223 = vadd.f32 %v5090, %v5166
      %v5224 = vadd.f32 %v5091, %v5166
      %v5225 = vadd.f32 %v5092, %v5166
      %v5226 = vadd.f32 %v5093, %v5166
      %v5227 = vadd.f32 %v5094, %v5166
      %v5228 = vadd.f32 %v5095, %v5166
      %v5229 = vadd.f32 %v5096, %v5166
      %v5230 = vadd.f32 %v5097, %v5166
      %v5231 = vadd.f32 %v5098, %v5166
      %v5232 = vadd.f32 %v5099, %v5166
      %v5233 = vadd.f32 %v5100, %v5166
      %v5234 = vadd.f32 %v5101, %v5166
      %v5235 = vadd.f32 %v5102, %v5166
      %v5236 = vadd.f32 %v5103, %v5166
      %v5237 = vadd.f32 %v5104, %v5166
      %v5238 = vadd.f32 %v5105, %v5166
      %v5239 = vadd.f32 %v5106, %v5166
      %v5240 = vadd.f32 %v5107, %v5166
      %v5241 = vadd.f32 %v5108, %v5166
      %v5242 = vadd.f32 %v5109, %v5166
      %v5243 = vadd.f32 %v5110, %v5166
      %v5244 = vadd.f32 %v5111, %v5166
      %v5245 = vadd.f32 %v5112, %v5166
      %v5246 = vadd.f32 %v5113, %v5166
      %v5247 = vadd.f32 %v5114, %v5166
      %v5248 = vadd.f32 %v5115, %v5166
      %v5249 = vadd.f32 %v5116, %v5166
      %v5250 = vadd.f32 %v5117, %v5166
      %v5251 = vadd.f32 %v5118, %v5166
      %v5252 = vadd.f32 %v5119, %v5166
      %v5253 = vadd.f32 %v5120, %v5166
      %v5254 = vadd.f32 %v5121, %v5166
      %v5255 = vadd.f32 %v5122, %v5166
      %v5256 = vadd.f32 %v5123, %v5166
      %v5257 = vadd.f32 %v5124, %v5166
      %v5258 = vadd.f32 %v5125, %v5166
      %v5259 = vadd.f32 %v5126, %v5166
      %v5260 = vadd.f32 %v5127, %v5166
      %v5261 = vadd.f32 %v5128, %v5166
      %v5262 = vadd.f32 %v5129, %v5166
      %v5263 = vadd.f32 %v5130, %v5166
      %v5264 = vadd.f32 %v5131, %v5166
      %v5265 = vadd.f32 %v5132, %v5166
      %v5266 = vadd.f32 %v5133, %v5166
      %v5267 = vadd.f32 %v5134, %v5166
      %v5268 = vadd.f32 %v5135, %v5166
      %v5269 = vadd.f32 %v5136, %v5166
      %v5270 = vadd.f32 %v5137, %v5166
      %v5271 = vadd.f32 %v5138, %v5166
      %v5272 = vadd.f32 %v5139, %v5166
      %v5273 = vadd.f32 %v5140, %v5166
      %v5274 = vadd.f32 %v5141, %v5166
      %v5275 = vadd.f32 %v5142, %v5166
      %v5276 = vadd.f32 %v5143, %v5166
      %v5277 = vadd.f32 %v5144, %v5166
      %v5278 = vadd.f32 %v5145, %v5166
      %v5279 = vadd.f32 %v5146, %v5166
      %v5280 = vadd.f32 %v5147, %v5166
      %v5281 = vadd.f32 %v5148, %v5166
      %v5282 = vadd.f32 %v5149, %v5166
      %v5283 = vadd.f32 %v5150, %v5166
      %v5284 = vadd.f32 %v5151, %v5166
      %v5285 = vadd.f32 %v5152, %v5166
      %v5286 = vadd.f32 %v5153, %v5166
      %v5287 = vadd.f32 %v5154, %v5166
      %v5288 = vadd.f32 %v5155, %v5166
      %v5289 = vadd.f32 %v5156, %v5166
      %v5290 = vadd.f32 %v5157, %v5166
      %v5291 = vadd.f32 %v5158, %v5166
      %v5292 = vadd.f32 %v5159, %v5166
      %v5293 = vadd.f32 %v5160, %v5166
      %v5294 = vmax.f32 %v5168, 0.0
      %v5295 = vmax.f32 %v5169, 0.0
      %v5296 = vmax.f32 %v5170, 0.0
      %v5297 = vmax.f32 %v5171, 0.0
      %v5298 = vmax.f32 %v5172, 0.0
      %v5299 = vmax.f32 %v5173, 0.0
      %v5300 = vmax.f32 %v5174, 0.0
      %v5301 = vmax.f32 %v5175, 0.0
      %v5302 = vmax.f32 %v5176, 0.0
      %v5303 = vmax.f32 %v5177, 0.0
      %v5304 = vmax.f32 %v5178, 0.0
      %v5305 = vmax.f32 %v5179, 0.0
      %v5306 = vmax.f32 %v5180, 0.0
      %v5307 = vmax.f32 %v5181, 0.0
      %v5308 = vmax.f32 %v5182, 0.0
      %v5309 = vmax.f32 %v5183, 0.0
      %v5310 = vmax.f32 %v5184, 0.0
      %v5311 = vmax.f32 %v5185, 0.0
      %v5312 = vmax.f32 %v5186, 0.0
      %v5313 = vmax.f32 %v5187, 0.0
      %v5314 = vmax.f32 %v5188, 0.0
      %v5315 = vmax.f32 %v5189, 0.0
      %v5316 = vmax.f32 %v5190, 0.0
      %v5317 = vmax.f32 %v5191, 0.0
      %v5318 = vmax.f32 %v5192, 0.0
      %v5319 = vmax.f32 %v5193, 0.0
      %v5320 = vmax.f32 %v5194, 0.0
      %v5321 = vmax.f32 %v5195, 0.0
      %v5322 = vmax.f32 %v5196, 0.0
      %v5323 = vmax.f32 %v5197, 0.0
      %v5324 = vmax.f32 %v5198, 0.0
      %v5325 = vmax.f32 %v5199, 0.0
      %v5326 = vmax.f32 %v5200, 0.0
      %v5327 = vmax.f32 %v5201, 0.0
      %v5328 = vmax.f32 %v5202, 0.0
      %v5329 = vmax.f32 %v5203, 0.0
      %v5330 = vmax.f32 %v5204, 0.0
      %v5331 = vmax.f32 %v5205, 0.0
      %v5332 = vmax.f32 %v5206, 0.0
      %v5333 = vmax.f32 %v5207, 0.0
      %v5334 = vmax.f32 %v5208, 0.0
      %v5335 = vmax.f32 %v5209, 0.0
      %v5336 = vmax.f32 %v5210, 0.0
      %v5337 = vmax.f32 %v5211, 0.0
      %v5338 = vmax.f32 %v5212, 0.0
      %v5339 = vmax.f32 %v5213, 0.0
      %v5340 = vmax.f32 %v5214, 0.0
      %v5341 = vmax.f32 %v5215, 0.0
      %v5342 = vmax.f32 %v5216, 0.0
      %v5343 = vmax.f32 %v5217, 0.0
      %v5344 = vmax.f32 %v5218, 0.0
      %v5345 = vmax.f32 %v5219, 0.0
      %v5346 = vmax.f32 %v5220, 0.0
      %v5347 = vmax.f32 %v5221, 0.0
      %v5348 = vmax.f32 %v5222, 0.0
      %v5349 = vmax.f32 %v5223, 0.0
      %v5350 = vmax.f32 %v5224, 0.0
      %v5351 = vmax.f32 %v5225, 0.0
      %v5352 = vmax.f32 %v5226, 0.0
      %v5353 = vmax.f32 %v5227, 0.0
      %v5354 = vmax.f32 %v5228, 0.0
      %v5355 = vmax.f32 %v5229, 0.0
      %v5356 = vmax.f32 %v5230, 0.0
      %v5357 = vmax.f32 %v5231, 0.0
      %v5358 = vmax.f32 %v5232, 0.0
      %v5359 = vmax.f32 %v5233, 0.0
      %v5360 = vmax.f32 %v5234, 0.0
      %v5361 = vmax.f32 %v5235, 0.0
      %v5362 = vmax.f32 %v5236, 0.0
      %v5363 = vmax.f32 %v5237, 0.0
      %v5364 = vmax.f32 %v5238, 0.0
      %v5365 = vmax.f32 %v5239, 0.0
      %v5366 = vmax.f32 %v5240, 0.0
      %v5367 = vmax.f32 %v5241, 0.0
      %v5368 = vmax.f32 %v5242, 0.0
      %v5369 = vmax.f32 %v5243, 0.0
      %v5370 = vmax.f32 %v5244, 0.0
      %v5371 = vmax.f32 %v5245, 0.0
      %v5372 = vmax.f32 %v5246, 0.0
      %v5373 = vmax.f32 %v5247, 0.0
      %v5374 = vmax.f32 %v5248, 0.0
      %v5375 = vmax.f32 %v5249, 0.0
      %v5376 = vmax.f32 %v5250, 0.0
      %v5377 = vmax.f32 %v5251, 0.0
      %v5378 = vmax.f32 %v5252, 0.0
      %v5379 = vmax.f32 %v5253, 0.0
      %v5380 = vmax.f32 %v5254, 0.0
      %v5381 = vmax.f32 %v5255, 0.0
      %v5382 = vmax.f32 %v5256, 0.0
      %v5383 = vmax.f32 %v5257, 0.0
      %v5384 = vmax.f32 %v5258, 0.0
      %v5385 = vmax.f32 %v5259, 0.0
      %v5386 = vmax.f32 %v5260, 0.0
      %v5387 = vmax.f32 %v5261, 0.0
      %v5388 = vmax.f32 %v5262, 0.0
      %v5389 = vmax.f32 %v5263, 0.0
      %v5390 = vmax.f32 %v5264, 0.0
      %v5391 = vmax.f32 %v5265, 0.0
      %v5392 = vmax.f32 %v5266, 0.0
      %v5393 = vmax.f32 %v5267, 0.0
      %v5394 = vmax.f32 %v5268, 0.0
      %v5395 = vmax.f32 %v5269, 0.0
      %v5396 = vmax.f32 %v5270, 0.0
      %v5397 = vmax.f32 %v5271, 0.0
      %v5398 = vmax.f32 %v5272, 0.0
      %v5399 = vmax.f32 %v5273, 0.0
      %v5400 = vmax.f32 %v5274, 0.0
      %v5401 = vmax.f32 %v5275, 0.0
      %v5402 = vmax.f32 %v5276, 0.0
      %v5403 = vmax.f32 %v5277, 0.0
      %v5404 = vmax.f32 %v5278, 0.0
      %v5405 = vmax.f32 %v5279, 0.0
      %v5406 = vmax.f32 %v5280, 0.0
      %v5407 = vmax.f32 %v5281, 0.0
      %v5408 = vmax.f32 %v5282, 0.0
      %v5409 = vmax.f32 %v5283, 0.0
      %v5410 = vmax.f32 %v5284, 0.0
      %v5411 = vmax.f32 %v5285, 0.0
      %v5412 = vmax.f32 %v5286, 0.0
      %v5413 = vmax.f32 %v5287, 0.0
      %v5414 = vmax.f32 %v5288, 0.0
      %v5415 = vmax.f32 %v5289, 0.0
      %v5416 = vmax.f32 %v5290, 0.0
      %v5417 = vmax.f32 %v5291, 0.0
      %v5418 = vmax.f32 %v5292, 0.0
      %v5419 = vmax.f32 %v5293, 0.0
      %vm5420 = vcmask 261120
      %5421 = vst.msk [vmem:[%s172] sm:$0xff] %vm5420, %v5294
      %5422 = vst.msk [vmem:[%s172 + $0x8] sm:$0xff] %vm5420, %v5295
      %5423 = vst.msk [vmem:[%s172 + $0x10] sm:$0xff] %vm5420, %v5296
      %5424 = vst.msk [vmem:[%s172 + $0x18] sm:$0xff] %vm5420, %v5297
      %5425 = vst.msk [vmem:[%s172 + $0x20] sm:$0xff] %vm5420, %v5298
      %5426 = vst.msk [vmem:[%s172 + $0x28] sm:$0xff] %vm5420, %v5299
      %5427 = vst.msk [vmem:[%s172 + $0x30] sm:$0xff] %vm5420, %v5300
      %5428 = vst.msk [vmem:[%s172 + $0x38] sm:$0xff] %vm5420, %v5301
      %5429 = vst.msk [vmem:[%s172 + $0x40] sm:$0xff] %vm5420, %v5302
      %5430 = vst.msk [vmem:[%s172 + $0x48] sm:$0xff] %vm5420, %v5303
      %5431 = vst.msk [vmem:[%s172 + $0x50] sm:$0xff] %vm5420, %v5304
      %5432 = vst.msk [vmem:[%s172 + $0x58] sm:$0xff] %vm5420, %v5305
      %5433 = vst.msk [vmem:[%s172 + $0x60] sm:$0xff] %vm5420, %v5306
      %5434 = vst.msk [vmem:[%s172 + $0x68] sm:$0xff] %vm5420, %v5307
      %5435 = vst.msk [vmem:[%s172 + $0x70] sm:$0xff] %vm5420, %v5308
      %5436 = vst.msk [vmem:[%s172 + $0x78] sm:$0xff] %vm5420, %v5309
      %5437 = vst.msk [vmem:[%s172 + $0x80] sm:$0xff] %vm5420, %v5310
      %5438 = vst.msk [vmem:[%s172 + $0x88] sm:$0xff] %vm5420, %v5311
      %5439 = vst.msk [vmem:[%s172 + $0x90] sm:$0xff] %vm5420, %v5312
      %5440 = vst.msk [vmem:[%s172 + $0x98] sm:$0xff] %vm5420, %v5313
      %5441 = vst.msk [vmem:[%s172 + $0xa0] sm:$0xff] %vm5420, %v5314
      %5442 = vst.msk [vmem:[%s172 + $0xa8] sm:$0xff] %vm5420, %v5315
      %5443 = vst.msk [vmem:[%s172 + $0xb0] sm:$0xff] %vm5420, %v5316
      %5444 = vst.msk [vmem:[%s172 + $0xb8] sm:$0xff] %vm5420, %v5317
      %5445 = vst.msk [vmem:[%s172 + $0xc0] sm:$0xff] %vm5420, %v5318
      %5446 = vst.msk [vmem:[%s172 + $0xc8] sm:$0xff] %vm5420, %v5319
      %5447 = vst.msk [vmem:[%s172 + $0xd0] sm:$0xff] %vm5420, %v5320
      %5448 = vst.msk [vmem:[%s172 + $0xd8] sm:$0xff] %vm5420, %v5321
      %5449 = vst.msk [vmem:[%s172 + $0xe0] sm:$0xff] %vm5420, %v5322
      %5450 = vst.msk [vmem:[%s172 + $0xe8] sm:$0xff] %vm5420, %v5323
      %5451 = vst.msk [vmem:[%s172 + $0xf0] sm:$0xff] %vm5420, %v5324
      %5452 = vst.msk [vmem:[%s172 + $0xf8] sm:$0xff] %vm5420, %v5325
      %5453 = vst.msk [vmem:[%s172 + $0x100] sm:$0xff] %vm5420, %v5326
      %5454 = vst.msk [vmem:[%s172 + $0x108] sm:$0xff] %vm5420, %v5327
      %5455 = vst.msk [vmem:[%s172 + $0x110] sm:$0xff] %vm5420, %v5328
      %5456 = vst.msk [vmem:[%s172 + $0x118] sm:$0xff] %vm5420, %v5329
      %5457 = vst.msk [vmem:[%s172 + $0x120] sm:$0xff] %vm5420, %v5330
      %5458 = vst.msk [vmem:[%s172 + $0x128] sm:$0xff] %vm5420, %v5331
      %5459 = vst.msk [vmem:[%s172 + $0x130] sm:$0xff] %vm5420, %v5332
      %5460 = vst.msk [vmem:[%s172 + $0x138] sm:$0xff] %vm5420, %v5333
      %5461 = vst.msk [vmem:[%s172 + $0x140] sm:$0xff] %vm5420, %v5334
      %5462 = vst.msk [vmem:[%s172 + $0x148] sm:$0xff] %vm5420, %v5335
      %5463 = vst.msk [vmem:[%s172 + $0x150] sm:$0xff] %vm5420, %v5336
      %5464 = vst.msk [vmem:[%s172 + $0x158] sm:$0xff] %vm5420, %v5337
      %5465 = vst.msk [vmem:[%s172 + $0x160] sm:$0xff] %vm5420, %v5338
      %5466 = vst.msk [vmem:[%s172 + $0x168] sm:$0xff] %vm5420, %v5339
      %5467 = vst.msk [vmem:[%s172 + $0x170] sm:$0xff] %vm5420, %v5340
      %5468 = vst.msk [vmem:[%s172 + $0x178] sm:$0xff] %vm5420, %v5341
      %5469 = vst.msk [vmem:[%s172 + $0x180] sm:$0xff] %vm5420, %v5342
      %5470 = vst.msk [vmem:[%s172 + $0x188] sm:$0xff] %vm5420, %v5343
      %5471 = vst.msk [vmem:[%s172 + $0x190] sm:$0xff] %vm5420, %v5344
      %5472 = vst.msk [vmem:[%s172 + $0x198] sm:$0xff] %vm5420, %v5345
      %5473 = vst.msk [vmem:[%s172 + $0x1a0] sm:$0xff] %vm5420, %v5346
      %5474 = vst.msk [vmem:[%s172 + $0x1a8] sm:$0xff] %vm5420, %v5347
      %5475 = vst.msk [vmem:[%s172 + $0x1b0] sm:$0xff] %vm5420, %v5348
      %5476 = vst.msk [vmem:[%s172 + $0x1b8] sm:$0xff] %vm5420, %v5349
      %5477 = vst.msk [vmem:[%s172 + $0x1c0] sm:$0xff] %vm5420, %v5350
      %5478 = vst.msk [vmem:[%s172 + $0x1c8] sm:$0xff] %vm5420, %v5351
      %5479 = vst.msk [vmem:[%s172 + $0x1d0] sm:$0xff] %vm5420, %v5352
      %5480 = vst.msk [vmem:[%s172 + $0x1d8] sm:$0xff] %vm5420, %v5353
      %5481 = vst.msk [vmem:[%s172 + $0x1e0] sm:$0xff] %vm5420, %v5354
      %5482 = vst.msk [vmem:[%s172 + $0x1e8] sm:$0xff] %vm5420, %v5355
      %5483 = vst.msk [vmem:[%s172 + $0x1f0] sm:$0xff] %vm5420, %v5356
      %5484 = vst.msk [vmem:[%s172 + $0x1f8] sm:$0xff] %vm5420, %v5357
      %5485 = vst.msk [vmem:[%s172 + $0x200] sm:$0xff] %vm5420, %v5358
      %5486 = vst.msk [vmem:[%s172 + $0x208] sm:$0xff] %vm5420, %v5359
      %5487 = vst.msk [vmem:[%s172 + $0x210] sm:$0xff] %vm5420, %v5360
      %5488 = vst.msk [vmem:[%s172 + $0x218] sm:$0xff] %vm5420, %v5361
      %5489 = vst.msk [vmem:[%s172 + $0x220] sm:$0xff] %vm5420, %v5362
      %5490 = vst.msk [vmem:[%s172 + $0x228] sm:$0xff] %vm5420, %v5363
      %5491 = vst.msk [vmem:[%s172 + $0x230] sm:$0xff] %vm5420, %v5364
      %5492 = vst.msk [vmem:[%s172 + $0x238] sm:$0xff] %vm5420, %v5365
      %5493 = vst.msk [vmem:[%s172 + $0x240] sm:$0xff] %vm5420, %v5366
      %5494 = vst.msk [vmem:[%s172 + $0x248] sm:$0xff] %vm5420, %v5367
      %5495 = vst.msk [vmem:[%s172 + $0x250] sm:$0xff] %vm5420, %v5368
      %5496 = vst.msk [vmem:[%s172 + $0x258] sm:$0xff] %vm5420, %v5369
      %5497 = vst.msk [vmem:[%s172 + $0x260] sm:$0xff] %vm5420, %v5370
      %5498 = vst.msk [vmem:[%s172 + $0x268] sm:$0xff] %vm5420, %v5371
      %5499 = vst.msk [vmem:[%s172 + $0x270] sm:$0xff] %vm5420, %v5372
      %5500 = vst.msk [vmem:[%s172 + $0x278] sm:$0xff] %vm5420, %v5373
      %5501 = vst.msk [vmem:[%s172 + $0x280] sm:$0xff] %vm5420, %v5374
      %5502 = vst.msk [vmem:[%s172 + $0x288] sm:$0xff] %vm5420, %v5375
      %5503 = vst.msk [vmem:[%s172 + $0x290] sm:$0xff] %vm5420, %v5376
      %5504 = vst.msk [vmem:[%s172 + $0x298] sm:$0xff] %vm5420, %v5377
      %5505 = vst.msk [vmem:[%s172 + $0x2a0] sm:$0xff] %vm5420, %v5378
      %5506 = vst.msk [vmem:[%s172 + $0x2a8] sm:$0xff] %vm5420, %v5379
      %5507 = vst.msk [vmem:[%s172 + $0x2b0] sm:$0xff] %vm5420, %v5380
      %5508 = vst.msk [vmem:[%s172 + $0x2b8] sm:$0xff] %vm5420, %v5381
      %5509 = vst.msk [vmem:[%s172 + $0x2c0] sm:$0xff] %vm5420, %v5382
      %5510 = vst.msk [vmem:[%s172 + $0x2c8] sm:$0xff] %vm5420, %v5383
      %5511 = vst.msk [vmem:[%s172 + $0x2d0] sm:$0xff] %vm5420, %v5384
      %5512 = vst.msk [vmem:[%s172 + $0x2d8] sm:$0xff] %vm5420, %v5385
      %5513 = vst.msk [vmem:[%s172 + $0x2e0] sm:$0xff] %vm5420, %v5386
      %5514 = vst.msk [vmem:[%s172 + $0x2e8] sm:$0xff] %vm5420, %v5387
      %5515 = vst.msk [vmem:[%s172 + $0x2f0] sm:$0xff] %vm5420, %v5388
      %5516 = vst.msk [vmem:[%s172 + $0x2f8] sm:$0xff] %vm5420, %v5389
      %5517 = vst.msk [vmem:[%s172 + $0x300] sm:$0xff] %vm5420, %v5390
      %5518 = vst.msk [vmem:[%s172 + $0x308] sm:$0xff] %vm5420, %v5391
      %5519 = vst.msk [vmem:[%s172 + $0x310] sm:$0xff] %vm5420, %v5392
      %5520 = vst.msk [vmem:[%s172 + $0x318] sm:$0xff] %vm5420, %v5393
      %5521 = vst.msk [vmem:[%s172 + $0x320] sm:$0xff] %vm5420, %v5394
      %5522 = vst.msk [vmem:[%s172 + $0x328] sm:$0xff] %vm5420, %v5395
      %5523 = vst.msk [vmem:[%s172 + $0x330] sm:$0xff] %vm5420, %v5396
      %5524 = vst.msk [vmem:[%s172 + $0x338] sm:$0xff] %vm5420, %v5397
      %5525 = vst.msk [vmem:[%s172 + $0x340] sm:$0xff] %vm5420, %v5398
      %5526 = vst.msk [vmem:[%s172 + $0x348] sm:$0xff] %vm5420, %v5399
      %5527 = vst.msk [vmem:[%s172 + $0x350] sm:$0xff] %vm5420, %v5400
      %5528 = vst.msk [vmem:[%s172 + $0x358] sm:$0xff] %vm5420, %v5401
      %5529 = vst.msk [vmem:[%s172 + $0x360] sm:$0xff] %vm5420, %v5402
      %5530 = vst.msk [vmem:[%s172 + $0x368] sm:$0xff] %vm5420, %v5403
      %5531 = vst.msk [vmem:[%s172 + $0x370] sm:$0xff] %vm5420, %v5404
      %5532 = vst.msk [vmem:[%s172 + $0x378] sm:$0xff] %vm5420, %v5405
      %5533 = vst.msk [vmem:[%s172 + $0x380] sm:$0xff] %vm5420, %v5406
      %5534 = vst.msk [vmem:[%s172 + $0x388] sm:$0xff] %vm5420, %v5407
      %5535 = vst.msk [vmem:[%s172 + $0x390] sm:$0xff] %vm5420, %v5408
      %5536 = vst.msk [vmem:[%s172 + $0x398] sm:$0xff] %vm5420, %v5409
      %5537 = vst.msk [vmem:[%s172 + $0x3a0] sm:$0xff] %vm5420, %v5410
      %5538 = vst.msk [vmem:[%s172 + $0x3a8] sm:$0xff] %vm5420, %v5411
      %5539 = vst.msk [vmem:[%s172 + $0x3b0] sm:$0xff] %vm5420, %v5412
      %5540 = vst.msk [vmem:[%s172 + $0x3b8] sm:$0xff] %vm5420, %v5413
      %5541 = vst.msk [vmem:[%s172 + $0x3c0] sm:$0xff] %vm5420, %v5414
      %5542 = vst.msk [vmem:[%s172 + $0x3c8] sm:$0xff] %vm5420, %v5415
      %5543 = vst.msk [vmem:[%s172 + $0x3d0] sm:$0xff] %vm5420, %v5416
      %5544 = vst.msk [vmem:[%s172 + $0x3d8] sm:$0xff] %vm5420, %v5417
      %5545 = vst.msk [vmem:[%s172 + $0x3e0] sm:$0xff] %vm5420, %v5418
      %5546 = vst.msk [vmem:[%s172 + $0x3e8] sm:$0xff] %vm5420, %v5419
      %s5547 = smul.u32 126, %s14
      %p5548 = scmp.lt.s32.totalorder %s5547, 251
      %s5549 = scalar_select %p5548, %s5547, 251
      %s5550 = smul.addr %s5549, 8
      %s5551 = scalar_lea.vmem %s3, %s5550
      // Predicated region
      $region33: #{my_cnn_and_gnn2_forward.3} parent=31 // pred_check
        %p5552 = pneg %p100
      $region34: #{my_cnn_and_gnn2_forward.3} parent=31 // pred_check_branch
        %5554 = sbr.rel (%p5552) target = $region36
      $region35: #{my_cnn_and_gnn2_forward.3} parent=31 // pred_region
        %s5555 = smul.u32 126, %s14
      $region36: #{my_cnn_and_gnn2_forward.3} parent=31 // pred_fallthru
        _
    $region32: #{my_cnn_and_gnn2_forward.3} parent=5 // pred_fallthru
      _
    %p5556 = scmp.le.s32.totalorder 2, %s9
    // Predicated region
    $region37: #{my_cnn_and_gnn2_forward.3} parent=5 // pred_check
      %p5557 = pneg %p5556
    $region38: #{my_cnn_and_gnn2_forward.3} parent=5 // pred_check_branch
      %5559 = sbr.rel (%p5557) target = $region40
    $region39: #{my_cnn_and_gnn2_forward.3} parent=5 // pred_region
      %s5560 = ssub.s32 %s9, 2
      // Predicated region
      $region41: #{my_cnn_and_gnn2_forward.3} parent=39 // pred_check
        %p5561 = pneg %p106
      $region42: #{my_cnn_and_gnn2_forward.3} parent=39 // pred_check_branch
        %5563 = sbr.rel (%p5561) target = $region44
      $region43: #{my_cnn_and_gnn2_forward.3} parent=39 // pred_region
        %s5564 = smul.u32 126, %s15
        %p5565 = scmp.lt.s32.totalorder %s5564, 251
        %s5566 = scalar_select %p5565, %s5564, 251
        %s5567 = smul.addr %s5566, 8
        %s5568 = scalar_lea.vmem %s3, %s5567
      $region44: #{my_cnn_and_gnn2_forward.3} parent=39 // pred_fallthru
        _
    $region40: #{my_cnn_and_gnn2_forward.3} parent=5 // pred_fallthru
      _
  $region6: #{my_cnn_and_gnn2_forward.3} parent=0 // loop_footer
    %s13 = sadd.s32 1, %s9
  $region7: #{my_cnn_and_gnn2_forward.3} parent=0 // loop_footer_branch
    %8 = sbr.rel target = $region3
  $region8: #{my_cnn_and_gnn2_forward.3} parent=0 // loop_exit
    _

// kernel: my_cnn_and_gnn2_forward.4
$region0: #{my_cnn_and_gnn2_forward.4}
  #allocation0 [shape = 'u32[]', space=smem, size = 0x4, offset = 0x4, fixed_abs, tag = 'smem constant byte address 0x4 - core index']
  #allocation1 [shape = 'u32[144,128]{1,0:T(1,128)}', space=vmem, size = 0x12000, scoped, tag = 'internal scratch']
  %s0 = inlined_call_operand.vmem [shape: f32[1728,288], index: 0, kind: input, shape index: {}]
  %s1 = inlined_call_operand.vmem [shape: f32[288,64], index: 1, kind: input, shape index: {}]
  %s2 = inlined_call_operand.vmem [shape: f32[1,64], index: 2, kind: input, shape index: {}]
  %s3 = inlined_call_operand.vmem [shape: f32[432,64], index: 3, kind: output, shape index: {}]
  %s4 = sld [smem:[#allocation0]]
  $region45: #{my_cnn_and_gnn2_forward.4} parent=0
    _
  %s6 = ssub.s32 1, %s4
  %s7 = scalar_select 0, %s6, %s4
  loop: start=0, step=1, limit=4
  $region2: #{my_cnn_and_gnn2_forward.4} parent=0 // loop_pre_header
    _
  $region3: #{my_cnn_and_gnn2_forward.4} parent=0 // loop_header
    %s9 = sphi 0, %s13
    %p10 = scmp.ge.s32.totalorder %s9, 4
    %s19 = sphi 0, %s21
    %s22 = sphi 0, %s19
    %s23 = sphi 0, %s22
    %s39 = sphi 0, %s23
    %s43 = sphi 0, %s43
    %s45 = sphi 0, %s43
    %s46 = sphi 0, %s45
    %s60 = sphi 0, %s46
    %s64 = sphi 0, %s64
    %s66 = sphi 0, %s64
    %s67 = sphi 0, %s66
    %s81 = sphi 0, %s67
    %s87 = sphi 0, %s89
    %s90 = sphi 0, %s87
    %s91 = sphi 0, %s90
    %s107 = sphi 0, %s91
  $region4: #{my_cnn_and_gnn2_forward.4} parent=0 // loop_header_branch
    %12 = sbr.rel (%p10) target = $region8
  $region5: #{my_cnn_and_gnn2_forward.4} parent=0 // loop_body
    %s14 = ssub.s32 %s9, 1
    %s15 = ssub.s32 %s9, 2
    %s16 = sadd.s32 %s9, 1
    %s17 = ssub.s32 %s9, %s16
    %p18 = scmp.eq.s32.totalorder %s17, 0
    %s20 = sadd.s32 %s19, 1
    %s21 = scalar_select %p18, %s19, %s20
    %p24 = pneg %p18
    %p25 = scmp.eq.s32.totalorder %s9, 1
    %p26 = por %p24, %p25
    %p27 = scmp.ne.s32.totalorder %s19, %s22
    %p28 = scmp.eq.s32.totalorder %s9, 0
    %p29 = por %p27, %p28
    %p30 = scmp.ne.s32.totalorder %s19, %s22
    %p31 = scmp.eq.s32.totalorder %s14, 1
    %p32 = por %p30, %p31
    %p33 = scmp.ne.s32.totalorder %s22, %s23
    %p34 = scmp.eq.s32.totalorder %s14, 0
    %p35 = por %p33, %p34
    %p36 = scmp.ne.s32.totalorder %s22, %s23
    %p37 = scmp.eq.s32.totalorder %s15, 1
    %p38 = por %p36, %p37
    %p40 = scmp.ne.s32.totalorder %s23, %s39
    %p41 = scmp.eq.s32.totalorder %s15, 0
    %p42 = por %p40, %p41
    %s44 = sadd.s32 %s43, 1
    %p47 = scmp.eq.s32.totalorder %s9, 1
    %p48 = scmp.ne.s32.totalorder %s43, %s45
    %p49 = scmp.eq.s32.totalorder %s9, 0
    %p50 = por %p48, %p49
    %p51 = scmp.ne.s32.totalorder %s43, %s45
    %p52 = scmp.eq.s32.totalorder %s14, 1
    %p53 = por %p51, %p52
    %p54 = scmp.ne.s32.totalorder %s45, %s46
    %p55 = scmp.eq.s32.totalorder %s14, 0
    %p56 = por %p54, %p55
    %p57 = scmp.ne.s32.totalorder %s45, %s46
    %p58 = scmp.eq.s32.totalorder %s15, 1
    %p59 = por %p57, %p58
    %p61 = scmp.ne.s32.totalorder %s46, %s60
    %p62 = scmp.eq.s32.totalorder %s15, 0
    %p63 = por %p61, %p62
    %s65 = sadd.s32 %s64, 1
    %p68 = scmp.eq.s32.totalorder %s9, 1
    %p69 = scmp.ne.s32.totalorder %s64, %s66
    %p70 = scmp.eq.s32.totalorder %s9, 0
    %p71 = por %p69, %p70
    %p72 = scmp.ne.s32.totalorder %s64, %s66
    %p73 = scmp.eq.s32.totalorder %s14, 1
    %p74 = por %p72, %p73
    %p75 = scmp.ne.s32.totalorder %s66, %s67
    %p76 = scmp.eq.s32.totalorder %s14, 0
    %p77 = por %p75, %p76
    %p78 = scmp.ne.s32.totalorder %s66, %s67
    %p79 = scmp.eq.s32.totalorder %s15, 1
    %p80 = por %p78, %p79
    %p82 = scmp.ne.s32.totalorder %s67, %s81
    %p83 = scmp.eq.s32.totalorder %s15, 0
    %p84 = por %p82, %p83
    %s85 = ssub.s32 %s9, %s16
    %p86 = scmp.eq.s32.totalorder %s85, 0
    %s88 = sadd.s32 %s87, 1
    %s89 = scalar_select %p86, %s87, %s88
    %p92 = pneg %p86
    %p93 = scmp.eq.s32.totalorder %s9, 1
    %p94 = por %p92, %p93
    %p95 = scmp.ne.s32.totalorder %s87, %s90
    %p96 = scmp.eq.s32.totalorder %s9, 0
    %p97 = por %p95, %p96
    %p98 = scmp.ne.s32.totalorder %s87, %s90
    %p99 = scmp.eq.s32.totalorder %s14, 1
    %p100 = por %p98, %p99
    %p101 = scmp.ne.s32.totalorder %s90, %s91
    %p102 = scmp.eq.s32.totalorder %s14, 0
    %p103 = por %p101, %p102
    %p104 = scmp.ne.s32.totalorder %s90, %s91
    %p105 = scmp.eq.s32.totalorder %s15, 1
    %p106 = por %p104, %p105
    %p108 = scmp.ne.s32.totalorder %s91, %s107
    %p109 = scmp.eq.s32.totalorder %s15, 0
    %p110 = por %p108, %p109
    %p111 = scmp.le.s32.totalorder 1, %s9
    %p112 = scmp.lt.s32.totalorder %s9, 3
    %p113 = pnand %p111, %p112
    %p114 = pneg %p113
    // Predicated region
    $region9: #{my_cnn_and_gnn2_forward.4} parent=5 // pred_check
      _
    $region10: #{my_cnn_and_gnn2_forward.4} parent=5 // pred_check_branch
      %116 = sbr.rel (%p113) target = $region12
    $region11: #{my_cnn_and_gnn2_forward.4} parent=5 // pred_region
      %s117 = ssub.s32 %s9, 1
      // Predicated region
      $region13: #{my_cnn_and_gnn2_forward.4} parent=11 // pred_check
        %p118 = pneg %p56
      $region14: #{my_cnn_and_gnn2_forward.4} parent=11 // pred_check_branch
        %120 = sbr.rel (%p118) target = $region16
      $region15: #{my_cnn_and_gnn2_forward.4} parent=11 // pred_region
        _
      $region16: #{my_cnn_and_gnn2_forward.4} parent=11 // pred_fallthru
        _
      // Predicated region
      $region17: #{my_cnn_and_gnn2_forward.4} parent=11 // pred_check
        %p121 = pneg %p77
      $region18: #{my_cnn_and_gnn2_forward.4} parent=11 // pred_check_branch
        %123 = sbr.rel (%p121) target = $region20
      $region19: #{my_cnn_and_gnn2_forward.4} parent=11 // pred_region
        _
      $region20: #{my_cnn_and_gnn2_forward.4} parent=11 // pred_fallthru
        _
    $region12: #{my_cnn_and_gnn2_forward.4} parent=5 // pred_fallthru
      _
    %p124 = scmp.lt.s32.totalorder %s9, 2
    // Predicated region
    $region21: #{my_cnn_and_gnn2_forward.4} parent=5 // pred_check
      %p125 = pneg %p124
    $region22: #{my_cnn_and_gnn2_forward.4} parent=5 // pred_check_branch
      %127 = sbr.rel (%p125) target = $region24
    $region23: #{my_cnn_and_gnn2_forward.4} parent=5 // pred_region
      // Predicated region
      $region25: #{my_cnn_and_gnn2_forward.4} parent=23 // pred_check
        %p128 = pneg %p29
      $region26: #{my_cnn_and_gnn2_forward.4} parent=23 // pred_check_branch
        %130 = sbr.rel (%p128) target = $region28
      $region27: #{my_cnn_and_gnn2_forward.4} parent=23 // pred_region
        %s131 = smul.u32 108, %s9
        %p132 = scmp.lt.s32.totalorder %s131, 215
        %s133 = scalar_select %p132, %s131, 215
        %s134 = smul.addr %s133, 3
        %s135 = smul.addr %s134, 8
        %s136 = scalar_lea.vmem %s0, %s135
        %s137 = smul.u32 108, %s9
      $region28: #{my_cnn_and_gnn2_forward.4} parent=23 // pred_fallthru
        _
    $region24: #{my_cnn_and_gnn2_forward.4} parent=5 // pred_fallthru
      _
    %p138 = scmp.le.s32.totalorder 1, %s9
    %p139 = scmp.lt.s32.totalorder %s9, 3
    %p140 = pnand %p138, %p139
    %p141 = pneg %p140
    // Predicated region
    $region29: #{my_cnn_and_gnn2_forward.4} parent=5 // pred_check
      _
    $region30: #{my_cnn_and_gnn2_forward.4} parent=5 // pred_check_branch
      %143 = sbr.rel (%p140) target = $region32
    $region31: #{my_cnn_and_gnn2_forward.4} parent=5 // pred_region
      %s144 = ssub.s32 %s9, 1
      %s145 = smul.u32 108, %s14
      %p146 = scmp.lt.s32.totalorder %s145, 215
      %s147 = scalar_select %p146, %s145, 215
      %s148 = smul.addr %s147, 3
      %s149 = smul.addr %s148, 8
      %s150 = scalar_lea.vmem %s0, %s149
      %p151 = pneg %p35
      %p152 = pneg %p32
      %p153 = pneg %p56
      %p154 = pneg %p53
      %p155 = pneg %p77
      %p156 = pneg %p74
      %p157 = pneg %p103
      %p158 = pneg %p100
      %s159 = smul.u32 27, %s14
      %p160 = scmp.lt.s32.totalorder %s159, 53
      %s161 = scalar_select %p160, %s159, 53
      %s162 = smul.addr %s161, 8
      %s163 = scalar_lea.vmem %s3, %s162
      %s164 = smul.u32 108, %s14
      %p165 = scmp.lt.s32.totalorder %s164, 215
      %s166 = scalar_select %p165, %s164, 215
      %s167 = smul.addr %s166, 3
      %s168 = smul.addr %s167, 8
      %s169 = scalar_lea.vmem %s0, %s168
      %s170 = smul.u32 108, %s14
      %s171 = smul.u32 27, %s14
      %p172 = scmp.lt.s32.totalorder %s171, 53
      %s173 = scalar_select %p172, %s171, 53
      %s174 = smul.addr %s173, 8
      %s175 = scalar_lea.vmem %s3, %s174
      %s176 = smul.u32 27, %s14
      %v177 = vld [vmem:[%s169] sm:$0xff]
      %v178 = vld [vmem:[%s169 + $0x8] sm:$0xff]
      %v179 = vld [vmem:[%s169 + $0x10] sm:$0xff]
      %v180 = vld [vmem:[%s169 + $0x18] sm:$0xff]
      %v181 = vld [vmem:[%s169 + $0x20] sm:$0xff]
      %v182 = vld [vmem:[%s169 + $0x28] sm:$0xff]
      %v183 = vld [vmem:[%s169 + $0x30] sm:$0xff]
      %v184 = vld [vmem:[%s169 + $0x38] sm:$0xff]
      %v185 = vld [vmem:[%s169 + $0x40] sm:$0xff]
      %v186 = vld [vmem:[%s169 + $0x48] sm:$0xff]
      %v187 = vld [vmem:[%s169 + $0x50] sm:$0xff]
      %v188 = vld [vmem:[%s169 + $0x58] sm:$0xff]
      %v189 = vld [vmem:[%s169 + $0x60] sm:$0xff]
      %v190 = vld [vmem:[%s169 + $0x68] sm:$0xff]
      %v191 = vld [vmem:[%s169 + $0x70] sm:$0xff]
      %v192 = vld [vmem:[%s169 + $0x78] sm:$0xff]
      %v193 = vld [vmem:[%s169 + $0x80] sm:$0xff]
      %v194 = vld [vmem:[%s169 + $0x88] sm:$0xff]
      %v195 = vld [vmem:[%s169 + $0x90] sm:$0xff]
      %v196 = vld [vmem:[%s169 + $0x98] sm:$0xff]
      %v197 = vld [vmem:[%s169 + $0xa0] sm:$0xff]
      %v198 = vld [vmem:[%s169 + $0xa8] sm:$0xff]
      %v199 = vld [vmem:[%s169 + $0xb0] sm:$0xff]
      %v200 = vld [vmem:[%s169 + $0xb8] sm:$0xff]
      %v201 = vld [vmem:[%s169 + $0xc0] sm:$0xff]
      %v202 = vld [vmem:[%s169 + $0xc8] sm:$0xff]
      %v203 = vld [vmem:[%s169 + $0xd0] sm:$0xff]
      %v204 = vld [vmem:[%s169 + $0xd8] sm:$0xff]
      %v205 = vld [vmem:[%s169 + $0xe0] sm:$0xff]
      %v206 = vld [vmem:[%s169 + $0xe8] sm:$0xff]
      %v207 = vld [vmem:[%s169 + $0xf0] sm:$0xff]
      %v208 = vld [vmem:[%s169 + $0xf8] sm:$0xff]
      %v209 = vld [vmem:[%s169 + $0x100] sm:$0xff]
      %v210 = vld [vmem:[%s169 + $0x108] sm:$0xff]
      %v211 = vld [vmem:[%s169 + $0x110] sm:$0xff]
      %v212 = vld [vmem:[%s169 + $0x118] sm:$0xff]
      %v213 = vld [vmem:[%s169 + $0x120] sm:$0xff]
      %v214 = vld [vmem:[%s169 + $0x128] sm:$0xff]
      %v215 = vld [vmem:[%s169 + $0x130] sm:$0xff]
      %v216 = vld [vmem:[%s169 + $0x138] sm:$0xff]
      %v217 = vld [vmem:[%s169 + $0x140] sm:$0xff]
      %v218 = vld [vmem:[%s169 + $0x148] sm:$0xff]
      %v219 = vld [vmem:[%s169 + $0x150] sm:$0xff]
      %v220 = vld [vmem:[%s169 + $0x158] sm:$0xff]
      %v221 = vld [vmem:[%s169 + $0x160] sm:$0xff]
      %v222 = vld [vmem:[%s169 + $0x168] sm:$0xff]
      %v223 = vld [vmem:[%s169 + $0x170] sm:$0xff]
      %v224 = vld [vmem:[%s169 + $0x178] sm:$0xff]
      %v225 = vld [vmem:[%s169 + $0x180] sm:$0xff]
      %v226 = vld [vmem:[%s169 + $0x188] sm:$0xff]
      %v227 = vld [vmem:[%s169 + $0x190] sm:$0xff]
      %v228 = vld [vmem:[%s169 + $0x198] sm:$0xff]
      %v229 = vld [vmem:[%s169 + $0x1a0] sm:$0xff]
      %v230 = vld [vmem:[%s169 + $0x1a8] sm:$0xff]
      %v231 = vld [vmem:[%s169 + $0x1b0] sm:$0xff]
      %v232 = vld [vmem:[%s169 + $0x1b8] sm:$0xff]
      %v233 = vld [vmem:[%s169 + $0x1c0] sm:$0xff]
      %v234 = vld [vmem:[%s169 + $0x1c8] sm:$0xff]
      %v235 = vld [vmem:[%s169 + $0x1d0] sm:$0xff]
      %v236 = vld [vmem:[%s169 + $0x1d8] sm:$0xff]
      %v237 = vld [vmem:[%s169 + $0x1e0] sm:$0xff]
      %v238 = vld [vmem:[%s169 + $0x1e8] sm:$0xff]
      %v239 = vld [vmem:[%s169 + $0x1f0] sm:$0xff]
      %v240 = vld [vmem:[%s169 + $0x1f8] sm:$0xff]
      %v241 = vld [vmem:[%s169 + $0x200] sm:$0xff]
      %v242 = vld [vmem:[%s169 + $0x208] sm:$0xff]
      %v243 = vld [vmem:[%s169 + $0x210] sm:$0xff]
      %v244 = vld [vmem:[%s169 + $0x218] sm:$0xff]
      %v245 = vld [vmem:[%s169 + $0x220] sm:$0xff]
      %v246 = vld [vmem:[%s169 + $0x228] sm:$0xff]
      %v247 = vld [vmem:[%s169 + $0x230] sm:$0xff]
      %v248 = vld [vmem:[%s169 + $0x238] sm:$0xff]
      %v249 = vld [vmem:[%s169 + $0x240] sm:$0xff]
      %v250 = vld [vmem:[%s169 + $0x248] sm:$0xff]
      %v251 = vld [vmem:[%s169 + $0x250] sm:$0xff]
      %v252 = vld [vmem:[%s169 + $0x258] sm:$0xff]
      %v253 = vld [vmem:[%s169 + $0x260] sm:$0xff]
      %v254 = vld [vmem:[%s169 + $0x268] sm:$0xff]
      %v255 = vld [vmem:[%s169 + $0x270] sm:$0xff]
      %v256 = vld [vmem:[%s169 + $0x278] sm:$0xff]
      %v257 = vld [vmem:[%s169 + $0x280] sm:$0xff]
      %v258 = vld [vmem:[%s169 + $0x288] sm:$0xff]
      %v259 = vld [vmem:[%s169 + $0x290] sm:$0xff]
      %v260 = vld [vmem:[%s169 + $0x298] sm:$0xff]
      %v261 = vld [vmem:[%s169 + $0x2a0] sm:$0xff]
      %v262 = vld [vmem:[%s169 + $0x2a8] sm:$0xff]
      %v263 = vld [vmem:[%s169 + $0x2b0] sm:$0xff]
      %v264 = vld [vmem:[%s169 + $0x2b8] sm:$0xff]
      %v265 = vld [vmem:[%s169 + $0x2c0] sm:$0xff]
      %v266 = vld [vmem:[%s169 + $0x2c8] sm:$0xff]
      %v267 = vld [vmem:[%s169 + $0x2d0] sm:$0xff]
      %v268 = vld [vmem:[%s169 + $0x2d8] sm:$0xff]
      %v269 = vld [vmem:[%s169 + $0x2e0] sm:$0xff]
      %v270 = vld [vmem:[%s169 + $0x2e8] sm:$0xff]
      %v271 = vld [vmem:[%s169 + $0x2f0] sm:$0xff]
      %v272 = vld [vmem:[%s169 + $0x2f8] sm:$0xff]
      %v273 = vld [vmem:[%s169 + $0x300] sm:$0xff]
      %v274 = vld [vmem:[%s169 + $0x308] sm:$0xff]
      %v275 = vld [vmem:[%s169 + $0x310] sm:$0xff]
      %v276 = vld [vmem:[%s169 + $0x318] sm:$0xff]
      %v277 = vld [vmem:[%s169 + $0x320] sm:$0xff]
      %v278 = vld [vmem:[%s169 + $0x328] sm:$0xff]
      %v279 = vld [vmem:[%s169 + $0x330] sm:$0xff]
      %v280 = vld [vmem:[%s169 + $0x338] sm:$0xff]
      %v281 = vld [vmem:[%s169 + $0x340] sm:$0xff]
      %v282 = vld [vmem:[%s169 + $0x348] sm:$0xff]
      %v283 = vld [vmem:[%s169 + $0x350] sm:$0xff]
      %v284 = vld [vmem:[%s169 + $0x358] sm:$0xff]
      %v285 = vld [vmem:[%s169 + $0x360] sm:$0xff]
      %v286 = vld [vmem:[%s169 + $0x368] sm:$0xff]
      %v287 = vld [vmem:[%s169 + $0x370] sm:$0xff]
      %v288 = vld [vmem:[%s169 + $0x378] sm:$0xff]
      %v289 = vld [vmem:[%s169 + $0x380] sm:$0xff]
      %v290 = vld [vmem:[%s169 + $0x388] sm:$0xff]
      %v291 = vld [vmem:[%s169 + $0x390] sm:$0xff]
      %v292 = vld [vmem:[%s169 + $0x398] sm:$0xff]
      %v293 = vld [vmem:[%s169 + $0x3a0] sm:$0xff]
      %v294 = vld [vmem:[%s169 + $0x3a8] sm:$0xff]
      %v295 = vld [vmem:[%s169 + $0x3b0] sm:$0xff]
      %v296 = vld [vmem:[%s169 + $0x3b8] sm:$0xff]
      %v297 = vld [vmem:[%s169 + $0x3c0] sm:$0xff]
      %v298 = vld [vmem:[%s169 + $0x3c8] sm:$0xff]
      %v299 = vld [vmem:[%s169 + $0x3d0] sm:$0xff]
      %v300 = vld [vmem:[%s169 + $0x3d8] sm:$0xff]
      %v301 = vld [vmem:[%s169 + $0x3e0] sm:$0xff]
      %v302 = vld [vmem:[%s169 + $0x3e8] sm:$0xff]
      %v303 = vld [vmem:[%s169 + $0x3f0] sm:$0xff]
      %v304 = vld [vmem:[%s169 + $0x3f8] sm:$0xff]
      %v305 = vld [vmem:[%s169 + $0x400] sm:$0xff]
      %v306 = vld [vmem:[%s169 + $0x408] sm:$0xff]
      %v307 = vld [vmem:[%s169 + $0x410] sm:$0xff]
      %v308 = vld [vmem:[%s169 + $0x418] sm:$0xff]
      %v309 = vld [vmem:[%s169 + $0x420] sm:$0xff]
      %v310 = vld [vmem:[%s169 + $0x428] sm:$0xff]
      %v311 = vld [vmem:[%s169 + $0x430] sm:$0xff]
      %v312 = vld [vmem:[%s169 + $0x438] sm:$0xff]
      %v313 = vld [vmem:[%s169 + $0x440] sm:$0xff]
      %v314 = vld [vmem:[%s169 + $0x448] sm:$0xff]
      %v315 = vld [vmem:[%s169 + $0x450] sm:$0xff]
      %v316 = vld [vmem:[%s169 + $0x458] sm:$0xff]
      %v317 = vld [vmem:[%s169 + $0x460] sm:$0xff]
      %v318 = vld [vmem:[%s169 + $0x468] sm:$0xff]
      %v319 = vld [vmem:[%s169 + $0x470] sm:$0xff]
      %v320 = vld [vmem:[%s169 + $0x478] sm:$0xff]
      %v321 = vld [vmem:[%s169 + $0x480] sm:$0xff]
      %v322 = vld [vmem:[%s169 + $0x488] sm:$0xff]
      %v323 = vld [vmem:[%s169 + $0x490] sm:$0xff]
      %v324 = vld [vmem:[%s169 + $0x498] sm:$0xff]
      %v325 = vld [vmem:[%s169 + $0x4a0] sm:$0xff]
      %v326 = vld [vmem:[%s169 + $0x4a8] sm:$0xff]
      %v327 = vld [vmem:[%s169 + $0x4b0] sm:$0xff]
      %v328 = vld [vmem:[%s169 + $0x4b8] sm:$0xff]
      %v329 = vld [vmem:[%s169 + $0x4c0] sm:$0xff]
      %v330 = vld [vmem:[%s169 + $0x4c8] sm:$0xff]
      %v331 = vld [vmem:[%s169 + $0x4d0] sm:$0xff]
      %v332 = vld [vmem:[%s169 + $0x4d8] sm:$0xff]
      %v333 = vld [vmem:[%s169 + $0x4e0] sm:$0xff]
      %v334 = vld [vmem:[%s169 + $0x4e8] sm:$0xff]
      %v335 = vld [vmem:[%s169 + $0x4f0] sm:$0xff]
      %v336 = vld [vmem:[%s169 + $0x4f8] sm:$0xff]
      %v337 = vld [vmem:[%s169 + $0x500] sm:$0xff]
      %v338 = vld [vmem:[%s169 + $0x508] sm:$0xff]
      %v339 = vld [vmem:[%s169 + $0x510] sm:$0xff]
      %v340 = vld [vmem:[%s169 + $0x518] sm:$0xff]
      %v341 = vld [vmem:[%s169 + $0x520] sm:$0xff]
      %v342 = vld [vmem:[%s169 + $0x528] sm:$0xff]
      %v343 = vld [vmem:[%s169 + $0x530] sm:$0xff]
      %v344 = vld [vmem:[%s169 + $0x538] sm:$0xff]
      %v345 = vld [vmem:[%s169 + $0x540] sm:$0xff]
      %v346 = vld [vmem:[%s169 + $0x548] sm:$0xff]
      %v347 = vld [vmem:[%s169 + $0x550] sm:$0xff]
      %v348 = vld [vmem:[%s169 + $0x558] sm:$0xff]
      %v349 = vld [vmem:[%s169 + $0x560] sm:$0xff]
      %v350 = vld [vmem:[%s169 + $0x568] sm:$0xff]
      %v351 = vld [vmem:[%s169 + $0x570] sm:$0xff]
      %v352 = vld [vmem:[%s169 + $0x578] sm:$0xff]
      %v353 = vld [vmem:[%s169 + $0x580] sm:$0xff]
      %v354 = vld [vmem:[%s169 + $0x588] sm:$0xff]
      %v355 = vld [vmem:[%s169 + $0x590] sm:$0xff]
      %v356 = vld [vmem:[%s169 + $0x598] sm:$0xff]
      %v357 = vld [vmem:[%s169 + $0x5a0] sm:$0xff]
      %v358 = vld [vmem:[%s169 + $0x5a8] sm:$0xff]
      %v359 = vld [vmem:[%s169 + $0x5b0] sm:$0xff]
      %v360 = vld [vmem:[%s169 + $0x5b8] sm:$0xff]
      %v361 = vld [vmem:[%s169 + $0x5c0] sm:$0xff]
      %v362 = vld [vmem:[%s169 + $0x5c8] sm:$0xff]
      %v363 = vld [vmem:[%s169 + $0x5d0] sm:$0xff]
      %v364 = vld [vmem:[%s169 + $0x5d8] sm:$0xff]
      %v365 = vld [vmem:[%s169 + $0x5e0] sm:$0xff]
      %v366 = vld [vmem:[%s169 + $0x5e8] sm:$0xff]
      %v367 = vld [vmem:[%s169 + $0x5f0] sm:$0xff]
      %v368 = vld [vmem:[%s169 + $0x5f8] sm:$0xff]
      %v369 = vld [vmem:[%s169 + $0x600] sm:$0xff]
      %v370 = vld [vmem:[%s169 + $0x608] sm:$0xff]
      %v371 = vld [vmem:[%s169 + $0x610] sm:$0xff]
      %v372 = vld [vmem:[%s169 + $0x618] sm:$0xff]
      %v373 = vld [vmem:[%s169 + $0x620] sm:$0xff]
      %v374 = vld [vmem:[%s169 + $0x628] sm:$0xff]
      %v375 = vld [vmem:[%s169 + $0x630] sm:$0xff]
      %v376 = vld [vmem:[%s169 + $0x638] sm:$0xff]
      %v377 = vld [vmem:[%s169 + $0x640] sm:$0xff]
      %v378 = vld [vmem:[%s169 + $0x648] sm:$0xff]
      %v379 = vld [vmem:[%s169 + $0x650] sm:$0xff]
      %v380 = vld [vmem:[%s169 + $0x658] sm:$0xff]
      %v381 = vld [vmem:[%s169 + $0x660] sm:$0xff]
      %v382 = vld [vmem:[%s169 + $0x668] sm:$0xff]
      %v383 = vld [vmem:[%s169 + $0x670] sm:$0xff]
      %v384 = vld [vmem:[%s169 + $0x678] sm:$0xff]
      %v385 = vld [vmem:[%s169 + $0x680] sm:$0xff]
      %v386 = vld [vmem:[%s169 + $0x688] sm:$0xff]
      %v387 = vld [vmem:[%s169 + $0x690] sm:$0xff]
      %v388 = vld [vmem:[%s169 + $0x698] sm:$0xff]
      %v389 = vld [vmem:[%s169 + $0x6a0] sm:$0xff]
      %v390 = vld [vmem:[%s169 + $0x6a8] sm:$0xff]
      %v391 = vld [vmem:[%s169 + $0x6b0] sm:$0xff]
      %v392 = vld [vmem:[%s169 + $0x6b8] sm:$0xff]
      %v393 = vld [vmem:[%s169 + $0x6c0] sm:$0xff]
      %v394 = vld [vmem:[%s169 + $0x6c8] sm:$0xff]
      %v395 = vld [vmem:[%s169 + $0x6d0] sm:$0xff]
      %v396 = vld [vmem:[%s169 + $0x6d8] sm:$0xff]
      %v397 = vld [vmem:[%s169 + $0x6e0] sm:$0xff]
      %v398 = vld [vmem:[%s169 + $0x6e8] sm:$0xff]
      %v399 = vld [vmem:[%s169 + $0x6f0] sm:$0xff]
      %v400 = vld [vmem:[%s169 + $0x6f8] sm:$0xff]
      %v401 = vld [vmem:[%s169 + $0x700] sm:$0xff]
      %v402 = vld [vmem:[%s169 + $0x708] sm:$0xff]
      %v403 = vld [vmem:[%s169 + $0x710] sm:$0xff]
      %v404 = vld [vmem:[%s169 + $0x718] sm:$0xff]
      %v405 = vld [vmem:[%s169 + $0x720] sm:$0xff]
      %v406 = vld [vmem:[%s169 + $0x728] sm:$0xff]
      %v407 = vld [vmem:[%s169 + $0x730] sm:$0xff]
      %v408 = vld [vmem:[%s169 + $0x738] sm:$0xff]
      %v409 = vld [vmem:[%s169 + $0x740] sm:$0xff]
      %v410 = vld [vmem:[%s169 + $0x748] sm:$0xff]
      %v411 = vld [vmem:[%s169 + $0x750] sm:$0xff]
      %v412 = vld [vmem:[%s169 + $0x758] sm:$0xff]
      %v413 = vld [vmem:[%s169 + $0x760] sm:$0xff]
      %v414 = vld [vmem:[%s169 + $0x768] sm:$0xff]
      %v415 = vld [vmem:[%s169 + $0x770] sm:$0xff]
      %v416 = vld [vmem:[%s169 + $0x778] sm:$0xff]
      %v417 = vld [vmem:[%s169 + $0x780] sm:$0xff]
      %v418 = vld [vmem:[%s169 + $0x788] sm:$0xff]
      %v419 = vld [vmem:[%s169 + $0x790] sm:$0xff]
      %v420 = vld [vmem:[%s169 + $0x798] sm:$0xff]
      %v421 = vld [vmem:[%s169 + $0x7a0] sm:$0xff]
      %v422 = vld [vmem:[%s169 + $0x7a8] sm:$0xff]
      %v423 = vld [vmem:[%s169 + $0x7b0] sm:$0xff]
      %v424 = vld [vmem:[%s169 + $0x7b8] sm:$0xff]
      %v425 = vld [vmem:[%s169 + $0x7c0] sm:$0xff]
      %v426 = vld [vmem:[%s169 + $0x7c8] sm:$0xff]
      %v427 = vld [vmem:[%s169 + $0x7d0] sm:$0xff]
      %v428 = vld [vmem:[%s169 + $0x7d8] sm:$0xff]
      %v429 = vld [vmem:[%s169 + $0x7e0] sm:$0xff]
      %v430 = vld [vmem:[%s169 + $0x7e8] sm:$0xff]
      %v431 = vld [vmem:[%s169 + $0x7f0] sm:$0xff]
      %v432 = vld [vmem:[%s169 + $0x7f8] sm:$0xff]
      %v433 = vld [vmem:[%s169 + $0x800] sm:$0xff]
      %v434 = vld [vmem:[%s169 + $0x808] sm:$0xff]
      %v435 = vld [vmem:[%s169 + $0x810] sm:$0xff]
      %v436 = vld [vmem:[%s169 + $0x818] sm:$0xff]
      %v437 = vld [vmem:[%s169 + $0x820] sm:$0xff]
      %v438 = vld [vmem:[%s169 + $0x828] sm:$0xff]
      %v439 = vld [vmem:[%s169 + $0x830] sm:$0xff]
      %v440 = vld [vmem:[%s169 + $0x838] sm:$0xff]
      %v441 = vld [vmem:[%s169 + $0x840] sm:$0xff]
      %v442 = vld [vmem:[%s169 + $0x848] sm:$0xff]
      %v443 = vld [vmem:[%s169 + $0x850] sm:$0xff]
      %v444 = vld [vmem:[%s169 + $0x858] sm:$0xff]
      %v445 = vld [vmem:[%s169 + $0x860] sm:$0xff]
      %v446 = vld [vmem:[%s169 + $0x868] sm:$0xff]
      %v447 = vld [vmem:[%s169 + $0x870] sm:$0xff]
      %v448 = vld [vmem:[%s169 + $0x878] sm:$0xff]
      %v449 = vld [vmem:[%s169 + $0x880] sm:$0xff]
      %v450 = vld [vmem:[%s169 + $0x888] sm:$0xff]
      %v451 = vld [vmem:[%s169 + $0x890] sm:$0xff]
      %v452 = vld [vmem:[%s169 + $0x898] sm:$0xff]
      %v453 = vld [vmem:[%s169 + $0x8a0] sm:$0xff]
      %v454 = vld [vmem:[%s169 + $0x8a8] sm:$0xff]
      %v455 = vld [vmem:[%s169 + $0x8b0] sm:$0xff]
      %v456 = vld [vmem:[%s169 + $0x8b8] sm:$0xff]
      %v457 = vld [vmem:[%s169 + $0x8c0] sm:$0xff]
      %v458 = vld [vmem:[%s169 + $0x8c8] sm:$0xff]
      %v459 = vld [vmem:[%s169 + $0x8d0] sm:$0xff]
      %v460 = vld [vmem:[%s169 + $0x8d8] sm:$0xff]
      %v461 = vld [vmem:[%s169 + $0x8e0] sm:$0xff]
      %v462 = vld [vmem:[%s169 + $0x8e8] sm:$0xff]
      %v463 = vld [vmem:[%s169 + $0x8f0] sm:$0xff]
      %v464 = vld [vmem:[%s169 + $0x8f8] sm:$0xff]
      %v465 = vld [vmem:[%s169 + $0x900] sm:$0xff]
      %v466 = vld [vmem:[%s169 + $0x908] sm:$0xff]
      %v467 = vld [vmem:[%s169 + $0x910] sm:$0xff]
      %v468 = vld [vmem:[%s169 + $0x918] sm:$0xff]
      %v469 = vld [vmem:[%s169 + $0x920] sm:$0xff]
      %v470 = vld [vmem:[%s169 + $0x928] sm:$0xff]
      %v471 = vld [vmem:[%s169 + $0x930] sm:$0xff]
      %v472 = vld [vmem:[%s169 + $0x938] sm:$0xff]
      %v473 = vld [vmem:[%s169 + $0x940] sm:$0xff]
      %v474 = vld [vmem:[%s169 + $0x948] sm:$0xff]
      %v475 = vld [vmem:[%s169 + $0x950] sm:$0xff]
      %v476 = vld [vmem:[%s169 + $0x958] sm:$0xff]
      %v477 = vld [vmem:[%s169 + $0x960] sm:$0xff]
      %v478 = vld [vmem:[%s169 + $0x968] sm:$0xff]
      %v479 = vld [vmem:[%s169 + $0x970] sm:$0xff]
      %v480 = vld [vmem:[%s169 + $0x978] sm:$0xff]
      %v481 = vld [vmem:[%s169 + $0x980] sm:$0xff]
      %v482 = vld [vmem:[%s169 + $0x988] sm:$0xff]
      %v483 = vld [vmem:[%s169 + $0x990] sm:$0xff]
      %v484 = vld [vmem:[%s169 + $0x998] sm:$0xff]
      %v485 = vld [vmem:[%s169 + $0x9a0] sm:$0xff]
      %v486 = vld [vmem:[%s169 + $0x9a8] sm:$0xff]
      %v487 = vld [vmem:[%s169 + $0x9b0] sm:$0xff]
      %v488 = vld [vmem:[%s169 + $0x9b8] sm:$0xff]
      %v489 = vld [vmem:[%s169 + $0x9c0] sm:$0xff]
      %v490 = vld [vmem:[%s169 + $0x9c8] sm:$0xff]
      %v491 = vld [vmem:[%s169 + $0x9d0] sm:$0xff]
      %v492 = vld [vmem:[%s169 + $0x9d8] sm:$0xff]
      %v493 = vld [vmem:[%s169 + $0x9e0] sm:$0xff]
      %v494 = vld [vmem:[%s169 + $0x9e8] sm:$0xff]
      %v495 = vld [vmem:[%s169 + $0x9f0] sm:$0xff]
      %v496 = vld [vmem:[%s169 + $0x9f8] sm:$0xff]
      %v497 = vld [vmem:[%s169 + $0xa00] sm:$0xff]
      %v498 = vld [vmem:[%s169 + $0xa08] sm:$0xff]
      %v499 = vld [vmem:[%s169 + $0xa10] sm:$0xff]
      %v500 = vld [vmem:[%s169 + $0xa18] sm:$0xff]
      %v501 = vld [vmem:[%s1] sm:$0xff]
      %v502 = vld [vmem:[%s1 + $0x8] sm:$0xff]
      %v503 = vld [vmem:[%s1 + $0x10] sm:$0xff]
      %v504 = vld [vmem:[%s1 + $0x18] sm:$0xff]
      %v505 = vld [vmem:[%s1 + $0x20] sm:$0xff]
      %v506 = vld [vmem:[%s1 + $0x28] sm:$0xff]
      %v507 = vld [vmem:[%s1 + $0x30] sm:$0xff]
      %v508 = vld [vmem:[%s1 + $0x38] sm:$0xff]
      %v509 = vld [vmem:[%s1 + $0x40] sm:$0xff]
      %v510 = vld [vmem:[%s1 + $0x48] sm:$0xff]
      %v511 = vld [vmem:[%s1 + $0x50] sm:$0xff]
      %v512 = vld [vmem:[%s1 + $0x58] sm:$0xff]
      %v513 = vld [vmem:[%s1 + $0x60] sm:$0xff]
      %v514 = vld [vmem:[%s1 + $0x68] sm:$0xff]
      %v515 = vld [vmem:[%s1 + $0x70] sm:$0xff]
      %v516 = vld [vmem:[%s1 + $0x78] sm:$0xff]
      %v517 = vld [vmem:[%s1 + $0x80] sm:$0xff]
      %v518 = vld [vmem:[%s1 + $0x88] sm:$0xff]
      %v519 = vld [vmem:[%s1 + $0x90] sm:$0xff]
      %v520 = vld [vmem:[%s1 + $0x98] sm:$0xff]
      %v521 = vld [vmem:[%s1 + $0xa0] sm:$0xff]
      %v522 = vld [vmem:[%s1 + $0xa8] sm:$0xff]
      %v523 = vld [vmem:[%s1 + $0xb0] sm:$0xff]
      %v524 = vld [vmem:[%s1 + $0xb8] sm:$0xff]
      %v525 = vld [vmem:[%s1 + $0xc0] sm:$0xff]
      %v526 = vld [vmem:[%s1 + $0xc8] sm:$0xff]
      %v527 = vld [vmem:[%s1 + $0xd0] sm:$0xff]
      %v528 = vld [vmem:[%s1 + $0xd8] sm:$0xff]
      %v529 = vld [vmem:[%s1 + $0xe0] sm:$0xff]
      %v530 = vld [vmem:[%s1 + $0xe8] sm:$0xff]
      %v531 = vld [vmem:[%s1 + $0xf0] sm:$0xff]
      %v532 = vld [vmem:[%s1 + $0xf8] sm:$0xff]
      %v533 = vld [vmem:[%s1 + $0x100] sm:$0xff]
      %v534 = vld [vmem:[%s1 + $0x108] sm:$0xff]
      %v535 = vld [vmem:[%s1 + $0x110] sm:$0xff]
      %v536 = vld [vmem:[%s1 + $0x118] sm:$0xff]
      %vm537 = vcmask 261120
      %v539 = vsel %vm537, %v179, 0
      %v542 = vsel %vm537, %v182, 0
      %v545 = vsel %vm537, %v185, 0
      %v548 = vsel %vm537, %v188, 0
      %v551 = vsel %vm537, %v191, 0
      %v554 = vsel %vm537, %v194, 0
      %v557 = vsel %vm537, %v197, 0
      %v560 = vsel %vm537, %v200, 0
      %v563 = vsel %vm537, %v203, 0
      %v566 = vsel %vm537, %v206, 0
      %v569 = vsel %vm537, %v209, 0
      %v572 = vsel %vm537, %v212, 0
      %v575 = vsel %vm537, %v215, 0
      %v578 = vsel %vm537, %v218, 0
      %v581 = vsel %vm537, %v221, 0
      %v584 = vsel %vm537, %v224, 0
      %v587 = vsel %vm537, %v227, 0
      %v590 = vsel %vm537, %v230, 0
      %v593 = vsel %vm537, %v233, 0
      %v596 = vsel %vm537, %v236, 0
      %v599 = vsel %vm537, %v239, 0
      %v602 = vsel %vm537, %v242, 0
      %v605 = vsel %vm537, %v245, 0
      %v608 = vsel %vm537, %v248, 0
      %v611 = vsel %vm537, %v251, 0
      %v614 = vsel %vm537, %v254, 0
      %v617 = vsel %vm537, %v257, 0
      %v620 = vsel %vm537, %v260, 0
      %v623 = vsel %vm537, %v263, 0
      %v626 = vsel %vm537, %v266, 0
      %v629 = vsel %vm537, %v269, 0
      %v632 = vsel %vm537, %v272, 0
      %v635 = vsel %vm537, %v275, 0
      %v638 = vsel %vm537, %v278, 0
      %v641 = vsel %vm537, %v281, 0
      %v644 = vsel %vm537, %v284, 0
      %v647 = vsel %vm537, %v287, 0
      %v650 = vsel %vm537, %v290, 0
      %v653 = vsel %vm537, %v293, 0
      %v656 = vsel %vm537, %v296, 0
      %v659 = vsel %vm537, %v299, 0
      %v662 = vsel %vm537, %v302, 0
      %v665 = vsel %vm537, %v305, 0
      %v668 = vsel %vm537, %v308, 0
      %v671 = vsel %vm537, %v311, 0
      %v674 = vsel %vm537, %v314, 0
      %v677 = vsel %vm537, %v317, 0
      %v680 = vsel %vm537, %v320, 0
      %v683 = vsel %vm537, %v323, 0
      %v686 = vsel %vm537, %v326, 0
      %v689 = vsel %vm537, %v329, 0
      %v692 = vsel %vm537, %v332, 0
      %v695 = vsel %vm537, %v335, 0
      %v698 = vsel %vm537, %v338, 0
      %v701 = vsel %vm537, %v341, 0
      %v704 = vsel %vm537, %v344, 0
      %v707 = vsel %vm537, %v347, 0
      %v710 = vsel %vm537, %v350, 0
      %v713 = vsel %vm537, %v353, 0
      %v716 = vsel %vm537, %v356, 0
      %v719 = vsel %vm537, %v359, 0
      %v722 = vsel %vm537, %v362, 0
      %v725 = vsel %vm537, %v365, 0
      %v728 = vsel %vm537, %v368, 0
      %v731 = vsel %vm537, %v371, 0
      %v734 = vsel %vm537, %v374, 0
      %v737 = vsel %vm537, %v377, 0
      %v740 = vsel %vm537, %v380, 0
      %v743 = vsel %vm537, %v383, 0
      %v746 = vsel %vm537, %v386, 0
      %v749 = vsel %vm537, %v389, 0
      %v752 = vsel %vm537, %v392, 0
      %v755 = vsel %vm537, %v395, 0
      %v758 = vsel %vm537, %v398, 0
      %v761 = vsel %vm537, %v401, 0
      %v764 = vsel %vm537, %v404, 0
      %v767 = vsel %vm537, %v407, 0
      %v770 = vsel %vm537, %v410, 0
      %v773 = vsel %vm537, %v413, 0
      %v776 = vsel %vm537, %v416, 0
      %v779 = vsel %vm537, %v419, 0
      %v782 = vsel %vm537, %v422, 0
      %v785 = vsel %vm537, %v425, 0
      %v788 = vsel %vm537, %v428, 0
      %v791 = vsel %vm537, %v431, 0
      %v794 = vsel %vm537, %v434, 0
      %v797 = vsel %vm537, %v437, 0
      %v800 = vsel %vm537, %v440, 0
      %v803 = vsel %vm537, %v443, 0
      %v806 = vsel %vm537, %v446, 0
      %v809 = vsel %vm537, %v449, 0
      %v812 = vsel %vm537, %v452, 0
      %v815 = vsel %vm537, %v455, 0
      %v818 = vsel %vm537, %v458, 0
      %v821 = vsel %vm537, %v461, 0
      %v824 = vsel %vm537, %v464, 0
      %v827 = vsel %vm537, %v467, 0
      %v830 = vsel %vm537, %v470, 0
      %v833 = vsel %vm537, %v473, 0
      %v836 = vsel %vm537, %v476, 0
      %v839 = vsel %vm537, %v479, 0
      %v842 = vsel %vm537, %v482, 0
      %v845 = vsel %vm537, %v485, 0
      %v848 = vsel %vm537, %v488, 0
      %v851 = vsel %vm537, %v491, 0
      %v854 = vsel %vm537, %v494, 0
      %v857 = vsel %vm537, %v497, 0
      %v860 = vsel %vm537, %v500, 0
      %862 = vmatprep.subr.mxu0 0.0
      %863 = vmatpush1.msra.mxu0 %v516
      %864 = vmatprep.subr.mxu0 0.0
      %865 = vmatpush1.msra.mxu0 %v515
      %866 = vmatprep.subr.mxu0 0.0
      %867 = vmatpush1.msra.mxu0 %v514
      %868 = vmatprep.subr.mxu0 0.0
      %869 = vmatpush1.msra.mxu0 %v513
      %870 = vmatprep.subr.mxu0 0.0
      %871 = vmatpush1.msra.mxu0 %v512
      %872 = vmatprep.subr.mxu0 0.0
      %873 = vmatpush1.msra.mxu0 %v511
      %874 = vmatprep.subr.mxu0 0.0
      %875 = vmatpush1.msra.mxu0 %v510
      %876 = vmatprep.subr.mxu0 0.0
      %877 = vmatpush1.msra.mxu0 %v509
      %878 = vmatprep.subr.mxu0 0.0
      %879 = vmatpush1.msra.mxu0 %v508
      %880 = vmatprep.subr.mxu0 0.0
      %881 = vmatpush1.msra.mxu0 %v507
      %882 = vmatprep.subr.mxu0 0.0
      %883 = vmatpush1.msra.mxu0 %v506
      %884 = vmatprep.subr.mxu0 0.0
      %885 = vmatpush1.msra.mxu0 %v505
      %886 = vmatprep.subr.mxu0 0.0
      %887 = vmatpush1.msra.mxu0 %v504
      %888 = vmatprep.subr.mxu0 0.0
      %889 = vmatpush1.msra.mxu0 %v503
      %890 = vmatprep.subr.mxu0 0.0
      %891 = vmatpush1.msra.mxu0 %v502
      %892 = vmatprep.subr.mxu0 0.0
      %893 = vmatpush1.msra.mxu0 %v501
      %894 = vmatprep.subr.mxu0 0.0
      %895 = vmatpush2.msra.mxu0 %v532
      %896 = vmatprep.subr.mxu0 0.0
      %897 = vmatpush2.msra.mxu0 %v531
      %898 = vmatprep.subr.mxu0 0.0
      %899 = vmatpush2.msra.mxu0 %v530
      %900 = vmatprep.subr.mxu0 0.0
      %901 = vmatpush2.msra.mxu0 %v529
      %902 = vmatprep.subr.mxu0 0.0
      %903 = vmatpush2.msra.mxu0 %v528
      %904 = vmatprep.subr.mxu0 0.0
      %905 = vmatpush2.msra.mxu0 %v527
      %906 = vmatprep.subr.mxu0 0.0
      %907 = vmatpush2.msra.mxu0 %v526
      %908 = vmatprep.subr.mxu0 0.0
      %909 = vmatpush2.msra.mxu0 %v525
      %910 = vmatprep.subr.mxu0 0.0
      %911 = vmatpush2.msra.mxu0 %v524
      %912 = vmatprep.subr.mxu0 0.0
      %913 = vmatpush2.msra.mxu0 %v523
      %914 = vmatprep.subr.mxu0 0.0
      %915 = vmatpush2.msra.mxu0 %v522
      %916 = vmatprep.subr.mxu0 0.0
      %917 = vmatpush2.msra.mxu0 %v521
      %918 = vmatprep.subr.mxu0 0.0
      %919 = vmatpush2.msra.mxu0 %v520
      %920 = vmatprep.subr.mxu0 0.0
      %921 = vmatpush2.msra.mxu0 %v519
      %922 = vmatprep.subr.mxu0 0.0
      %923 = vmatpush2.msra.mxu0 %v518
      %924 = vmatprep.subr.mxu0 0.0
      %925 = vmatpush2.msra.mxu0 %v517
      %926 = vmatprep.mubr.f32.mxu0 %v178
      %927 = vmatmul.mubr.f32.gmra.mxu0 %v177
      %v928 = vpop.f32.mrf.mxu0
      %v929 = vadd.f32 0.0, %v928
      %v930 = vpop.f32.mrf.mxu0
      %931 = vmatprep.mubr.f32.mxu0 %v181
      %932 = vmatmul.mubr.f32.gmra.mxu0 %v180
      %v933 = vpop.f32.mrf.mxu0
      %v934 = vadd.f32 0.0, %v933
      %v935 = vpop.f32.mrf.mxu0
      %936 = vmatprep.mubr.f32.mxu0 %v184
      %937 = vmatmul.mubr.f32.gmra.mxu0 %v183
      %v938 = vpop.f32.mrf.mxu0
      %v939 = vadd.f32 0.0, %v938
      %v940 = vpop.f32.mrf.mxu0
      %941 = vmatprep.mubr.f32.mxu0 %v187
      %942 = vmatmul.mubr.f32.gmra.mxu0 %v186
      %v943 = vpop.f32.mrf.mxu0
      %v944 = vadd.f32 0.0, %v943
      %v945 = vpop.f32.mrf.mxu0
      %946 = vmatprep.mubr.f32.mxu0 %v190
      %947 = vmatmul.mubr.f32.gmra.mxu0 %v189
      %v948 = vpop.f32.mrf.mxu0
      %v949 = vadd.f32 0.0, %v948
      %v950 = vpop.f32.mrf.mxu0
      %951 = vmatprep.mubr.f32.mxu0 %v193
      %952 = vmatmul.mubr.f32.gmra.mxu0 %v192
      %v953 = vpop.f32.mrf.mxu0
      %v954 = vadd.f32 0.0, %v953
      %v955 = vpop.f32.mrf.mxu0
      %956 = vmatprep.mubr.f32.mxu0 %v196
      %957 = vmatmul.mubr.f32.gmra.mxu0 %v195
      %v958 = vpop.f32.mrf.mxu0
      %v959 = vadd.f32 0.0, %v958
      %v960 = vpop.f32.mrf.mxu0
      %961 = vmatprep.mubr.f32.mxu0 %v199
      %962 = vmatmul.mubr.f32.gmra.mxu0 %v198
      %v963 = vpop.f32.mrf.mxu0
      %v964 = vadd.f32 0.0, %v963
      %v965 = vpop.f32.mrf.mxu0
      %966 = vmatprep.mubr.f32.mxu0 %v202
      %967 = vmatmul.mubr.f32.gmra.mxu0 %v201
      %v968 = vpop.f32.mrf.mxu0
      %v969 = vadd.f32 0.0, %v968
      %v970 = vpop.f32.mrf.mxu0
      %971 = vmatprep.mubr.f32.mxu0 %v205
      %972 = vmatmul.mubr.f32.gmra.mxu0 %v204
      %v973 = vpop.f32.mrf.mxu0
      %v974 = vadd.f32 0.0, %v973
      %v975 = vpop.f32.mrf.mxu0
      %976 = vmatprep.mubr.f32.mxu0 %v208
      %977 = vmatmul.mubr.f32.gmra.mxu0 %v207
      %v978 = vpop.f32.mrf.mxu0
      %v979 = vadd.f32 0.0, %v978
      %v980 = vpop.f32.mrf.mxu0
      %981 = vmatprep.mubr.f32.mxu0 %v211
      %982 = vmatmul.mubr.f32.gmra.mxu0 %v210
      %v983 = vpop.f32.mrf.mxu0
      %v984 = vadd.f32 0.0, %v983
      %v985 = vpop.f32.mrf.mxu0
      %986 = vmatprep.mubr.f32.mxu0 %v214
      %987 = vmatmul.mubr.f32.gmra.mxu0 %v213
      %v988 = vpop.f32.mrf.mxu0
      %v989 = vadd.f32 0.0, %v988
      %v990 = vpop.f32.mrf.mxu0
      %991 = vmatprep.mubr.f32.mxu0 %v217
      %992 = vmatmul.mubr.f32.gmra.mxu0 %v216
      %v993 = vpop.f32.mrf.mxu0
      %v994 = vadd.f32 0.0, %v993
      %v995 = vpop.f32.mrf.mxu0
      %996 = vmatprep.mubr.f32.mxu0 %v220
      %997 = vmatmul.mubr.f32.gmra.mxu0 %v219
      %v998 = vpop.f32.mrf.mxu0
      %v999 = vadd.f32 0.0, %v998
      %v1000 = vpop.f32.mrf.mxu0
      %1001 = vmatprep.mubr.f32.mxu0 %v223
      %1002 = vmatmul.mubr.f32.gmra.mxu0 %v222
      %v1003 = vpop.f32.mrf.mxu0
      %v1004 = vadd.f32 0.0, %v1003
      %v1005 = vpop.f32.mrf.mxu0
      %1006 = vmatprep.mubr.f32.mxu0 %v226
      %1007 = vmatmul.mubr.f32.gmra.mxu0 %v225
      %v1008 = vpop.f32.mrf.mxu0
      %v1009 = vadd.f32 0.0, %v1008
      %v1010 = vpop.f32.mrf.mxu0
      %1011 = vmatprep.mubr.f32.mxu0 %v229
      %1012 = vmatmul.mubr.f32.gmra.mxu0 %v228
      %v1013 = vpop.f32.mrf.mxu0
      %v1014 = vadd.f32 0.0, %v1013
      %v1015 = vpop.f32.mrf.mxu0
      %1016 = vmatprep.mubr.f32.mxu0 %v232
      %1017 = vmatmul.mubr.f32.gmra.mxu0 %v231
      %v1018 = vpop.f32.mrf.mxu0
      %v1019 = vadd.f32 0.0, %v1018
      %v1020 = vpop.f32.mrf.mxu0
      %1021 = vmatprep.mubr.f32.mxu0 %v235
      %1022 = vmatmul.mubr.f32.gmra.mxu0 %v234
      %v1023 = vpop.f32.mrf.mxu0
      %v1024 = vadd.f32 0.0, %v1023
      %v1025 = vpop.f32.mrf.mxu0
      %1026 = vmatprep.mubr.f32.mxu0 %v238
      %1027 = vmatmul.mubr.f32.gmra.mxu0 %v237
      %v1028 = vpop.f32.mrf.mxu0
      %v1029 = vadd.f32 0.0, %v1028
      %v1030 = vpop.f32.mrf.mxu0
      %1031 = vmatprep.mubr.f32.mxu0 %v241
      %1032 = vmatmul.mubr.f32.gmra.mxu0 %v240
      %v1033 = vpop.f32.mrf.mxu0
      %v1034 = vadd.f32 0.0, %v1033
      %v1035 = vpop.f32.mrf.mxu0
      %1036 = vmatprep.mubr.f32.mxu0 %v244
      %1037 = vmatmul.mubr.f32.gmra.mxu0 %v243
      %v1038 = vpop.f32.mrf.mxu0
      %v1039 = vadd.f32 0.0, %v1038
      %v1040 = vpop.f32.mrf.mxu0
      %1041 = vmatprep.mubr.f32.mxu0 %v247
      %1042 = vmatmul.mubr.f32.gmra.mxu0 %v246
      %v1043 = vpop.f32.mrf.mxu0
      %v1044 = vadd.f32 0.0, %v1043
      %v1045 = vpop.f32.mrf.mxu0
      %1046 = vmatprep.mubr.f32.mxu0 %v250
      %1047 = vmatmul.mubr.f32.gmra.mxu0 %v249
      %v1048 = vpop.f32.mrf.mxu0
      %v1049 = vadd.f32 0.0, %v1048
      %v1050 = vpop.f32.mrf.mxu0
      %1051 = vmatprep.mubr.f32.mxu0 %v253
      %1052 = vmatmul.mubr.f32.gmra.mxu0 %v252
      %v1053 = vpop.f32.mrf.mxu0
      %v1054 = vadd.f32 0.0, %v1053
      %v1055 = vpop.f32.mrf.mxu0
      %1056 = vmatprep.mubr.f32.mxu0 %v256
      %1057 = vmatmul.mubr.f32.gmra.mxu0 %v255
      %v1058 = vpop.f32.mrf.mxu0
      %v1059 = vadd.f32 0.0, %v1058
      %v1060 = vpop.f32.mrf.mxu0
      %1061 = vmatprep.mubr.f32.mxu0 %v259
      %1062 = vmatmul.mubr.f32.gmra.mxu0 %v258
      %v1063 = vpop.f32.mrf.mxu0
      %v1064 = vadd.f32 0.0, %v1063
      %v1065 = vpop.f32.mrf.mxu0
      %1066 = vmatprep.mubr.f32.mxu0 %v262
      %1067 = vmatmul.mubr.f32.gmra.mxu0 %v261
      %v1068 = vpop.f32.mrf.mxu0
      %v1069 = vadd.f32 0.0, %v1068
      %v1070 = vpop.f32.mrf.mxu0
      %1071 = vmatprep.mubr.f32.mxu0 %v265
      %1072 = vmatmul.mubr.f32.gmra.mxu0 %v264
      %v1073 = vpop.f32.mrf.mxu0
      %v1074 = vadd.f32 0.0, %v1073
      %v1075 = vpop.f32.mrf.mxu0
      %1076 = vmatprep.mubr.f32.mxu0 %v268
      %1077 = vmatmul.mubr.f32.gmra.mxu0 %v267
      %v1078 = vpop.f32.mrf.mxu0
      %v1079 = vadd.f32 0.0, %v1078
      %v1080 = vpop.f32.mrf.mxu0
      %1081 = vmatprep.mubr.f32.mxu0 %v271
      %1082 = vmatmul.mubr.f32.gmra.mxu0 %v270
      %v1083 = vpop.f32.mrf.mxu0
      %v1084 = vadd.f32 0.0, %v1083
      %v1085 = vpop.f32.mrf.mxu0
      %1086 = vmatprep.mubr.f32.mxu0 %v274
      %1087 = vmatmul.mubr.f32.gmra.mxu0 %v273
      %v1088 = vpop.f32.mrf.mxu0
      %v1089 = vadd.f32 0.0, %v1088
      %v1090 = vpop.f32.mrf.mxu0
      %1091 = vmatprep.mubr.f32.mxu0 %v277
      %1092 = vmatmul.mubr.f32.gmra.mxu0 %v276
      %v1093 = vpop.f32.mrf.mxu0
      %v1094 = vadd.f32 0.0, %v1093
      %v1095 = vpop.f32.mrf.mxu0
      %1096 = vmatprep.mubr.f32.mxu0 %v280
      %1097 = vmatmul.mubr.f32.gmra.mxu0 %v279
      %v1098 = vpop.f32.mrf.mxu0
      %v1099 = vadd.f32 0.0, %v1098
      %v1100 = vpop.f32.mrf.mxu0
      %1101 = vmatprep.mubr.f32.mxu0 %v283
      %1102 = vmatmul.mubr.f32.gmra.mxu0 %v282
      %v1103 = vpop.f32.mrf.mxu0
      %v1104 = vadd.f32 0.0, %v1103
      %v1105 = vpop.f32.mrf.mxu0
      %1106 = vmatprep.mubr.f32.mxu0 %v286
      %1107 = vmatmul.mubr.f32.gmra.mxu0 %v285
      %v1108 = vpop.f32.mrf.mxu0
      %v1109 = vadd.f32 0.0, %v1108
      %v1110 = vpop.f32.mrf.mxu0
      %1111 = vmatprep.mubr.f32.mxu0 %v289
      %1112 = vmatmul.mubr.f32.gmra.mxu0 %v288
      %v1113 = vpop.f32.mrf.mxu0
      %v1114 = vadd.f32 0.0, %v1113
      %v1115 = vpop.f32.mrf.mxu0
      %1116 = vmatprep.mubr.f32.mxu0 %v292
      %1117 = vmatmul.mubr.f32.gmra.mxu0 %v291
      %v1118 = vpop.f32.mrf.mxu0
      %v1119 = vadd.f32 0.0, %v1118
      %v1120 = vpop.f32.mrf.mxu0
      %1121 = vmatprep.mubr.f32.mxu0 %v295
      %1122 = vmatmul.mubr.f32.gmra.mxu0 %v294
      %v1123 = vpop.f32.mrf.mxu0
      %v1124 = vadd.f32 0.0, %v1123
      %v1125 = vpop.f32.mrf.mxu0
      %1126 = vmatprep.mubr.f32.mxu0 %v298
      %1127 = vmatmul.mubr.f32.gmra.mxu0 %v297
      %v1128 = vpop.f32.mrf.mxu0
      %v1129 = vadd.f32 0.0, %v1128
      %v1130 = vpop.f32.mrf.mxu0
      %1131 = vmatprep.mubr.f32.mxu0 %v301
      %1132 = vmatmul.mubr.f32.gmra.mxu0 %v300
      %v1133 = vpop.f32.mrf.mxu0
      %v1134 = vadd.f32 0.0, %v1133
      %v1135 = vpop.f32.mrf.mxu0
      %1136 = vmatprep.mubr.f32.mxu0 %v304
      %1137 = vmatmul.mubr.f32.gmra.mxu0 %v303
      %v1138 = vpop.f32.mrf.mxu0
      %v1139 = vadd.f32 0.0, %v1138
      %v1140 = vpop.f32.mrf.mxu0
      %1141 = vmatprep.mubr.f32.mxu0 %v307
      %1142 = vmatmul.mubr.f32.gmra.mxu0 %v306
      %v1143 = vpop.f32.mrf.mxu0
      %v1144 = vadd.f32 0.0, %v1143
      %v1145 = vpop.f32.mrf.mxu0
      %1146 = vmatprep.mubr.f32.mxu0 %v310
      %1147 = vmatmul.mubr.f32.gmra.mxu0 %v309
      %v1148 = vpop.f32.mrf.mxu0
      %v1149 = vadd.f32 0.0, %v1148
      %v1150 = vpop.f32.mrf.mxu0
      %1151 = vmatprep.mubr.f32.mxu0 %v313
      %1152 = vmatmul.mubr.f32.gmra.mxu0 %v312
      %v1153 = vpop.f32.mrf.mxu0
      %v1154 = vadd.f32 0.0, %v1153
      %v1155 = vpop.f32.mrf.mxu0
      %1156 = vmatprep.mubr.f32.mxu0 %v316
      %1157 = vmatmul.mubr.f32.gmra.mxu0 %v315
      %v1158 = vpop.f32.mrf.mxu0
      %v1159 = vadd.f32 0.0, %v1158
      %v1160 = vpop.f32.mrf.mxu0
      %1161 = vmatprep.mubr.f32.mxu0 %v319
      %1162 = vmatmul.mubr.f32.gmra.mxu0 %v318
      %v1163 = vpop.f32.mrf.mxu0
      %v1164 = vadd.f32 0.0, %v1163
      %v1165 = vpop.f32.mrf.mxu0
      %1166 = vmatprep.mubr.f32.mxu0 %v322
      %1167 = vmatmul.mubr.f32.gmra.mxu0 %v321
      %v1168 = vpop.f32.mrf.mxu0
      %v1169 = vadd.f32 0.0, %v1168
      %v1170 = vpop.f32.mrf.mxu0
      %1171 = vmatprep.mubr.f32.mxu0 %v325
      %1172 = vmatmul.mubr.f32.gmra.mxu0 %v324
      %v1173 = vpop.f32.mrf.mxu0
      %v1174 = vadd.f32 0.0, %v1173
      %v1175 = vpop.f32.mrf.mxu0
      %1176 = vmatprep.mubr.f32.mxu0 %v328
      %1177 = vmatmul.mubr.f32.gmra.mxu0 %v327
      %v1178 = vpop.f32.mrf.mxu0
      %v1179 = vadd.f32 0.0, %v1178
      %v1180 = vpop.f32.mrf.mxu0
      %1181 = vmatprep.mubr.f32.mxu0 %v331
      %1182 = vmatmul.mubr.f32.gmra.mxu0 %v330
      %v1183 = vpop.f32.mrf.mxu0
      %v1184 = vadd.f32 0.0, %v1183
      %v1185 = vpop.f32.mrf.mxu0
      %1186 = vmatprep.mubr.f32.mxu0 %v334
      %1187 = vmatmul.mubr.f32.gmra.mxu0 %v333
      %v1188 = vpop.f32.mrf.mxu0
      %v1189 = vadd.f32 0.0, %v1188
      %v1190 = vpop.f32.mrf.mxu0
      %1191 = vmatprep.mubr.f32.mxu0 %v337
      %1192 = vmatmul.mubr.f32.gmra.mxu0 %v336
      %v1193 = vpop.f32.mrf.mxu0
      %v1194 = vadd.f32 0.0, %v1193
      %v1195 = vpop.f32.mrf.mxu0
      %1196 = vmatprep.mubr.f32.mxu0 %v340
      %1197 = vmatmul.mubr.f32.gmra.mxu0 %v339
      %v1198 = vpop.f32.mrf.mxu0
      %v1199 = vadd.f32 0.0, %v1198
      %v1200 = vpop.f32.mrf.mxu0
      %1201 = vmatprep.mubr.f32.mxu0 %v343
      %1202 = vmatmul.mubr.f32.gmra.mxu0 %v342
      %v1203 = vpop.f32.mrf.mxu0
      %v1204 = vadd.f32 0.0, %v1203
      %v1205 = vpop.f32.mrf.mxu0
      %1206 = vmatprep.mubr.f32.mxu0 %v346
      %1207 = vmatmul.mubr.f32.gmra.mxu0 %v345
      %v1208 = vpop.f32.mrf.mxu0
      %v1209 = vadd.f32 0.0, %v1208
      %v1210 = vpop.f32.mrf.mxu0
      %1211 = vmatprep.mubr.f32.mxu0 %v349
      %1212 = vmatmul.mubr.f32.gmra.mxu0 %v348
      %v1213 = vpop.f32.mrf.mxu0
      %v1214 = vadd.f32 0.0, %v1213
      %v1215 = vpop.f32.mrf.mxu0
      %1216 = vmatprep.mubr.f32.mxu0 %v352
      %1217 = vmatmul.mubr.f32.gmra.mxu0 %v351
      %v1218 = vpop.f32.mrf.mxu0
      %v1219 = vadd.f32 0.0, %v1218
      %v1220 = vpop.f32.mrf.mxu0
      %1221 = vmatprep.mubr.f32.mxu0 %v355
      %1222 = vmatmul.mubr.f32.gmra.mxu0 %v354
      %v1223 = vpop.f32.mrf.mxu0
      %v1224 = vadd.f32 0.0, %v1223
      %v1225 = vpop.f32.mrf.mxu0
      %1226 = vmatprep.mubr.f32.mxu0 %v358
      %1227 = vmatmul.mubr.f32.gmra.mxu0 %v357
      %v1228 = vpop.f32.mrf.mxu0
      %v1229 = vadd.f32 0.0, %v1228
      %v1230 = vpop.f32.mrf.mxu0
      %1231 = vmatprep.mubr.f32.mxu0 %v361
      %1232 = vmatmul.mubr.f32.gmra.mxu0 %v360
      %v1233 = vpop.f32.mrf.mxu0
      %v1234 = vadd.f32 0.0, %v1233
      %v1235 = vpop.f32.mrf.mxu0
      %1236 = vmatprep.mubr.f32.mxu0 %v364
      %1237 = vmatmul.mubr.f32.gmra.mxu0 %v363
      %v1238 = vpop.f32.mrf.mxu0
      %v1239 = vadd.f32 0.0, %v1238
      %v1240 = vpop.f32.mrf.mxu0
      %1241 = vmatprep.mubr.f32.mxu0 %v367
      %1242 = vmatmul.mubr.f32.gmra.mxu0 %v366
      %v1243 = vpop.f32.mrf.mxu0
      %v1244 = vadd.f32 0.0, %v1243
      %v1245 = vpop.f32.mrf.mxu0
      %1246 = vmatprep.mubr.f32.mxu0 %v370
      %1247 = vmatmul.mubr.f32.gmra.mxu0 %v369
      %v1248 = vpop.f32.mrf.mxu0
      %v1249 = vadd.f32 0.0, %v1248
      %v1250 = vpop.f32.mrf.mxu0
      %1251 = vmatprep.mubr.f32.mxu0 %v373
      %1252 = vmatmul.mubr.f32.gmra.mxu0 %v372
      %v1253 = vpop.f32.mrf.mxu0
      %v1254 = vadd.f32 0.0, %v1253
      %v1255 = vpop.f32.mrf.mxu0
      %1256 = vmatprep.mubr.f32.mxu0 %v376
      %1257 = vmatmul.mubr.f32.gmra.mxu0 %v375
      %v1258 = vpop.f32.mrf.mxu0
      %v1259 = vadd.f32 0.0, %v1258
      %v1260 = vpop.f32.mrf.mxu0
      %1261 = vmatprep.mubr.f32.mxu0 %v379
      %1262 = vmatmul.mubr.f32.gmra.mxu0 %v378
      %v1263 = vpop.f32.mrf.mxu0
      %v1264 = vadd.f32 0.0, %v1263
      %v1265 = vpop.f32.mrf.mxu0
      %1266 = vmatprep.mubr.f32.mxu0 %v382
      %1267 = vmatmul.mubr.f32.gmra.mxu0 %v381
      %v1268 = vpop.f32.mrf.mxu0
      %v1269 = vadd.f32 0.0, %v1268
      %v1270 = vpop.f32.mrf.mxu0
      %1271 = vmatprep.mubr.f32.mxu0 %v385
      %1272 = vmatmul.mubr.f32.gmra.mxu0 %v384
      %v1273 = vpop.f32.mrf.mxu0
      %v1274 = vadd.f32 0.0, %v1273
      %v1275 = vpop.f32.mrf.mxu0
      %1276 = vmatprep.mubr.f32.mxu0 %v388
      %1277 = vmatmul.mubr.f32.gmra.mxu0 %v387
      %v1278 = vpop.f32.mrf.mxu0
      %v1279 = vadd.f32 0.0, %v1278
      %v1280 = vpop.f32.mrf.mxu0
      %1281 = vmatprep.mubr.f32.mxu0 %v391
      %1282 = vmatmul.mubr.f32.gmra.mxu0 %v390
      %v1283 = vpop.f32.mrf.mxu0
      %v1284 = vadd.f32 0.0, %v1283
      %v1285 = vpop.f32.mrf.mxu0
      %1286 = vmatprep.mubr.f32.mxu0 %v394
      %1287 = vmatmul.mubr.f32.gmra.mxu0 %v393
      %v1288 = vpop.f32.mrf.mxu0
      %v1289 = vadd.f32 0.0, %v1288
      %v1290 = vpop.f32.mrf.mxu0
      %1291 = vmatprep.mubr.f32.mxu0 %v397
      %1292 = vmatmul.mubr.f32.gmra.mxu0 %v396
      %v1293 = vpop.f32.mrf.mxu0
      %v1294 = vadd.f32 0.0, %v1293
      %v1295 = vpop.f32.mrf.mxu0
      %1296 = vmatprep.mubr.f32.mxu0 %v400
      %1297 = vmatmul.mubr.f32.gmra.mxu0 %v399
      %v1298 = vpop.f32.mrf.mxu0
      %v1299 = vadd.f32 0.0, %v1298
      %v1300 = vpop.f32.mrf.mxu0
      %1301 = vmatprep.mubr.f32.mxu0 %v403
      %1302 = vmatmul.mubr.f32.gmra.mxu0 %v402
      %v1303 = vpop.f32.mrf.mxu0
      %v1304 = vadd.f32 0.0, %v1303
      %v1305 = vpop.f32.mrf.mxu0
      %1306 = vmatprep.mubr.f32.mxu0 %v406
      %1307 = vmatmul.mubr.f32.gmra.mxu0 %v405
      %v1308 = vpop.f32.mrf.mxu0
      %v1309 = vadd.f32 0.0, %v1308
      %v1310 = vpop.f32.mrf.mxu0
      %1311 = vmatprep.mubr.f32.mxu0 %v409
      %1312 = vmatmul.mubr.f32.gmra.mxu0 %v408
      %v1313 = vpop.f32.mrf.mxu0
      %v1314 = vadd.f32 0.0, %v1313
      %v1315 = vpop.f32.mrf.mxu0
      %1316 = vmatprep.mubr.f32.mxu0 %v412
      %1317 = vmatmul.mubr.f32.gmra.mxu0 %v411
      %v1318 = vpop.f32.mrf.mxu0
      %v1319 = vadd.f32 0.0, %v1318
      %v1320 = vpop.f32.mrf.mxu0
      %1321 = vmatprep.mubr.f32.mxu0 %v415
      %1322 = vmatmul.mubr.f32.gmra.mxu0 %v414
      %v1323 = vpop.f32.mrf.mxu0
      %v1324 = vadd.f32 0.0, %v1323
      %v1325 = vpop.f32.mrf.mxu0
      %1326 = vmatprep.mubr.f32.mxu0 %v418
      %1327 = vmatmul.mubr.f32.gmra.mxu0 %v417
      %v1328 = vpop.f32.mrf.mxu0
      %v1329 = vadd.f32 0.0, %v1328
      %v1330 = vpop.f32.mrf.mxu0
      %1331 = vmatprep.mubr.f32.mxu0 %v421
      %1332 = vmatmul.mubr.f32.gmra.mxu0 %v420
      %v1333 = vpop.f32.mrf.mxu0
      %v1334 = vadd.f32 0.0, %v1333
      %v1335 = vpop.f32.mrf.mxu0
      %1336 = vmatprep.mubr.f32.mxu0 %v424
      %1337 = vmatmul.mubr.f32.gmra.mxu0 %v423
      %v1338 = vpop.f32.mrf.mxu0
      %v1339 = vadd.f32 0.0, %v1338
      %v1340 = vpop.f32.mrf.mxu0
      %1341 = vmatprep.mubr.f32.mxu0 %v427
      %1342 = vmatmul.mubr.f32.gmra.mxu0 %v426
      %v1343 = vpop.f32.mrf.mxu0
      %v1344 = vadd.f32 0.0, %v1343
      %v1345 = vpop.f32.mrf.mxu0
      %1346 = vmatprep.mubr.f32.mxu0 %v430
      %1347 = vmatmul.mubr.f32.gmra.mxu0 %v429
      %v1348 = vpop.f32.mrf.mxu0
      %v1349 = vadd.f32 0.0, %v1348
      %v1350 = vpop.f32.mrf.mxu0
      %1351 = vmatprep.mubr.f32.mxu0 %v433
      %1352 = vmatmul.mubr.f32.gmra.mxu0 %v432
      %v1353 = vpop.f32.mrf.mxu0
      %v1354 = vadd.f32 0.0, %v1353
      %v1355 = vpop.f32.mrf.mxu0
      %1356 = vmatprep.mubr.f32.mxu0 %v436
      %1357 = vmatmul.mubr.f32.gmra.mxu0 %v435
      %v1358 = vpop.f32.mrf.mxu0
      %v1359 = vadd.f32 0.0, %v1358
      %v1360 = vpop.f32.mrf.mxu0
      %1361 = vmatprep.mubr.f32.mxu0 %v439
      %1362 = vmatmul.mubr.f32.gmra.mxu0 %v438
      %v1363 = vpop.f32.mrf.mxu0
      %v1364 = vadd.f32 0.0, %v1363
      %v1365 = vpop.f32.mrf.mxu0
      %1366 = vmatprep.mubr.f32.mxu0 %v442
      %1367 = vmatmul.mubr.f32.gmra.mxu0 %v441
      %v1368 = vpop.f32.mrf.mxu0
      %v1369 = vadd.f32 0.0, %v1368
      %v1370 = vpop.f32.mrf.mxu0
      %1371 = vmatprep.mubr.f32.mxu0 %v445
      %1372 = vmatmul.mubr.f32.gmra.mxu0 %v444
      %v1373 = vpop.f32.mrf.mxu0
      %v1374 = vadd.f32 0.0, %v1373
      %v1375 = vpop.f32.mrf.mxu0
      %1376 = vmatprep.mubr.f32.mxu0 %v448
      %1377 = vmatmul.mubr.f32.gmra.mxu0 %v447
      %v1378 = vpop.f32.mrf.mxu0
      %v1379 = vadd.f32 0.0, %v1378
      %v1380 = vpop.f32.mrf.mxu0
      %1381 = vmatprep.mubr.f32.mxu0 %v451
      %1382 = vmatmul.mubr.f32.gmra.mxu0 %v450
      %v1383 = vpop.f32.mrf.mxu0
      %v1384 = vadd.f32 0.0, %v1383
      %v1385 = vpop.f32.mrf.mxu0
      %1386 = vmatprep.mubr.f32.mxu0 %v454
      %1387 = vmatmul.mubr.f32.gmra.mxu0 %v453
      %v1388 = vpop.f32.mrf.mxu0
      %v1389 = vadd.f32 0.0, %v1388
      %v1390 = vpop.f32.mrf.mxu0
      %1391 = vmatprep.mubr.f32.mxu0 %v457
      %1392 = vmatmul.mubr.f32.gmra.mxu0 %v456
      %v1393 = vpop.f32.mrf.mxu0
      %v1394 = vadd.f32 0.0, %v1393
      %v1395 = vpop.f32.mrf.mxu0
      %1396 = vmatprep.mubr.f32.mxu0 %v460
      %1397 = vmatmul.mubr.f32.gmra.mxu0 %v459
      %v1398 = vpop.f32.mrf.mxu0
      %v1399 = vadd.f32 0.0, %v1398
      %v1400 = vpop.f32.mrf.mxu0
      %1401 = vmatprep.mubr.f32.mxu0 %v463
      %1402 = vmatmul.mubr.f32.gmra.mxu0 %v462
      %v1403 = vpop.f32.mrf.mxu0
      %v1404 = vadd.f32 0.0, %v1403
      %v1405 = vpop.f32.mrf.mxu0
      %1406 = vmatprep.mubr.f32.mxu0 %v466
      %1407 = vmatmul.mubr.f32.gmra.mxu0 %v465
      %v1408 = vpop.f32.mrf.mxu0
      %v1409 = vadd.f32 0.0, %v1408
      %v1410 = vpop.f32.mrf.mxu0
      %1411 = vmatprep.mubr.f32.mxu0 %v469
      %1412 = vmatmul.mubr.f32.gmra.mxu0 %v468
      %v1413 = vpop.f32.mrf.mxu0
      %v1414 = vadd.f32 0.0, %v1413
      %v1415 = vpop.f32.mrf.mxu0
      %1416 = vmatprep.mubr.f32.mxu0 %v472
      %1417 = vmatmul.mubr.f32.gmra.mxu0 %v471
      %v1418 = vpop.f32.mrf.mxu0
      %v1419 = vadd.f32 0.0, %v1418
      %v1420 = vpop.f32.mrf.mxu0
      %1421 = vmatprep.mubr.f32.mxu0 %v475
      %1422 = vmatmul.mubr.f32.gmra.mxu0 %v474
      %v1423 = vpop.f32.mrf.mxu0
      %v1424 = vadd.f32 0.0, %v1423
      %v1425 = vpop.f32.mrf.mxu0
      %1426 = vmatprep.mubr.f32.mxu0 %v478
      %1427 = vmatmul.mubr.f32.gmra.mxu0 %v477
      %v1428 = vpop.f32.mrf.mxu0
      %v1429 = vadd.f32 0.0, %v1428
      %v1430 = vpop.f32.mrf.mxu0
      %1431 = vmatprep.mubr.f32.mxu0 %v481
      %1432 = vmatmul.mubr.f32.gmra.mxu0 %v480
      %v1433 = vpop.f32.mrf.mxu0
      %v1434 = vadd.f32 0.0, %v1433
      %v1435 = vpop.f32.mrf.mxu0
      %1436 = vmatprep.mubr.f32.mxu0 %v484
      %1437 = vmatmul.mubr.f32.gmra.mxu0 %v483
      %v1438 = vpop.f32.mrf.mxu0
      %v1439 = vadd.f32 0.0, %v1438
      %v1440 = vpop.f32.mrf.mxu0
      %1441 = vmatprep.mubr.f32.mxu0 %v487
      %1442 = vmatmul.mubr.f32.gmra.mxu0 %v486
      %v1443 = vpop.f32.mrf.mxu0
      %v1444 = vadd.f32 0.0, %v1443
      %v1445 = vpop.f32.mrf.mxu0
      %1446 = vmatprep.mubr.f32.mxu0 %v490
      %1447 = vmatmul.mubr.f32.gmra.mxu0 %v489
      %v1448 = vpop.f32.mrf.mxu0
      %v1449 = vadd.f32 0.0, %v1448
      %v1450 = vpop.f32.mrf.mxu0
      %1451 = vmatprep.mubr.f32.mxu0 %v493
      %1452 = vmatmul.mubr.f32.gmra.mxu0 %v492
      %v1453 = vpop.f32.mrf.mxu0
      %v1454 = vadd.f32 0.0, %v1453
      %v1455 = vpop.f32.mrf.mxu0
      %1456 = vmatprep.mubr.f32.mxu0 %v496
      %1457 = vmatmul.mubr.f32.gmra.mxu0 %v495
      %v1458 = vpop.f32.mrf.mxu0
      %v1459 = vadd.f32 0.0, %v1458
      %v1460 = vpop.f32.mrf.mxu0
      %1461 = vmatprep.mubr.f32.mxu0 %v499
      %1462 = vmatmul.mubr.f32.gmra.mxu0 %v498
      %v1463 = vpop.f32.mrf.mxu0
      %v1464 = vadd.f32 0.0, %v1463
      %v1465 = vpop.f32.mrf.mxu0
      %1466 = vdwg.mxu0
      %1467 = vmatprep.subr.mxu0 0.0
      %1468 = vmatpush1.msra.mxu0 0.0
      %1469 = vmatprep.subr.mxu0 0.0
      %1470 = vmatpush1.msra.mxu0 0.0
      %1471 = vmatprep.subr.mxu0 0.0
      %1472 = vmatpush1.msra.mxu0 0.0
      %1473 = vmatprep.subr.mxu0 0.0
      %1474 = vmatpush1.msra.mxu0 0.0
      %1475 = vmatprep.subr.mxu0 0.0
      %1476 = vmatpush1.msra.mxu0 0.0
      %1477 = vmatprep.subr.mxu0 0.0
      %1478 = vmatpush1.msra.mxu0 0.0
      %1479 = vmatprep.subr.mxu0 0.0
      %1480 = vmatpush1.msra.mxu0 0.0
      %1481 = vmatprep.subr.mxu0 0.0
      %1482 = vmatpush1.msra.mxu0 0.0
      %1483 = vmatprep.subr.mxu0 0.0
      %1484 = vmatpush1.msra.mxu0 0.0
      %1485 = vmatprep.subr.mxu0 0.0
      %1486 = vmatpush1.msra.mxu0 0.0
      %1487 = vmatprep.subr.mxu0 0.0
      %1488 = vmatpush1.msra.mxu0 0.0
      %1489 = vmatprep.subr.mxu0 0.0
      %1490 = vmatpush1.msra.mxu0 0.0
      %1491 = vmatprep.subr.mxu0 0.0
      %1492 = vmatpush1.msra.mxu0 %v536
      %1493 = vmatprep.subr.mxu0 0.0
      %1494 = vmatpush1.msra.mxu0 %v535
      %1495 = vmatprep.subr.mxu0 0.0
      %1496 = vmatpush1.msra.mxu0 %v534
      %1497 = vmatprep.subr.mxu0 0.0
      %1498 = vmatpush1.msra.mxu0 %v533
      %1499 = vmatprep.subr.mxu0 0.0
      %1500 = vmatpush2.msra.mxu0 0.0
      %1501 = vmatprep.subr.mxu0 0.0
      %1502 = vmatpush2.msra.mxu0 0.0
      %1503 = vmatprep.subr.mxu0 0.0
      %1504 = vmatpush2.msra.mxu0 0.0
      %1505 = vmatprep.subr.mxu0 0.0
      %1506 = vmatpush2.msra.mxu0 0.0
      %1507 = vmatprep.subr.mxu0 0.0
      %1508 = vmatpush2.msra.mxu0 0.0
      %1509 = vmatprep.subr.mxu0 0.0
      %1510 = vmatpush2.msra.mxu0 0.0
      %1511 = vmatprep.subr.mxu0 0.0
      %1512 = vmatpush2.msra.mxu0 0.0
      %1513 = vmatprep.subr.mxu0 0.0
      %1514 = vmatpush2.msra.mxu0 0.0
      %1515 = vmatprep.subr.mxu0 0.0
      %1516 = vmatpush2.msra.mxu0 0.0
      %1517 = vmatprep.subr.mxu0 0.0
      %1518 = vmatpush2.msra.mxu0 0.0
      %1519 = vmatprep.subr.mxu0 0.0
      %1520 = vmatpush2.msra.mxu0 0.0
      %1521 = vmatprep.subr.mxu0 0.0
      %1522 = vmatpush2.msra.mxu0 0.0
      %1523 = vmatprep.subr.mxu0 0.0
      %1524 = vmatpush2.msra.mxu0 0.0
      %1525 = vmatprep.subr.mxu0 0.0
      %1526 = vmatpush2.msra.mxu0 0.0
      %1527 = vmatprep.subr.mxu0 0.0
      %1528 = vmatpush2.msra.mxu0 0.0
      %1529 = vmatprep.subr.mxu0 0.0
      %1530 = vmatpush2.msra.mxu0 0.0
      %1531 = vmatprep.mubr.f32.mxu0 0.0
      %1532 = vmatmul.mubr.f32.gmra.mxu0 %v539
      %v1533 = vpop.f32.mrf.mxu0
      %v1534 = vadd.f32 %v929, %v1533
      %v1535 = vpop.f32.mrf.mxu0
      %1536 = vmatprep.mubr.f32.mxu0 0.0
      %1537 = vmatmul.mubr.f32.gmra.mxu0 %v542
      %v1538 = vpop.f32.mrf.mxu0
      %v1539 = vadd.f32 %v934, %v1538
      %v1540 = vpop.f32.mrf.mxu0
      %1541 = vmatprep.mubr.f32.mxu0 0.0
      %1542 = vmatmul.mubr.f32.gmra.mxu0 %v545
      %v1543 = vpop.f32.mrf.mxu0
      %v1544 = vadd.f32 %v939, %v1543
      %v1545 = vpop.f32.mrf.mxu0
      %1546 = vmatprep.mubr.f32.mxu0 0.0
      %1547 = vmatmul.mubr.f32.gmra.mxu0 %v548
      %v1548 = vpop.f32.mrf.mxu0
      %v1549 = vadd.f32 %v944, %v1548
      %v1550 = vpop.f32.mrf.mxu0
      %1551 = vmatprep.mubr.f32.mxu0 0.0
      %1552 = vmatmul.mubr.f32.gmra.mxu0 %v551
      %v1553 = vpop.f32.mrf.mxu0
      %v1554 = vadd.f32 %v949, %v1553
      %v1555 = vpop.f32.mrf.mxu0
      %1556 = vmatprep.mubr.f32.mxu0 0.0
      %1557 = vmatmul.mubr.f32.gmra.mxu0 %v554
      %v1558 = vpop.f32.mrf.mxu0
      %v1559 = vadd.f32 %v954, %v1558
      %v1560 = vpop.f32.mrf.mxu0
      %1561 = vmatprep.mubr.f32.mxu0 0.0
      %1562 = vmatmul.mubr.f32.gmra.mxu0 %v557
      %v1563 = vpop.f32.mrf.mxu0
      %v1564 = vadd.f32 %v959, %v1563
      %v1565 = vpop.f32.mrf.mxu0
      %1566 = vmatprep.mubr.f32.mxu0 0.0
      %1567 = vmatmul.mubr.f32.gmra.mxu0 %v560
      %v1568 = vpop.f32.mrf.mxu0
      %v1569 = vadd.f32 %v964, %v1568
      %v1570 = vpop.f32.mrf.mxu0
      %1571 = vmatprep.mubr.f32.mxu0 0.0
      %1572 = vmatmul.mubr.f32.gmra.mxu0 %v563
      %v1573 = vpop.f32.mrf.mxu0
      %v1574 = vadd.f32 %v969, %v1573
      %v1575 = vpop.f32.mrf.mxu0
      %1576 = vmatprep.mubr.f32.mxu0 0.0
      %1577 = vmatmul.mubr.f32.gmra.mxu0 %v566
      %v1578 = vpop.f32.mrf.mxu0
      %v1579 = vadd.f32 %v974, %v1578
      %v1580 = vpop.f32.mrf.mxu0
      %1581 = vmatprep.mubr.f32.mxu0 0.0
      %1582 = vmatmul.mubr.f32.gmra.mxu0 %v569
      %v1583 = vpop.f32.mrf.mxu0
      %v1584 = vadd.f32 %v979, %v1583
      %v1585 = vpop.f32.mrf.mxu0
      %1586 = vmatprep.mubr.f32.mxu0 0.0
      %1587 = vmatmul.mubr.f32.gmra.mxu0 %v572
      %v1588 = vpop.f32.mrf.mxu0
      %v1589 = vadd.f32 %v984, %v1588
      %v1590 = vpop.f32.mrf.mxu0
      %1591 = vmatprep.mubr.f32.mxu0 0.0
      %1592 = vmatmul.mubr.f32.gmra.mxu0 %v575
      %v1593 = vpop.f32.mrf.mxu0
      %v1594 = vadd.f32 %v989, %v1593
      %v1595 = vpop.f32.mrf.mxu0
      %1596 = vmatprep.mubr.f32.mxu0 0.0
      %1597 = vmatmul.mubr.f32.gmra.mxu0 %v578
      %v1598 = vpop.f32.mrf.mxu0
      %v1599 = vadd.f32 %v994, %v1598
      %v1600 = vpop.f32.mrf.mxu0
      %1601 = vmatprep.mubr.f32.mxu0 0.0
      %1602 = vmatmul.mubr.f32.gmra.mxu0 %v581
      %v1603 = vpop.f32.mrf.mxu0
      %v1604 = vadd.f32 %v999, %v1603
      %v1605 = vpop.f32.mrf.mxu0
      %1606 = vmatprep.mubr.f32.mxu0 0.0
      %1607 = vmatmul.mubr.f32.gmra.mxu0 %v584
      %v1608 = vpop.f32.mrf.mxu0
      %v1609 = vadd.f32 %v1004, %v1608
      %v1610 = vpop.f32.mrf.mxu0
      %1611 = vmatprep.mubr.f32.mxu0 0.0
      %1612 = vmatmul.mubr.f32.gmra.mxu0 %v587
      %v1613 = vpop.f32.mrf.mxu0
      %v1614 = vadd.f32 %v1009, %v1613
      %v1615 = vpop.f32.mrf.mxu0
      %1616 = vmatprep.mubr.f32.mxu0 0.0
      %1617 = vmatmul.mubr.f32.gmra.mxu0 %v590
      %v1618 = vpop.f32.mrf.mxu0
      %v1619 = vadd.f32 %v1014, %v1618
      %v1620 = vpop.f32.mrf.mxu0
      %1621 = vmatprep.mubr.f32.mxu0 0.0
      %1622 = vmatmul.mubr.f32.gmra.mxu0 %v593
      %v1623 = vpop.f32.mrf.mxu0
      %v1624 = vadd.f32 %v1019, %v1623
      %v1625 = vpop.f32.mrf.mxu0
      %1626 = vmatprep.mubr.f32.mxu0 0.0
      %1627 = vmatmul.mubr.f32.gmra.mxu0 %v596
      %v1628 = vpop.f32.mrf.mxu0
      %v1629 = vadd.f32 %v1024, %v1628
      %v1630 = vpop.f32.mrf.mxu0
      %1631 = vmatprep.mubr.f32.mxu0 0.0
      %1632 = vmatmul.mubr.f32.gmra.mxu0 %v599
      %v1633 = vpop.f32.mrf.mxu0
      %v1634 = vadd.f32 %v1029, %v1633
      %v1635 = vpop.f32.mrf.mxu0
      %1636 = vmatprep.mubr.f32.mxu0 0.0
      %1637 = vmatmul.mubr.f32.gmra.mxu0 %v602
      %v1638 = vpop.f32.mrf.mxu0
      %v1639 = vadd.f32 %v1034, %v1638
      %v1640 = vpop.f32.mrf.mxu0
      %1641 = vmatprep.mubr.f32.mxu0 0.0
      %1642 = vmatmul.mubr.f32.gmra.mxu0 %v605
      %v1643 = vpop.f32.mrf.mxu0
      %v1644 = vadd.f32 %v1039, %v1643
      %v1645 = vpop.f32.mrf.mxu0
      %1646 = vmatprep.mubr.f32.mxu0 0.0
      %1647 = vmatmul.mubr.f32.gmra.mxu0 %v608
      %v1648 = vpop.f32.mrf.mxu0
      %v1649 = vadd.f32 %v1044, %v1648
      %v1650 = vpop.f32.mrf.mxu0
      %1651 = vmatprep.mubr.f32.mxu0 0.0
      %1652 = vmatmul.mubr.f32.gmra.mxu0 %v611
      %v1653 = vpop.f32.mrf.mxu0
      %v1654 = vadd.f32 %v1049, %v1653
      %v1655 = vpop.f32.mrf.mxu0
      %1656 = vmatprep.mubr.f32.mxu0 0.0
      %1657 = vmatmul.mubr.f32.gmra.mxu0 %v614
      %v1658 = vpop.f32.mrf.mxu0
      %v1659 = vadd.f32 %v1054, %v1658
      %v1660 = vpop.f32.mrf.mxu0
      %1661 = vmatprep.mubr.f32.mxu0 0.0
      %1662 = vmatmul.mubr.f32.gmra.mxu0 %v617
      %v1663 = vpop.f32.mrf.mxu0
      %v1664 = vadd.f32 %v1059, %v1663
      %v1665 = vpop.f32.mrf.mxu0
      %1666 = vmatprep.mubr.f32.mxu0 0.0
      %1667 = vmatmul.mubr.f32.gmra.mxu0 %v620
      %v1668 = vpop.f32.mrf.mxu0
      %v1669 = vadd.f32 %v1064, %v1668
      %v1670 = vpop.f32.mrf.mxu0
      %1671 = vmatprep.mubr.f32.mxu0 0.0
      %1672 = vmatmul.mubr.f32.gmra.mxu0 %v623
      %v1673 = vpop.f32.mrf.mxu0
      %v1674 = vadd.f32 %v1069, %v1673
      %v1675 = vpop.f32.mrf.mxu0
      %1676 = vmatprep.mubr.f32.mxu0 0.0
      %1677 = vmatmul.mubr.f32.gmra.mxu0 %v626
      %v1678 = vpop.f32.mrf.mxu0
      %v1679 = vadd.f32 %v1074, %v1678
      %v1680 = vpop.f32.mrf.mxu0
      %1681 = vmatprep.mubr.f32.mxu0 0.0
      %1682 = vmatmul.mubr.f32.gmra.mxu0 %v629
      %v1683 = vpop.f32.mrf.mxu0
      %v1684 = vadd.f32 %v1079, %v1683
      %v1685 = vpop.f32.mrf.mxu0
      %1686 = vmatprep.mubr.f32.mxu0 0.0
      %1687 = vmatmul.mubr.f32.gmra.mxu0 %v632
      %v1688 = vpop.f32.mrf.mxu0
      %v1689 = vadd.f32 %v1084, %v1688
      %v1690 = vpop.f32.mrf.mxu0
      %1691 = vmatprep.mubr.f32.mxu0 0.0
      %1692 = vmatmul.mubr.f32.gmra.mxu0 %v635
      %v1693 = vpop.f32.mrf.mxu0
      %v1694 = vadd.f32 %v1089, %v1693
      %v1695 = vpop.f32.mrf.mxu0
      %1696 = vmatprep.mubr.f32.mxu0 0.0
      %1697 = vmatmul.mubr.f32.gmra.mxu0 %v638
      %v1698 = vpop.f32.mrf.mxu0
      %v1699 = vadd.f32 %v1094, %v1698
      %v1700 = vpop.f32.mrf.mxu0
      %1701 = vmatprep.mubr.f32.mxu0 0.0
      %1702 = vmatmul.mubr.f32.gmra.mxu0 %v641
      %v1703 = vpop.f32.mrf.mxu0
      %v1704 = vadd.f32 %v1099, %v1703
      %v1705 = vpop.f32.mrf.mxu0
      %1706 = vmatprep.mubr.f32.mxu0 0.0
      %1707 = vmatmul.mubr.f32.gmra.mxu0 %v644
      %v1708 = vpop.f32.mrf.mxu0
      %v1709 = vadd.f32 %v1104, %v1708
      %v1710 = vpop.f32.mrf.mxu0
      %1711 = vmatprep.mubr.f32.mxu0 0.0
      %1712 = vmatmul.mubr.f32.gmra.mxu0 %v647
      %v1713 = vpop.f32.mrf.mxu0
      %v1714 = vadd.f32 %v1109, %v1713
      %v1715 = vpop.f32.mrf.mxu0
      %1716 = vmatprep.mubr.f32.mxu0 0.0
      %1717 = vmatmul.mubr.f32.gmra.mxu0 %v650
      %v1718 = vpop.f32.mrf.mxu0
      %v1719 = vadd.f32 %v1114, %v1718
      %v1720 = vpop.f32.mrf.mxu0
      %1721 = vmatprep.mubr.f32.mxu0 0.0
      %1722 = vmatmul.mubr.f32.gmra.mxu0 %v653
      %v1723 = vpop.f32.mrf.mxu0
      %v1724 = vadd.f32 %v1119, %v1723
      %v1725 = vpop.f32.mrf.mxu0
      %1726 = vmatprep.mubr.f32.mxu0 0.0
      %1727 = vmatmul.mubr.f32.gmra.mxu0 %v656
      %v1728 = vpop.f32.mrf.mxu0
      %v1729 = vadd.f32 %v1124, %v1728
      %v1730 = vpop.f32.mrf.mxu0
      %1731 = vmatprep.mubr.f32.mxu0 0.0
      %1732 = vmatmul.mubr.f32.gmra.mxu0 %v659
      %v1733 = vpop.f32.mrf.mxu0
      %v1734 = vadd.f32 %v1129, %v1733
      %v1735 = vpop.f32.mrf.mxu0
      %1736 = vmatprep.mubr.f32.mxu0 0.0
      %1737 = vmatmul.mubr.f32.gmra.mxu0 %v662
      %v1738 = vpop.f32.mrf.mxu0
      %v1739 = vadd.f32 %v1134, %v1738
      %v1740 = vpop.f32.mrf.mxu0
      %1741 = vmatprep.mubr.f32.mxu0 0.0
      %1742 = vmatmul.mubr.f32.gmra.mxu0 %v665
      %v1743 = vpop.f32.mrf.mxu0
      %v1744 = vadd.f32 %v1139, %v1743
      %v1745 = vpop.f32.mrf.mxu0
      %1746 = vmatprep.mubr.f32.mxu0 0.0
      %1747 = vmatmul.mubr.f32.gmra.mxu0 %v668
      %v1748 = vpop.f32.mrf.mxu0
      %v1749 = vadd.f32 %v1144, %v1748
      %v1750 = vpop.f32.mrf.mxu0
      %1751 = vmatprep.mubr.f32.mxu0 0.0
      %1752 = vmatmul.mubr.f32.gmra.mxu0 %v671
      %v1753 = vpop.f32.mrf.mxu0
      %v1754 = vadd.f32 %v1149, %v1753
      %v1755 = vpop.f32.mrf.mxu0
      %1756 = vmatprep.mubr.f32.mxu0 0.0
      %1757 = vmatmul.mubr.f32.gmra.mxu0 %v674
      %v1758 = vpop.f32.mrf.mxu0
      %v1759 = vadd.f32 %v1154, %v1758
      %v1760 = vpop.f32.mrf.mxu0
      %1761 = vmatprep.mubr.f32.mxu0 0.0
      %1762 = vmatmul.mubr.f32.gmra.mxu0 %v677
      %v1763 = vpop.f32.mrf.mxu0
      %v1764 = vadd.f32 %v1159, %v1763
      %v1765 = vpop.f32.mrf.mxu0
      %1766 = vmatprep.mubr.f32.mxu0 0.0
      %1767 = vmatmul.mubr.f32.gmra.mxu0 %v680
      %v1768 = vpop.f32.mrf.mxu0
      %v1769 = vadd.f32 %v1164, %v1768
      %v1770 = vpop.f32.mrf.mxu0
      %1771 = vmatprep.mubr.f32.mxu0 0.0
      %1772 = vmatmul.mubr.f32.gmra.mxu0 %v683
      %v1773 = vpop.f32.mrf.mxu0
      %v1774 = vadd.f32 %v1169, %v1773
      %v1775 = vpop.f32.mrf.mxu0
      %1776 = vmatprep.mubr.f32.mxu0 0.0
      %1777 = vmatmul.mubr.f32.gmra.mxu0 %v686
      %v1778 = vpop.f32.mrf.mxu0
      %v1779 = vadd.f32 %v1174, %v1778
      %v1780 = vpop.f32.mrf.mxu0
      %1781 = vmatprep.mubr.f32.mxu0 0.0
      %1782 = vmatmul.mubr.f32.gmra.mxu0 %v689
      %v1783 = vpop.f32.mrf.mxu0
      %v1784 = vadd.f32 %v1179, %v1783
      %v1785 = vpop.f32.mrf.mxu0
      %1786 = vmatprep.mubr.f32.mxu0 0.0
      %1787 = vmatmul.mubr.f32.gmra.mxu0 %v692
      %v1788 = vpop.f32.mrf.mxu0
      %v1789 = vadd.f32 %v1184, %v1788
      %v1790 = vpop.f32.mrf.mxu0
      %1791 = vmatprep.mubr.f32.mxu0 0.0
      %1792 = vmatmul.mubr.f32.gmra.mxu0 %v695
      %v1793 = vpop.f32.mrf.mxu0
      %v1794 = vadd.f32 %v1189, %v1793
      %v1795 = vpop.f32.mrf.mxu0
      %1796 = vmatprep.mubr.f32.mxu0 0.0
      %1797 = vmatmul.mubr.f32.gmra.mxu0 %v698
      %v1798 = vpop.f32.mrf.mxu0
      %v1799 = vadd.f32 %v1194, %v1798
      %v1800 = vpop.f32.mrf.mxu0
      %1801 = vmatprep.mubr.f32.mxu0 0.0
      %1802 = vmatmul.mubr.f32.gmra.mxu0 %v701
      %v1803 = vpop.f32.mrf.mxu0
      %v1804 = vadd.f32 %v1199, %v1803
      %v1805 = vpop.f32.mrf.mxu0
      %1806 = vmatprep.mubr.f32.mxu0 0.0
      %1807 = vmatmul.mubr.f32.gmra.mxu0 %v704
      %v1808 = vpop.f32.mrf.mxu0
      %v1809 = vadd.f32 %v1204, %v1808
      %v1810 = vpop.f32.mrf.mxu0
      %1811 = vmatprep.mubr.f32.mxu0 0.0
      %1812 = vmatmul.mubr.f32.gmra.mxu0 %v707
      %v1813 = vpop.f32.mrf.mxu0
      %v1814 = vadd.f32 %v1209, %v1813
      %v1815 = vpop.f32.mrf.mxu0
      %1816 = vmatprep.mubr.f32.mxu0 0.0
      %1817 = vmatmul.mubr.f32.gmra.mxu0 %v710
      %v1818 = vpop.f32.mrf.mxu0
      %v1819 = vadd.f32 %v1214, %v1818
      %v1820 = vpop.f32.mrf.mxu0
      %1821 = vmatprep.mubr.f32.mxu0 0.0
      %1822 = vmatmul.mubr.f32.gmra.mxu0 %v713
      %v1823 = vpop.f32.mrf.mxu0
      %v1824 = vadd.f32 %v1219, %v1823
      %v1825 = vpop.f32.mrf.mxu0
      %1826 = vmatprep.mubr.f32.mxu0 0.0
      %1827 = vmatmul.mubr.f32.gmra.mxu0 %v716
      %v1828 = vpop.f32.mrf.mxu0
      %v1829 = vadd.f32 %v1224, %v1828
      %v1830 = vpop.f32.mrf.mxu0
      %1831 = vmatprep.mubr.f32.mxu0 0.0
      %1832 = vmatmul.mubr.f32.gmra.mxu0 %v719
      %v1833 = vpop.f32.mrf.mxu0
      %v1834 = vadd.f32 %v1229, %v1833
      %v1835 = vpop.f32.mrf.mxu0
      %1836 = vmatprep.mubr.f32.mxu0 0.0
      %1837 = vmatmul.mubr.f32.gmra.mxu0 %v722
      %v1838 = vpop.f32.mrf.mxu0
      %v1839 = vadd.f32 %v1234, %v1838
      %v1840 = vpop.f32.mrf.mxu0
      %1841 = vmatprep.mubr.f32.mxu0 0.0
      %1842 = vmatmul.mubr.f32.gmra.mxu0 %v725
      %v1843 = vpop.f32.mrf.mxu0
      %v1844 = vadd.f32 %v1239, %v1843
      %v1845 = vpop.f32.mrf.mxu0
      %1846 = vmatprep.mubr.f32.mxu0 0.0
      %1847 = vmatmul.mubr.f32.gmra.mxu0 %v728
      %v1848 = vpop.f32.mrf.mxu0
      %v1849 = vadd.f32 %v1244, %v1848
      %v1850 = vpop.f32.mrf.mxu0
      %1851 = vmatprep.mubr.f32.mxu0 0.0
      %1852 = vmatmul.mubr.f32.gmra.mxu0 %v731
      %v1853 = vpop.f32.mrf.mxu0
      %v1854 = vadd.f32 %v1249, %v1853
      %v1855 = vpop.f32.mrf.mxu0
      %1856 = vmatprep.mubr.f32.mxu0 0.0
      %1857 = vmatmul.mubr.f32.gmra.mxu0 %v734
      %v1858 = vpop.f32.mrf.mxu0
      %v1859 = vadd.f32 %v1254, %v1858
      %v1860 = vpop.f32.mrf.mxu0
      %1861 = vmatprep.mubr.f32.mxu0 0.0
      %1862 = vmatmul.mubr.f32.gmra.mxu0 %v737
      %v1863 = vpop.f32.mrf.mxu0
      %v1864 = vadd.f32 %v1259, %v1863
      %v1865 = vpop.f32.mrf.mxu0
      %1866 = vmatprep.mubr.f32.mxu0 0.0
      %1867 = vmatmul.mubr.f32.gmra.mxu0 %v740
      %v1868 = vpop.f32.mrf.mxu0
      %v1869 = vadd.f32 %v1264, %v1868
      %v1870 = vpop.f32.mrf.mxu0
      %1871 = vmatprep.mubr.f32.mxu0 0.0
      %1872 = vmatmul.mubr.f32.gmra.mxu0 %v743
      %v1873 = vpop.f32.mrf.mxu0
      %v1874 = vadd.f32 %v1269, %v1873
      %v1875 = vpop.f32.mrf.mxu0
      %1876 = vmatprep.mubr.f32.mxu0 0.0
      %1877 = vmatmul.mubr.f32.gmra.mxu0 %v746
      %v1878 = vpop.f32.mrf.mxu0
      %v1879 = vadd.f32 %v1274, %v1878
      %v1880 = vpop.f32.mrf.mxu0
      %1881 = vmatprep.mubr.f32.mxu0 0.0
      %1882 = vmatmul.mubr.f32.gmra.mxu0 %v749
      %v1883 = vpop.f32.mrf.mxu0
      %v1884 = vadd.f32 %v1279, %v1883
      %v1885 = vpop.f32.mrf.mxu0
      %1886 = vmatprep.mubr.f32.mxu0 0.0
      %1887 = vmatmul.mubr.f32.gmra.mxu0 %v752
      %v1888 = vpop.f32.mrf.mxu0
      %v1889 = vadd.f32 %v1284, %v1888
      %v1890 = vpop.f32.mrf.mxu0
      %1891 = vmatprep.mubr.f32.mxu0 0.0
      %1892 = vmatmul.mubr.f32.gmra.mxu0 %v755
      %v1893 = vpop.f32.mrf.mxu0
      %v1894 = vadd.f32 %v1289, %v1893
      %v1895 = vpop.f32.mrf.mxu0
      %1896 = vmatprep.mubr.f32.mxu0 0.0
      %1897 = vmatmul.mubr.f32.gmra.mxu0 %v758
      %v1898 = vpop.f32.mrf.mxu0
      %v1899 = vadd.f32 %v1294, %v1898
      %v1900 = vpop.f32.mrf.mxu0
      %1901 = vmatprep.mubr.f32.mxu0 0.0
      %1902 = vmatmul.mubr.f32.gmra.mxu0 %v761
      %v1903 = vpop.f32.mrf.mxu0
      %v1904 = vadd.f32 %v1299, %v1903
      %v1905 = vpop.f32.mrf.mxu0
      %1906 = vmatprep.mubr.f32.mxu0 0.0
      %1907 = vmatmul.mubr.f32.gmra.mxu0 %v764
      %v1908 = vpop.f32.mrf.mxu0
      %v1909 = vadd.f32 %v1304, %v1908
      %v1910 = vpop.f32.mrf.mxu0
      %1911 = vmatprep.mubr.f32.mxu0 0.0
      %1912 = vmatmul.mubr.f32.gmra.mxu0 %v767
      %v1913 = vpop.f32.mrf.mxu0
      %v1914 = vadd.f32 %v1309, %v1913
      %v1915 = vpop.f32.mrf.mxu0
      %1916 = vmatprep.mubr.f32.mxu0 0.0
      %1917 = vmatmul.mubr.f32.gmra.mxu0 %v770
      %v1918 = vpop.f32.mrf.mxu0
      %v1919 = vadd.f32 %v1314, %v1918
      %v1920 = vpop.f32.mrf.mxu0
      %1921 = vmatprep.mubr.f32.mxu0 0.0
      %1922 = vmatmul.mubr.f32.gmra.mxu0 %v773
      %v1923 = vpop.f32.mrf.mxu0
      %v1924 = vadd.f32 %v1319, %v1923
      %v1925 = vpop.f32.mrf.mxu0
      %1926 = vmatprep.mubr.f32.mxu0 0.0
      %1927 = vmatmul.mubr.f32.gmra.mxu0 %v776
      %v1928 = vpop.f32.mrf.mxu0
      %v1929 = vadd.f32 %v1324, %v1928
      %v1930 = vpop.f32.mrf.mxu0
      %1931 = vmatprep.mubr.f32.mxu0 0.0
      %1932 = vmatmul.mubr.f32.gmra.mxu0 %v779
      %v1933 = vpop.f32.mrf.mxu0
      %v1934 = vadd.f32 %v1329, %v1933
      %v1935 = vpop.f32.mrf.mxu0
      %1936 = vmatprep.mubr.f32.mxu0 0.0
      %1937 = vmatmul.mubr.f32.gmra.mxu0 %v782
      %v1938 = vpop.f32.mrf.mxu0
      %v1939 = vadd.f32 %v1334, %v1938
      %v1940 = vpop.f32.mrf.mxu0
      %1941 = vmatprep.mubr.f32.mxu0 0.0
      %1942 = vmatmul.mubr.f32.gmra.mxu0 %v785
      %v1943 = vpop.f32.mrf.mxu0
      %v1944 = vadd.f32 %v1339, %v1943
      %v1945 = vpop.f32.mrf.mxu0
      %1946 = vmatprep.mubr.f32.mxu0 0.0
      %1947 = vmatmul.mubr.f32.gmra.mxu0 %v788
      %v1948 = vpop.f32.mrf.mxu0
      %v1949 = vadd.f32 %v1344, %v1948
      %v1950 = vpop.f32.mrf.mxu0
      %1951 = vmatprep.mubr.f32.mxu0 0.0
      %1952 = vmatmul.mubr.f32.gmra.mxu0 %v791
      %v1953 = vpop.f32.mrf.mxu0
      %v1954 = vadd.f32 %v1349, %v1953
      %v1955 = vpop.f32.mrf.mxu0
      %1956 = vmatprep.mubr.f32.mxu0 0.0
      %1957 = vmatmul.mubr.f32.gmra.mxu0 %v794
      %v1958 = vpop.f32.mrf.mxu0
      %v1959 = vadd.f32 %v1354, %v1958
      %v1960 = vpop.f32.mrf.mxu0
      %1961 = vmatprep.mubr.f32.mxu0 0.0
      %1962 = vmatmul.mubr.f32.gmra.mxu0 %v797
      %v1963 = vpop.f32.mrf.mxu0
      %v1964 = vadd.f32 %v1359, %v1963
      %v1965 = vpop.f32.mrf.mxu0
      %1966 = vmatprep.mubr.f32.mxu0 0.0
      %1967 = vmatmul.mubr.f32.gmra.mxu0 %v800
      %v1968 = vpop.f32.mrf.mxu0
      %v1969 = vadd.f32 %v1364, %v1968
      %v1970 = vpop.f32.mrf.mxu0
      %1971 = vmatprep.mubr.f32.mxu0 0.0
      %1972 = vmatmul.mubr.f32.gmra.mxu0 %v803
      %v1973 = vpop.f32.mrf.mxu0
      %v1974 = vadd.f32 %v1369, %v1973
      %v1975 = vpop.f32.mrf.mxu0
      %1976 = vmatprep.mubr.f32.mxu0 0.0
      %1977 = vmatmul.mubr.f32.gmra.mxu0 %v806
      %v1978 = vpop.f32.mrf.mxu0
      %v1979 = vadd.f32 %v1374, %v1978
      %v1980 = vpop.f32.mrf.mxu0
      %1981 = vmatprep.mubr.f32.mxu0 0.0
      %1982 = vmatmul.mubr.f32.gmra.mxu0 %v809
      %v1983 = vpop.f32.mrf.mxu0
      %v1984 = vadd.f32 %v1379, %v1983
      %v1985 = vpop.f32.mrf.mxu0
      %1986 = vmatprep.mubr.f32.mxu0 0.0
      %1987 = vmatmul.mubr.f32.gmra.mxu0 %v812
      %v1988 = vpop.f32.mrf.mxu0
      %v1989 = vadd.f32 %v1384, %v1988
      %v1990 = vpop.f32.mrf.mxu0
      %1991 = vmatprep.mubr.f32.mxu0 0.0
      %1992 = vmatmul.mubr.f32.gmra.mxu0 %v815
      %v1993 = vpop.f32.mrf.mxu0
      %v1994 = vadd.f32 %v1389, %v1993
      %v1995 = vpop.f32.mrf.mxu0
      %1996 = vmatprep.mubr.f32.mxu0 0.0
      %1997 = vmatmul.mubr.f32.gmra.mxu0 %v818
      %v1998 = vpop.f32.mrf.mxu0
      %v1999 = vadd.f32 %v1394, %v1998
      %v2000 = vpop.f32.mrf.mxu0
      %2001 = vmatprep.mubr.f32.mxu0 0.0
      %2002 = vmatmul.mubr.f32.gmra.mxu0 %v821
      %v2003 = vpop.f32.mrf.mxu0
      %v2004 = vadd.f32 %v1399, %v2003
      %v2005 = vpop.f32.mrf.mxu0
      %2006 = vmatprep.mubr.f32.mxu0 0.0
      %2007 = vmatmul.mubr.f32.gmra.mxu0 %v824
      %v2008 = vpop.f32.mrf.mxu0
      %v2009 = vadd.f32 %v1404, %v2008
      %v2010 = vpop.f32.mrf.mxu0
      %2011 = vmatprep.mubr.f32.mxu0 0.0
      %2012 = vmatmul.mubr.f32.gmra.mxu0 %v827
      %v2013 = vpop.f32.mrf.mxu0
      %v2014 = vadd.f32 %v1409, %v2013
      %v2015 = vpop.f32.mrf.mxu0
      %2016 = vmatprep.mubr.f32.mxu0 0.0
      %2017 = vmatmul.mubr.f32.gmra.mxu0 %v830
      %v2018 = vpop.f32.mrf.mxu0
      %v2019 = vadd.f32 %v1414, %v2018
      %v2020 = vpop.f32.mrf.mxu0
      %2021 = vmatprep.mubr.f32.mxu0 0.0
      %2022 = vmatmul.mubr.f32.gmra.mxu0 %v833
      %v2023 = vpop.f32.mrf.mxu0
      %v2024 = vadd.f32 %v1419, %v2023
      %v2025 = vpop.f32.mrf.mxu0
      %2026 = vmatprep.mubr.f32.mxu0 0.0
      %2027 = vmatmul.mubr.f32.gmra.mxu0 %v836
      %v2028 = vpop.f32.mrf.mxu0
      %v2029 = vadd.f32 %v1424, %v2028
      %v2030 = vpop.f32.mrf.mxu0
      %2031 = vmatprep.mubr.f32.mxu0 0.0
      %2032 = vmatmul.mubr.f32.gmra.mxu0 %v839
      %v2033 = vpop.f32.mrf.mxu0
      %v2034 = vadd.f32 %v1429, %v2033
      %v2035 = vpop.f32.mrf.mxu0
      %2036 = vmatprep.mubr.f32.mxu0 0.0
      %2037 = vmatmul.mubr.f32.gmra.mxu0 %v842
      %v2038 = vpop.f32.mrf.mxu0
      %v2039 = vadd.f32 %v1434, %v2038
      %v2040 = vpop.f32.mrf.mxu0
      %2041 = vmatprep.mubr.f32.mxu0 0.0
      %2042 = vmatmul.mubr.f32.gmra.mxu0 %v845
      %v2043 = vpop.f32.mrf.mxu0
      %v2044 = vadd.f32 %v1439, %v2043
      %v2045 = vpop.f32.mrf.mxu0
      %2046 = vmatprep.mubr.f32.mxu0 0.0
      %2047 = vmatmul.mubr.f32.gmra.mxu0 %v848
      %v2048 = vpop.f32.mrf.mxu0
      %v2049 = vadd.f32 %v1444, %v2048
      %v2050 = vpop.f32.mrf.mxu0
      %2051 = vmatprep.mubr.f32.mxu0 0.0
      %2052 = vmatmul.mubr.f32.gmra.mxu0 %v851
      %v2053 = vpop.f32.mrf.mxu0
      %v2054 = vadd.f32 %v1449, %v2053
      %v2055 = vpop.f32.mrf.mxu0
      %2056 = vmatprep.mubr.f32.mxu0 0.0
      %2057 = vmatmul.mubr.f32.gmra.mxu0 %v854
      %v2058 = vpop.f32.mrf.mxu0
      %v2059 = vadd.f32 %v1454, %v2058
      %v2060 = vpop.f32.mrf.mxu0
      %2061 = vmatprep.mubr.f32.mxu0 0.0
      %2062 = vmatmul.mubr.f32.gmra.mxu0 %v857
      %v2063 = vpop.f32.mrf.mxu0
      %v2064 = vadd.f32 %v1459, %v2063
      %v2065 = vpop.f32.mrf.mxu0
      %2066 = vmatprep.mubr.f32.mxu0 0.0
      %2067 = vmatmul.mubr.f32.gmra.mxu0 %v860
      %v2068 = vpop.f32.mrf.mxu0
      %v2069 = vadd.f32 %v1464, %v2068
      %v2070 = vpop.f32.mrf.mxu0
      %2071 = vdwg.mxu0
      %v2072 = vmax.f32 %v1534, %v1669
      %v2073 = vmax.f32 %v1539, %v1674
      %v2074 = vmax.f32 %v1544, %v1679
      %v2075 = vmax.f32 %v1549, %v1684
      %v2076 = vmax.f32 %v1554, %v1689
      %v2077 = vmax.f32 %v1559, %v1694
      %v2078 = vmax.f32 %v1564, %v1699
      %v2079 = vmax.f32 %v1569, %v1704
      %v2080 = vmax.f32 %v1574, %v1709
      %v2081 = vmax.f32 %v1579, %v1714
      %v2082 = vmax.f32 %v1584, %v1719
      %v2083 = vmax.f32 %v1589, %v1724
      %v2084 = vmax.f32 %v1594, %v1729
      %v2085 = vmax.f32 %v1599, %v1734
      %v2086 = vmax.f32 %v1604, %v1739
      %v2087 = vmax.f32 %v1609, %v1744
      %v2088 = vmax.f32 %v1614, %v1749
      %v2089 = vmax.f32 %v1619, %v1754
      %v2090 = vmax.f32 %v1624, %v1759
      %v2091 = vmax.f32 %v1629, %v1764
      %v2092 = vmax.f32 %v1634, %v1769
      %v2093 = vmax.f32 %v1639, %v1774
      %v2094 = vmax.f32 %v1644, %v1779
      %v2095 = vmax.f32 %v1649, %v1784
      %v2096 = vmax.f32 %v1654, %v1789
      %v2097 = vmax.f32 %v1659, %v1794
      %v2098 = vmax.f32 %v1664, %v1799
      %v2099 = vmax.f32 %v1804, %v1939
      %v2100 = vmax.f32 %v1809, %v1944
      %v2101 = vmax.f32 %v1814, %v1949
      %v2102 = vmax.f32 %v1819, %v1954
      %v2103 = vmax.f32 %v1824, %v1959
      %v2104 = vmax.f32 %v1829, %v1964
      %v2105 = vmax.f32 %v1834, %v1969
      %v2106 = vmax.f32 %v1839, %v1974
      %v2107 = vmax.f32 %v1844, %v1979
      %v2108 = vmax.f32 %v1849, %v1984
      %v2109 = vmax.f32 %v1854, %v1989
      %v2110 = vmax.f32 %v1859, %v1994
      %v2111 = vmax.f32 %v1864, %v1999
      %v2112 = vmax.f32 %v1869, %v2004
      %v2113 = vmax.f32 %v1874, %v2009
      %v2114 = vmax.f32 %v1879, %v2014
      %v2115 = vmax.f32 %v1884, %v2019
      %v2116 = vmax.f32 %v1889, %v2024
      %v2117 = vmax.f32 %v1894, %v2029
      %v2118 = vmax.f32 %v1899, %v2034
      %v2119 = vmax.f32 %v1904, %v2039
      %v2120 = vmax.f32 %v1909, %v2044
      %v2121 = vmax.f32 %v1914, %v2049
      %v2122 = vmax.f32 %v1919, %v2054
      %v2123 = vmax.f32 %v1924, %v2059
      %v2124 = vmax.f32 %v1929, %v2064
      %v2125 = vmax.f32 %v1934, %v2069
      %v2126 = vmax.f32 %v2072, %v2099
      %v2127 = vmax.f32 %v2073, %v2100
      %v2128 = vmax.f32 %v2074, %v2101
      %v2129 = vmax.f32 %v2075, %v2102
      %v2130 = vmax.f32 %v2076, %v2103
      %v2131 = vmax.f32 %v2077, %v2104
      %v2132 = vmax.f32 %v2078, %v2105
      %v2133 = vmax.f32 %v2079, %v2106
      %v2134 = vmax.f32 %v2080, %v2107
      %v2135 = vmax.f32 %v2081, %v2108
      %v2136 = vmax.f32 %v2082, %v2109
      %v2137 = vmax.f32 %v2083, %v2110
      %v2138 = vmax.f32 %v2084, %v2111
      %v2139 = vmax.f32 %v2085, %v2112
      %v2140 = vmax.f32 %v2086, %v2113
      %v2141 = vmax.f32 %v2087, %v2114
      %v2142 = vmax.f32 %v2088, %v2115
      %v2143 = vmax.f32 %v2089, %v2116
      %v2144 = vmax.f32 %v2090, %v2117
      %v2145 = vmax.f32 %v2091, %v2118
      %v2146 = vmax.f32 %v2092, %v2119
      %v2147 = vmax.f32 %v2093, %v2120
      %v2148 = vmax.f32 %v2094, %v2121
      %v2149 = vmax.f32 %v2095, %v2122
      %v2150 = vmax.f32 %v2096, %v2123
      %v2151 = vmax.f32 %v2097, %v2124
      %v2152 = vmax.f32 %v2098, %v2125
      %v2153 = vld [vmem:[%s2] sm:$0x1]
      %v2155 = vlaneseq
      %v2156 = vshrl.u32 %v2155, 7
      %v2157 = vsub.s32 0, %v2156
      %v2158 = vrot.slane %v2153, %v2157
      %v2160 = vadd.f32 %v2126, %v2158
      %v2161 = vadd.f32 %v2127, %v2158
      %v2162 = vadd.f32 %v2128, %v2158
      %v2163 = vadd.f32 %v2129, %v2158
      %v2164 = vadd.f32 %v2130, %v2158
      %v2165 = vadd.f32 %v2131, %v2158
      %v2166 = vadd.f32 %v2132, %v2158
      %v2167 = vadd.f32 %v2133, %v2158
      %v2168 = vadd.f32 %v2134, %v2158
      %v2169 = vadd.f32 %v2135, %v2158
      %v2170 = vadd.f32 %v2136, %v2158
      %v2171 = vadd.f32 %v2137, %v2158
      %v2172 = vadd.f32 %v2138, %v2158
      %v2173 = vadd.f32 %v2139, %v2158
      %v2174 = vadd.f32 %v2140, %v2158
      %v2175 = vadd.f32 %v2141, %v2158
      %v2176 = vadd.f32 %v2142, %v2158
      %v2177 = vadd.f32 %v2143, %v2158
      %v2178 = vadd.f32 %v2144, %v2158
      %v2179 = vadd.f32 %v2145, %v2158
      %v2180 = vadd.f32 %v2146, %v2158
      %v2181 = vadd.f32 %v2147, %v2158
      %v2182 = vadd.f32 %v2148, %v2158
      %v2183 = vadd.f32 %v2149, %v2158
      %v2184 = vadd.f32 %v2150, %v2158
      %v2185 = vadd.f32 %v2151, %v2158
      %v2186 = vadd.f32 %v2152, %v2158
      %v2187 = vmax.f32 %v2160, 0.0
      %v2188 = vmax.f32 %v2161, 0.0
      %v2189 = vmax.f32 %v2162, 0.0
      %v2190 = vmax.f32 %v2163, 0.0
      %v2191 = vmax.f32 %v2164, 0.0
      %v2192 = vmax.f32 %v2165, 0.0
      %v2193 = vmax.f32 %v2166, 0.0
      %v2194 = vmax.f32 %v2167, 0.0
      %v2195 = vmax.f32 %v2168, 0.0
      %v2196 = vmax.f32 %v2169, 0.0
      %v2197 = vmax.f32 %v2170, 0.0
      %v2198 = vmax.f32 %v2171, 0.0
      %v2199 = vmax.f32 %v2172, 0.0
      %v2200 = vmax.f32 %v2173, 0.0
      %v2201 = vmax.f32 %v2174, 0.0
      %v2202 = vmax.f32 %v2175, 0.0
      %v2203 = vmax.f32 %v2176, 0.0
      %v2204 = vmax.f32 %v2177, 0.0
      %v2205 = vmax.f32 %v2178, 0.0
      %v2206 = vmax.f32 %v2179, 0.0
      %v2207 = vmax.f32 %v2180, 0.0
      %v2208 = vmax.f32 %v2181, 0.0
      %v2209 = vmax.f32 %v2182, 0.0
      %v2210 = vmax.f32 %v2183, 0.0
      %v2211 = vmax.f32 %v2184, 0.0
      %v2212 = vmax.f32 %v2185, 0.0
      %v2213 = vmax.f32 %v2186, 0.0
      %vm2214 = vcmask 523264
      %2215 = vst.msk [vmem:[%s175] sm:$0xff] %vm2214, %v2187
      %2216 = vst.msk [vmem:[%s175 + $0x8] sm:$0xff] %vm2214, %v2188
      %2217 = vst.msk [vmem:[%s175 + $0x10] sm:$0xff] %vm2214, %v2189
      %2218 = vst.msk [vmem:[%s175 + $0x18] sm:$0xff] %vm2214, %v2190
      %2219 = vst.msk [vmem:[%s175 + $0x20] sm:$0xff] %vm2214, %v2191
      %2220 = vst.msk [vmem:[%s175 + $0x28] sm:$0xff] %vm2214, %v2192
      %2221 = vst.msk [vmem:[%s175 + $0x30] sm:$0xff] %vm2214, %v2193
      %2222 = vst.msk [vmem:[%s175 + $0x38] sm:$0xff] %vm2214, %v2194
      %2223 = vst.msk [vmem:[%s175 + $0x40] sm:$0xff] %vm2214, %v2195
      %2224 = vst.msk [vmem:[%s175 + $0x48] sm:$0xff] %vm2214, %v2196
      %2225 = vst.msk [vmem:[%s175 + $0x50] sm:$0xff] %vm2214, %v2197
      %2226 = vst.msk [vmem:[%s175 + $0x58] sm:$0xff] %vm2214, %v2198
      %2227 = vst.msk [vmem:[%s175 + $0x60] sm:$0xff] %vm2214, %v2199
      %2228 = vst.msk [vmem:[%s175 + $0x68] sm:$0xff] %vm2214, %v2200
      %2229 = vst.msk [vmem:[%s175 + $0x70] sm:$0xff] %vm2214, %v2201
      %2230 = vst.msk [vmem:[%s175 + $0x78] sm:$0xff] %vm2214, %v2202
      %2231 = vst.msk [vmem:[%s175 + $0x80] sm:$0xff] %vm2214, %v2203
      %2232 = vst.msk [vmem:[%s175 + $0x88] sm:$0xff] %vm2214, %v2204
      %2233 = vst.msk [vmem:[%s175 + $0x90] sm:$0xff] %vm2214, %v2205
      %2234 = vst.msk [vmem:[%s175 + $0x98] sm:$0xff] %vm2214, %v2206
      %2235 = vst.msk [vmem:[%s175 + $0xa0] sm:$0xff] %vm2214, %v2207
      %2236 = vst.msk [vmem:[%s175 + $0xa8] sm:$0xff] %vm2214, %v2208
      %2237 = vst.msk [vmem:[%s175 + $0xb0] sm:$0xff] %vm2214, %v2209
      %2238 = vst.msk [vmem:[%s175 + $0xb8] sm:$0xff] %vm2214, %v2210
      %2239 = vst.msk [vmem:[%s175 + $0xc0] sm:$0xff] %vm2214, %v2211
      %2240 = vst.msk [vmem:[%s175 + $0xc8] sm:$0xff] %vm2214, %v2212
      %2241 = vst.msk [vmem:[%s175 + $0xd0] sm:$0xff] %vm2214, %v2213
      %s2242 = smul.u32 27, %s14
      %p2243 = scmp.lt.s32.totalorder %s2242, 53
      %s2244 = scalar_select %p2243, %s2242, 53
      %s2245 = smul.addr %s2244, 8
      %s2246 = scalar_lea.vmem %s3, %s2245
      // Predicated region
      $region33: #{my_cnn_and_gnn2_forward.4} parent=31 // pred_check
        %p2247 = pneg %p100
      $region34: #{my_cnn_and_gnn2_forward.4} parent=31 // pred_check_branch
        %2249 = sbr.rel (%p2247) target = $region36
      $region35: #{my_cnn_and_gnn2_forward.4} parent=31 // pred_region
        %s2250 = smul.u32 27, %s14
      $region36: #{my_cnn_and_gnn2_forward.4} parent=31 // pred_fallthru
        _
    $region32: #{my_cnn_and_gnn2_forward.4} parent=5 // pred_fallthru
      _
    %p2251 = scmp.le.s32.totalorder 2, %s9
    // Predicated region
    $region37: #{my_cnn_and_gnn2_forward.4} parent=5 // pred_check
      %p2252 = pneg %p2251
    $region38: #{my_cnn_and_gnn2_forward.4} parent=5 // pred_check_branch
      %2254 = sbr.rel (%p2252) target = $region40
    $region39: #{my_cnn_and_gnn2_forward.4} parent=5 // pred_region
      %s2255 = ssub.s32 %s9, 2
      // Predicated region
      $region41: #{my_cnn_and_gnn2_forward.4} parent=39 // pred_check
        %p2256 = pneg %p106
      $region42: #{my_cnn_and_gnn2_forward.4} parent=39 // pred_check_branch
        %2258 = sbr.rel (%p2256) target = $region44
      $region43: #{my_cnn_and_gnn2_forward.4} parent=39 // pred_region
        %s2259 = smul.u32 27, %s15
        %p2260 = scmp.lt.s32.totalorder %s2259, 53
        %s2261 = scalar_select %p2260, %s2259, 53
        %s2262 = smul.addr %s2261, 8
        %s2263 = scalar_lea.vmem %s3, %s2262
      $region44: #{my_cnn_and_gnn2_forward.4} parent=39 // pred_fallthru
        _
    $region40: #{my_cnn_and_gnn2_forward.4} parent=5 // pred_fallthru
      _
  $region6: #{my_cnn_and_gnn2_forward.4} parent=0 // loop_footer
    %s13 = sadd.s32 1, %s9
  $region7: #{my_cnn_and_gnn2_forward.4} parent=0 // loop_footer_branch
    %8 = sbr.rel target = $region3
  $region8: #{my_cnn_and_gnn2_forward.4} parent=0 // loop_exit
    _

// kernel: my_cnn_and_gnn2_forward.5
$region0: #{my_cnn_and_gnn2_forward.5}
  #allocation0 [shape = 'u32[]', space=smem, size = 0x4, offset = 0x4, fixed_abs, tag = 'smem constant byte address 0x4 - core index']
  #allocation1 [shape = 'u32[144,128]{1,0:T(1,128)}', space=vmem, size = 0x12000, scoped, tag = 'internal scratch']
  %s0 = inlined_call_operand.vmem [shape: f32[8,3456], index: 0, kind: input, shape index: {}]
  %s1 = inlined_call_operand.vmem [shape: f32[8,10], index: 1, kind: input, shape index: {}]
  %s2 = inlined_call_operand.vmem [shape: f32[8,8], index: 2, kind: input, shape index: {}]
  %s3 = inlined_call_operand.vmem [shape: bf16[3456,246], index: 3, kind: input, shape index: {}]
  %s4 = inlined_call_operand.vmem [shape: f32[1,246], index: 4, kind: input, shape index: {}]
  %s5 = inlined_call_operand.vmem [shape: f32[246,256], index: 5, kind: input, shape index: {}]
  %s6 = inlined_call_operand.vmem [shape: f32[10,256], index: 6, kind: input, shape index: {}]
  %s7 = inlined_call_operand.vmem [shape: f32[1,256], index: 7, kind: input, shape index: {}]
  %s8 = inlined_call_operand.vmem [shape: f32[256,256], index: 8, kind: input, shape index: {}]
  %s9 = inlined_call_operand.vmem [shape: f32[1,256], index: 9, kind: input, shape index: {}]
  %s10 = inlined_call_operand.vmem [shape: f32[256,128], index: 10, kind: input, shape index: {}]
  %s11 = inlined_call_operand.vmem [shape: f32[246,128], index: 11, kind: input, shape index: {}]
  %s12 = inlined_call_operand.vmem [shape: f32[10,128], index: 12, kind: input, shape index: {}]
  %s13 = inlined_call_operand.vmem [shape: f32[1,128], index: 13, kind: input, shape index: {}]
  %s14 = inlined_call_operand.vmem [shape: f32[128,8], index: 14, kind: input, shape index: {}]
  %s15 = inlined_call_operand.vmem [shape: f32[1,8], index: 15, kind: input, shape index: {}]
  %s16 = inlined_call_operand.vmem [shape: f32[8,8], index: 16, kind: output, shape index: {}]
  %s17 = sld [smem:[#allocation0]]
  $region74: #{my_cnn_and_gnn2_forward.5} parent=0
    _
  %s19 = ssub.s32 1, %s17
  %s20 = scalar_select 0, %s19, %s17
  // Predicated region
  $region2: #{my_cnn_and_gnn2_forward.5} parent=0 // pred_check
    _
  $region3: #{my_cnn_and_gnn2_forward.5} parent=0 // pred_check_branch
    %22 = sbr.rel (0) target = $region5
  $region4: #{my_cnn_and_gnn2_forward.5} parent=0 // pred_region
    _
  $region5: #{my_cnn_and_gnn2_forward.5} parent=0 // pred_fallthru
    _
  // Predicated region
  $region6: #{my_cnn_and_gnn2_forward.5} parent=0 // pred_check
    _
  $region7: #{my_cnn_and_gnn2_forward.5} parent=0 // pred_check_branch
    %24 = sbr.rel (0) target = $region9
  $region8: #{my_cnn_and_gnn2_forward.5} parent=0 // pred_region
    _
  $region9: #{my_cnn_and_gnn2_forward.5} parent=0 // pred_fallthru
    _
  // Predicated region
  $region10: #{my_cnn_and_gnn2_forward.5} parent=0 // pred_check
    _
  $region11: #{my_cnn_and_gnn2_forward.5} parent=0 // pred_check_branch
    %26 = sbr.rel (0) target = $region13
  $region12: #{my_cnn_and_gnn2_forward.5} parent=0 // pred_region
    _
  $region13: #{my_cnn_and_gnn2_forward.5} parent=0 // pred_fallthru
    _
  // Predicated region
  $region14: #{my_cnn_and_gnn2_forward.5} parent=0 // pred_check
    _
  $region15: #{my_cnn_and_gnn2_forward.5} parent=0 // pred_check_branch
    %28 = sbr.rel (0) target = $region17
  $region16: #{my_cnn_and_gnn2_forward.5} parent=0 // pred_region
    _
  $region17: #{my_cnn_and_gnn2_forward.5} parent=0 // pred_fallthru
    _
  // Predicated region
  $region18: #{my_cnn_and_gnn2_forward.5} parent=0 // pred_check
    _
  $region19: #{my_cnn_and_gnn2_forward.5} parent=0 // pred_check_branch
    %30 = sbr.rel (0) target = $region21
  $region20: #{my_cnn_and_gnn2_forward.5} parent=0 // pred_region
    _
  $region21: #{my_cnn_and_gnn2_forward.5} parent=0 // pred_fallthru
    _
  // Predicated region
  $region22: #{my_cnn_and_gnn2_forward.5} parent=0 // pred_check
    _
  $region23: #{my_cnn_and_gnn2_forward.5} parent=0 // pred_check_branch
    %32 = sbr.rel (0) target = $region25
  $region24: #{my_cnn_and_gnn2_forward.5} parent=0 // pred_region
    _
  $region25: #{my_cnn_and_gnn2_forward.5} parent=0 // pred_fallthru
    _
  // Predicated region
  $region26: #{my_cnn_and_gnn2_forward.5} parent=0 // pred_check
    _
  $region27: #{my_cnn_and_gnn2_forward.5} parent=0 // pred_check_branch
    %34 = sbr.rel (0) target = $region29
  $region28: #{my_cnn_and_gnn2_forward.5} parent=0 // pred_region
    _
  $region29: #{my_cnn_and_gnn2_forward.5} parent=0 // pred_fallthru
    _
  // Predicated region
  $region30: #{my_cnn_and_gnn2_forward.5} parent=0 // pred_check
    _
  $region31: #{my_cnn_and_gnn2_forward.5} parent=0 // pred_check_branch
    %36 = sbr.rel (0) target = $region33
  $region32: #{my_cnn_and_gnn2_forward.5} parent=0 // pred_region
    _
  $region33: #{my_cnn_and_gnn2_forward.5} parent=0 // pred_fallthru
    _
  // Predicated region
  $region34: #{my_cnn_and_gnn2_forward.5} parent=0 // pred_check
    _
  $region35: #{my_cnn_and_gnn2_forward.5} parent=0 // pred_check_branch
    %38 = sbr.rel (0) target = $region37
  $region36: #{my_cnn_and_gnn2_forward.5} parent=0 // pred_region
    _
  $region37: #{my_cnn_and_gnn2_forward.5} parent=0 // pred_fallthru
    _
  // Predicated region
  $region38: #{my_cnn_and_gnn2_forward.5} parent=0 // pred_check
    _
  $region39: #{my_cnn_and_gnn2_forward.5} parent=0 // pred_check_branch
    %40 = sbr.rel (0) target = $region41
  $region40: #{my_cnn_and_gnn2_forward.5} parent=0 // pred_region
    _
  $region41: #{my_cnn_and_gnn2_forward.5} parent=0 // pred_fallthru
    _
  // Predicated region
  $region42: #{my_cnn_and_gnn2_forward.5} parent=0 // pred_check
    _
  $region43: #{my_cnn_and_gnn2_forward.5} parent=0 // pred_check_branch
    %42 = sbr.rel (0) target = $region45
  $region44: #{my_cnn_and_gnn2_forward.5} parent=0 // pred_region
    _
  $region45: #{my_cnn_and_gnn2_forward.5} parent=0 // pred_fallthru
    _
  // Predicated region
  $region46: #{my_cnn_and_gnn2_forward.5} parent=0 // pred_check
    _
  $region47: #{my_cnn_and_gnn2_forward.5} parent=0 // pred_check_branch
    %44 = sbr.rel (0) target = $region49
  $region48: #{my_cnn_and_gnn2_forward.5} parent=0 // pred_region
    _
  $region49: #{my_cnn_and_gnn2_forward.5} parent=0 // pred_fallthru
    _
  // Predicated region
  $region50: #{my_cnn_and_gnn2_forward.5} parent=0 // pred_check
    _
  $region51: #{my_cnn_and_gnn2_forward.5} parent=0 // pred_check_branch
    %46 = sbr.rel (0) target = $region53
  $region52: #{my_cnn_and_gnn2_forward.5} parent=0 // pred_region
    _
  $region53: #{my_cnn_and_gnn2_forward.5} parent=0 // pred_fallthru
    _
  // Predicated region
  $region54: #{my_cnn_and_gnn2_forward.5} parent=0 // pred_check
    _
  $region55: #{my_cnn_and_gnn2_forward.5} parent=0 // pred_check_branch
    %48 = sbr.rel (0) target = $region57
  $region56: #{my_cnn_and_gnn2_forward.5} parent=0 // pred_region
    _
  $region57: #{my_cnn_and_gnn2_forward.5} parent=0 // pred_fallthru
    _
  // Predicated region
  $region58: #{my_cnn_and_gnn2_forward.5} parent=0 // pred_check
    _
  $region59: #{my_cnn_and_gnn2_forward.5} parent=0 // pred_check_branch
    %50 = sbr.rel (0) target = $region61
  $region60: #{my_cnn_and_gnn2_forward.5} parent=0 // pred_region
    _
  $region61: #{my_cnn_and_gnn2_forward.5} parent=0 // pred_fallthru
    _
  // Predicated region
  $region62: #{my_cnn_and_gnn2_forward.5} parent=0 // pred_check
    _
  $region63: #{my_cnn_and_gnn2_forward.5} parent=0 // pred_check_branch
    %52 = sbr.rel (0) target = $region65
  $region64: #{my_cnn_and_gnn2_forward.5} parent=0 // pred_region
    _
  $region65: #{my_cnn_and_gnn2_forward.5} parent=0 // pred_fallthru
    _
  %v54 = vld [vmem:[%s0] sm:$0xff]
  %v55 = vld [vmem:[%s0 + $0x8] sm:$0xff]
  %v56 = vld [vmem:[%s0 + $0x10] sm:$0xff]
  %v57 = vld [vmem:[%s0 + $0x18] sm:$0xff]
  %v58 = vld [vmem:[%s0 + $0x20] sm:$0xff]
  %v59 = vld [vmem:[%s0 + $0x28] sm:$0xff]
  %v60 = vld [vmem:[%s0 + $0x30] sm:$0xff]
  %v61 = vld [vmem:[%s0 + $0x38] sm:$0xff]
  %v62 = vld [vmem:[%s0 + $0x40] sm:$0xff]
  %v63 = vld [vmem:[%s0 + $0x48] sm:$0xff]
  %v64 = vld [vmem:[%s0 + $0x50] sm:$0xff]
  %v65 = vld [vmem:[%s0 + $0x58] sm:$0xff]
  %v66 = vld [vmem:[%s0 + $0x60] sm:$0xff]
  %v67 = vld [vmem:[%s0 + $0x68] sm:$0xff]
  %v68 = vld [vmem:[%s0 + $0x70] sm:$0xff]
  %v69 = vld [vmem:[%s0 + $0x78] sm:$0xff]
  %v70 = vld [vmem:[%s0 + $0x80] sm:$0xff]
  %v71 = vld [vmem:[%s0 + $0x88] sm:$0xff]
  %v72 = vld [vmem:[%s0 + $0x90] sm:$0xff]
  %v73 = vld [vmem:[%s0 + $0x98] sm:$0xff]
  %v74 = vld [vmem:[%s0 + $0xa0] sm:$0xff]
  %v75 = vld [vmem:[%s0 + $0xa8] sm:$0xff]
  %v76 = vld [vmem:[%s0 + $0xb0] sm:$0xff]
  %v77 = vld [vmem:[%s0 + $0xb8] sm:$0xff]
  %v78 = vld [vmem:[%s0 + $0xc0] sm:$0xff]
  %v79 = vld [vmem:[%s0 + $0xc8] sm:$0xff]
  %v80 = vld [vmem:[%s0 + $0xd0] sm:$0xff]
  %v81 = vpack.c.bf16 %v54, %v54
  %v82 = vpack.c.bf16 %v55, %v55
  %v83 = vpack.c.bf16 %v56, %v56
  %v84 = vpack.c.bf16 %v57, %v57
  %v85 = vpack.c.bf16 %v58, %v58
  %v86 = vpack.c.bf16 %v59, %v59
  %v87 = vpack.c.bf16 %v60, %v60
  %v88 = vpack.c.bf16 %v61, %v61
  %v89 = vpack.c.bf16 %v62, %v62
  %v90 = vpack.c.bf16 %v63, %v63
  %v91 = vpack.c.bf16 %v64, %v64
  %v92 = vpack.c.bf16 %v65, %v65
  %v93 = vpack.c.bf16 %v66, %v66
  %v94 = vpack.c.bf16 %v67, %v67
  %v95 = vpack.c.bf16 %v68, %v68
  %v96 = vpack.c.bf16 %v69, %v69
  %v97 = vpack.c.bf16 %v70, %v70
  %v98 = vpack.c.bf16 %v71, %v71
  %v99 = vpack.c.bf16 %v72, %v72
  %v100 = vpack.c.bf16 %v73, %v73
  %v101 = vpack.c.bf16 %v74, %v74
  %v102 = vpack.c.bf16 %v75, %v75
  %v103 = vpack.c.bf16 %v76, %v76
  %v104 = vpack.c.bf16 %v77, %v77
  %v105 = vpack.c.bf16 %v78, %v78
  %v106 = vpack.c.bf16 %v79, %v79
  %v107 = vpack.c.bf16 %v80, %v80
  %v108 = vld [vmem:[%s3] sm:$0xff]
  %v109 = vld [vmem:[%s3 + $0x8] sm:$0xff]
  %v110 = vld [vmem:[%s3 + $0x10] sm:$0xff]
  %v111 = vld [vmem:[%s3 + $0x18] sm:$0xff]
  %v112 = vld [vmem:[%s3 + $0x20] sm:$0xff]
  %v113 = vld [vmem:[%s3 + $0x28] sm:$0xff]
  %v114 = vld [vmem:[%s3 + $0x30] sm:$0xff]
  %v115 = vld [vmem:[%s3 + $0x38] sm:$0xff]
  %v116 = vld [vmem:[%s3 + $0x40] sm:$0xff]
  %v117 = vld [vmem:[%s3 + $0x48] sm:$0xff]
  %v118 = vld [vmem:[%s3 + $0x50] sm:$0xff]
  %v119 = vld [vmem:[%s3 + $0x58] sm:$0xff]
  %v120 = vld [vmem:[%s3 + $0x60] sm:$0xff]
  %v121 = vld [vmem:[%s3 + $0x68] sm:$0xff]
  %v122 = vld [vmem:[%s3 + $0x70] sm:$0xff]
  %v123 = vld [vmem:[%s3 + $0x78] sm:$0xff]
  %v124 = vld [vmem:[%s3 + $0x80] sm:$0xff]
  %v125 = vld [vmem:[%s3 + $0x88] sm:$0xff]
  %v126 = vld [vmem:[%s3 + $0x90] sm:$0xff]
  %v127 = vld [vmem:[%s3 + $0x98] sm:$0xff]
  %v128 = vld [vmem:[%s3 + $0xa0] sm:$0xff]
  %v129 = vld [vmem:[%s3 + $0xa8] sm:$0xff]
  %v130 = vld [vmem:[%s3 + $0xb0] sm:$0xff]
  %v131 = vld [vmem:[%s3 + $0xb8] sm:$0xff]
  %v132 = vld [vmem:[%s3 + $0xc0] sm:$0xff]
  %v133 = vld [vmem:[%s3 + $0xc8] sm:$0xff]
  %v134 = vld [vmem:[%s3 + $0xd0] sm:$0xff]
  %v135 = vld [vmem:[%s3 + $0xd8] sm:$0xff]
  %v136 = vld [vmem:[%s3 + $0xe0] sm:$0xff]
  %v137 = vld [vmem:[%s3 + $0xe8] sm:$0xff]
  %v138 = vld [vmem:[%s3 + $0xf0] sm:$0xff]
  %v139 = vld [vmem:[%s3 + $0xf8] sm:$0xff]
  %v140 = vld [vmem:[%s3 + $0x100] sm:$0xff]
  %v141 = vld [vmem:[%s3 + $0x108] sm:$0xff]
  %v142 = vld [vmem:[%s3 + $0x110] sm:$0xff]
  %v143 = vld [vmem:[%s3 + $0x118] sm:$0xff]
  %v144 = vld [vmem:[%s3 + $0x120] sm:$0xff]
  %v145 = vld [vmem:[%s3 + $0x128] sm:$0xff]
  %v146 = vld [vmem:[%s3 + $0x130] sm:$0xff]
  %v147 = vld [vmem:[%s3 + $0x138] sm:$0xff]
  %v148 = vld [vmem:[%s3 + $0x140] sm:$0xff]
  %v149 = vld [vmem:[%s3 + $0x148] sm:$0xff]
  %v150 = vld [vmem:[%s3 + $0x150] sm:$0xff]
  %v151 = vld [vmem:[%s3 + $0x158] sm:$0xff]
  %v152 = vld [vmem:[%s3 + $0x160] sm:$0xff]
  %v153 = vld [vmem:[%s3 + $0x168] sm:$0xff]
  %v154 = vld [vmem:[%s3 + $0x170] sm:$0xff]
  %v155 = vld [vmem:[%s3 + $0x178] sm:$0xff]
  %v156 = vld [vmem:[%s3 + $0x180] sm:$0xff]
  %v157 = vld [vmem:[%s3 + $0x188] sm:$0xff]
  %v158 = vld [vmem:[%s3 + $0x190] sm:$0xff]
  %v159 = vld [vmem:[%s3 + $0x198] sm:$0xff]
  %v160 = vld [vmem:[%s3 + $0x1a0] sm:$0xff]
  %v161 = vld [vmem:[%s3 + $0x1a8] sm:$0xff]
  %v162 = vld [vmem:[%s3 + $0x1b0] sm:$0xff]
  %v163 = vld [vmem:[%s3 + $0x1b8] sm:$0xff]
  %v164 = vld [vmem:[%s3 + $0x1c0] sm:$0xff]
  %v165 = vld [vmem:[%s3 + $0x1c8] sm:$0xff]
  %v166 = vld [vmem:[%s3 + $0x1d0] sm:$0xff]
  %v167 = vld [vmem:[%s3 + $0x1d8] sm:$0xff]
  %v168 = vld [vmem:[%s3 + $0x1e0] sm:$0xff]
  %v169 = vld [vmem:[%s3 + $0x1e8] sm:$0xff]
  %v170 = vld [vmem:[%s3 + $0x1f0] sm:$0xff]
  %v171 = vld [vmem:[%s3 + $0x1f8] sm:$0xff]
  %v172 = vld [vmem:[%s3 + $0x200] sm:$0xff]
  %v173 = vld [vmem:[%s3 + $0x208] sm:$0xff]
  %v174 = vld [vmem:[%s3 + $0x210] sm:$0xff]
  %v175 = vld [vmem:[%s3 + $0x218] sm:$0xff]
  %v176 = vld [vmem:[%s3 + $0x220] sm:$0xff]
  %v177 = vld [vmem:[%s3 + $0x228] sm:$0xff]
  %v178 = vld [vmem:[%s3 + $0x230] sm:$0xff]
  %v179 = vld [vmem:[%s3 + $0x238] sm:$0xff]
  %v180 = vld [vmem:[%s3 + $0x240] sm:$0xff]
  %v181 = vld [vmem:[%s3 + $0x248] sm:$0xff]
  %v182 = vld [vmem:[%s3 + $0x250] sm:$0xff]
  %v183 = vld [vmem:[%s3 + $0x258] sm:$0xff]
  %v184 = vld [vmem:[%s3 + $0x260] sm:$0xff]
  %v185 = vld [vmem:[%s3 + $0x268] sm:$0xff]
  %v186 = vld [vmem:[%s3 + $0x270] sm:$0xff]
  %v187 = vld [vmem:[%s3 + $0x278] sm:$0xff]
  %v188 = vld [vmem:[%s3 + $0x280] sm:$0xff]
  %v189 = vld [vmem:[%s3 + $0x288] sm:$0xff]
  %v190 = vld [vmem:[%s3 + $0x290] sm:$0xff]
  %v191 = vld [vmem:[%s3 + $0x298] sm:$0xff]
  %v192 = vld [vmem:[%s3 + $0x2a0] sm:$0xff]
  %v193 = vld [vmem:[%s3 + $0x2a8] sm:$0xff]
  %v194 = vld [vmem:[%s3 + $0x2b0] sm:$0xff]
  %v195 = vld [vmem:[%s3 + $0x2b8] sm:$0xff]
  %v196 = vld [vmem:[%s3 + $0x2c0] sm:$0xff]
  %v197 = vld [vmem:[%s3 + $0x2c8] sm:$0xff]
  %v198 = vld [vmem:[%s3 + $0x2d0] sm:$0xff]
  %v199 = vld [vmem:[%s3 + $0x2d8] sm:$0xff]
  %v200 = vld [vmem:[%s3 + $0x2e0] sm:$0xff]
  %v201 = vld [vmem:[%s3 + $0x2e8] sm:$0xff]
  %v202 = vld [vmem:[%s3 + $0x2f0] sm:$0xff]
  %v203 = vld [vmem:[%s3 + $0x2f8] sm:$0xff]
  %v204 = vld [vmem:[%s3 + $0x300] sm:$0xff]
  %v205 = vld [vmem:[%s3 + $0x308] sm:$0xff]
  %v206 = vld [vmem:[%s3 + $0x310] sm:$0xff]
  %v207 = vld [vmem:[%s3 + $0x318] sm:$0xff]
  %v208 = vld [vmem:[%s3 + $0x320] sm:$0xff]
  %v209 = vld [vmem:[%s3 + $0x328] sm:$0xff]
  %v210 = vld [vmem:[%s3 + $0x330] sm:$0xff]
  %v211 = vld [vmem:[%s3 + $0x338] sm:$0xff]
  %v212 = vld [vmem:[%s3 + $0x340] sm:$0xff]
  %v213 = vld [vmem:[%s3 + $0x348] sm:$0xff]
  %v214 = vld [vmem:[%s3 + $0x350] sm:$0xff]
  %v215 = vld [vmem:[%s3 + $0x358] sm:$0xff]
  %v216 = vld [vmem:[%s3 + $0x360] sm:$0xff]
  %v217 = vld [vmem:[%s3 + $0x368] sm:$0xff]
  %v218 = vld [vmem:[%s3 + $0x370] sm:$0xff]
  %v219 = vld [vmem:[%s3 + $0x378] sm:$0xff]
  %v220 = vld [vmem:[%s3 + $0x380] sm:$0xff]
  %v221 = vld [vmem:[%s3 + $0x388] sm:$0xff]
  %v222 = vld [vmem:[%s3 + $0x390] sm:$0xff]
  %v223 = vld [vmem:[%s3 + $0x398] sm:$0xff]
  %v224 = vld [vmem:[%s3 + $0x3a0] sm:$0xff]
  %v225 = vld [vmem:[%s3 + $0x3a8] sm:$0xff]
  %v226 = vld [vmem:[%s3 + $0x3b0] sm:$0xff]
  %v227 = vld [vmem:[%s3 + $0x3b8] sm:$0xff]
  %v228 = vld [vmem:[%s3 + $0x3c0] sm:$0xff]
  %v229 = vld [vmem:[%s3 + $0x3c8] sm:$0xff]
  %v230 = vld [vmem:[%s3 + $0x3d0] sm:$0xff]
  %v231 = vld [vmem:[%s3 + $0x3d8] sm:$0xff]
  %v232 = vld [vmem:[%s3 + $0x3e0] sm:$0xff]
  %v233 = vld [vmem:[%s3 + $0x3e8] sm:$0xff]
  %v234 = vld [vmem:[%s3 + $0x3f0] sm:$0xff]
  %v235 = vld [vmem:[%s3 + $0x3f8] sm:$0xff]
  %v236 = vld [vmem:[%s3 + $0x400] sm:$0xff]
  %v237 = vld [vmem:[%s3 + $0x408] sm:$0xff]
  %v238 = vld [vmem:[%s3 + $0x410] sm:$0xff]
  %v239 = vld [vmem:[%s3 + $0x418] sm:$0xff]
  %v240 = vld [vmem:[%s3 + $0x420] sm:$0xff]
  %v241 = vld [vmem:[%s3 + $0x428] sm:$0xff]
  %v242 = vld [vmem:[%s3 + $0x430] sm:$0xff]
  %v243 = vld [vmem:[%s3 + $0x438] sm:$0xff]
  %v244 = vld [vmem:[%s3 + $0x440] sm:$0xff]
  %v245 = vld [vmem:[%s3 + $0x448] sm:$0xff]
  %v246 = vld [vmem:[%s3 + $0x450] sm:$0xff]
  %v247 = vld [vmem:[%s3 + $0x458] sm:$0xff]
  %v248 = vld [vmem:[%s3 + $0x460] sm:$0xff]
  %v249 = vld [vmem:[%s3 + $0x468] sm:$0xff]
  %v250 = vld [vmem:[%s3 + $0x470] sm:$0xff]
  %v251 = vld [vmem:[%s3 + $0x478] sm:$0xff]
  %v252 = vld [vmem:[%s3 + $0x480] sm:$0xff]
  %v253 = vld [vmem:[%s3 + $0x488] sm:$0xff]
  %v254 = vld [vmem:[%s3 + $0x490] sm:$0xff]
  %v255 = vld [vmem:[%s3 + $0x498] sm:$0xff]
  %v256 = vld [vmem:[%s3 + $0x4a0] sm:$0xff]
  %v257 = vld [vmem:[%s3 + $0x4a8] sm:$0xff]
  %v258 = vld [vmem:[%s3 + $0x4b0] sm:$0xff]
  %v259 = vld [vmem:[%s3 + $0x4b8] sm:$0xff]
  %v260 = vld [vmem:[%s3 + $0x4c0] sm:$0xff]
  %v261 = vld [vmem:[%s3 + $0x4c8] sm:$0xff]
  %v262 = vld [vmem:[%s3 + $0x4d0] sm:$0xff]
  %v263 = vld [vmem:[%s3 + $0x4d8] sm:$0xff]
  %v264 = vld [vmem:[%s3 + $0x4e0] sm:$0xff]
  %v265 = vld [vmem:[%s3 + $0x4e8] sm:$0xff]
  %v266 = vld [vmem:[%s3 + $0x4f0] sm:$0xff]
  %v267 = vld [vmem:[%s3 + $0x4f8] sm:$0xff]
  %v268 = vld [vmem:[%s3 + $0x500] sm:$0xff]
  %v269 = vld [vmem:[%s3 + $0x508] sm:$0xff]
  %v270 = vld [vmem:[%s3 + $0x510] sm:$0xff]
  %v271 = vld [vmem:[%s3 + $0x518] sm:$0xff]
  %v272 = vld [vmem:[%s3 + $0x520] sm:$0xff]
  %v273 = vld [vmem:[%s3 + $0x528] sm:$0xff]
  %v274 = vld [vmem:[%s3 + $0x530] sm:$0xff]
  %v275 = vld [vmem:[%s3 + $0x538] sm:$0xff]
  %v276 = vld [vmem:[%s3 + $0x540] sm:$0xff]
  %v277 = vld [vmem:[%s3 + $0x548] sm:$0xff]
  %v278 = vld [vmem:[%s3 + $0x550] sm:$0xff]
  %v279 = vld [vmem:[%s3 + $0x558] sm:$0xff]
  %v280 = vld [vmem:[%s3 + $0x560] sm:$0xff]
  %v281 = vld [vmem:[%s3 + $0x568] sm:$0xff]
  %v282 = vld [vmem:[%s3 + $0x570] sm:$0xff]
  %v283 = vld [vmem:[%s3 + $0x578] sm:$0xff]
  %v284 = vld [vmem:[%s3 + $0x580] sm:$0xff]
  %v285 = vld [vmem:[%s3 + $0x588] sm:$0xff]
  %v286 = vld [vmem:[%s3 + $0x590] sm:$0xff]
  %v287 = vld [vmem:[%s3 + $0x598] sm:$0xff]
  %v288 = vld [vmem:[%s3 + $0x5a0] sm:$0xff]
  %v289 = vld [vmem:[%s3 + $0x5a8] sm:$0xff]
  %v290 = vld [vmem:[%s3 + $0x5b0] sm:$0xff]
  %v291 = vld [vmem:[%s3 + $0x5b8] sm:$0xff]
  %v292 = vld [vmem:[%s3 + $0x5c0] sm:$0xff]
  %v293 = vld [vmem:[%s3 + $0x5c8] sm:$0xff]
  %v294 = vld [vmem:[%s3 + $0x5d0] sm:$0xff]
  %v295 = vld [vmem:[%s3 + $0x5d8] sm:$0xff]
  %v296 = vld [vmem:[%s3 + $0x5e0] sm:$0xff]
  %v297 = vld [vmem:[%s3 + $0x5e8] sm:$0xff]
  %v298 = vld [vmem:[%s3 + $0x5f0] sm:$0xff]
  %v299 = vld [vmem:[%s3 + $0x5f8] sm:$0xff]
  %v300 = vld [vmem:[%s3 + $0x600] sm:$0xff]
  %v301 = vld [vmem:[%s3 + $0x608] sm:$0xff]
  %v302 = vld [vmem:[%s3 + $0x610] sm:$0xff]
  %v303 = vld [vmem:[%s3 + $0x618] sm:$0xff]
  %v304 = vld [vmem:[%s3 + $0x620] sm:$0xff]
  %v305 = vld [vmem:[%s3 + $0x628] sm:$0xff]
  %v306 = vld [vmem:[%s3 + $0x630] sm:$0xff]
  %v307 = vld [vmem:[%s3 + $0x638] sm:$0xff]
  %v308 = vld [vmem:[%s3 + $0x640] sm:$0xff]
  %v309 = vld [vmem:[%s3 + $0x648] sm:$0xff]
  %v310 = vld [vmem:[%s3 + $0x650] sm:$0xff]
  %v311 = vld [vmem:[%s3 + $0x658] sm:$0xff]
  %v312 = vld [vmem:[%s3 + $0x660] sm:$0xff]
  %v313 = vld [vmem:[%s3 + $0x668] sm:$0xff]
  %v314 = vld [vmem:[%s3 + $0x670] sm:$0xff]
  %v315 = vld [vmem:[%s3 + $0x678] sm:$0xff]
  %v316 = vld [vmem:[%s3 + $0x680] sm:$0xff]
  %v317 = vld [vmem:[%s3 + $0x688] sm:$0xff]
  %v318 = vld [vmem:[%s3 + $0x690] sm:$0xff]
  %v319 = vld [vmem:[%s3 + $0x698] sm:$0xff]
  %v320 = vld [vmem:[%s3 + $0x6a0] sm:$0xff]
  %v321 = vld [vmem:[%s3 + $0x6a8] sm:$0xff]
  %v322 = vld [vmem:[%s3 + $0x6b0] sm:$0xff]
  %v323 = vld [vmem:[%s3 + $0x6b8] sm:$0xff]
  %v324 = vld [vmem:[%s3 + $0x6c0] sm:$0xff]
  %v325 = vld [vmem:[%s3 + $0x6c8] sm:$0xff]
  %v326 = vld [vmem:[%s3 + $0x6d0] sm:$0xff]
  %v327 = vld [vmem:[%s3 + $0x6d8] sm:$0xff]
  %v328 = vld [vmem:[%s3 + $0x6e0] sm:$0xff]
  %v329 = vld [vmem:[%s3 + $0x6e8] sm:$0xff]
  %v330 = vld [vmem:[%s3 + $0x6f0] sm:$0xff]
  %v331 = vld [vmem:[%s3 + $0x6f8] sm:$0xff]
  %v332 = vld [vmem:[%s3 + $0x700] sm:$0xff]
  %v333 = vld [vmem:[%s3 + $0x708] sm:$0xff]
  %v334 = vld [vmem:[%s3 + $0x710] sm:$0xff]
  %v335 = vld [vmem:[%s3 + $0x718] sm:$0xff]
  %v336 = vld [vmem:[%s3 + $0x720] sm:$0xff]
  %v337 = vld [vmem:[%s3 + $0x728] sm:$0xff]
  %v338 = vld [vmem:[%s3 + $0x730] sm:$0xff]
  %v339 = vld [vmem:[%s3 + $0x738] sm:$0xff]
  %v340 = vld [vmem:[%s3 + $0x740] sm:$0xff]
  %v341 = vld [vmem:[%s3 + $0x748] sm:$0xff]
  %v342 = vld [vmem:[%s3 + $0x750] sm:$0xff]
  %v343 = vld [vmem:[%s3 + $0x758] sm:$0xff]
  %v344 = vld [vmem:[%s3 + $0x760] sm:$0xff]
  %v345 = vld [vmem:[%s3 + $0x768] sm:$0xff]
  %v346 = vld [vmem:[%s3 + $0x770] sm:$0xff]
  %v347 = vld [vmem:[%s3 + $0x778] sm:$0xff]
  %v348 = vld [vmem:[%s3 + $0x780] sm:$0xff]
  %v349 = vld [vmem:[%s3 + $0x788] sm:$0xff]
  %v350 = vld [vmem:[%s3 + $0x790] sm:$0xff]
  %v351 = vld [vmem:[%s3 + $0x798] sm:$0xff]
  %v352 = vld [vmem:[%s3 + $0x7a0] sm:$0xff]
  %v353 = vld [vmem:[%s3 + $0x7a8] sm:$0xff]
  %v354 = vld [vmem:[%s3 + $0x7b0] sm:$0xff]
  %v355 = vld [vmem:[%s3 + $0x7b8] sm:$0xff]
  %v356 = vld [vmem:[%s3 + $0x7c0] sm:$0xff]
  %v357 = vld [vmem:[%s3 + $0x7c8] sm:$0xff]
  %v358 = vld [vmem:[%s3 + $0x7d0] sm:$0xff]
  %v359 = vld [vmem:[%s3 + $0x7d8] sm:$0xff]
  %v360 = vld [vmem:[%s3 + $0x7e0] sm:$0xff]
  %v361 = vld [vmem:[%s3 + $0x7e8] sm:$0xff]
  %v362 = vld [vmem:[%s3 + $0x7f0] sm:$0xff]
  %v363 = vld [vmem:[%s3 + $0x7f8] sm:$0xff]
  %v364 = vld [vmem:[%s3 + $0x800] sm:$0xff]
  %v365 = vld [vmem:[%s3 + $0x808] sm:$0xff]
  %v366 = vld [vmem:[%s3 + $0x810] sm:$0xff]
  %v367 = vld [vmem:[%s3 + $0x818] sm:$0xff]
  %v368 = vld [vmem:[%s3 + $0x820] sm:$0xff]
  %v369 = vld [vmem:[%s3 + $0x828] sm:$0xff]
  %v370 = vld [vmem:[%s3 + $0x830] sm:$0xff]
  %v371 = vld [vmem:[%s3 + $0x838] sm:$0xff]
  %v372 = vld [vmem:[%s3 + $0x840] sm:$0xff]
  %v373 = vld [vmem:[%s3 + $0x848] sm:$0xff]
  %v374 = vld [vmem:[%s3 + $0x850] sm:$0xff]
  %v375 = vld [vmem:[%s3 + $0x858] sm:$0xff]
  %v376 = vld [vmem:[%s3 + $0x860] sm:$0xff]
  %v377 = vld [vmem:[%s3 + $0x868] sm:$0xff]
  %v378 = vld [vmem:[%s3 + $0x870] sm:$0xff]
  %v379 = vld [vmem:[%s3 + $0x878] sm:$0xff]
  %v380 = vld [vmem:[%s3 + $0x880] sm:$0xff]
  %v381 = vld [vmem:[%s3 + $0x888] sm:$0xff]
  %v382 = vld [vmem:[%s3 + $0x890] sm:$0xff]
  %v383 = vld [vmem:[%s3 + $0x898] sm:$0xff]
  %v384 = vld [vmem:[%s3 + $0x8a0] sm:$0xff]
  %v385 = vld [vmem:[%s3 + $0x8a8] sm:$0xff]
  %v386 = vld [vmem:[%s3 + $0x8b0] sm:$0xff]
  %v387 = vld [vmem:[%s3 + $0x8b8] sm:$0xff]
  %v388 = vld [vmem:[%s3 + $0x8c0] sm:$0xff]
  %v389 = vld [vmem:[%s3 + $0x8c8] sm:$0xff]
  %v390 = vld [vmem:[%s3 + $0x8d0] sm:$0xff]
  %v391 = vld [vmem:[%s3 + $0x8d8] sm:$0xff]
  %v392 = vld [vmem:[%s3 + $0x8e0] sm:$0xff]
  %v393 = vld [vmem:[%s3 + $0x8e8] sm:$0xff]
  %v394 = vld [vmem:[%s3 + $0x8f0] sm:$0xff]
  %v395 = vld [vmem:[%s3 + $0x8f8] sm:$0xff]
  %v396 = vld [vmem:[%s3 + $0x900] sm:$0xff]
  %v397 = vld [vmem:[%s3 + $0x908] sm:$0xff]
  %v398 = vld [vmem:[%s3 + $0x910] sm:$0xff]
  %v399 = vld [vmem:[%s3 + $0x918] sm:$0xff]
  %v400 = vld [vmem:[%s3 + $0x920] sm:$0xff]
  %v401 = vld [vmem:[%s3 + $0x928] sm:$0xff]
  %v402 = vld [vmem:[%s3 + $0x930] sm:$0xff]
  %v403 = vld [vmem:[%s3 + $0x938] sm:$0xff]
  %v404 = vld [vmem:[%s3 + $0x940] sm:$0xff]
  %v405 = vld [vmem:[%s3 + $0x948] sm:$0xff]
  %v406 = vld [vmem:[%s3 + $0x950] sm:$0xff]
  %v407 = vld [vmem:[%s3 + $0x958] sm:$0xff]
  %v408 = vld [vmem:[%s3 + $0x960] sm:$0xff]
  %v409 = vld [vmem:[%s3 + $0x968] sm:$0xff]
  %v410 = vld [vmem:[%s3 + $0x970] sm:$0xff]
  %v411 = vld [vmem:[%s3 + $0x978] sm:$0xff]
  %v412 = vld [vmem:[%s3 + $0x980] sm:$0xff]
  %v413 = vld [vmem:[%s3 + $0x988] sm:$0xff]
  %v414 = vld [vmem:[%s3 + $0x990] sm:$0xff]
  %v415 = vld [vmem:[%s3 + $0x998] sm:$0xff]
  %v416 = vld [vmem:[%s3 + $0x9a0] sm:$0xff]
  %v417 = vld [vmem:[%s3 + $0x9a8] sm:$0xff]
  %v418 = vld [vmem:[%s3 + $0x9b0] sm:$0xff]
  %v419 = vld [vmem:[%s3 + $0x9b8] sm:$0xff]
  %v420 = vld [vmem:[%s3 + $0x9c0] sm:$0xff]
  %v421 = vld [vmem:[%s3 + $0x9c8] sm:$0xff]
  %v422 = vld [vmem:[%s3 + $0x9d0] sm:$0xff]
  %v423 = vld [vmem:[%s3 + $0x9d8] sm:$0xff]
  %v424 = vld [vmem:[%s3 + $0x9e0] sm:$0xff]
  %v425 = vld [vmem:[%s3 + $0x9e8] sm:$0xff]
  %v426 = vld [vmem:[%s3 + $0x9f0] sm:$0xff]
  %v427 = vld [vmem:[%s3 + $0x9f8] sm:$0xff]
  %v428 = vld [vmem:[%s3 + $0xa00] sm:$0xff]
  %v429 = vld [vmem:[%s3 + $0xa08] sm:$0xff]
  %v430 = vld [vmem:[%s3 + $0xa10] sm:$0xff]
  %v431 = vld [vmem:[%s3 + $0xa18] sm:$0xff]
  %v432 = vld [vmem:[%s3 + $0xa20] sm:$0xff]
  %v433 = vld [vmem:[%s3 + $0xa28] sm:$0xff]
  %v434 = vld [vmem:[%s3 + $0xa30] sm:$0xff]
  %v435 = vld [vmem:[%s3 + $0xa38] sm:$0xff]
  %v436 = vld [vmem:[%s3 + $0xa40] sm:$0xff]
  %v437 = vld [vmem:[%s3 + $0xa48] sm:$0xff]
  %v438 = vld [vmem:[%s3 + $0xa50] sm:$0xff]
  %v439 = vld [vmem:[%s3 + $0xa58] sm:$0xff]
  %v440 = vld [vmem:[%s3 + $0xa60] sm:$0xff]
  %v441 = vld [vmem:[%s3 + $0xa68] sm:$0xff]
  %v442 = vld [vmem:[%s3 + $0xa70] sm:$0xff]
  %v443 = vld [vmem:[%s3 + $0xa78] sm:$0xff]
  %v444 = vld [vmem:[%s3 + $0xa80] sm:$0xff]
  %v445 = vld [vmem:[%s3 + $0xa88] sm:$0xff]
  %v446 = vld [vmem:[%s3 + $0xa90] sm:$0xff]
  %v447 = vld [vmem:[%s3 + $0xa98] sm:$0xff]
  %v448 = vld [vmem:[%s3 + $0xaa0] sm:$0xff]
  %v449 = vld [vmem:[%s3 + $0xaa8] sm:$0xff]
  %v450 = vld [vmem:[%s3 + $0xab0] sm:$0xff]
  %v451 = vld [vmem:[%s3 + $0xab8] sm:$0xff]
  %v452 = vld [vmem:[%s3 + $0xac0] sm:$0xff]
  %v453 = vld [vmem:[%s3 + $0xac8] sm:$0xff]
  %v454 = vld [vmem:[%s3 + $0xad0] sm:$0xff]
  %v455 = vld [vmem:[%s3 + $0xad8] sm:$0xff]
  %v456 = vld [vmem:[%s3 + $0xae0] sm:$0xff]
  %v457 = vld [vmem:[%s3 + $0xae8] sm:$0xff]
  %v458 = vld [vmem:[%s3 + $0xaf0] sm:$0xff]
  %v459 = vld [vmem:[%s3 + $0xaf8] sm:$0xff]
  %v460 = vld [vmem:[%s3 + $0xb00] sm:$0xff]
  %v461 = vld [vmem:[%s3 + $0xb08] sm:$0xff]
  %v462 = vld [vmem:[%s3 + $0xb10] sm:$0xff]
  %v463 = vld [vmem:[%s3 + $0xb18] sm:$0xff]
  %v464 = vld [vmem:[%s3 + $0xb20] sm:$0xff]
  %v465 = vld [vmem:[%s3 + $0xb28] sm:$0xff]
  %v466 = vld [vmem:[%s3 + $0xb30] sm:$0xff]
  %v467 = vld [vmem:[%s3 + $0xb38] sm:$0xff]
  %v468 = vld [vmem:[%s3 + $0xb40] sm:$0xff]
  %v469 = vld [vmem:[%s3 + $0xb48] sm:$0xff]
  %v470 = vld [vmem:[%s3 + $0xb50] sm:$0xff]
  %v471 = vld [vmem:[%s3 + $0xb58] sm:$0xff]
  %v472 = vld [vmem:[%s3 + $0xb60] sm:$0xff]
  %v473 = vld [vmem:[%s3 + $0xb68] sm:$0xff]
  %v474 = vld [vmem:[%s3 + $0xb70] sm:$0xff]
  %v475 = vld [vmem:[%s3 + $0xb78] sm:$0xff]
  %v476 = vld [vmem:[%s3 + $0xb80] sm:$0xff]
  %v477 = vld [vmem:[%s3 + $0xb88] sm:$0xff]
  %v478 = vld [vmem:[%s3 + $0xb90] sm:$0xff]
  %v479 = vld [vmem:[%s3 + $0xb98] sm:$0xff]
  %v480 = vld [vmem:[%s3 + $0xba0] sm:$0xff]
  %v481 = vld [vmem:[%s3 + $0xba8] sm:$0xff]
  %v482 = vld [vmem:[%s3 + $0xbb0] sm:$0xff]
  %v483 = vld [vmem:[%s3 + $0xbb8] sm:$0xff]
  %v484 = vld [vmem:[%s3 + $0xbc0] sm:$0xff]
  %v485 = vld [vmem:[%s3 + $0xbc8] sm:$0xff]
  %v486 = vld [vmem:[%s3 + $0xbd0] sm:$0xff]
  %v487 = vld [vmem:[%s3 + $0xbd8] sm:$0xff]
  %v488 = vld [vmem:[%s3 + $0xbe0] sm:$0xff]
  %v489 = vld [vmem:[%s3 + $0xbe8] sm:$0xff]
  %v490 = vld [vmem:[%s3 + $0xbf0] sm:$0xff]
  %v491 = vld [vmem:[%s3 + $0xbf8] sm:$0xff]
  %v492 = vld [vmem:[%s3 + $0xc00] sm:$0xff]
  %v493 = vld [vmem:[%s3 + $0xc08] sm:$0xff]
  %v494 = vld [vmem:[%s3 + $0xc10] sm:$0xff]
  %v495 = vld [vmem:[%s3 + $0xc18] sm:$0xff]
  %v496 = vld [vmem:[%s3 + $0xc20] sm:$0xff]
  %v497 = vld [vmem:[%s3 + $0xc28] sm:$0xff]
  %v498 = vld [vmem:[%s3 + $0xc30] sm:$0xff]
  %v499 = vld [vmem:[%s3 + $0xc38] sm:$0xff]
  %v500 = vld [vmem:[%s3 + $0xc40] sm:$0xff]
  %v501 = vld [vmem:[%s3 + $0xc48] sm:$0xff]
  %v502 = vld [vmem:[%s3 + $0xc50] sm:$0xff]
  %v503 = vld [vmem:[%s3 + $0xc58] sm:$0xff]
  %v504 = vld [vmem:[%s3 + $0xc60] sm:$0xff]
  %v505 = vld [vmem:[%s3 + $0xc68] sm:$0xff]
  %v506 = vld [vmem:[%s3 + $0xc70] sm:$0xff]
  %v507 = vld [vmem:[%s3 + $0xc78] sm:$0xff]
  %v508 = vld [vmem:[%s3 + $0xc80] sm:$0xff]
  %v509 = vld [vmem:[%s3 + $0xc88] sm:$0xff]
  %v510 = vld [vmem:[%s3 + $0xc90] sm:$0xff]
  %v511 = vld [vmem:[%s3 + $0xc98] sm:$0xff]
  %v512 = vld [vmem:[%s3 + $0xca0] sm:$0xff]
  %v513 = vld [vmem:[%s3 + $0xca8] sm:$0xff]
  %v514 = vld [vmem:[%s3 + $0xcb0] sm:$0xff]
  %v515 = vld [vmem:[%s3 + $0xcb8] sm:$0xff]
  %v516 = vld [vmem:[%s3 + $0xcc0] sm:$0xff]
  %v517 = vld [vmem:[%s3 + $0xcc8] sm:$0xff]
  %v518 = vld [vmem:[%s3 + $0xcd0] sm:$0xff]
  %v519 = vld [vmem:[%s3 + $0xcd8] sm:$0xff]
  %v520 = vld [vmem:[%s3 + $0xce0] sm:$0xff]
  %v521 = vld [vmem:[%s3 + $0xce8] sm:$0xff]
  %v522 = vld [vmem:[%s3 + $0xcf0] sm:$0xff]
  %v523 = vld [vmem:[%s3 + $0xcf8] sm:$0xff]
  %v524 = vld [vmem:[%s3 + $0xd00] sm:$0xff]
  %v525 = vld [vmem:[%s3 + $0xd08] sm:$0xff]
  %v526 = vld [vmem:[%s3 + $0xd10] sm:$0xff]
  %v527 = vld [vmem:[%s3 + $0xd18] sm:$0xff]
  %v528 = vld [vmem:[%s3 + $0xd20] sm:$0xff]
  %v529 = vld [vmem:[%s3 + $0xd28] sm:$0xff]
  %v530 = vld [vmem:[%s3 + $0xd30] sm:$0xff]
  %v531 = vld [vmem:[%s3 + $0xd38] sm:$0xff]
  %v532 = vld [vmem:[%s3 + $0xd40] sm:$0xff]
  %v533 = vld [vmem:[%s3 + $0xd48] sm:$0xff]
  %v534 = vld [vmem:[%s3 + $0xd50] sm:$0xff]
  %v535 = vld [vmem:[%s3 + $0xd58] sm:$0xff]
  %v536 = vld [vmem:[%s3 + $0xd60] sm:$0xff]
  %v537 = vld [vmem:[%s3 + $0xd68] sm:$0xff]
  %v538 = vld [vmem:[%s3 + $0xd70] sm:$0xff]
  %v539 = vld [vmem:[%s3 + $0xd78] sm:$0xff]
  %v540 = vld [vmem:[%s4] sm:$0x3]
  %v542 = vlaneseq
  %v543 = vshrl.u32 %v542, 7
  %v544 = vsub.s32 0, %v543
  %v545 = vrot.slane %v540, %v544
  %v546 = vlaneseq
  %v547 = vshrl.u32 %v546, 7
  %v548 = vsub.s32 1, %v547
  %v549 = vrot.slane %v540, %v548
  %v984 = vunpack.c.l.b16 %v108
  %v985 = vunpack.c.h.b16 %v108
  %v986 = vunpack.c.l.b16 %v109
  %v987 = vunpack.c.h.b16 %v109
  %v988 = vunpack.c.l.b16 %v110
  %v989 = vunpack.c.h.b16 %v110
  %v990 = vunpack.c.l.b16 %v111
  %v991 = vunpack.c.h.b16 %v111
  %v992 = vunpack.c.l.b16 %v112
  %v993 = vunpack.c.h.b16 %v112
  %v994 = vunpack.c.l.b16 %v113
  %v995 = vunpack.c.h.b16 %v113
  %v996 = vunpack.c.l.b16 %v114
  %v997 = vunpack.c.h.b16 %v114
  %v998 = vunpack.c.l.b16 %v115
  %v999 = vunpack.c.h.b16 %v115
  %v1000 = vunpack.c.l.b16 %v116
  %v1001 = vunpack.c.h.b16 %v116
  %v1002 = vunpack.c.l.b16 %v117
  %v1003 = vunpack.c.h.b16 %v117
  %v1004 = vunpack.c.l.b16 %v118
  %v1005 = vunpack.c.h.b16 %v118
  %v1006 = vunpack.c.l.b16 %v119
  %v1007 = vunpack.c.h.b16 %v119
  %v1008 = vunpack.c.l.b16 %v120
  %v1009 = vunpack.c.h.b16 %v120
  %v1010 = vunpack.c.l.b16 %v121
  %v1011 = vunpack.c.h.b16 %v121
  %v1012 = vunpack.c.l.b16 %v122
  %v1013 = vunpack.c.h.b16 %v122
  %v1014 = vunpack.c.l.b16 %v123
  %v1015 = vunpack.c.h.b16 %v123
  %v1016 = vunpack.c.l.b16 %v124
  %v1017 = vunpack.c.h.b16 %v124
  %v1018 = vunpack.c.l.b16 %v125
  %v1019 = vunpack.c.h.b16 %v125
  %v1020 = vunpack.c.l.b16 %v126
  %v1021 = vunpack.c.h.b16 %v126
  %v1022 = vunpack.c.l.b16 %v127
  %v1023 = vunpack.c.h.b16 %v127
  %v1024 = vunpack.c.l.b16 %v128
  %v1025 = vunpack.c.h.b16 %v128
  %v1026 = vunpack.c.l.b16 %v129
  %v1027 = vunpack.c.h.b16 %v129
  %v1028 = vunpack.c.l.b16 %v130
  %v1029 = vunpack.c.h.b16 %v130
  %v1030 = vunpack.c.l.b16 %v131
  %v1031 = vunpack.c.h.b16 %v131
  %v1032 = vunpack.c.l.b16 %v132
  %v1033 = vunpack.c.h.b16 %v132
  %v1034 = vunpack.c.l.b16 %v133
  %v1035 = vunpack.c.h.b16 %v133
  %v1036 = vunpack.c.l.b16 %v134
  %v1037 = vunpack.c.h.b16 %v134
  %v1038 = vunpack.c.l.b16 %v135
  %v1039 = vunpack.c.h.b16 %v135
  %v1040 = vunpack.c.l.b16 %v136
  %v1041 = vunpack.c.h.b16 %v136
  %v1042 = vunpack.c.l.b16 %v137
  %v1043 = vunpack.c.h.b16 %v137
  %v1044 = vunpack.c.l.b16 %v138
  %v1045 = vunpack.c.h.b16 %v138
  %v1046 = vunpack.c.l.b16 %v139
  %v1047 = vunpack.c.h.b16 %v139
  %v1048 = vunpack.c.l.b16 %v140
  %v1049 = vunpack.c.h.b16 %v140
  %v1050 = vunpack.c.l.b16 %v141
  %v1051 = vunpack.c.h.b16 %v141
  %v1052 = vunpack.c.l.b16 %v142
  %v1053 = vunpack.c.h.b16 %v142
  %v1054 = vunpack.c.l.b16 %v143
  %v1055 = vunpack.c.h.b16 %v143
  %v1056 = vunpack.c.l.b16 %v144
  %v1057 = vunpack.c.h.b16 %v144
  %v1058 = vunpack.c.l.b16 %v145
  %v1059 = vunpack.c.h.b16 %v145
  %v1060 = vunpack.c.l.b16 %v146
  %v1061 = vunpack.c.h.b16 %v146
  %v1062 = vunpack.c.l.b16 %v147
  %v1063 = vunpack.c.h.b16 %v147
  %v1064 = vunpack.c.l.b16 %v148
  %v1065 = vunpack.c.h.b16 %v148
  %v1066 = vunpack.c.l.b16 %v149
  %v1067 = vunpack.c.h.b16 %v149
  %v1068 = vunpack.c.l.b16 %v150
  %v1069 = vunpack.c.h.b16 %v150
  %v1070 = vunpack.c.l.b16 %v151
  %v1071 = vunpack.c.h.b16 %v151
  %v1072 = vunpack.c.l.b16 %v152
  %v1073 = vunpack.c.h.b16 %v152
  %v1074 = vunpack.c.l.b16 %v153
  %v1075 = vunpack.c.h.b16 %v153
  %v1076 = vunpack.c.l.b16 %v154
  %v1077 = vunpack.c.h.b16 %v154
  %v1078 = vunpack.c.l.b16 %v155
  %v1079 = vunpack.c.h.b16 %v155
  %v1080 = vunpack.c.l.b16 %v156
  %v1081 = vunpack.c.h.b16 %v156
  %v1082 = vunpack.c.l.b16 %v157
  %v1083 = vunpack.c.h.b16 %v157
  %v1084 = vunpack.c.l.b16 %v158
  %v1085 = vunpack.c.h.b16 %v158
  %v1086 = vunpack.c.l.b16 %v159
  %v1087 = vunpack.c.h.b16 %v159
  %v1088 = vunpack.c.l.b16 %v160
  %v1089 = vunpack.c.h.b16 %v160
  %v1090 = vunpack.c.l.b16 %v161
  %v1091 = vunpack.c.h.b16 %v161
  %v1092 = vunpack.c.l.b16 %v162
  %v1093 = vunpack.c.h.b16 %v162
  %v1094 = vunpack.c.l.b16 %v163
  %v1095 = vunpack.c.h.b16 %v163
  %v1096 = vunpack.c.l.b16 %v164
  %v1097 = vunpack.c.h.b16 %v164
  %v1098 = vunpack.c.l.b16 %v165
  %v1099 = vunpack.c.h.b16 %v165
  %v1100 = vunpack.c.l.b16 %v166
  %v1101 = vunpack.c.h.b16 %v166
  %v1102 = vunpack.c.l.b16 %v167
  %v1103 = vunpack.c.h.b16 %v167
  %v1104 = vunpack.c.l.b16 %v168
  %v1105 = vunpack.c.h.b16 %v168
  %v1106 = vunpack.c.l.b16 %v169
  %v1107 = vunpack.c.h.b16 %v169
  %v1108 = vunpack.c.l.b16 %v170
  %v1109 = vunpack.c.h.b16 %v170
  %v1110 = vunpack.c.l.b16 %v171
  %v1111 = vunpack.c.h.b16 %v171
  %v1112 = vunpack.c.l.b16 %v172
  %v1113 = vunpack.c.h.b16 %v172
  %v1114 = vunpack.c.l.b16 %v173
  %v1115 = vunpack.c.h.b16 %v173
  %v1116 = vunpack.c.l.b16 %v174
  %v1117 = vunpack.c.h.b16 %v174
  %v1118 = vunpack.c.l.b16 %v175
  %v1119 = vunpack.c.h.b16 %v175
  %v1120 = vunpack.c.l.b16 %v176
  %v1121 = vunpack.c.h.b16 %v176
  %v1122 = vunpack.c.l.b16 %v177
  %v1123 = vunpack.c.h.b16 %v177
  %v1124 = vunpack.c.l.b16 %v178
  %v1125 = vunpack.c.h.b16 %v178
  %v1126 = vunpack.c.l.b16 %v179
  %v1127 = vunpack.c.h.b16 %v179
  %v1128 = vunpack.c.l.b16 %v180
  %v1129 = vunpack.c.h.b16 %v180
  %v1130 = vunpack.c.l.b16 %v181
  %v1131 = vunpack.c.h.b16 %v181
  %v1132 = vunpack.c.l.b16 %v182
  %v1133 = vunpack.c.h.b16 %v182
  %v1134 = vunpack.c.l.b16 %v183
  %v1135 = vunpack.c.h.b16 %v183
  %v1136 = vunpack.c.l.b16 %v184
  %v1137 = vunpack.c.h.b16 %v184
  %v1138 = vunpack.c.l.b16 %v185
  %v1139 = vunpack.c.h.b16 %v185
  %v1140 = vunpack.c.l.b16 %v186
  %v1141 = vunpack.c.h.b16 %v186
  %v1142 = vunpack.c.l.b16 %v187
  %v1143 = vunpack.c.h.b16 %v187
  %v1144 = vunpack.c.l.b16 %v188
  %v1145 = vunpack.c.h.b16 %v188
  %v1146 = vunpack.c.l.b16 %v189
  %v1147 = vunpack.c.h.b16 %v189
  %v1148 = vunpack.c.l.b16 %v190
  %v1149 = vunpack.c.h.b16 %v190
  %v1150 = vunpack.c.l.b16 %v191
  %v1151 = vunpack.c.h.b16 %v191
  %v1152 = vunpack.c.l.b16 %v192
  %v1153 = vunpack.c.h.b16 %v192
  %v1154 = vunpack.c.l.b16 %v193
  %v1155 = vunpack.c.h.b16 %v193
  %v1156 = vunpack.c.l.b16 %v194
  %v1157 = vunpack.c.h.b16 %v194
  %v1158 = vunpack.c.l.b16 %v195
  %v1159 = vunpack.c.h.b16 %v195
  %v1160 = vunpack.c.l.b16 %v196
  %v1161 = vunpack.c.h.b16 %v196
  %v1162 = vunpack.c.l.b16 %v197
  %v1163 = vunpack.c.h.b16 %v197
  %v1164 = vunpack.c.l.b16 %v198
  %v1165 = vunpack.c.h.b16 %v198
  %v1166 = vunpack.c.l.b16 %v199
  %v1167 = vunpack.c.h.b16 %v199
  %v1168 = vunpack.c.l.b16 %v200
  %v1169 = vunpack.c.h.b16 %v200
  %v1170 = vunpack.c.l.b16 %v201
  %v1171 = vunpack.c.h.b16 %v201
  %v1172 = vunpack.c.l.b16 %v202
  %v1173 = vunpack.c.h.b16 %v202
  %v1174 = vunpack.c.l.b16 %v203
  %v1175 = vunpack.c.h.b16 %v203
  %v1176 = vunpack.c.l.b16 %v204
  %v1177 = vunpack.c.h.b16 %v204
  %v1178 = vunpack.c.l.b16 %v205
  %v1179 = vunpack.c.h.b16 %v205
  %v1180 = vunpack.c.l.b16 %v206
  %v1181 = vunpack.c.h.b16 %v206
  %v1182 = vunpack.c.l.b16 %v207
  %v1183 = vunpack.c.h.b16 %v207
  %v1184 = vunpack.c.l.b16 %v208
  %v1185 = vunpack.c.h.b16 %v208
  %v1186 = vunpack.c.l.b16 %v209
  %v1187 = vunpack.c.h.b16 %v209
  %v1188 = vunpack.c.l.b16 %v210
  %v1189 = vunpack.c.h.b16 %v210
  %v1190 = vunpack.c.l.b16 %v211
  %v1191 = vunpack.c.h.b16 %v211
  %v1192 = vunpack.c.l.b16 %v212
  %v1193 = vunpack.c.h.b16 %v212
  %v1194 = vunpack.c.l.b16 %v213
  %v1195 = vunpack.c.h.b16 %v213
  %v1196 = vunpack.c.l.b16 %v214
  %v1197 = vunpack.c.h.b16 %v214
  %v1198 = vunpack.c.l.b16 %v215
  %v1199 = vunpack.c.h.b16 %v215
  %v1200 = vunpack.c.l.b16 %v216
  %v1201 = vunpack.c.h.b16 %v216
  %v1202 = vunpack.c.l.b16 %v217
  %v1203 = vunpack.c.h.b16 %v217
  %v1204 = vunpack.c.l.b16 %v218
  %v1205 = vunpack.c.h.b16 %v218
  %v1206 = vunpack.c.l.b16 %v219
  %v1207 = vunpack.c.h.b16 %v219
  %v1208 = vunpack.c.l.b16 %v220
  %v1209 = vunpack.c.h.b16 %v220
  %v1210 = vunpack.c.l.b16 %v221
  %v1211 = vunpack.c.h.b16 %v221
  %v1212 = vunpack.c.l.b16 %v222
  %v1213 = vunpack.c.h.b16 %v222
  %v1214 = vunpack.c.l.b16 %v223
  %v1215 = vunpack.c.h.b16 %v223
  %v1216 = vunpack.c.l.b16 %v224
  %v1217 = vunpack.c.h.b16 %v224
  %v1218 = vunpack.c.l.b16 %v225
  %v1219 = vunpack.c.h.b16 %v225
  %v1220 = vunpack.c.l.b16 %v226
  %v1221 = vunpack.c.h.b16 %v226
  %v1222 = vunpack.c.l.b16 %v227
  %v1223 = vunpack.c.h.b16 %v227
  %v1224 = vunpack.c.l.b16 %v228
  %v1225 = vunpack.c.h.b16 %v228
  %v1226 = vunpack.c.l.b16 %v229
  %v1227 = vunpack.c.h.b16 %v229
  %v1228 = vunpack.c.l.b16 %v230
  %v1229 = vunpack.c.h.b16 %v230
  %v1230 = vunpack.c.l.b16 %v231
  %v1231 = vunpack.c.h.b16 %v231
  %v1232 = vunpack.c.l.b16 %v232
  %v1233 = vunpack.c.h.b16 %v232
  %v1234 = vunpack.c.l.b16 %v233
  %v1235 = vunpack.c.h.b16 %v233
  %v1236 = vunpack.c.l.b16 %v234
  %v1237 = vunpack.c.h.b16 %v234
  %v1238 = vunpack.c.l.b16 %v235
  %v1239 = vunpack.c.h.b16 %v235
  %v1240 = vunpack.c.l.b16 %v236
  %v1241 = vunpack.c.h.b16 %v236
  %v1242 = vunpack.c.l.b16 %v237
  %v1243 = vunpack.c.h.b16 %v237
  %v1244 = vunpack.c.l.b16 %v238
  %v1245 = vunpack.c.h.b16 %v238
  %v1246 = vunpack.c.l.b16 %v239
  %v1247 = vunpack.c.h.b16 %v239
  %v1248 = vunpack.c.l.b16 %v240
  %v1249 = vunpack.c.h.b16 %v240
  %v1250 = vunpack.c.l.b16 %v241
  %v1251 = vunpack.c.h.b16 %v241
  %v1252 = vunpack.c.l.b16 %v242
  %v1253 = vunpack.c.h.b16 %v242
  %v1254 = vunpack.c.l.b16 %v243
  %v1255 = vunpack.c.h.b16 %v243
  %v1256 = vunpack.c.l.b16 %v244
  %v1257 = vunpack.c.h.b16 %v244
  %v1258 = vunpack.c.l.b16 %v245
  %v1259 = vunpack.c.h.b16 %v245
  %v1260 = vunpack.c.l.b16 %v246
  %v1261 = vunpack.c.h.b16 %v246
  %v1262 = vunpack.c.l.b16 %v247
  %v1263 = vunpack.c.h.b16 %v247
  %v1264 = vunpack.c.l.b16 %v248
  %v1265 = vunpack.c.h.b16 %v248
  %v1266 = vunpack.c.l.b16 %v249
  %v1267 = vunpack.c.h.b16 %v249
  %v1268 = vunpack.c.l.b16 %v250
  %v1269 = vunpack.c.h.b16 %v250
  %v1270 = vunpack.c.l.b16 %v251
  %v1271 = vunpack.c.h.b16 %v251
  %v1272 = vunpack.c.l.b16 %v252
  %v1273 = vunpack.c.h.b16 %v252
  %v1274 = vunpack.c.l.b16 %v253
  %v1275 = vunpack.c.h.b16 %v253
  %v1276 = vunpack.c.l.b16 %v254
  %v1277 = vunpack.c.h.b16 %v254
  %v1278 = vunpack.c.l.b16 %v255
  %v1279 = vunpack.c.h.b16 %v255
  %v1280 = vunpack.c.l.b16 %v256
  %v1281 = vunpack.c.h.b16 %v256
  %v1282 = vunpack.c.l.b16 %v257
  %v1283 = vunpack.c.h.b16 %v257
  %v1284 = vunpack.c.l.b16 %v258
  %v1285 = vunpack.c.h.b16 %v258
  %v1286 = vunpack.c.l.b16 %v259
  %v1287 = vunpack.c.h.b16 %v259
  %v1288 = vunpack.c.l.b16 %v260
  %v1289 = vunpack.c.h.b16 %v260
  %v1290 = vunpack.c.l.b16 %v261
  %v1291 = vunpack.c.h.b16 %v261
  %v1292 = vunpack.c.l.b16 %v262
  %v1293 = vunpack.c.h.b16 %v262
  %v1294 = vunpack.c.l.b16 %v263
  %v1295 = vunpack.c.h.b16 %v263
  %v1296 = vunpack.c.l.b16 %v264
  %v1297 = vunpack.c.h.b16 %v264
  %v1298 = vunpack.c.l.b16 %v265
  %v1299 = vunpack.c.h.b16 %v265
  %v1300 = vunpack.c.l.b16 %v266
  %v1301 = vunpack.c.h.b16 %v266
  %v1302 = vunpack.c.l.b16 %v267
  %v1303 = vunpack.c.h.b16 %v267
  %v1304 = vunpack.c.l.b16 %v268
  %v1305 = vunpack.c.h.b16 %v268
  %v1306 = vunpack.c.l.b16 %v269
  %v1307 = vunpack.c.h.b16 %v269
  %v1308 = vunpack.c.l.b16 %v270
  %v1309 = vunpack.c.h.b16 %v270
  %v1310 = vunpack.c.l.b16 %v271
  %v1311 = vunpack.c.h.b16 %v271
  %v1312 = vunpack.c.l.b16 %v272
  %v1313 = vunpack.c.h.b16 %v272
  %v1314 = vunpack.c.l.b16 %v273
  %v1315 = vunpack.c.h.b16 %v273
  %v1316 = vunpack.c.l.b16 %v274
  %v1317 = vunpack.c.h.b16 %v274
  %v1318 = vunpack.c.l.b16 %v275
  %v1319 = vunpack.c.h.b16 %v275
  %v1320 = vunpack.c.l.b16 %v276
  %v1321 = vunpack.c.h.b16 %v276
  %v1322 = vunpack.c.l.b16 %v277
  %v1323 = vunpack.c.h.b16 %v277
  %v1324 = vunpack.c.l.b16 %v278
  %v1325 = vunpack.c.h.b16 %v278
  %v1326 = vunpack.c.l.b16 %v279
  %v1327 = vunpack.c.h.b16 %v279
  %v1328 = vunpack.c.l.b16 %v280
  %v1329 = vunpack.c.h.b16 %v280
  %v1330 = vunpack.c.l.b16 %v281
  %v1331 = vunpack.c.h.b16 %v281
  %v1332 = vunpack.c.l.b16 %v282
  %v1333 = vunpack.c.h.b16 %v282
  %v1334 = vunpack.c.l.b16 %v283
  %v1335 = vunpack.c.h.b16 %v283
  %v1336 = vunpack.c.l.b16 %v284
  %v1337 = vunpack.c.h.b16 %v284
  %v1338 = vunpack.c.l.b16 %v285
  %v1339 = vunpack.c.h.b16 %v285
  %v1340 = vunpack.c.l.b16 %v286
  %v1341 = vunpack.c.h.b16 %v286
  %v1342 = vunpack.c.l.b16 %v287
  %v1343 = vunpack.c.h.b16 %v287
  %v1344 = vunpack.c.l.b16 %v288
  %v1345 = vunpack.c.h.b16 %v288
  %v1346 = vunpack.c.l.b16 %v289
  %v1347 = vunpack.c.h.b16 %v289
  %v1348 = vunpack.c.l.b16 %v290
  %v1349 = vunpack.c.h.b16 %v290
  %v1350 = vunpack.c.l.b16 %v291
  %v1351 = vunpack.c.h.b16 %v291
  %v1352 = vunpack.c.l.b16 %v292
  %v1353 = vunpack.c.h.b16 %v292
  %v1354 = vunpack.c.l.b16 %v293
  %v1355 = vunpack.c.h.b16 %v293
  %v1356 = vunpack.c.l.b16 %v294
  %v1357 = vunpack.c.h.b16 %v294
  %v1358 = vunpack.c.l.b16 %v295
  %v1359 = vunpack.c.h.b16 %v295
  %v1360 = vunpack.c.l.b16 %v296
  %v1361 = vunpack.c.h.b16 %v296
  %v1362 = vunpack.c.l.b16 %v297
  %v1363 = vunpack.c.h.b16 %v297
  %v1364 = vunpack.c.l.b16 %v298
  %v1365 = vunpack.c.h.b16 %v298
  %v1366 = vunpack.c.l.b16 %v299
  %v1367 = vunpack.c.h.b16 %v299
  %v1368 = vunpack.c.l.b16 %v300
  %v1369 = vunpack.c.h.b16 %v300
  %v1370 = vunpack.c.l.b16 %v301
  %v1371 = vunpack.c.h.b16 %v301
  %v1372 = vunpack.c.l.b16 %v302
  %v1373 = vunpack.c.h.b16 %v302
  %v1374 = vunpack.c.l.b16 %v303
  %v1375 = vunpack.c.h.b16 %v303
  %v1376 = vunpack.c.l.b16 %v304
  %v1377 = vunpack.c.h.b16 %v304
  %v1378 = vunpack.c.l.b16 %v305
  %v1379 = vunpack.c.h.b16 %v305
  %v1380 = vunpack.c.l.b16 %v306
  %v1381 = vunpack.c.h.b16 %v306
  %v1382 = vunpack.c.l.b16 %v307
  %v1383 = vunpack.c.h.b16 %v307
  %v1384 = vunpack.c.l.b16 %v308
  %v1385 = vunpack.c.h.b16 %v308
  %v1386 = vunpack.c.l.b16 %v309
  %v1387 = vunpack.c.h.b16 %v309
  %v1388 = vunpack.c.l.b16 %v310
  %v1389 = vunpack.c.h.b16 %v310
  %v1390 = vunpack.c.l.b16 %v311
  %v1391 = vunpack.c.h.b16 %v311
  %v1392 = vunpack.c.l.b16 %v312
  %v1393 = vunpack.c.h.b16 %v312
  %v1394 = vunpack.c.l.b16 %v313
  %v1395 = vunpack.c.h.b16 %v313
  %v1396 = vunpack.c.l.b16 %v314
  %v1397 = vunpack.c.h.b16 %v314
  %v1398 = vunpack.c.l.b16 %v315
  %v1399 = vunpack.c.h.b16 %v315
  %v1400 = vunpack.c.l.b16 %v316
  %v1401 = vunpack.c.h.b16 %v316
  %v1402 = vunpack.c.l.b16 %v317
  %v1403 = vunpack.c.h.b16 %v317
  %v1404 = vunpack.c.l.b16 %v318
  %v1405 = vunpack.c.h.b16 %v318
  %v1406 = vunpack.c.l.b16 %v319
  %v1407 = vunpack.c.h.b16 %v319
  %v1408 = vunpack.c.l.b16 %v320
  %v1409 = vunpack.c.h.b16 %v320
  %v1410 = vunpack.c.l.b16 %v321
  %v1411 = vunpack.c.h.b16 %v321
  %v1412 = vunpack.c.l.b16 %v322
  %v1413 = vunpack.c.h.b16 %v322
  %v1414 = vunpack.c.l.b16 %v323
  %v1415 = vunpack.c.h.b16 %v323
  %v1416 = vunpack.c.l.b16 %v324
  %v1417 = vunpack.c.h.b16 %v324
  %v1418 = vunpack.c.l.b16 %v325
  %v1419 = vunpack.c.h.b16 %v325
  %v1420 = vunpack.c.l.b16 %v326
  %v1421 = vunpack.c.h.b16 %v326
  %v1422 = vunpack.c.l.b16 %v327
  %v1423 = vunpack.c.h.b16 %v327
  %v1424 = vunpack.c.l.b16 %v328
  %v1425 = vunpack.c.h.b16 %v328
  %v1426 = vunpack.c.l.b16 %v329
  %v1427 = vunpack.c.h.b16 %v329
  %v1428 = vunpack.c.l.b16 %v330
  %v1429 = vunpack.c.h.b16 %v330
  %v1430 = vunpack.c.l.b16 %v331
  %v1431 = vunpack.c.h.b16 %v331
  %v1432 = vunpack.c.l.b16 %v332
  %v1433 = vunpack.c.h.b16 %v332
  %v1434 = vunpack.c.l.b16 %v333
  %v1435 = vunpack.c.h.b16 %v333
  %v1436 = vunpack.c.l.b16 %v334
  %v1437 = vunpack.c.h.b16 %v334
  %v1438 = vunpack.c.l.b16 %v335
  %v1439 = vunpack.c.h.b16 %v335
  %v1440 = vunpack.c.l.b16 %v336
  %v1441 = vunpack.c.h.b16 %v336
  %v1442 = vunpack.c.l.b16 %v337
  %v1443 = vunpack.c.h.b16 %v337
  %v1444 = vunpack.c.l.b16 %v338
  %v1445 = vunpack.c.h.b16 %v338
  %v1446 = vunpack.c.l.b16 %v339
  %v1447 = vunpack.c.h.b16 %v339
  %v1448 = vunpack.c.l.b16 %v340
  %v1449 = vunpack.c.h.b16 %v340
  %v1450 = vunpack.c.l.b16 %v341
  %v1451 = vunpack.c.h.b16 %v341
  %v1452 = vunpack.c.l.b16 %v342
  %v1453 = vunpack.c.h.b16 %v342
  %v1454 = vunpack.c.l.b16 %v343
  %v1455 = vunpack.c.h.b16 %v343
  %v1456 = vunpack.c.l.b16 %v344
  %v1457 = vunpack.c.h.b16 %v344
  %v1458 = vunpack.c.l.b16 %v345
  %v1459 = vunpack.c.h.b16 %v345
  %v1460 = vunpack.c.l.b16 %v346
  %v1461 = vunpack.c.h.b16 %v346
  %v1462 = vunpack.c.l.b16 %v347
  %v1463 = vunpack.c.h.b16 %v347
  %v1464 = vunpack.c.l.b16 %v348
  %v1465 = vunpack.c.h.b16 %v348
  %v1466 = vunpack.c.l.b16 %v349
  %v1467 = vunpack.c.h.b16 %v349
  %v1468 = vunpack.c.l.b16 %v350
  %v1469 = vunpack.c.h.b16 %v350
  %v1470 = vunpack.c.l.b16 %v351
  %v1471 = vunpack.c.h.b16 %v351
  %v1472 = vunpack.c.l.b16 %v352
  %v1473 = vunpack.c.h.b16 %v352
  %v1474 = vunpack.c.l.b16 %v353
  %v1475 = vunpack.c.h.b16 %v353
  %v1476 = vunpack.c.l.b16 %v354
  %v1477 = vunpack.c.h.b16 %v354
  %v1478 = vunpack.c.l.b16 %v355
  %v1479 = vunpack.c.h.b16 %v355
  %v1480 = vunpack.c.l.b16 %v356
  %v1481 = vunpack.c.h.b16 %v356
  %v1482 = vunpack.c.l.b16 %v357
  %v1483 = vunpack.c.h.b16 %v357
  %v1484 = vunpack.c.l.b16 %v358
  %v1485 = vunpack.c.h.b16 %v358
  %v1486 = vunpack.c.l.b16 %v359
  %v1487 = vunpack.c.h.b16 %v359
  %v1488 = vunpack.c.l.b16 %v360
  %v1489 = vunpack.c.h.b16 %v360
  %v1490 = vunpack.c.l.b16 %v361
  %v1491 = vunpack.c.h.b16 %v361
  %v1492 = vunpack.c.l.b16 %v362
  %v1493 = vunpack.c.h.b16 %v362
  %v1494 = vunpack.c.l.b16 %v363
  %v1495 = vunpack.c.h.b16 %v363
  %v1496 = vunpack.c.l.b16 %v364
  %v1497 = vunpack.c.h.b16 %v364
  %v1498 = vunpack.c.l.b16 %v365
  %v1499 = vunpack.c.h.b16 %v365
  %v1500 = vunpack.c.l.b16 %v366
  %v1501 = vunpack.c.h.b16 %v366
  %v1502 = vunpack.c.l.b16 %v367
  %v1503 = vunpack.c.h.b16 %v367
  %v1504 = vunpack.c.l.b16 %v368
  %v1505 = vunpack.c.h.b16 %v368
  %v1506 = vunpack.c.l.b16 %v369
  %v1507 = vunpack.c.h.b16 %v369
  %v1508 = vunpack.c.l.b16 %v370
  %v1509 = vunpack.c.h.b16 %v370
  %v1510 = vunpack.c.l.b16 %v371
  %v1511 = vunpack.c.h.b16 %v371
  %v1512 = vunpack.c.l.b16 %v372
  %v1513 = vunpack.c.h.b16 %v372
  %v1514 = vunpack.c.l.b16 %v373
  %v1515 = vunpack.c.h.b16 %v373
  %v1516 = vunpack.c.l.b16 %v374
  %v1517 = vunpack.c.h.b16 %v374
  %v1518 = vunpack.c.l.b16 %v375
  %v1519 = vunpack.c.h.b16 %v375
  %v1520 = vunpack.c.l.b16 %v376
  %v1521 = vunpack.c.h.b16 %v376
  %v1522 = vunpack.c.l.b16 %v377
  %v1523 = vunpack.c.h.b16 %v377
  %v1524 = vunpack.c.l.b16 %v378
  %v1525 = vunpack.c.h.b16 %v378
  %v1526 = vunpack.c.l.b16 %v379
  %v1527 = vunpack.c.h.b16 %v379
  %v1528 = vunpack.c.l.b16 %v380
  %v1529 = vunpack.c.h.b16 %v380
  %v1530 = vunpack.c.l.b16 %v381
  %v1531 = vunpack.c.h.b16 %v381
  %v1532 = vunpack.c.l.b16 %v382
  %v1533 = vunpack.c.h.b16 %v382
  %v1534 = vunpack.c.l.b16 %v383
  %v1535 = vunpack.c.h.b16 %v383
  %v1536 = vunpack.c.l.b16 %v384
  %v1537 = vunpack.c.h.b16 %v384
  %v1538 = vunpack.c.l.b16 %v385
  %v1539 = vunpack.c.h.b16 %v385
  %v1540 = vunpack.c.l.b16 %v386
  %v1541 = vunpack.c.h.b16 %v386
  %v1542 = vunpack.c.l.b16 %v387
  %v1543 = vunpack.c.h.b16 %v387
  %v1544 = vunpack.c.l.b16 %v388
  %v1545 = vunpack.c.h.b16 %v388
  %v1546 = vunpack.c.l.b16 %v389
  %v1547 = vunpack.c.h.b16 %v389
  %v1548 = vunpack.c.l.b16 %v390
  %v1549 = vunpack.c.h.b16 %v390
  %v1550 = vunpack.c.l.b16 %v391
  %v1551 = vunpack.c.h.b16 %v391
  %v1552 = vunpack.c.l.b16 %v392
  %v1553 = vunpack.c.h.b16 %v392
  %v1554 = vunpack.c.l.b16 %v393
  %v1555 = vunpack.c.h.b16 %v393
  %v1556 = vunpack.c.l.b16 %v394
  %v1557 = vunpack.c.h.b16 %v394
  %v1558 = vunpack.c.l.b16 %v395
  %v1559 = vunpack.c.h.b16 %v395
  %v1560 = vunpack.c.l.b16 %v396
  %v1561 = vunpack.c.h.b16 %v396
  %v1562 = vunpack.c.l.b16 %v397
  %v1563 = vunpack.c.h.b16 %v397
  %v1564 = vunpack.c.l.b16 %v398
  %v1565 = vunpack.c.h.b16 %v398
  %v1566 = vunpack.c.l.b16 %v399
  %v1567 = vunpack.c.h.b16 %v399
  %v1568 = vunpack.c.l.b16 %v400
  %v1569 = vunpack.c.h.b16 %v400
  %v1570 = vunpack.c.l.b16 %v401
  %v1571 = vunpack.c.h.b16 %v401
  %v1572 = vunpack.c.l.b16 %v402
  %v1573 = vunpack.c.h.b16 %v402
  %v1574 = vunpack.c.l.b16 %v403
  %v1575 = vunpack.c.h.b16 %v403
  %v1576 = vunpack.c.l.b16 %v404
  %v1577 = vunpack.c.h.b16 %v404
  %v1578 = vunpack.c.l.b16 %v405
  %v1579 = vunpack.c.h.b16 %v405
  %v1580 = vunpack.c.l.b16 %v406
  %v1581 = vunpack.c.h.b16 %v406
  %v1582 = vunpack.c.l.b16 %v407
  %v1583 = vunpack.c.h.b16 %v407
  %v1584 = vunpack.c.l.b16 %v408
  %v1585 = vunpack.c.h.b16 %v408
  %v1586 = vunpack.c.l.b16 %v409
  %v1587 = vunpack.c.h.b16 %v409
  %v1588 = vunpack.c.l.b16 %v410
  %v1589 = vunpack.c.h.b16 %v410
  %v1590 = vunpack.c.l.b16 %v411
  %v1591 = vunpack.c.h.b16 %v411
  %v1592 = vunpack.c.l.b16 %v412
  %v1593 = vunpack.c.h.b16 %v412
  %v1594 = vunpack.c.l.b16 %v413
  %v1595 = vunpack.c.h.b16 %v413
  %v1596 = vunpack.c.l.b16 %v414
  %v1597 = vunpack.c.h.b16 %v414
  %v1598 = vunpack.c.l.b16 %v415
  %v1599 = vunpack.c.h.b16 %v415
  %v1600 = vunpack.c.l.b16 %v416
  %v1601 = vunpack.c.h.b16 %v416
  %v1602 = vunpack.c.l.b16 %v417
  %v1603 = vunpack.c.h.b16 %v417
  %v1604 = vunpack.c.l.b16 %v418
  %v1605 = vunpack.c.h.b16 %v418
  %v1606 = vunpack.c.l.b16 %v419
  %v1607 = vunpack.c.h.b16 %v419
  %v1608 = vunpack.c.l.b16 %v420
  %v1609 = vunpack.c.h.b16 %v420
  %v1610 = vunpack.c.l.b16 %v421
  %v1611 = vunpack.c.h.b16 %v421
  %v1612 = vunpack.c.l.b16 %v422
  %v1613 = vunpack.c.h.b16 %v422
  %v1614 = vunpack.c.l.b16 %v423
  %v1615 = vunpack.c.h.b16 %v423
  %v1616 = vunpack.c.l.b16 %v424
  %v1617 = vunpack.c.h.b16 %v424
  %v1618 = vunpack.c.l.b16 %v425
  %v1619 = vunpack.c.h.b16 %v425
  %v1620 = vunpack.c.l.b16 %v426
  %v1621 = vunpack.c.h.b16 %v426
  %v1622 = vunpack.c.l.b16 %v427
  %v1623 = vunpack.c.h.b16 %v427
  %v1624 = vunpack.c.l.b16 %v428
  %v1625 = vunpack.c.h.b16 %v428
  %v1626 = vunpack.c.l.b16 %v429
  %v1627 = vunpack.c.h.b16 %v429
  %v1628 = vunpack.c.l.b16 %v430
  %v1629 = vunpack.c.h.b16 %v430
  %v1630 = vunpack.c.l.b16 %v431
  %v1631 = vunpack.c.h.b16 %v431
  %v1632 = vunpack.c.l.b16 %v432
  %v1633 = vunpack.c.h.b16 %v432
  %v1634 = vunpack.c.l.b16 %v433
  %v1635 = vunpack.c.h.b16 %v433
  %v1636 = vunpack.c.l.b16 %v434
  %v1637 = vunpack.c.h.b16 %v434
  %v1638 = vunpack.c.l.b16 %v435
  %v1639 = vunpack.c.h.b16 %v435
  %v1640 = vunpack.c.l.b16 %v436
  %v1641 = vunpack.c.h.b16 %v436
  %v1642 = vunpack.c.l.b16 %v437
  %v1643 = vunpack.c.h.b16 %v437
  %v1644 = vunpack.c.l.b16 %v438
  %v1645 = vunpack.c.h.b16 %v438
  %v1646 = vunpack.c.l.b16 %v439
  %v1647 = vunpack.c.h.b16 %v439
  %v1648 = vunpack.c.l.b16 %v440
  %v1649 = vunpack.c.h.b16 %v440
  %v1650 = vunpack.c.l.b16 %v441
  %v1651 = vunpack.c.h.b16 %v441
  %v1652 = vunpack.c.l.b16 %v442
  %v1653 = vunpack.c.h.b16 %v442
  %v1654 = vunpack.c.l.b16 %v443
  %v1655 = vunpack.c.h.b16 %v443
  %v1656 = vunpack.c.l.b16 %v444
  %v1657 = vunpack.c.h.b16 %v444
  %v1658 = vunpack.c.l.b16 %v445
  %v1659 = vunpack.c.h.b16 %v445
  %v1660 = vunpack.c.l.b16 %v446
  %v1661 = vunpack.c.h.b16 %v446
  %v1662 = vunpack.c.l.b16 %v447
  %v1663 = vunpack.c.h.b16 %v447
  %v1664 = vunpack.c.l.b16 %v448
  %v1665 = vunpack.c.h.b16 %v448
  %v1666 = vunpack.c.l.b16 %v449
  %v1667 = vunpack.c.h.b16 %v449
  %v1668 = vunpack.c.l.b16 %v450
  %v1669 = vunpack.c.h.b16 %v450
  %v1670 = vunpack.c.l.b16 %v451
  %v1671 = vunpack.c.h.b16 %v451
  %v1672 = vunpack.c.l.b16 %v452
  %v1673 = vunpack.c.h.b16 %v452
  %v1674 = vunpack.c.l.b16 %v453
  %v1675 = vunpack.c.h.b16 %v453
  %v1676 = vunpack.c.l.b16 %v454
  %v1677 = vunpack.c.h.b16 %v454
  %v1678 = vunpack.c.l.b16 %v455
  %v1679 = vunpack.c.h.b16 %v455
  %v1680 = vunpack.c.l.b16 %v456
  %v1681 = vunpack.c.h.b16 %v456
  %v1682 = vunpack.c.l.b16 %v457
  %v1683 = vunpack.c.h.b16 %v457
  %v1684 = vunpack.c.l.b16 %v458
  %v1685 = vunpack.c.h.b16 %v458
  %v1686 = vunpack.c.l.b16 %v459
  %v1687 = vunpack.c.h.b16 %v459
  %v1688 = vunpack.c.l.b16 %v460
  %v1689 = vunpack.c.h.b16 %v460
  %v1690 = vunpack.c.l.b16 %v461
  %v1691 = vunpack.c.h.b16 %v461
  %v1692 = vunpack.c.l.b16 %v462
  %v1693 = vunpack.c.h.b16 %v462
  %v1694 = vunpack.c.l.b16 %v463
  %v1695 = vunpack.c.h.b16 %v463
  %v1696 = vunpack.c.l.b16 %v464
  %v1697 = vunpack.c.h.b16 %v464
  %v1698 = vunpack.c.l.b16 %v465
  %v1699 = vunpack.c.h.b16 %v465
  %v1700 = vunpack.c.l.b16 %v466
  %v1701 = vunpack.c.h.b16 %v466
  %v1702 = vunpack.c.l.b16 %v467
  %v1703 = vunpack.c.h.b16 %v467
  %v1704 = vunpack.c.l.b16 %v468
  %v1705 = vunpack.c.h.b16 %v468
  %v1706 = vunpack.c.l.b16 %v469
  %v1707 = vunpack.c.h.b16 %v469
  %v1708 = vunpack.c.l.b16 %v470
  %v1709 = vunpack.c.h.b16 %v470
  %v1710 = vunpack.c.l.b16 %v471
  %v1711 = vunpack.c.h.b16 %v471
  %v1712 = vunpack.c.l.b16 %v472
  %v1713 = vunpack.c.h.b16 %v472
  %v1714 = vunpack.c.l.b16 %v473
  %v1715 = vunpack.c.h.b16 %v473
  %v1716 = vunpack.c.l.b16 %v474
  %v1717 = vunpack.c.h.b16 %v474
  %v1718 = vunpack.c.l.b16 %v475
  %v1719 = vunpack.c.h.b16 %v475
  %v1720 = vunpack.c.l.b16 %v476
  %v1721 = vunpack.c.h.b16 %v476
  %v1722 = vunpack.c.l.b16 %v477
  %v1723 = vunpack.c.h.b16 %v477
  %v1724 = vunpack.c.l.b16 %v478
  %v1725 = vunpack.c.h.b16 %v478
  %v1726 = vunpack.c.l.b16 %v479
  %v1727 = vunpack.c.h.b16 %v479
  %v1728 = vunpack.c.l.b16 %v480
  %v1729 = vunpack.c.h.b16 %v480
  %v1730 = vunpack.c.l.b16 %v481
  %v1731 = vunpack.c.h.b16 %v481
  %v1732 = vunpack.c.l.b16 %v482
  %v1733 = vunpack.c.h.b16 %v482
  %v1734 = vunpack.c.l.b16 %v483
  %v1735 = vunpack.c.h.b16 %v483
  %v1736 = vunpack.c.l.b16 %v484
  %v1737 = vunpack.c.h.b16 %v484
  %v1738 = vunpack.c.l.b16 %v485
  %v1739 = vunpack.c.h.b16 %v485
  %v1740 = vunpack.c.l.b16 %v486
  %v1741 = vunpack.c.h.b16 %v486
  %v1742 = vunpack.c.l.b16 %v487
  %v1743 = vunpack.c.h.b16 %v487
  %v1744 = vunpack.c.l.b16 %v488
  %v1745 = vunpack.c.h.b16 %v488
  %v1746 = vunpack.c.l.b16 %v489
  %v1747 = vunpack.c.h.b16 %v489
  %v1748 = vunpack.c.l.b16 %v490
  %v1749 = vunpack.c.h.b16 %v490
  %v1750 = vunpack.c.l.b16 %v491
  %v1751 = vunpack.c.h.b16 %v491
  %v1752 = vunpack.c.l.b16 %v492
  %v1753 = vunpack.c.h.b16 %v492
  %v1754 = vunpack.c.l.b16 %v493
  %v1755 = vunpack.c.h.b16 %v493
  %v1756 = vunpack.c.l.b16 %v494
  %v1757 = vunpack.c.h.b16 %v494
  %v1758 = vunpack.c.l.b16 %v495
  %v1759 = vunpack.c.h.b16 %v495
  %v1760 = vunpack.c.l.b16 %v496
  %v1761 = vunpack.c.h.b16 %v496
  %v1762 = vunpack.c.l.b16 %v497
  %v1763 = vunpack.c.h.b16 %v497
  %v1764 = vunpack.c.l.b16 %v498
  %v1765 = vunpack.c.h.b16 %v498
  %v1766 = vunpack.c.l.b16 %v499
  %v1767 = vunpack.c.h.b16 %v499
  %v1768 = vunpack.c.l.b16 %v500
  %v1769 = vunpack.c.h.b16 %v500
  %v1770 = vunpack.c.l.b16 %v501
  %v1771 = vunpack.c.h.b16 %v501
  %v1772 = vunpack.c.l.b16 %v502
  %v1773 = vunpack.c.h.b16 %v502
  %v1774 = vunpack.c.l.b16 %v503
  %v1775 = vunpack.c.h.b16 %v503
  %v1776 = vunpack.c.l.b16 %v504
  %v1777 = vunpack.c.h.b16 %v504
  %v1778 = vunpack.c.l.b16 %v505
  %v1779 = vunpack.c.h.b16 %v505
  %v1780 = vunpack.c.l.b16 %v506
  %v1781 = vunpack.c.h.b16 %v506
  %v1782 = vunpack.c.l.b16 %v507
  %v1783 = vunpack.c.h.b16 %v507
  %v1784 = vunpack.c.l.b16 %v508
  %v1785 = vunpack.c.h.b16 %v508
  %v1786 = vunpack.c.l.b16 %v509
  %v1787 = vunpack.c.h.b16 %v509
  %v1788 = vunpack.c.l.b16 %v510
  %v1789 = vunpack.c.h.b16 %v510
  %v1790 = vunpack.c.l.b16 %v511
  %v1791 = vunpack.c.h.b16 %v511
  %v1792 = vunpack.c.l.b16 %v512
  %v1793 = vunpack.c.h.b16 %v512
  %v1794 = vunpack.c.l.b16 %v513
  %v1795 = vunpack.c.h.b16 %v513
  %v1796 = vunpack.c.l.b16 %v514
  %v1797 = vunpack.c.h.b16 %v514
  %v1798 = vunpack.c.l.b16 %v515
  %v1799 = vunpack.c.h.b16 %v515
  %v1800 = vunpack.c.l.b16 %v516
  %v1801 = vunpack.c.h.b16 %v516
  %v1802 = vunpack.c.l.b16 %v517
  %v1803 = vunpack.c.h.b16 %v517
  %v1804 = vunpack.c.l.b16 %v518
  %v1805 = vunpack.c.h.b16 %v518
  %v1806 = vunpack.c.l.b16 %v519
  %v1807 = vunpack.c.h.b16 %v519
  %v1808 = vunpack.c.l.b16 %v520
  %v1809 = vunpack.c.h.b16 %v520
  %v1810 = vunpack.c.l.b16 %v521
  %v1811 = vunpack.c.h.b16 %v521
  %v1812 = vunpack.c.l.b16 %v522
  %v1813 = vunpack.c.h.b16 %v522
  %v1814 = vunpack.c.l.b16 %v523
  %v1815 = vunpack.c.h.b16 %v523
  %v1816 = vunpack.c.l.b16 %v524
  %v1817 = vunpack.c.h.b16 %v524
  %v1818 = vunpack.c.l.b16 %v525
  %v1819 = vunpack.c.h.b16 %v525
  %v1820 = vunpack.c.l.b16 %v526
  %v1821 = vunpack.c.h.b16 %v526
  %v1822 = vunpack.c.l.b16 %v527
  %v1823 = vunpack.c.h.b16 %v527
  %v1824 = vunpack.c.l.b16 %v528
  %v1825 = vunpack.c.h.b16 %v528
  %v1826 = vunpack.c.l.b16 %v529
  %v1827 = vunpack.c.h.b16 %v529
  %v1828 = vunpack.c.l.b16 %v530
  %v1829 = vunpack.c.h.b16 %v530
  %v1830 = vunpack.c.l.b16 %v531
  %v1831 = vunpack.c.h.b16 %v531
  %v1832 = vunpack.c.l.b16 %v532
  %v1833 = vunpack.c.h.b16 %v532
  %v1834 = vunpack.c.l.b16 %v533
  %v1835 = vunpack.c.h.b16 %v533
  %v1836 = vunpack.c.l.b16 %v534
  %v1837 = vunpack.c.h.b16 %v534
  %v1838 = vunpack.c.l.b16 %v535
  %v1839 = vunpack.c.h.b16 %v535
  %v1840 = vunpack.c.l.b16 %v536
  %v1841 = vunpack.c.h.b16 %v536
  %v1842 = vunpack.c.l.b16 %v537
  %v1843 = vunpack.c.h.b16 %v537
  %v1844 = vunpack.c.l.b16 %v538
  %v1845 = vunpack.c.h.b16 %v538
  %v1846 = vunpack.c.l.b16 %v539
  %v1847 = vunpack.c.h.b16 %v539
  %v1848 = vpack.c.b16 %v986, %v984
  %v1849 = vpack.c.b16 %v987, %v985
  %v1850 = vpack.c.b16 %v990, %v988
  %v1851 = vpack.c.b16 %v991, %v989
  %v1852 = vpack.c.b16 %v994, %v992
  %v1853 = vpack.c.b16 %v995, %v993
  %v1854 = vpack.c.b16 %v998, %v996
  %v1855 = vpack.c.b16 %v999, %v997
  %v1856 = vpack.c.b16 %v1002, %v1000
  %v1857 = vpack.c.b16 %v1003, %v1001
  %v1858 = vpack.c.b16 %v1006, %v1004
  %v1859 = vpack.c.b16 %v1007, %v1005
  %v1860 = vpack.c.b16 %v1010, %v1008
  %v1861 = vpack.c.b16 %v1011, %v1009
  %v1862 = vpack.c.b16 %v1014, %v1012
  %v1863 = vpack.c.b16 %v1015, %v1013
  %v1864 = vpack.c.b16 %v1018, %v1016
  %v1865 = vpack.c.b16 %v1019, %v1017
  %v1866 = vpack.c.b16 %v1022, %v1020
  %v1867 = vpack.c.b16 %v1023, %v1021
  %v1868 = vpack.c.b16 %v1026, %v1024
  %v1869 = vpack.c.b16 %v1027, %v1025
  %v1870 = vpack.c.b16 %v1030, %v1028
  %v1871 = vpack.c.b16 %v1031, %v1029
  %v1872 = vpack.c.b16 %v1034, %v1032
  %v1873 = vpack.c.b16 %v1035, %v1033
  %v1874 = vpack.c.b16 %v1038, %v1036
  %v1875 = vpack.c.b16 %v1039, %v1037
  %v1876 = vpack.c.b16 %v1042, %v1040
  %v1877 = vpack.c.b16 %v1043, %v1041
  %v1878 = vpack.c.b16 %v1046, %v1044
  %v1879 = vpack.c.b16 %v1047, %v1045
  %v1880 = vpack.c.b16 %v1050, %v1048
  %v1881 = vpack.c.b16 %v1051, %v1049
  %v1882 = vpack.c.b16 %v1054, %v1052
  %v1883 = vpack.c.b16 %v1055, %v1053
  %v1884 = vpack.c.b16 %v1058, %v1056
  %v1885 = vpack.c.b16 %v1059, %v1057
  %v1886 = vpack.c.b16 %v1062, %v1060
  %v1887 = vpack.c.b16 %v1063, %v1061
  %v1888 = vpack.c.b16 %v1066, %v1064
  %v1889 = vpack.c.b16 %v1067, %v1065
  %v1890 = vpack.c.b16 %v1070, %v1068
  %v1891 = vpack.c.b16 %v1071, %v1069
  %v1892 = vpack.c.b16 %v1074, %v1072
  %v1893 = vpack.c.b16 %v1075, %v1073
  %v1894 = vpack.c.b16 %v1078, %v1076
  %v1895 = vpack.c.b16 %v1079, %v1077
  %v1896 = vpack.c.b16 %v1082, %v1080
  %v1897 = vpack.c.b16 %v1083, %v1081
  %v1898 = vpack.c.b16 %v1086, %v1084
  %v1899 = vpack.c.b16 %v1087, %v1085
  %v1900 = vpack.c.b16 %v1090, %v1088
  %v1901 = vpack.c.b16 %v1091, %v1089
  %v1902 = vpack.c.b16 %v1094, %v1092
  %v1903 = vpack.c.b16 %v1095, %v1093
  %v1904 = vpack.c.b16 %v1098, %v1096
  %v1905 = vpack.c.b16 %v1099, %v1097
  %v1906 = vpack.c.b16 %v1102, %v1100
  %v1907 = vpack.c.b16 %v1103, %v1101
  %v1908 = vpack.c.b16 %v1106, %v1104
  %v1909 = vpack.c.b16 %v1107, %v1105
  %v1910 = vpack.c.b16 %v1110, %v1108
  %v1911 = vpack.c.b16 %v1111, %v1109
  %v1912 = vpack.c.b16 %v1114, %v1112
  %v1913 = vpack.c.b16 %v1115, %v1113
  %v1914 = vpack.c.b16 %v1118, %v1116
  %v1915 = vpack.c.b16 %v1119, %v1117
  %v1916 = vpack.c.b16 %v1122, %v1120
  %v1917 = vpack.c.b16 %v1123, %v1121
  %v1918 = vpack.c.b16 %v1126, %v1124
  %v1919 = vpack.c.b16 %v1127, %v1125
  %v1920 = vpack.c.b16 %v1130, %v1128
  %v1921 = vpack.c.b16 %v1131, %v1129
  %v1922 = vpack.c.b16 %v1134, %v1132
  %v1923 = vpack.c.b16 %v1135, %v1133
  %v1924 = vpack.c.b16 %v1138, %v1136
  %v1925 = vpack.c.b16 %v1139, %v1137
  %v1926 = vpack.c.b16 %v1142, %v1140
  %v1927 = vpack.c.b16 %v1143, %v1141
  %v1928 = vpack.c.b16 %v1146, %v1144
  %v1929 = vpack.c.b16 %v1147, %v1145
  %v1930 = vpack.c.b16 %v1150, %v1148
  %v1931 = vpack.c.b16 %v1151, %v1149
  %v1932 = vpack.c.b16 %v1154, %v1152
  %v1933 = vpack.c.b16 %v1155, %v1153
  %v1934 = vpack.c.b16 %v1158, %v1156
  %v1935 = vpack.c.b16 %v1159, %v1157
  %v1936 = vpack.c.b16 %v1162, %v1160
  %v1937 = vpack.c.b16 %v1163, %v1161
  %v1938 = vpack.c.b16 %v1166, %v1164
  %v1939 = vpack.c.b16 %v1167, %v1165
  %v1940 = vpack.c.b16 %v1170, %v1168
  %v1941 = vpack.c.b16 %v1171, %v1169
  %v1942 = vpack.c.b16 %v1174, %v1172
  %v1943 = vpack.c.b16 %v1175, %v1173
  %v1944 = vpack.c.b16 %v1178, %v1176
  %v1945 = vpack.c.b16 %v1179, %v1177
  %v1946 = vpack.c.b16 %v1182, %v1180
  %v1947 = vpack.c.b16 %v1183, %v1181
  %v1948 = vpack.c.b16 %v1186, %v1184
  %v1949 = vpack.c.b16 %v1187, %v1185
  %v1950 = vpack.c.b16 %v1190, %v1188
  %v1951 = vpack.c.b16 %v1191, %v1189
  %v1952 = vpack.c.b16 %v1194, %v1192
  %v1953 = vpack.c.b16 %v1195, %v1193
  %v1954 = vpack.c.b16 %v1198, %v1196
  %v1955 = vpack.c.b16 %v1199, %v1197
  %v1956 = vpack.c.b16 %v1202, %v1200
  %v1957 = vpack.c.b16 %v1203, %v1201
  %v1958 = vpack.c.b16 %v1206, %v1204
  %v1959 = vpack.c.b16 %v1207, %v1205
  %v1960 = vpack.c.b16 %v1210, %v1208
  %v1961 = vpack.c.b16 %v1211, %v1209
  %v1962 = vpack.c.b16 %v1214, %v1212
  %v1963 = vpack.c.b16 %v1215, %v1213
  %v1964 = vpack.c.b16 %v1218, %v1216
  %v1965 = vpack.c.b16 %v1219, %v1217
  %v1966 = vpack.c.b16 %v1222, %v1220
  %v1967 = vpack.c.b16 %v1223, %v1221
  %v1968 = vpack.c.b16 %v1226, %v1224
  %v1969 = vpack.c.b16 %v1227, %v1225
  %v1970 = vpack.c.b16 %v1230, %v1228
  %v1971 = vpack.c.b16 %v1231, %v1229
  %v1972 = vpack.c.b16 %v1234, %v1232
  %v1973 = vpack.c.b16 %v1235, %v1233
  %v1974 = vpack.c.b16 %v1238, %v1236
  %v1975 = vpack.c.b16 %v1239, %v1237
  %v1976 = vpack.c.b16 %v1242, %v1240
  %v1977 = vpack.c.b16 %v1243, %v1241
  %v1978 = vpack.c.b16 %v1246, %v1244
  %v1979 = vpack.c.b16 %v1247, %v1245
  %v1980 = vpack.c.b16 %v1250, %v1248
  %v1981 = vpack.c.b16 %v1251, %v1249
  %v1982 = vpack.c.b16 %v1254, %v1252
  %v1983 = vpack.c.b16 %v1255, %v1253
  %v1984 = vpack.c.b16 %v1258, %v1256
  %v1985 = vpack.c.b16 %v1259, %v1257
  %v1986 = vpack.c.b16 %v1262, %v1260
  %v1987 = vpack.c.b16 %v1263, %v1261
  %v1988 = vpack.c.b16 %v1266, %v1264
  %v1989 = vpack.c.b16 %v1267, %v1265
  %v1990 = vpack.c.b16 %v1270, %v1268
  %v1991 = vpack.c.b16 %v1271, %v1269
  %v1992 = vpack.c.b16 %v1274, %v1272
  %v1993 = vpack.c.b16 %v1275, %v1273
  %v1994 = vpack.c.b16 %v1278, %v1276
  %v1995 = vpack.c.b16 %v1279, %v1277
  %v1996 = vpack.c.b16 %v1282, %v1280
  %v1997 = vpack.c.b16 %v1283, %v1281
  %v1998 = vpack.c.b16 %v1286, %v1284
  %v1999 = vpack.c.b16 %v1287, %v1285
  %v2000 = vpack.c.b16 %v1290, %v1288
  %v2001 = vpack.c.b16 %v1291, %v1289
  %v2002 = vpack.c.b16 %v1294, %v1292
  %v2003 = vpack.c.b16 %v1295, %v1293
  %v2004 = vpack.c.b16 %v1298, %v1296
  %v2005 = vpack.c.b16 %v1299, %v1297
  %v2006 = vpack.c.b16 %v1302, %v1300
  %v2007 = vpack.c.b16 %v1303, %v1301
  %v2008 = vpack.c.b16 %v1306, %v1304
  %v2009 = vpack.c.b16 %v1307, %v1305
  %v2010 = vpack.c.b16 %v1310, %v1308
  %v2011 = vpack.c.b16 %v1311, %v1309
  %v2012 = vpack.c.b16 %v1314, %v1312
  %v2013 = vpack.c.b16 %v1315, %v1313
  %v2014 = vpack.c.b16 %v1318, %v1316
  %v2015 = vpack.c.b16 %v1319, %v1317
  %v2016 = vpack.c.b16 %v1322, %v1320
  %v2017 = vpack.c.b16 %v1323, %v1321
  %v2018 = vpack.c.b16 %v1326, %v1324
  %v2019 = vpack.c.b16 %v1327, %v1325
  %v2020 = vpack.c.b16 %v1330, %v1328
  %v2021 = vpack.c.b16 %v1331, %v1329
  %v2022 = vpack.c.b16 %v1334, %v1332
  %v2023 = vpack.c.b16 %v1335, %v1333
  %v2024 = vpack.c.b16 %v1338, %v1336
  %v2025 = vpack.c.b16 %v1339, %v1337
  %v2026 = vpack.c.b16 %v1342, %v1340
  %v2027 = vpack.c.b16 %v1343, %v1341
  %v2028 = vpack.c.b16 %v1346, %v1344
  %v2029 = vpack.c.b16 %v1347, %v1345
  %v2030 = vpack.c.b16 %v1350, %v1348
  %v2031 = vpack.c.b16 %v1351, %v1349
  %v2032 = vpack.c.b16 %v1354, %v1352
  %v2033 = vpack.c.b16 %v1355, %v1353
  %v2034 = vpack.c.b16 %v1358, %v1356
  %v2035 = vpack.c.b16 %v1359, %v1357
  %v2036 = vpack.c.b16 %v1362, %v1360
  %v2037 = vpack.c.b16 %v1363, %v1361
  %v2038 = vpack.c.b16 %v1366, %v1364
  %v2039 = vpack.c.b16 %v1367, %v1365
  %v2040 = vpack.c.b16 %v1370, %v1368
  %v2041 = vpack.c.b16 %v1371, %v1369
  %v2042 = vpack.c.b16 %v1374, %v1372
  %v2043 = vpack.c.b16 %v1375, %v1373
  %v2044 = vpack.c.b16 %v1378, %v1376
  %v2045 = vpack.c.b16 %v1379, %v1377
  %v2046 = vpack.c.b16 %v1382, %v1380
  %v2047 = vpack.c.b16 %v1383, %v1381
  %v2048 = vpack.c.b16 %v1386, %v1384
  %v2049 = vpack.c.b16 %v1387, %v1385
  %v2050 = vpack.c.b16 %v1390, %v1388
  %v2051 = vpack.c.b16 %v1391, %v1389
  %v2052 = vpack.c.b16 %v1394, %v1392
  %v2053 = vpack.c.b16 %v1395, %v1393
  %v2054 = vpack.c.b16 %v1398, %v1396
  %v2055 = vpack.c.b16 %v1399, %v1397
  %v2056 = vpack.c.b16 %v1402, %v1400
  %v2057 = vpack.c.b16 %v1403, %v1401
  %v2058 = vpack.c.b16 %v1406, %v1404
  %v2059 = vpack.c.b16 %v1407, %v1405
  %v2060 = vpack.c.b16 %v1410, %v1408
  %v2061 = vpack.c.b16 %v1411, %v1409
  %v2062 = vpack.c.b16 %v1414, %v1412
  %v2063 = vpack.c.b16 %v1415, %v1413
  %v2064 = vpack.c.b16 %v1418, %v1416
  %v2065 = vpack.c.b16 %v1419, %v1417
  %v2066 = vpack.c.b16 %v1422, %v1420
  %v2067 = vpack.c.b16 %v1423, %v1421
  %v2068 = vpack.c.b16 %v1426, %v1424
  %v2069 = vpack.c.b16 %v1427, %v1425
  %v2070 = vpack.c.b16 %v1430, %v1428
  %v2071 = vpack.c.b16 %v1431, %v1429
  %v2072 = vpack.c.b16 %v1434, %v1432
  %v2073 = vpack.c.b16 %v1435, %v1433
  %v2074 = vpack.c.b16 %v1438, %v1436
  %v2075 = vpack.c.b16 %v1439, %v1437
  %v2076 = vpack.c.b16 %v1442, %v1440
  %v2077 = vpack.c.b16 %v1443, %v1441
  %v2078 = vpack.c.b16 %v1446, %v1444
  %v2079 = vpack.c.b16 %v1447, %v1445
  %v2080 = vpack.c.b16 %v1450, %v1448
  %v2081 = vpack.c.b16 %v1451, %v1449
  %v2082 = vpack.c.b16 %v1454, %v1452
  %v2083 = vpack.c.b16 %v1455, %v1453
  %v2084 = vpack.c.b16 %v1458, %v1456
  %v2085 = vpack.c.b16 %v1459, %v1457
  %v2086 = vpack.c.b16 %v1462, %v1460
  %v2087 = vpack.c.b16 %v1463, %v1461
  %v2088 = vpack.c.b16 %v1466, %v1464
  %v2089 = vpack.c.b16 %v1467, %v1465
  %v2090 = vpack.c.b16 %v1470, %v1468
  %v2091 = vpack.c.b16 %v1471, %v1469
  %v2092 = vpack.c.b16 %v1474, %v1472
  %v2093 = vpack.c.b16 %v1475, %v1473
  %v2094 = vpack.c.b16 %v1478, %v1476
  %v2095 = vpack.c.b16 %v1479, %v1477
  %v2096 = vpack.c.b16 %v1482, %v1480
  %v2097 = vpack.c.b16 %v1483, %v1481
  %v2098 = vpack.c.b16 %v1486, %v1484
  %v2099 = vpack.c.b16 %v1487, %v1485
  %v2100 = vpack.c.b16 %v1490, %v1488
  %v2101 = vpack.c.b16 %v1491, %v1489
  %v2102 = vpack.c.b16 %v1494, %v1492
  %v2103 = vpack.c.b16 %v1495, %v1493
  %v2104 = vpack.c.b16 %v1498, %v1496
  %v2105 = vpack.c.b16 %v1499, %v1497
  %v2106 = vpack.c.b16 %v1502, %v1500
  %v2107 = vpack.c.b16 %v1503, %v1501
  %v2108 = vpack.c.b16 %v1506, %v1504
  %v2109 = vpack.c.b16 %v1507, %v1505
  %v2110 = vpack.c.b16 %v1510, %v1508
  %v2111 = vpack.c.b16 %v1511, %v1509
  %v2112 = vpack.c.b16 %v1514, %v1512
  %v2113 = vpack.c.b16 %v1515, %v1513
  %v2114 = vpack.c.b16 %v1518, %v1516
  %v2115 = vpack.c.b16 %v1519, %v1517
  %v2116 = vpack.c.b16 %v1522, %v1520
  %v2117 = vpack.c.b16 %v1523, %v1521
  %v2118 = vpack.c.b16 %v1526, %v1524
  %v2119 = vpack.c.b16 %v1527, %v1525
  %v2120 = vpack.c.b16 %v1530, %v1528
  %v2121 = vpack.c.b16 %v1531, %v1529
  %v2122 = vpack.c.b16 %v1534, %v1532
  %v2123 = vpack.c.b16 %v1535, %v1533
  %v2124 = vpack.c.b16 %v1538, %v1536
  %v2125 = vpack.c.b16 %v1539, %v1537
  %v2126 = vpack.c.b16 %v1542, %v1540
  %v2127 = vpack.c.b16 %v1543, %v1541
  %v2128 = vpack.c.b16 %v1546, %v1544
  %v2129 = vpack.c.b16 %v1547, %v1545
  %v2130 = vpack.c.b16 %v1550, %v1548
  %v2131 = vpack.c.b16 %v1551, %v1549
  %v2132 = vpack.c.b16 %v1554, %v1552
  %v2133 = vpack.c.b16 %v1555, %v1553
  %v2134 = vpack.c.b16 %v1558, %v1556
  %v2135 = vpack.c.b16 %v1559, %v1557
  %v2136 = vpack.c.b16 %v1562, %v1560
  %v2137 = vpack.c.b16 %v1563, %v1561
  %v2138 = vpack.c.b16 %v1566, %v1564
  %v2139 = vpack.c.b16 %v1567, %v1565
  %v2140 = vpack.c.b16 %v1570, %v1568
  %v2141 = vpack.c.b16 %v1571, %v1569
  %v2142 = vpack.c.b16 %v1574, %v1572
  %v2143 = vpack.c.b16 %v1575, %v1573
  %v2144 = vpack.c.b16 %v1578, %v1576
  %v2145 = vpack.c.b16 %v1579, %v1577
  %v2146 = vpack.c.b16 %v1582, %v1580
  %v2147 = vpack.c.b16 %v1583, %v1581
  %v2148 = vpack.c.b16 %v1586, %v1584
  %v2149 = vpack.c.b16 %v1587, %v1585
  %v2150 = vpack.c.b16 %v1590, %v1588
  %v2151 = vpack.c.b16 %v1591, %v1589
  %v2152 = vpack.c.b16 %v1594, %v1592
  %v2153 = vpack.c.b16 %v1595, %v1593
  %v2154 = vpack.c.b16 %v1598, %v1596
  %v2155 = vpack.c.b16 %v1599, %v1597
  %v2156 = vpack.c.b16 %v1602, %v1600
  %v2157 = vpack.c.b16 %v1603, %v1601
  %v2158 = vpack.c.b16 %v1606, %v1604
  %v2159 = vpack.c.b16 %v1607, %v1605
  %v2160 = vpack.c.b16 %v1610, %v1608
  %v2161 = vpack.c.b16 %v1611, %v1609
  %v2162 = vpack.c.b16 %v1614, %v1612
  %v2163 = vpack.c.b16 %v1615, %v1613
  %v2164 = vpack.c.b16 %v1618, %v1616
  %v2165 = vpack.c.b16 %v1619, %v1617
  %v2166 = vpack.c.b16 %v1622, %v1620
  %v2167 = vpack.c.b16 %v1623, %v1621
  %v2168 = vpack.c.b16 %v1626, %v1624
  %v2169 = vpack.c.b16 %v1627, %v1625
  %v2170 = vpack.c.b16 %v1630, %v1628
  %v2171 = vpack.c.b16 %v1631, %v1629
  %v2172 = vpack.c.b16 %v1634, %v1632
  %v2173 = vpack.c.b16 %v1635, %v1633
  %v2174 = vpack.c.b16 %v1638, %v1636
  %v2175 = vpack.c.b16 %v1639, %v1637
  %v2176 = vpack.c.b16 %v1642, %v1640
  %v2177 = vpack.c.b16 %v1643, %v1641
  %v2178 = vpack.c.b16 %v1646, %v1644
  %v2179 = vpack.c.b16 %v1647, %v1645
  %v2180 = vpack.c.b16 %v1650, %v1648
  %v2181 = vpack.c.b16 %v1651, %v1649
  %v2182 = vpack.c.b16 %v1654, %v1652
  %v2183 = vpack.c.b16 %v1655, %v1653
  %v2184 = vpack.c.b16 %v1658, %v1656
  %v2185 = vpack.c.b16 %v1659, %v1657
  %v2186 = vpack.c.b16 %v1662, %v1660
  %v2187 = vpack.c.b16 %v1663, %v1661
  %v2188 = vpack.c.b16 %v1666, %v1664
  %v2189 = vpack.c.b16 %v1667, %v1665
  %v2190 = vpack.c.b16 %v1670, %v1668
  %v2191 = vpack.c.b16 %v1671, %v1669
  %v2192 = vpack.c.b16 %v1674, %v1672
  %v2193 = vpack.c.b16 %v1675, %v1673
  %v2194 = vpack.c.b16 %v1678, %v1676
  %v2195 = vpack.c.b16 %v1679, %v1677
  %v2196 = vpack.c.b16 %v1682, %v1680
  %v2197 = vpack.c.b16 %v1683, %v1681
  %v2198 = vpack.c.b16 %v1686, %v1684
  %v2199 = vpack.c.b16 %v1687, %v1685
  %v2200 = vpack.c.b16 %v1690, %v1688
  %v2201 = vpack.c.b16 %v1691, %v1689
  %v2202 = vpack.c.b16 %v1694, %v1692
  %v2203 = vpack.c.b16 %v1695, %v1693
  %v2204 = vpack.c.b16 %v1698, %v1696
  %v2205 = vpack.c.b16 %v1699, %v1697
  %v2206 = vpack.c.b16 %v1702, %v1700
  %v2207 = vpack.c.b16 %v1703, %v1701
  %v2208 = vpack.c.b16 %v1706, %v1704
  %v2209 = vpack.c.b16 %v1707, %v1705
  %v2210 = vpack.c.b16 %v1710, %v1708
  %v2211 = vpack.c.b16 %v1711, %v1709
  %v2212 = vpack.c.b16 %v1714, %v1712
  %v2213 = vpack.c.b16 %v1715, %v1713
  %v2214 = vpack.c.b16 %v1718, %v1716
  %v2215 = vpack.c.b16 %v1719, %v1717
  %v2216 = vpack.c.b16 %v1722, %v1720
  %v2217 = vpack.c.b16 %v1723, %v1721
  %v2218 = vpack.c.b16 %v1726, %v1724
  %v2219 = vpack.c.b16 %v1727, %v1725
  %v2220 = vpack.c.b16 %v1730, %v1728
  %v2221 = vpack.c.b16 %v1731, %v1729
  %v2222 = vpack.c.b16 %v1734, %v1732
  %v2223 = vpack.c.b16 %v1735, %v1733
  %v2224 = vpack.c.b16 %v1738, %v1736
  %v2225 = vpack.c.b16 %v1739, %v1737
  %v2226 = vpack.c.b16 %v1742, %v1740
  %v2227 = vpack.c.b16 %v1743, %v1741
  %v2228 = vpack.c.b16 %v1746, %v1744
  %v2229 = vpack.c.b16 %v1747, %v1745
  %v2230 = vpack.c.b16 %v1750, %v1748
  %v2231 = vpack.c.b16 %v1751, %v1749
  %v2232 = vpack.c.b16 %v1754, %v1752
  %v2233 = vpack.c.b16 %v1755, %v1753
  %v2234 = vpack.c.b16 %v1758, %v1756
  %v2235 = vpack.c.b16 %v1759, %v1757
  %v2236 = vpack.c.b16 %v1762, %v1760
  %v2237 = vpack.c.b16 %v1763, %v1761
  %v2238 = vpack.c.b16 %v1766, %v1764
  %v2239 = vpack.c.b16 %v1767, %v1765
  %v2240 = vpack.c.b16 %v1770, %v1768
  %v2241 = vpack.c.b16 %v1771, %v1769
  %v2242 = vpack.c.b16 %v1774, %v1772
  %v2243 = vpack.c.b16 %v1775, %v1773
  %v2244 = vpack.c.b16 %v1778, %v1776
  %v2245 = vpack.c.b16 %v1779, %v1777
  %v2246 = vpack.c.b16 %v1782, %v1780
  %v2247 = vpack.c.b16 %v1783, %v1781
  %v2248 = vpack.c.b16 %v1786, %v1784
  %v2249 = vpack.c.b16 %v1787, %v1785
  %v2250 = vpack.c.b16 %v1790, %v1788
  %v2251 = vpack.c.b16 %v1791, %v1789
  %v2252 = vpack.c.b16 %v1794, %v1792
  %v2253 = vpack.c.b16 %v1795, %v1793
  %v2254 = vpack.c.b16 %v1798, %v1796
  %v2255 = vpack.c.b16 %v1799, %v1797
  %v2256 = vpack.c.b16 %v1802, %v1800
  %v2257 = vpack.c.b16 %v1803, %v1801
  %v2258 = vpack.c.b16 %v1806, %v1804
  %v2259 = vpack.c.b16 %v1807, %v1805
  %v2260 = vpack.c.b16 %v1810, %v1808
  %v2261 = vpack.c.b16 %v1811, %v1809
  %v2262 = vpack.c.b16 %v1814, %v1812
  %v2263 = vpack.c.b16 %v1815, %v1813
  %v2264 = vpack.c.b16 %v1818, %v1816
  %v2265 = vpack.c.b16 %v1819, %v1817
  %v2266 = vpack.c.b16 %v1822, %v1820
  %v2267 = vpack.c.b16 %v1823, %v1821
  %v2268 = vpack.c.b16 %v1826, %v1824
  %v2269 = vpack.c.b16 %v1827, %v1825
  %v2270 = vpack.c.b16 %v1830, %v1828
  %v2271 = vpack.c.b16 %v1831, %v1829
  %v2272 = vpack.c.b16 %v1834, %v1832
  %v2273 = vpack.c.b16 %v1835, %v1833
  %v2274 = vpack.c.b16 %v1838, %v1836
  %v2275 = vpack.c.b16 %v1839, %v1837
  %v2276 = vpack.c.b16 %v1842, %v1840
  %v2277 = vpack.c.b16 %v1843, %v1841
  %v2278 = vpack.c.b16 %v1846, %v1844
  %v2279 = vpack.c.b16 %v1847, %v1845
  %2712 = vmatprep.subr.bf16.mxu0 %v1863
  %2713 = vmatpush1.bf16.msra.mxu0 %v1862
  %2714 = vmatprep.subr.bf16.mxu0 %v1861
  %2715 = vmatpush1.bf16.msra.mxu0 %v1860
  %2716 = vmatprep.subr.bf16.mxu0 %v1859
  %2717 = vmatpush1.bf16.msra.mxu0 %v1858
  %2718 = vmatprep.subr.bf16.mxu0 %v1857
  %2719 = vmatpush1.bf16.msra.mxu0 %v1856
  %2720 = vmatprep.subr.bf16.mxu0 %v1855
  %2721 = vmatpush1.bf16.msra.mxu0 %v1854
  %2722 = vmatprep.subr.bf16.mxu0 %v1853
  %2723 = vmatpush1.bf16.msra.mxu0 %v1852
  %2724 = vmatprep.subr.bf16.mxu0 %v1851
  %2725 = vmatpush1.bf16.msra.mxu0 %v1850
  %2726 = vmatprep.subr.bf16.mxu0 %v1849
  %2727 = vmatpush1.bf16.msra.mxu0 %v1848
  %2728 = vmatprep.subr.bf16.mxu0 %v1879
  %2729 = vmatpush2.bf16.msra.mxu0 %v1878
  %2730 = vmatprep.subr.bf16.mxu0 %v1877
  %2731 = vmatpush2.bf16.msra.mxu0 %v1876
  %2732 = vmatprep.subr.bf16.mxu0 %v1875
  %2733 = vmatpush2.bf16.msra.mxu0 %v1874
  %2734 = vmatprep.subr.bf16.mxu0 %v1873
  %2735 = vmatpush2.bf16.msra.mxu0 %v1872
  %2736 = vmatprep.subr.bf16.mxu0 %v1871
  %2737 = vmatpush2.bf16.msra.mxu0 %v1870
  %2738 = vmatprep.subr.bf16.mxu0 %v1869
  %2739 = vmatpush2.bf16.msra.mxu0 %v1868
  %2740 = vmatprep.subr.bf16.mxu0 %v1867
  %2741 = vmatpush2.bf16.msra.mxu0 %v1866
  %2742 = vmatprep.subr.bf16.mxu0 %v1865
  %2743 = vmatpush2.bf16.msra.mxu0 %v1864
  %2744 = vmatprep.mubr.bf16.mxu0 %v82
  %2745 = vmatmul.mubr.bf16.gmra.mxu0 %v81
  %v2746 = vpop.f32.mrf.mxu0
  %v2747 = vadd.f32 %v545, %v2746
  %v2748 = vpop.f32.mrf.mxu0
  %v2749 = vadd.f32 %v549, %v2748
  %v2750 = vpop.f32.mrf.mxu0
  %v2751 = vpop.f32.mrf.mxu0
  %2752 = vdwg.mxu0
  %2753 = vmatprep.subr.bf16.mxu0 %v1895
  %2754 = vmatpush1.bf16.msra.mxu0 %v1894
  %2755 = vmatprep.subr.bf16.mxu0 %v1893
  %2756 = vmatpush1.bf16.msra.mxu0 %v1892
  %2757 = vmatprep.subr.bf16.mxu0 %v1891
  %2758 = vmatpush1.bf16.msra.mxu0 %v1890
  %2759 = vmatprep.subr.bf16.mxu0 %v1889
  %2760 = vmatpush1.bf16.msra.mxu0 %v1888
  %2761 = vmatprep.subr.bf16.mxu0 %v1887
  %2762 = vmatpush1.bf16.msra.mxu0 %v1886
  %2763 = vmatprep.subr.bf16.mxu0 %v1885
  %2764 = vmatpush1.bf16.msra.mxu0 %v1884
  %2765 = vmatprep.subr.bf16.mxu0 %v1883
  %2766 = vmatpush1.bf16.msra.mxu0 %v1882
  %2767 = vmatprep.subr.bf16.mxu0 %v1881
  %2768 = vmatpush1.bf16.msra.mxu0 %v1880
  %2769 = vmatprep.subr.bf16.mxu0 %v1911
  %2770 = vmatpush2.bf16.msra.mxu0 %v1910
  %2771 = vmatprep.subr.bf16.mxu0 %v1909
  %2772 = vmatpush2.bf16.msra.mxu0 %v1908
  %2773 = vmatprep.subr.bf16.mxu0 %v1907
  %2774 = vmatpush2.bf16.msra.mxu0 %v1906
  %2775 = vmatprep.subr.bf16.mxu0 %v1905
  %2776 = vmatpush2.bf16.msra.mxu0 %v1904
  %2777 = vmatprep.subr.bf16.mxu0 %v1903
  %2778 = vmatpush2.bf16.msra.mxu0 %v1902
  %2779 = vmatprep.subr.bf16.mxu0 %v1901
  %2780 = vmatpush2.bf16.msra.mxu0 %v1900
  %2781 = vmatprep.subr.bf16.mxu0 %v1899
  %2782 = vmatpush2.bf16.msra.mxu0 %v1898
  %2783 = vmatprep.subr.bf16.mxu0 %v1897
  %2784 = vmatpush2.bf16.msra.mxu0 %v1896
  %2785 = vmatprep.mubr.bf16.mxu0 %v84
  %2786 = vmatmul.mubr.bf16.gmra.mxu0 %v83
  %v2787 = vpop.f32.mrf.mxu0
  %v2788 = vadd.f32 %v2747, %v2787
  %v2789 = vpop.f32.mrf.mxu0
  %v2790 = vadd.f32 %v2749, %v2789
  %v2791 = vpop.f32.mrf.mxu0
  %v2792 = vpop.f32.mrf.mxu0
  %2793 = vdwg.mxu0
  %2794 = vmatprep.subr.bf16.mxu0 %v1927
  %2795 = vmatpush1.bf16.msra.mxu0 %v1926
  %2796 = vmatprep.subr.bf16.mxu0 %v1925
  %2797 = vmatpush1.bf16.msra.mxu0 %v1924
  %2798 = vmatprep.subr.bf16.mxu0 %v1923
  %2799 = vmatpush1.bf16.msra.mxu0 %v1922
  %2800 = vmatprep.subr.bf16.mxu0 %v1921
  %2801 = vmatpush1.bf16.msra.mxu0 %v1920
  %2802 = vmatprep.subr.bf16.mxu0 %v1919
  %2803 = vmatpush1.bf16.msra.mxu0 %v1918
  %2804 = vmatprep.subr.bf16.mxu0 %v1917
  %2805 = vmatpush1.bf16.msra.mxu0 %v1916
  %2806 = vmatprep.subr.bf16.mxu0 %v1915
  %2807 = vmatpush1.bf16.msra.mxu0 %v1914
  %2808 = vmatprep.subr.bf16.mxu0 %v1913
  %2809 = vmatpush1.bf16.msra.mxu0 %v1912
  %2810 = vmatprep.subr.bf16.mxu0 %v1943
  %2811 = vmatpush2.bf16.msra.mxu0 %v1942
  %2812 = vmatprep.subr.bf16.mxu0 %v1941
  %2813 = vmatpush2.bf16.msra.mxu0 %v1940
  %2814 = vmatprep.subr.bf16.mxu0 %v1939
  %2815 = vmatpush2.bf16.msra.mxu0 %v1938
  %2816 = vmatprep.subr.bf16.mxu0 %v1937
  %2817 = vmatpush2.bf16.msra.mxu0 %v1936
  %2818 = vmatprep.subr.bf16.mxu0 %v1935
  %2819 = vmatpush2.bf16.msra.mxu0 %v1934
  %2820 = vmatprep.subr.bf16.mxu0 %v1933
  %2821 = vmatpush2.bf16.msra.mxu0 %v1932
  %2822 = vmatprep.subr.bf16.mxu0 %v1931
  %2823 = vmatpush2.bf16.msra.mxu0 %v1930
  %2824 = vmatprep.subr.bf16.mxu0 %v1929
  %2825 = vmatpush2.bf16.msra.mxu0 %v1928
  %2826 = vmatprep.mubr.bf16.mxu0 %v86
  %2827 = vmatmul.mubr.bf16.gmra.mxu0 %v85
  %v2828 = vpop.f32.mrf.mxu0
  %v2829 = vadd.f32 %v2788, %v2828
  %v2830 = vpop.f32.mrf.mxu0
  %v2831 = vadd.f32 %v2790, %v2830
  %v2832 = vpop.f32.mrf.mxu0
  %v2833 = vpop.f32.mrf.mxu0
  %2834 = vdwg.mxu0
  %2835 = vmatprep.subr.bf16.mxu0 %v1959
  %2836 = vmatpush1.bf16.msra.mxu0 %v1958
  %2837 = vmatprep.subr.bf16.mxu0 %v1957
  %2838 = vmatpush1.bf16.msra.mxu0 %v1956
  %2839 = vmatprep.subr.bf16.mxu0 %v1955
  %2840 = vmatpush1.bf16.msra.mxu0 %v1954
  %2841 = vmatprep.subr.bf16.mxu0 %v1953
  %2842 = vmatpush1.bf16.msra.mxu0 %v1952
  %2843 = vmatprep.subr.bf16.mxu0 %v1951
  %2844 = vmatpush1.bf16.msra.mxu0 %v1950
  %2845 = vmatprep.subr.bf16.mxu0 %v1949
  %2846 = vmatpush1.bf16.msra.mxu0 %v1948
  %2847 = vmatprep.subr.bf16.mxu0 %v1947
  %2848 = vmatpush1.bf16.msra.mxu0 %v1946
  %2849 = vmatprep.subr.bf16.mxu0 %v1945
  %2850 = vmatpush1.bf16.msra.mxu0 %v1944
  %2851 = vmatprep.subr.bf16.mxu0 %v1975
  %2852 = vmatpush2.bf16.msra.mxu0 %v1974
  %2853 = vmatprep.subr.bf16.mxu0 %v1973
  %2854 = vmatpush2.bf16.msra.mxu0 %v1972
  %2855 = vmatprep.subr.bf16.mxu0 %v1971
  %2856 = vmatpush2.bf16.msra.mxu0 %v1970
  %2857 = vmatprep.subr.bf16.mxu0 %v1969
  %2858 = vmatpush2.bf16.msra.mxu0 %v1968
  %2859 = vmatprep.subr.bf16.mxu0 %v1967
  %2860 = vmatpush2.bf16.msra.mxu0 %v1966
  %2861 = vmatprep.subr.bf16.mxu0 %v1965
  %2862 = vmatpush2.bf16.msra.mxu0 %v1964
  %2863 = vmatprep.subr.bf16.mxu0 %v1963
  %2864 = vmatpush2.bf16.msra.mxu0 %v1962
  %2865 = vmatprep.subr.bf16.mxu0 %v1961
  %2866 = vmatpush2.bf16.msra.mxu0 %v1960
  %2867 = vmatprep.mubr.bf16.mxu0 %v88
  %2868 = vmatmul.mubr.bf16.gmra.mxu0 %v87
  %v2869 = vpop.f32.mrf.mxu0
  %v2870 = vadd.f32 %v2829, %v2869
  %v2871 = vpop.f32.mrf.mxu0
  %v2872 = vadd.f32 %v2831, %v2871
  %v2873 = vpop.f32.mrf.mxu0
  %v2874 = vpop.f32.mrf.mxu0
  %2875 = vdwg.mxu0
  %2876 = vmatprep.subr.bf16.mxu0 %v1991
  %2877 = vmatpush1.bf16.msra.mxu0 %v1990
  %2878 = vmatprep.subr.bf16.mxu0 %v1989
  %2879 = vmatpush1.bf16.msra.mxu0 %v1988
  %2880 = vmatprep.subr.bf16.mxu0 %v1987
  %2881 = vmatpush1.bf16.msra.mxu0 %v1986
  %2882 = vmatprep.subr.bf16.mxu0 %v1985
  %2883 = vmatpush1.bf16.msra.mxu0 %v1984
  %2884 = vmatprep.subr.bf16.mxu0 %v1983
  %2885 = vmatpush1.bf16.msra.mxu0 %v1982
  %2886 = vmatprep.subr.bf16.mxu0 %v1981
  %2887 = vmatpush1.bf16.msra.mxu0 %v1980
  %2888 = vmatprep.subr.bf16.mxu0 %v1979
  %2889 = vmatpush1.bf16.msra.mxu0 %v1978
  %2890 = vmatprep.subr.bf16.mxu0 %v1977
  %2891 = vmatpush1.bf16.msra.mxu0 %v1976
  %2892 = vmatprep.subr.bf16.mxu0 %v2007
  %2893 = vmatpush2.bf16.msra.mxu0 %v2006
  %2894 = vmatprep.subr.bf16.mxu0 %v2005
  %2895 = vmatpush2.bf16.msra.mxu0 %v2004
  %2896 = vmatprep.subr.bf16.mxu0 %v2003
  %2897 = vmatpush2.bf16.msra.mxu0 %v2002
  %2898 = vmatprep.subr.bf16.mxu0 %v2001
  %2899 = vmatpush2.bf16.msra.mxu0 %v2000
  %2900 = vmatprep.subr.bf16.mxu0 %v1999
  %2901 = vmatpush2.bf16.msra.mxu0 %v1998
  %2902 = vmatprep.subr.bf16.mxu0 %v1997
  %2903 = vmatpush2.bf16.msra.mxu0 %v1996
  %2904 = vmatprep.subr.bf16.mxu0 %v1995
  %2905 = vmatpush2.bf16.msra.mxu0 %v1994
  %2906 = vmatprep.subr.bf16.mxu0 %v1993
  %2907 = vmatpush2.bf16.msra.mxu0 %v1992
  %2908 = vmatprep.mubr.bf16.mxu0 %v90
  %2909 = vmatmul.mubr.bf16.gmra.mxu0 %v89
  %v2910 = vpop.f32.mrf.mxu0
  %v2911 = vadd.f32 %v2870, %v2910
  %v2912 = vpop.f32.mrf.mxu0
  %v2913 = vadd.f32 %v2872, %v2912
  %v2914 = vpop.f32.mrf.mxu0
  %v2915 = vpop.f32.mrf.mxu0
  %2916 = vdwg.mxu0
  %2917 = vmatprep.subr.bf16.mxu0 %v2023
  %2918 = vmatpush1.bf16.msra.mxu0 %v2022
  %2919 = vmatprep.subr.bf16.mxu0 %v2021
  %2920 = vmatpush1.bf16.msra.mxu0 %v2020
  %2921 = vmatprep.subr.bf16.mxu0 %v2019
  %2922 = vmatpush1.bf16.msra.mxu0 %v2018
  %2923 = vmatprep.subr.bf16.mxu0 %v2017
  %2924 = vmatpush1.bf16.msra.mxu0 %v2016
  %2925 = vmatprep.subr.bf16.mxu0 %v2015
  %2926 = vmatpush1.bf16.msra.mxu0 %v2014
  %2927 = vmatprep.subr.bf16.mxu0 %v2013
  %2928 = vmatpush1.bf16.msra.mxu0 %v2012
  %2929 = vmatprep.subr.bf16.mxu0 %v2011
  %2930 = vmatpush1.bf16.msra.mxu0 %v2010
  %2931 = vmatprep.subr.bf16.mxu0 %v2009
  %2932 = vmatpush1.bf16.msra.mxu0 %v2008
  %2933 = vmatprep.subr.bf16.mxu0 %v2039
  %2934 = vmatpush2.bf16.msra.mxu0 %v2038
  %2935 = vmatprep.subr.bf16.mxu0 %v2037
  %2936 = vmatpush2.bf16.msra.mxu0 %v2036
  %2937 = vmatprep.subr.bf16.mxu0 %v2035
  %2938 = vmatpush2.bf16.msra.mxu0 %v2034
  %2939 = vmatprep.subr.bf16.mxu0 %v2033
  %2940 = vmatpush2.bf16.msra.mxu0 %v2032
  %2941 = vmatprep.subr.bf16.mxu0 %v2031
  %2942 = vmatpush2.bf16.msra.mxu0 %v2030
  %2943 = vmatprep.subr.bf16.mxu0 %v2029
  %2944 = vmatpush2.bf16.msra.mxu0 %v2028
  %2945 = vmatprep.subr.bf16.mxu0 %v2027
  %2946 = vmatpush2.bf16.msra.mxu0 %v2026
  %2947 = vmatprep.subr.bf16.mxu0 %v2025
  %2948 = vmatpush2.bf16.msra.mxu0 %v2024
  %2949 = vmatprep.mubr.bf16.mxu0 %v92
  %2950 = vmatmul.mubr.bf16.gmra.mxu0 %v91
  %v2951 = vpop.f32.mrf.mxu0
  %v2952 = vadd.f32 %v2911, %v2951
  %v2953 = vpop.f32.mrf.mxu0
  %v2954 = vadd.f32 %v2913, %v2953
  %v2955 = vpop.f32.mrf.mxu0
  %v2956 = vpop.f32.mrf.mxu0
  %2957 = vdwg.mxu0
  %2958 = vmatprep.subr.bf16.mxu0 %v2055
  %2959 = vmatpush1.bf16.msra.mxu0 %v2054
  %2960 = vmatprep.subr.bf16.mxu0 %v2053
  %2961 = vmatpush1.bf16.msra.mxu0 %v2052
  %2962 = vmatprep.subr.bf16.mxu0 %v2051
  %2963 = vmatpush1.bf16.msra.mxu0 %v2050
  %2964 = vmatprep.subr.bf16.mxu0 %v2049
  %2965 = vmatpush1.bf16.msra.mxu0 %v2048
  %2966 = vmatprep.subr.bf16.mxu0 %v2047
  %2967 = vmatpush1.bf16.msra.mxu0 %v2046
  %2968 = vmatprep.subr.bf16.mxu0 %v2045
  %2969 = vmatpush1.bf16.msra.mxu0 %v2044
  %2970 = vmatprep.subr.bf16.mxu0 %v2043
  %2971 = vmatpush1.bf16.msra.mxu0 %v2042
  %2972 = vmatprep.subr.bf16.mxu0 %v2041
  %2973 = vmatpush1.bf16.msra.mxu0 %v2040
  %2974 = vmatprep.subr.bf16.mxu0 %v2071
  %2975 = vmatpush2.bf16.msra.mxu0 %v2070
  %2976 = vmatprep.subr.bf16.mxu0 %v2069
  %2977 = vmatpush2.bf16.msra.mxu0 %v2068
  %2978 = vmatprep.subr.bf16.mxu0 %v2067
  %2979 = vmatpush2.bf16.msra.mxu0 %v2066
  %2980 = vmatprep.subr.bf16.mxu0 %v2065
  %2981 = vmatpush2.bf16.msra.mxu0 %v2064
  %2982 = vmatprep.subr.bf16.mxu0 %v2063
  %2983 = vmatpush2.bf16.msra.mxu0 %v2062
  %2984 = vmatprep.subr.bf16.mxu0 %v2061
  %2985 = vmatpush2.bf16.msra.mxu0 %v2060
  %2986 = vmatprep.subr.bf16.mxu0 %v2059
  %2987 = vmatpush2.bf16.msra.mxu0 %v2058
  %2988 = vmatprep.subr.bf16.mxu0 %v2057
  %2989 = vmatpush2.bf16.msra.mxu0 %v2056
  %2990 = vmatprep.mubr.bf16.mxu0 %v94
  %2991 = vmatmul.mubr.bf16.gmra.mxu0 %v93
  %v2992 = vpop.f32.mrf.mxu0
  %v2993 = vadd.f32 %v2952, %v2992
  %v2994 = vpop.f32.mrf.mxu0
  %v2995 = vadd.f32 %v2954, %v2994
  %v2996 = vpop.f32.mrf.mxu0
  %v2997 = vpop.f32.mrf.mxu0
  %2998 = vdwg.mxu0
  %2999 = vmatprep.subr.bf16.mxu0 %v2087
  %3000 = vmatpush1.bf16.msra.mxu0 %v2086
  %3001 = vmatprep.subr.bf16.mxu0 %v2085
  %3002 = vmatpush1.bf16.msra.mxu0 %v2084
  %3003 = vmatprep.subr.bf16.mxu0 %v2083
  %3004 = vmatpush1.bf16.msra.mxu0 %v2082
  %3005 = vmatprep.subr.bf16.mxu0 %v2081
  %3006 = vmatpush1.bf16.msra.mxu0 %v2080
  %3007 = vmatprep.subr.bf16.mxu0 %v2079
  %3008 = vmatpush1.bf16.msra.mxu0 %v2078
  %3009 = vmatprep.subr.bf16.mxu0 %v2077
  %3010 = vmatpush1.bf16.msra.mxu0 %v2076
  %3011 = vmatprep.subr.bf16.mxu0 %v2075
  %3012 = vmatpush1.bf16.msra.mxu0 %v2074
  %3013 = vmatprep.subr.bf16.mxu0 %v2073
  %3014 = vmatpush1.bf16.msra.mxu0 %v2072
  %3015 = vmatprep.subr.bf16.mxu0 %v2103
  %3016 = vmatpush2.bf16.msra.mxu0 %v2102
  %3017 = vmatprep.subr.bf16.mxu0 %v2101
  %3018 = vmatpush2.bf16.msra.mxu0 %v2100
  %3019 = vmatprep.subr.bf16.mxu0 %v2099
  %3020 = vmatpush2.bf16.msra.mxu0 %v2098
  %3021 = vmatprep.subr.bf16.mxu0 %v2097
  %3022 = vmatpush2.bf16.msra.mxu0 %v2096
  %3023 = vmatprep.subr.bf16.mxu0 %v2095
  %3024 = vmatpush2.bf16.msra.mxu0 %v2094
  %3025 = vmatprep.subr.bf16.mxu0 %v2093
  %3026 = vmatpush2.bf16.msra.mxu0 %v2092
  %3027 = vmatprep.subr.bf16.mxu0 %v2091
  %3028 = vmatpush2.bf16.msra.mxu0 %v2090
  %3029 = vmatprep.subr.bf16.mxu0 %v2089
  %3030 = vmatpush2.bf16.msra.mxu0 %v2088
  %3031 = vmatprep.mubr.bf16.mxu0 %v96
  %3032 = vmatmul.mubr.bf16.gmra.mxu0 %v95
  %v3033 = vpop.f32.mrf.mxu0
  %v3034 = vadd.f32 %v2993, %v3033
  %v3035 = vpop.f32.mrf.mxu0
  %v3036 = vadd.f32 %v2995, %v3035
  %v3037 = vpop.f32.mrf.mxu0
  %v3038 = vpop.f32.mrf.mxu0
  %3039 = vdwg.mxu0
  %3040 = vmatprep.subr.bf16.mxu0 %v2119
  %3041 = vmatpush1.bf16.msra.mxu0 %v2118
  %3042 = vmatprep.subr.bf16.mxu0 %v2117
  %3043 = vmatpush1.bf16.msra.mxu0 %v2116
  %3044 = vmatprep.subr.bf16.mxu0 %v2115
  %3045 = vmatpush1.bf16.msra.mxu0 %v2114
  %3046 = vmatprep.subr.bf16.mxu0 %v2113
  %3047 = vmatpush1.bf16.msra.mxu0 %v2112
  %3048 = vmatprep.subr.bf16.mxu0 %v2111
  %3049 = vmatpush1.bf16.msra.mxu0 %v2110
  %3050 = vmatprep.subr.bf16.mxu0 %v2109
  %3051 = vmatpush1.bf16.msra.mxu0 %v2108
  %3052 = vmatprep.subr.bf16.mxu0 %v2107
  %3053 = vmatpush1.bf16.msra.mxu0 %v2106
  %3054 = vmatprep.subr.bf16.mxu0 %v2105
  %3055 = vmatpush1.bf16.msra.mxu0 %v2104
  %3056 = vmatprep.subr.bf16.mxu0 %v2135
  %3057 = vmatpush2.bf16.msra.mxu0 %v2134
  %3058 = vmatprep.subr.bf16.mxu0 %v2133
  %3059 = vmatpush2.bf16.msra.mxu0 %v2132
  %3060 = vmatprep.subr.bf16.mxu0 %v2131
  %3061 = vmatpush2.bf16.msra.mxu0 %v2130
  %3062 = vmatprep.subr.bf16.mxu0 %v2129
  %3063 = vmatpush2.bf16.msra.mxu0 %v2128
  %3064 = vmatprep.subr.bf16.mxu0 %v2127
  %3065 = vmatpush2.bf16.msra.mxu0 %v2126
  %3066 = vmatprep.subr.bf16.mxu0 %v2125
  %3067 = vmatpush2.bf16.msra.mxu0 %v2124
  %3068 = vmatprep.subr.bf16.mxu0 %v2123
  %3069 = vmatpush2.bf16.msra.mxu0 %v2122
  %3070 = vmatprep.subr.bf16.mxu0 %v2121
  %3071 = vmatpush2.bf16.msra.mxu0 %v2120
  %3072 = vmatprep.mubr.bf16.mxu0 %v98
  %3073 = vmatmul.mubr.bf16.gmra.mxu0 %v97
  %v3074 = vpop.f32.mrf.mxu0
  %v3075 = vadd.f32 %v3034, %v3074
  %v3076 = vpop.f32.mrf.mxu0
  %v3077 = vadd.f32 %v3036, %v3076
  %v3078 = vpop.f32.mrf.mxu0
  %v3079 = vpop.f32.mrf.mxu0
  %3080 = vdwg.mxu0
  %3081 = vmatprep.subr.bf16.mxu0 %v2151
  %3082 = vmatpush1.bf16.msra.mxu0 %v2150
  %3083 = vmatprep.subr.bf16.mxu0 %v2149
  %3084 = vmatpush1.bf16.msra.mxu0 %v2148
  %3085 = vmatprep.subr.bf16.mxu0 %v2147
  %3086 = vmatpush1.bf16.msra.mxu0 %v2146
  %3087 = vmatprep.subr.bf16.mxu0 %v2145
  %3088 = vmatpush1.bf16.msra.mxu0 %v2144
  %3089 = vmatprep.subr.bf16.mxu0 %v2143
  %3090 = vmatpush1.bf16.msra.mxu0 %v2142
  %3091 = vmatprep.subr.bf16.mxu0 %v2141
  %3092 = vmatpush1.bf16.msra.mxu0 %v2140
  %3093 = vmatprep.subr.bf16.mxu0 %v2139
  %3094 = vmatpush1.bf16.msra.mxu0 %v2138
  %3095 = vmatprep.subr.bf16.mxu0 %v2137
  %3096 = vmatpush1.bf16.msra.mxu0 %v2136
  %3097 = vmatprep.subr.bf16.mxu0 %v2167
  %3098 = vmatpush2.bf16.msra.mxu0 %v2166
  %3099 = vmatprep.subr.bf16.mxu0 %v2165
  %3100 = vmatpush2.bf16.msra.mxu0 %v2164
  %3101 = vmatprep.subr.bf16.mxu0 %v2163
  %3102 = vmatpush2.bf16.msra.mxu0 %v2162
  %3103 = vmatprep.subr.bf16.mxu0 %v2161
  %3104 = vmatpush2.bf16.msra.mxu0 %v2160
  %3105 = vmatprep.subr.bf16.mxu0 %v2159
  %3106 = vmatpush2.bf16.msra.mxu0 %v2158
  %3107 = vmatprep.subr.bf16.mxu0 %v2157
  %3108 = vmatpush2.bf16.msra.mxu0 %v2156
  %3109 = vmatprep.subr.bf16.mxu0 %v2155
  %3110 = vmatpush2.bf16.msra.mxu0 %v2154
  %3111 = vmatprep.subr.bf16.mxu0 %v2153
  %3112 = vmatpush2.bf16.msra.mxu0 %v2152
  %3113 = vmatprep.mubr.bf16.mxu0 %v100
  %3114 = vmatmul.mubr.bf16.gmra.mxu0 %v99
  %v3115 = vpop.f32.mrf.mxu0
  %v3116 = vadd.f32 %v3075, %v3115
  %v3117 = vpop.f32.mrf.mxu0
  %v3118 = vadd.f32 %v3077, %v3117
  %v3119 = vpop.f32.mrf.mxu0
  %v3120 = vpop.f32.mrf.mxu0
  %3121 = vdwg.mxu0
  %3122 = vmatprep.subr.bf16.mxu0 %v2183
  %3123 = vmatpush1.bf16.msra.mxu0 %v2182
  %3124 = vmatprep.subr.bf16.mxu0 %v2181
  %3125 = vmatpush1.bf16.msra.mxu0 %v2180
  %3126 = vmatprep.subr.bf16.mxu0 %v2179
  %3127 = vmatpush1.bf16.msra.mxu0 %v2178
  %3128 = vmatprep.subr.bf16.mxu0 %v2177
  %3129 = vmatpush1.bf16.msra.mxu0 %v2176
  %3130 = vmatprep.subr.bf16.mxu0 %v2175
  %3131 = vmatpush1.bf16.msra.mxu0 %v2174
  %3132 = vmatprep.subr.bf16.mxu0 %v2173
  %3133 = vmatpush1.bf16.msra.mxu0 %v2172
  %3134 = vmatprep.subr.bf16.mxu0 %v2171
  %3135 = vmatpush1.bf16.msra.mxu0 %v2170
  %3136 = vmatprep.subr.bf16.mxu0 %v2169
  %3137 = vmatpush1.bf16.msra.mxu0 %v2168
  %3138 = vmatprep.subr.bf16.mxu0 %v2199
  %3139 = vmatpush2.bf16.msra.mxu0 %v2198
  %3140 = vmatprep.subr.bf16.mxu0 %v2197
  %3141 = vmatpush2.bf16.msra.mxu0 %v2196
  %3142 = vmatprep.subr.bf16.mxu0 %v2195
  %3143 = vmatpush2.bf16.msra.mxu0 %v2194
  %3144 = vmatprep.subr.bf16.mxu0 %v2193
  %3145 = vmatpush2.bf16.msra.mxu0 %v2192
  %3146 = vmatprep.subr.bf16.mxu0 %v2191
  %3147 = vmatpush2.bf16.msra.mxu0 %v2190
  %3148 = vmatprep.subr.bf16.mxu0 %v2189
  %3149 = vmatpush2.bf16.msra.mxu0 %v2188
  %3150 = vmatprep.subr.bf16.mxu0 %v2187
  %3151 = vmatpush2.bf16.msra.mxu0 %v2186
  %3152 = vmatprep.subr.bf16.mxu0 %v2185
  %3153 = vmatpush2.bf16.msra.mxu0 %v2184
  %3154 = vmatprep.mubr.bf16.mxu0 %v102
  %3155 = vmatmul.mubr.bf16.gmra.mxu0 %v101
  %v3156 = vpop.f32.mrf.mxu0
  %v3157 = vadd.f32 %v3116, %v3156
  %v3158 = vpop.f32.mrf.mxu0
  %v3159 = vadd.f32 %v3118, %v3158
  %v3160 = vpop.f32.mrf.mxu0
  %v3161 = vpop.f32.mrf.mxu0
  %3162 = vdwg.mxu0
  %3163 = vmatprep.subr.bf16.mxu0 %v2215
  %3164 = vmatpush1.bf16.msra.mxu0 %v2214
  %3165 = vmatprep.subr.bf16.mxu0 %v2213
  %3166 = vmatpush1.bf16.msra.mxu0 %v2212
  %3167 = vmatprep.subr.bf16.mxu0 %v2211
  %3168 = vmatpush1.bf16.msra.mxu0 %v2210
  %3169 = vmatprep.subr.bf16.mxu0 %v2209
  %3170 = vmatpush1.bf16.msra.mxu0 %v2208
  %3171 = vmatprep.subr.bf16.mxu0 %v2207
  %3172 = vmatpush1.bf16.msra.mxu0 %v2206
  %3173 = vmatprep.subr.bf16.mxu0 %v2205
  %3174 = vmatpush1.bf16.msra.mxu0 %v2204
  %3175 = vmatprep.subr.bf16.mxu0 %v2203
  %3176 = vmatpush1.bf16.msra.mxu0 %v2202
  %3177 = vmatprep.subr.bf16.mxu0 %v2201
  %3178 = vmatpush1.bf16.msra.mxu0 %v2200
  %3179 = vmatprep.subr.bf16.mxu0 %v2231
  %3180 = vmatpush2.bf16.msra.mxu0 %v2230
  %3181 = vmatprep.subr.bf16.mxu0 %v2229
  %3182 = vmatpush2.bf16.msra.mxu0 %v2228
  %3183 = vmatprep.subr.bf16.mxu0 %v2227
  %3184 = vmatpush2.bf16.msra.mxu0 %v2226
  %3185 = vmatprep.subr.bf16.mxu0 %v2225
  %3186 = vmatpush2.bf16.msra.mxu0 %v2224
  %3187 = vmatprep.subr.bf16.mxu0 %v2223
  %3188 = vmatpush2.bf16.msra.mxu0 %v2222
  %3189 = vmatprep.subr.bf16.mxu0 %v2221
  %3190 = vmatpush2.bf16.msra.mxu0 %v2220
  %3191 = vmatprep.subr.bf16.mxu0 %v2219
  %3192 = vmatpush2.bf16.msra.mxu0 %v2218
  %3193 = vmatprep.subr.bf16.mxu0 %v2217
  %3194 = vmatpush2.bf16.msra.mxu0 %v2216
  %3195 = vmatprep.mubr.bf16.mxu0 %v104
  %3196 = vmatmul.mubr.bf16.gmra.mxu0 %v103
  %v3197 = vpop.f32.mrf.mxu0
  %v3198 = vadd.f32 %v3157, %v3197
  %v3199 = vpop.f32.mrf.mxu0
  %v3200 = vadd.f32 %v3159, %v3199
  %v3201 = vpop.f32.mrf.mxu0
  %v3202 = vpop.f32.mrf.mxu0
  %3203 = vdwg.mxu0
  %3204 = vmatprep.subr.bf16.mxu0 %v2247
  %3205 = vmatpush1.bf16.msra.mxu0 %v2246
  %3206 = vmatprep.subr.bf16.mxu0 %v2245
  %3207 = vmatpush1.bf16.msra.mxu0 %v2244
  %3208 = vmatprep.subr.bf16.mxu0 %v2243
  %3209 = vmatpush1.bf16.msra.mxu0 %v2242
  %3210 = vmatprep.subr.bf16.mxu0 %v2241
  %3211 = vmatpush1.bf16.msra.mxu0 %v2240
  %3212 = vmatprep.subr.bf16.mxu0 %v2239
  %3213 = vmatpush1.bf16.msra.mxu0 %v2238
  %3214 = vmatprep.subr.bf16.mxu0 %v2237
  %3215 = vmatpush1.bf16.msra.mxu0 %v2236
  %3216 = vmatprep.subr.bf16.mxu0 %v2235
  %3217 = vmatpush1.bf16.msra.mxu0 %v2234
  %3218 = vmatprep.subr.bf16.mxu0 %v2233
  %3219 = vmatpush1.bf16.msra.mxu0 %v2232
  %3220 = vmatprep.subr.bf16.mxu0 %v2263
  %3221 = vmatpush2.bf16.msra.mxu0 %v2262
  %3222 = vmatprep.subr.bf16.mxu0 %v2261
  %3223 = vmatpush2.bf16.msra.mxu0 %v2260
  %3224 = vmatprep.subr.bf16.mxu0 %v2259
  %3225 = vmatpush2.bf16.msra.mxu0 %v2258
  %3226 = vmatprep.subr.bf16.mxu0 %v2257
  %3227 = vmatpush2.bf16.msra.mxu0 %v2256
  %3228 = vmatprep.subr.bf16.mxu0 %v2255
  %3229 = vmatpush2.bf16.msra.mxu0 %v2254
  %3230 = vmatprep.subr.bf16.mxu0 %v2253
  %3231 = vmatpush2.bf16.msra.mxu0 %v2252
  %3232 = vmatprep.subr.bf16.mxu0 %v2251
  %3233 = vmatpush2.bf16.msra.mxu0 %v2250
  %3234 = vmatprep.subr.bf16.mxu0 %v2249
  %3235 = vmatpush2.bf16.msra.mxu0 %v2248
  %3236 = vmatprep.mubr.bf16.mxu0 %v106
  %3237 = vmatmul.mubr.bf16.gmra.mxu0 %v105
  %v3238 = vpop.f32.mrf.mxu0
  %v3239 = vadd.f32 %v3198, %v3238
  %v3240 = vpop.f32.mrf.mxu0
  %v3241 = vadd.f32 %v3200, %v3240
  %v3242 = vpop.f32.mrf.mxu0
  %v3243 = vpop.f32.mrf.mxu0
  %3244 = vdwg.mxu0
  %3245 = vmatprep.subr.bf16.mxu0 %v2279
  %3246 = vmatpush1.bf16.msra.mxu0 %v2278
  %3247 = vmatprep.subr.bf16.mxu0 %v2277
  %3248 = vmatpush1.bf16.msra.mxu0 %v2276
  %3249 = vmatprep.subr.bf16.mxu0 %v2275
  %3250 = vmatpush1.bf16.msra.mxu0 %v2274
  %3251 = vmatprep.subr.bf16.mxu0 %v2273
  %3252 = vmatpush1.bf16.msra.mxu0 %v2272
  %3253 = vmatprep.subr.bf16.mxu0 %v2271
  %3254 = vmatpush1.bf16.msra.mxu0 %v2270
  %3255 = vmatprep.subr.bf16.mxu0 %v2269
  %3256 = vmatpush1.bf16.msra.mxu0 %v2268
  %3257 = vmatprep.subr.bf16.mxu0 %v2267
  %3258 = vmatpush1.bf16.msra.mxu0 %v2266
  %3259 = vmatprep.subr.bf16.mxu0 %v2265
  %3260 = vmatpush1.bf16.msra.mxu0 %v2264
  %3261 = vmatprep.subr.bf16.mxu0 0
  %3262 = vmatpush2.bf16.msra.mxu0 0
  %3263 = vmatprep.subr.bf16.mxu0 0
  %3264 = vmatpush2.bf16.msra.mxu0 0
  %3265 = vmatprep.subr.bf16.mxu0 0
  %3266 = vmatpush2.bf16.msra.mxu0 0
  %3267 = vmatprep.subr.bf16.mxu0 0
  %3268 = vmatpush2.bf16.msra.mxu0 0
  %3269 = vmatprep.subr.bf16.mxu0 0
  %3270 = vmatpush2.bf16.msra.mxu0 0
  %3271 = vmatprep.subr.bf16.mxu0 0
  %3272 = vmatpush2.bf16.msra.mxu0 0
  %3273 = vmatprep.subr.bf16.mxu0 0
  %3274 = vmatpush2.bf16.msra.mxu0 0
  %3275 = vmatprep.subr.bf16.mxu0 0
  %3276 = vmatpush2.bf16.msra.mxu0 0
  %3277 = vmatprep.mubr.bf16.mxu0 0
  %3278 = vmatmul.mubr.bf16.gmra.mxu0 %v107
  %v3279 = vpop.f32.mrf.mxu0
  %v3280 = vadd.f32 %v3239, %v3279
  %v3281 = vpop.f32.mrf.mxu0
  %v3282 = vadd.f32 %v3241, %v3281
  %v3283 = vpop.f32.mrf.mxu0
  %v3284 = vpop.f32.mrf.mxu0
  %3285 = vdwg.mxu0
  %v3286 = vld [vmem:[%s1] sm:$0xff]
  %v3287 = vld [vmem:[%s2] sm:$0xff]
  %vm3288 = vcmask 64512
  %v3290 = vsel %vm3288, %v3287, 0
  %3292 = vmatprep.subr.mxu0 0.0
  %3293 = vmatpush1.msra.mxu0 0.0
  %3294 = vmatprep.subr.mxu0 0.0
  %3295 = vmatpush1.msra.mxu0 0.0
  %3296 = vmatprep.subr.mxu0 0.0
  %3297 = vmatpush1.msra.mxu0 0.0
  %3298 = vmatprep.subr.mxu0 0.0
  %3299 = vmatpush1.msra.mxu0 0.0
  %3300 = vmatprep.subr.mxu0 0.0
  %3301 = vmatpush1.msra.mxu0 0.0
  %3302 = vmatprep.subr.mxu0 0.0
  %3303 = vmatpush1.msra.mxu0 0.0
  %3304 = vmatprep.subr.mxu0 0.0
  %3305 = vmatpush1.msra.mxu0 0.0
  %3306 = vmatprep.subr.mxu0 0.0
  %3307 = vmatpush1.msra.mxu0 0.0
  %3308 = vmatprep.subr.mxu0 0.0
  %3309 = vmatpush1.msra.mxu0 0.0
  %3310 = vmatprep.subr.mxu0 0.0
  %3311 = vmatpush1.msra.mxu0 0.0
  %3312 = vmatprep.subr.mxu0 0.0
  %3313 = vmatpush1.msra.mxu0 0.0
  %3314 = vmatprep.subr.mxu0 0.0
  %3315 = vmatpush1.msra.mxu0 0.0
  %3316 = vmatprep.subr.mxu0 0.0
  %3317 = vmatpush1.msra.mxu0 0.0
  %3318 = vmatprep.subr.mxu0 0.0
  %3319 = vmatpush1.msra.mxu0 0.0
  %3320 = vmatprep.subr.mxu0 0.0
  %3321 = vmatpush1.msra.mxu0 0.0
  %3322 = vmatprep.subr.mxu0 %v3282
  %3323 = vmatpush1.msra.mxu0 %v3280
  %3324 = vmatprep.subr.mxu0 0.0
  %3325 = vmatpush2.msra.mxu0 0.0
  %3326 = vmatprep.subr.mxu0 0.0
  %3327 = vmatpush2.msra.mxu0 0.0
  %3328 = vmatprep.subr.mxu0 0.0
  %3329 = vmatpush2.msra.mxu0 0.0
  %3330 = vmatprep.subr.mxu0 0.0
  %3331 = vmatpush2.msra.mxu0 0.0
  %3332 = vmatprep.subr.mxu0 0.0
  %3333 = vmatpush2.msra.mxu0 0.0
  %3334 = vmatprep.subr.mxu0 0.0
  %3335 = vmatpush2.msra.mxu0 0.0
  %3336 = vmatprep.subr.mxu0 0.0
  %3337 = vmatpush2.msra.mxu0 0.0
  %3338 = vmatprep.subr.mxu0 0.0
  %3339 = vmatpush2.msra.mxu0 0.0
  %3340 = vmatprep.subr.mxu0 0.0
  %3341 = vmatpush2.msra.mxu0 0.0
  %3342 = vmatprep.subr.mxu0 0.0
  %3343 = vmatpush2.msra.mxu0 0.0
  %3344 = vmatprep.subr.mxu0 0.0
  %3345 = vmatpush2.msra.mxu0 0.0
  %3346 = vmatprep.subr.mxu0 0.0
  %3347 = vmatpush2.msra.mxu0 0.0
  %3348 = vmatprep.subr.mxu0 0.0
  %3349 = vmatpush2.msra.mxu0 0.0
  %3350 = vmatprep.subr.mxu0 0.0
  %3351 = vmatpush2.msra.mxu0 0.0
  %3352 = vmatprep.subr.mxu0 0.0
  %3353 = vmatpush2.msra.mxu0 0.0
  %3354 = vmatprep.subr.mxu0 0.0
  %3355 = vmatpush2.msra.mxu0 0.0
  %3356 = vmatprep.mubr.f32.mxu0 0.0
  %3357 = vmatmul.mubr.f32.gmra.mxu0 %v3290
  %v3358 = vpop.f32.mrf.mxu0
  %v3359 = vadd.f32 0.0, %v3358
  %v3360 = vpop.f32.mrf.mxu0
  %v3361 = vadd.f32 0.0, %v3360
  %3362 = vdwg.mxu0
  %3363 = vmatprep.subr.mxu0 0.0
  %3364 = vmatpush1.msra.mxu0 0.0
  %3365 = vmatprep.subr.mxu0 0.0
  %3366 = vmatpush1.msra.mxu0 0.0
  %3367 = vmatprep.subr.mxu0 0.0
  %3368 = vmatpush1.msra.mxu0 0.0
  %3369 = vmatprep.subr.mxu0 0.0
  %3370 = vmatpush1.msra.mxu0 0.0
  %3371 = vmatprep.subr.mxu0 0.0
  %3372 = vmatpush1.msra.mxu0 0.0
  %3373 = vmatprep.subr.mxu0 0.0
  %3374 = vmatpush1.msra.mxu0 0.0
  %3375 = vmatprep.subr.mxu0 0.0
  %3376 = vmatpush1.msra.mxu0 0.0
  %3377 = vmatprep.subr.mxu0 0.0
  %3378 = vmatpush1.msra.mxu0 0.0
  %3379 = vmatprep.subr.mxu0 0.0
  %3380 = vmatpush1.msra.mxu0 0.0
  %3381 = vmatprep.subr.mxu0 0.0
  %3382 = vmatpush1.msra.mxu0 0.0
  %3383 = vmatprep.subr.mxu0 0.0
  %3384 = vmatpush1.msra.mxu0 0.0
  %3385 = vmatprep.subr.mxu0 0.0
  %3386 = vmatpush1.msra.mxu0 0.0
  %3387 = vmatprep.subr.mxu0 0.0
  %3388 = vmatpush1.msra.mxu0 0.0
  %3389 = vmatprep.subr.mxu0 0.0
  %3390 = vmatpush1.msra.mxu0 0.0
  %3391 = vmatprep.subr.mxu0 0.0
  %3392 = vmatpush1.msra.mxu0 0.0
  %3393 = vmatprep.subr.mxu0 0.0
  %3394 = vmatpush1.msra.mxu0 %v3286
  %3395 = vmatprep.subr.mxu0 0.0
  %3396 = vmatpush2.msra.mxu0 0.0
  %3397 = vmatprep.subr.mxu0 0.0
  %3398 = vmatpush2.msra.mxu0 0.0
  %3399 = vmatprep.subr.mxu0 0.0
  %3400 = vmatpush2.msra.mxu0 0.0
  %3401 = vmatprep.subr.mxu0 0.0
  %3402 = vmatpush2.msra.mxu0 0.0
  %3403 = vmatprep.subr.mxu0 0.0
  %3404 = vmatpush2.msra.mxu0 0.0
  %3405 = vmatprep.subr.mxu0 0.0
  %3406 = vmatpush2.msra.mxu0 0.0
  %3407 = vmatprep.subr.mxu0 0.0
  %3408 = vmatpush2.msra.mxu0 0.0
  %3409 = vmatprep.subr.mxu0 0.0
  %3410 = vmatpush2.msra.mxu0 0.0
  %3411 = vmatprep.subr.mxu0 0.0
  %3412 = vmatpush2.msra.mxu0 0.0
  %3413 = vmatprep.subr.mxu0 0.0
  %3414 = vmatpush2.msra.mxu0 0.0
  %3415 = vmatprep.subr.mxu0 0.0
  %3416 = vmatpush2.msra.mxu0 0.0
  %3417 = vmatprep.subr.mxu0 0.0
  %3418 = vmatpush2.msra.mxu0 0.0
  %3419 = vmatprep.subr.mxu0 0.0
  %3420 = vmatpush2.msra.mxu0 0.0
  %3421 = vmatprep.subr.mxu0 0.0
  %3422 = vmatpush2.msra.mxu0 0.0
  %3423 = vmatprep.subr.mxu0 0.0
  %3424 = vmatpush2.msra.mxu0 0.0
  %3425 = vmatprep.subr.mxu0 0.0
  %3426 = vmatpush2.msra.mxu0 0.0
  %3427 = vmatprep.mubr.f32.mxu0 0.0
  %3428 = vmatmul.mubr.f32.gmra.mxu0 %v3290
  %v3429 = vpop.f32.mrf.mxu0
  %v3430 = vadd.f32 0.0, %v3429
  %v3431 = vpop.f32.mrf.mxu0
  %3432 = vdwg.mxu0
  %v3433 = vld [vmem:[%s5] sm:$0xff]
  %v3434 = vld [vmem:[%s5 + $0x8] sm:$0xff]
  %v3435 = vld [vmem:[%s5 + $0x10] sm:$0xff]
  %v3436 = vld [vmem:[%s5 + $0x18] sm:$0xff]
  %v3437 = vld [vmem:[%s5 + $0x20] sm:$0xff]
  %v3438 = vld [vmem:[%s5 + $0x28] sm:$0xff]
  %v3439 = vld [vmem:[%s5 + $0x30] sm:$0xff]
  %v3440 = vld [vmem:[%s5 + $0x38] sm:$0xff]
  %v3441 = vld [vmem:[%s5 + $0x40] sm:$0xff]
  %v3442 = vld [vmem:[%s5 + $0x48] sm:$0xff]
  %v3443 = vld [vmem:[%s5 + $0x50] sm:$0xff]
  %v3444 = vld [vmem:[%s5 + $0x58] sm:$0xff]
  %v3445 = vld [vmem:[%s5 + $0x60] sm:$0xff]
  %v3446 = vld [vmem:[%s5 + $0x68] sm:$0xff]
  %v3447 = vld [vmem:[%s5 + $0x70] sm:$0xff]
  %v3448 = vld [vmem:[%s5 + $0x78] sm:$0xff]
  %v3449 = vld [vmem:[%s5 + $0x80] sm:$0xff]
  %v3450 = vld [vmem:[%s5 + $0x88] sm:$0xff]
  %v3451 = vld [vmem:[%s5 + $0x90] sm:$0xff]
  %v3452 = vld [vmem:[%s5 + $0x98] sm:$0xff]
  %v3453 = vld [vmem:[%s5 + $0xa0] sm:$0xff]
  %v3454 = vld [vmem:[%s5 + $0xa8] sm:$0xff]
  %v3455 = vld [vmem:[%s5 + $0xb0] sm:$0xff]
  %v3456 = vld [vmem:[%s5 + $0xb8] sm:$0xff]
  %v3457 = vld [vmem:[%s5 + $0xc0] sm:$0xff]
  %v3458 = vld [vmem:[%s5 + $0xc8] sm:$0xff]
  %v3459 = vld [vmem:[%s5 + $0xd0] sm:$0xff]
  %v3460 = vld [vmem:[%s5 + $0xd8] sm:$0xff]
  %v3461 = vld [vmem:[%s5 + $0xe0] sm:$0xff]
  %v3462 = vld [vmem:[%s5 + $0xe8] sm:$0xff]
  %v3463 = vld [vmem:[%s5 + $0xf0] sm:$0xff]
  %v3464 = vld [vmem:[%s5 + $0xf8] sm:$0xff]
  %v3465 = vld [vmem:[%s5 + $0x100] sm:$0xff]
  %v3466 = vld [vmem:[%s5 + $0x108] sm:$0xff]
  %v3467 = vld [vmem:[%s5 + $0x110] sm:$0xff]
  %v3468 = vld [vmem:[%s5 + $0x118] sm:$0xff]
  %v3469 = vld [vmem:[%s5 + $0x120] sm:$0xff]
  %v3470 = vld [vmem:[%s5 + $0x128] sm:$0xff]
  %v3471 = vld [vmem:[%s5 + $0x130] sm:$0xff]
  %v3472 = vld [vmem:[%s5 + $0x138] sm:$0xff]
  %v3473 = vld [vmem:[%s5 + $0x140] sm:$0xff]
  %v3474 = vld [vmem:[%s5 + $0x148] sm:$0xff]
  %v3475 = vld [vmem:[%s5 + $0x150] sm:$0xff]
  %v3476 = vld [vmem:[%s5 + $0x158] sm:$0xff]
  %v3477 = vld [vmem:[%s5 + $0x160] sm:$0xff]
  %v3478 = vld [vmem:[%s5 + $0x168] sm:$0xff]
  %v3479 = vld [vmem:[%s5 + $0x170] sm:$0xff]
  %v3480 = vld [vmem:[%s5 + $0x178] sm:$0xff]
  %v3481 = vld [vmem:[%s5 + $0x180] sm:$0xff]
  %v3482 = vld [vmem:[%s5 + $0x188] sm:$0xff]
  %v3483 = vld [vmem:[%s5 + $0x190] sm:$0xff]
  %v3484 = vld [vmem:[%s5 + $0x198] sm:$0xff]
  %v3485 = vld [vmem:[%s5 + $0x1a0] sm:$0xff]
  %v3486 = vld [vmem:[%s5 + $0x1a8] sm:$0xff]
  %v3487 = vld [vmem:[%s5 + $0x1b0] sm:$0xff]
  %v3488 = vld [vmem:[%s5 + $0x1b8] sm:$0xff]
  %v3489 = vld [vmem:[%s5 + $0x1c0] sm:$0xff]
  %v3490 = vld [vmem:[%s5 + $0x1c8] sm:$0xff]
  %v3491 = vld [vmem:[%s5 + $0x1d0] sm:$0xff]
  %v3492 = vld [vmem:[%s5 + $0x1d8] sm:$0xff]
  %v3493 = vld [vmem:[%s5 + $0x1e0] sm:$0x3f]
  %v3494 = vld [vmem:[%s5 + $0x1e8] sm:$0x3f]
  %v3495 = vld [vmem:[%s6] sm:$0xff]
  %v3496 = vld [vmem:[%s6 + $0x8] sm:$0xff]
  %v3497 = vld [vmem:[%s6 + $0x10] sm:$0x3]
  %v3498 = vld [vmem:[%s6 + $0x18] sm:$0x3]
  %vm3499 = vcmask 80896
  %v3501 = vsel %vm3499, %v3430, 0
  %vm3503 = vcmask 1041408
  %v3505 = vsel %vm3503, %v3497, 0
  %v3508 = vsel %vm3503, %v3498, 0
  %3510 = vmatprep.subr.mxu0 0.0
  %3511 = vmatpush1.msra.mxu0 0.0
  %3512 = vmatprep.subr.mxu0 0.0
  %3513 = vmatpush1.msra.mxu0 0.0
  %3514 = vmatprep.subr.mxu0 0.0
  %3515 = vmatpush1.msra.mxu0 0.0
  %3516 = vmatprep.subr.mxu0 0.0
  %3517 = vmatpush1.msra.mxu0 0.0
  %3518 = vmatprep.subr.mxu0 0.0
  %3519 = vmatpush1.msra.mxu0 0.0
  %3520 = vmatprep.subr.mxu0 0.0
  %3521 = vmatpush1.msra.mxu0 0.0
  %3522 = vmatprep.subr.mxu0 0.0
  %3523 = vmatpush1.msra.mxu0 0.0
  %3524 = vmatprep.subr.mxu0 0.0
  %3525 = vmatpush1.msra.mxu0 0.0
  %3526 = vmatprep.subr.mxu0 0.0
  %3527 = vmatpush1.msra.mxu0 0.0
  %3528 = vmatprep.subr.mxu0 0.0
  %3529 = vmatpush1.msra.mxu0 0.0
  %3530 = vmatprep.subr.mxu0 0.0
  %3531 = vmatpush1.msra.mxu0 0.0
  %3532 = vmatprep.subr.mxu0 0.0
  %3533 = vmatpush1.msra.mxu0 0.0
  %3534 = vmatprep.subr.mxu0 0.0
  %3535 = vmatpush1.msra.mxu0 0.0
  %3536 = vmatprep.subr.mxu0 0.0
  %3537 = vmatpush1.msra.mxu0 0.0
  %3538 = vmatprep.subr.mxu0 %v3508
  %3539 = vmatpush1.msra.mxu0 %v3505
  %3540 = vmatprep.subr.mxu0 %v3496
  %3541 = vmatpush1.msra.mxu0 %v3495
  %3542 = vmatprep.subr.mxu0 0.0
  %3543 = vmatpush2.msra.mxu0 0.0
  %3544 = vmatprep.subr.mxu0 0.0
  %3545 = vmatpush2.msra.mxu0 0.0
  %3546 = vmatprep.subr.mxu0 0.0
  %3547 = vmatpush2.msra.mxu0 0.0
  %3548 = vmatprep.subr.mxu0 0.0
  %3549 = vmatpush2.msra.mxu0 0.0
  %3550 = vmatprep.subr.mxu0 0.0
  %3551 = vmatpush2.msra.mxu0 0.0
  %3552 = vmatprep.subr.mxu0 0.0
  %3553 = vmatpush2.msra.mxu0 0.0
  %3554 = vmatprep.subr.mxu0 0.0
  %3555 = vmatpush2.msra.mxu0 0.0
  %3556 = vmatprep.subr.mxu0 0.0
  %3557 = vmatpush2.msra.mxu0 0.0
  %3558 = vmatprep.subr.mxu0 0.0
  %3559 = vmatpush2.msra.mxu0 0.0
  %3560 = vmatprep.subr.mxu0 0.0
  %3561 = vmatpush2.msra.mxu0 0.0
  %3562 = vmatprep.subr.mxu0 0.0
  %3563 = vmatpush2.msra.mxu0 0.0
  %3564 = vmatprep.subr.mxu0 0.0
  %3565 = vmatpush2.msra.mxu0 0.0
  %3566 = vmatprep.subr.mxu0 0.0
  %3567 = vmatpush2.msra.mxu0 0.0
  %3568 = vmatprep.subr.mxu0 0.0
  %3569 = vmatpush2.msra.mxu0 0.0
  %3570 = vmatprep.subr.mxu0 0.0
  %3571 = vmatpush2.msra.mxu0 0.0
  %3572 = vmatprep.subr.mxu0 0.0
  %3573 = vmatpush2.msra.mxu0 0.0
  %3574 = vmatprep.mubr.f32.mxu0 0.0
  %3575 = vmatmul.mubr.f32.gmra.mxu0 %v3501
  %v3576 = vpop.f32.mrf.mxu0
  %v3577 = vadd.f32 0.0, %v3576
  %v3578 = vpop.f32.mrf.mxu0
  %v3579 = vadd.f32 0.0, %v3578
  %3580 = vdwg.mxu0
  %vm3581 = vcmask 965632
  %v3583 = vsel %vm3581, %v3361, 0
  %vm3585 = vcmask 1045504
  %v3587 = vsel %vm3585, %v3493, 0
  %v3590 = vsel %vm3585, %v3494, 0
  %3592 = vmatprep.subr.mxu0 %v3464
  %3593 = vmatpush1.msra.mxu0 %v3463
  %3594 = vmatprep.subr.mxu0 %v3462
  %3595 = vmatpush1.msra.mxu0 %v3461
  %3596 = vmatprep.subr.mxu0 %v3460
  %3597 = vmatpush1.msra.mxu0 %v3459
  %3598 = vmatprep.subr.mxu0 %v3458
  %3599 = vmatpush1.msra.mxu0 %v3457
  %3600 = vmatprep.subr.mxu0 %v3456
  %3601 = vmatpush1.msra.mxu0 %v3455
  %3602 = vmatprep.subr.mxu0 %v3454
  %3603 = vmatpush1.msra.mxu0 %v3453
  %3604 = vmatprep.subr.mxu0 %v3452
  %3605 = vmatpush1.msra.mxu0 %v3451
  %3606 = vmatprep.subr.mxu0 %v3450
  %3607 = vmatpush1.msra.mxu0 %v3449
  %3608 = vmatprep.subr.mxu0 %v3448
  %3609 = vmatpush1.msra.mxu0 %v3447
  %3610 = vmatprep.subr.mxu0 %v3446
  %3611 = vmatpush1.msra.mxu0 %v3445
  %3612 = vmatprep.subr.mxu0 %v3444
  %3613 = vmatpush1.msra.mxu0 %v3443
  %3614 = vmatprep.subr.mxu0 %v3442
  %3615 = vmatpush1.msra.mxu0 %v3441
  %3616 = vmatprep.subr.mxu0 %v3440
  %3617 = vmatpush1.msra.mxu0 %v3439
  %3618 = vmatprep.subr.mxu0 %v3438
  %3619 = vmatpush1.msra.mxu0 %v3437
  %3620 = vmatprep.subr.mxu0 %v3436
  %3621 = vmatpush1.msra.mxu0 %v3435
  %3622 = vmatprep.subr.mxu0 %v3434
  %3623 = vmatpush1.msra.mxu0 %v3433
  %3624 = vmatprep.subr.mxu0 0.0
  %3625 = vmatpush2.msra.mxu0 0.0
  %3626 = vmatprep.subr.mxu0 %v3590
  %3627 = vmatpush2.msra.mxu0 %v3587
  %3628 = vmatprep.subr.mxu0 %v3492
  %3629 = vmatpush2.msra.mxu0 %v3491
  %3630 = vmatprep.subr.mxu0 %v3490
  %3631 = vmatpush2.msra.mxu0 %v3489
  %3632 = vmatprep.subr.mxu0 %v3488
  %3633 = vmatpush2.msra.mxu0 %v3487
  %3634 = vmatprep.subr.mxu0 %v3486
  %3635 = vmatpush2.msra.mxu0 %v3485
  %3636 = vmatprep.subr.mxu0 %v3484
  %3637 = vmatpush2.msra.mxu0 %v3483
  %3638 = vmatprep.subr.mxu0 %v3482
  %3639 = vmatpush2.msra.mxu0 %v3481
  %3640 = vmatprep.subr.mxu0 %v3480
  %3641 = vmatpush2.msra.mxu0 %v3479
  %3642 = vmatprep.subr.mxu0 %v3478
  %3643 = vmatpush2.msra.mxu0 %v3477
  %3644 = vmatprep.subr.mxu0 %v3476
  %3645 = vmatpush2.msra.mxu0 %v3475
  %3646 = vmatprep.subr.mxu0 %v3474
  %3647 = vmatpush2.msra.mxu0 %v3473
  %3648 = vmatprep.subr.mxu0 %v3472
  %3649 = vmatpush2.msra.mxu0 %v3471
  %3650 = vmatprep.subr.mxu0 %v3470
  %3651 = vmatpush2.msra.mxu0 %v3469
  %3652 = vmatprep.subr.mxu0 %v3468
  %3653 = vmatpush2.msra.mxu0 %v3467
  %3654 = vmatprep.subr.mxu0 %v3466
  %3655 = vmatpush2.msra.mxu0 %v3465
  %3656 = vmatprep.mubr.f32.mxu0 %v3583
  %3657 = vmatmul.mubr.f32.gmra.mxu0 %v3359
  %v3658 = vpop.f32.mrf.mxu0
  %v3659 = vadd.f32 %v3577, %v3658
  %v3660 = vpop.f32.mrf.mxu0
  %v3661 = vadd.f32 %v3579, %v3660
  %3662 = vdwg.mxu0
  %v3663 = vld [vmem:[%s7] sm:$0x3]
  %v3665 = vlaneseq
  %v3666 = vshrl.u32 %v3665, 7
  %v3667 = vsub.s32 0, %v3666
  %v3668 = vrot.slane %v3663, %v3667
  %v3669 = vlaneseq
  %v3670 = vshrl.u32 %v3669, 7
  %v3671 = vsub.s32 1, %v3670
  %v3672 = vrot.slane %v3663, %v3671
  %v3675 = vadd.f32 %v3659, %v3668
  %v3676 = vadd.f32 %v3661, %v3672
  %v3677 = vmax.f32 %v3675, 0.0
  %v3678 = vmax.f32 %v3676, 0.0
  %3679 = vmatprep.subr.mxu0 0.0
  %3680 = vmatpush1.msra.mxu0 0.0
  %3681 = vmatprep.subr.mxu0 0.0
  %3682 = vmatpush1.msra.mxu0 0.0
  %3683 = vmatprep.subr.mxu0 0.0
  %3684 = vmatpush1.msra.mxu0 0.0
  %3685 = vmatprep.subr.mxu0 0.0
  %3686 = vmatpush1.msra.mxu0 0.0
  %3687 = vmatprep.subr.mxu0 0.0
  %3688 = vmatpush1.msra.mxu0 0.0
  %3689 = vmatprep.subr.mxu0 0.0
  %3690 = vmatpush1.msra.mxu0 0.0
  %3691 = vmatprep.subr.mxu0 0.0
  %3692 = vmatpush1.msra.mxu0 0.0
  %3693 = vmatprep.subr.mxu0 0.0
  %3694 = vmatpush1.msra.mxu0 0.0
  %3695 = vmatprep.subr.mxu0 0.0
  %3696 = vmatpush1.msra.mxu0 0.0
  %3697 = vmatprep.subr.mxu0 0.0
  %3698 = vmatpush1.msra.mxu0 0.0
  %3699 = vmatprep.subr.mxu0 0.0
  %3700 = vmatpush1.msra.mxu0 0.0
  %3701 = vmatprep.subr.mxu0 0.0
  %3702 = vmatpush1.msra.mxu0 0.0
  %3703 = vmatprep.subr.mxu0 0.0
  %3704 = vmatpush1.msra.mxu0 0.0
  %3705 = vmatprep.subr.mxu0 0.0
  %3706 = vmatpush1.msra.mxu0 0.0
  %3707 = vmatprep.subr.mxu0 0.0
  %3708 = vmatpush1.msra.mxu0 0.0
  %3709 = vmatprep.subr.mxu0 %v3678
  %3710 = vmatpush1.msra.mxu0 %v3677
  %3711 = vmatprep.subr.mxu0 0.0
  %3712 = vmatpush2.msra.mxu0 0.0
  %3713 = vmatprep.subr.mxu0 0.0
  %3714 = vmatpush2.msra.mxu0 0.0
  %3715 = vmatprep.subr.mxu0 0.0
  %3716 = vmatpush2.msra.mxu0 0.0
  %3717 = vmatprep.subr.mxu0 0.0
  %3718 = vmatpush2.msra.mxu0 0.0
  %3719 = vmatprep.subr.mxu0 0.0
  %3720 = vmatpush2.msra.mxu0 0.0
  %3721 = vmatprep.subr.mxu0 0.0
  %3722 = vmatpush2.msra.mxu0 0.0
  %3723 = vmatprep.subr.mxu0 0.0
  %3724 = vmatpush2.msra.mxu0 0.0
  %3725 = vmatprep.subr.mxu0 0.0
  %3726 = vmatpush2.msra.mxu0 0.0
  %3727 = vmatprep.subr.mxu0 0.0
  %3728 = vmatpush2.msra.mxu0 0.0
  %3729 = vmatprep.subr.mxu0 0.0
  %3730 = vmatpush2.msra.mxu0 0.0
  %3731 = vmatprep.subr.mxu0 0.0
  %3732 = vmatpush2.msra.mxu0 0.0
  %3733 = vmatprep.subr.mxu0 0.0
  %3734 = vmatpush2.msra.mxu0 0.0
  %3735 = vmatprep.subr.mxu0 0.0
  %3736 = vmatpush2.msra.mxu0 0.0
  %3737 = vmatprep.subr.mxu0 0.0
  %3738 = vmatpush2.msra.mxu0 0.0
  %3739 = vmatprep.subr.mxu0 0.0
  %3740 = vmatpush2.msra.mxu0 0.0
  %3741 = vmatprep.subr.mxu0 0.0
  %3742 = vmatpush2.msra.mxu0 0.0
  %3743 = vmatprep.mubr.f32.mxu0 0.0
  %3744 = vmatmul.mubr.f32.gmra.mxu0 %v3290
  %v3745 = vpop.f32.mrf.mxu0
  %v3746 = vadd.f32 0.0, %v3745
  %v3747 = vpop.f32.mrf.mxu0
  %v3748 = vadd.f32 0.0, %v3747
  %3749 = vdwg.mxu0
  %v3750 = vld [vmem:[%s8] sm:$0xff]
  %v3751 = vld [vmem:[%s8 + $0x8] sm:$0xff]
  %v3752 = vld [vmem:[%s8 + $0x10] sm:$0xff]
  %v3753 = vld [vmem:[%s8 + $0x18] sm:$0xff]
  %v3754 = vld [vmem:[%s8 + $0x20] sm:$0xff]
  %v3755 = vld [vmem:[%s8 + $0x28] sm:$0xff]
  %v3756 = vld [vmem:[%s8 + $0x30] sm:$0xff]
  %v3757 = vld [vmem:[%s8 + $0x38] sm:$0xff]
  %v3758 = vld [vmem:[%s8 + $0x40] sm:$0xff]
  %v3759 = vld [vmem:[%s8 + $0x48] sm:$0xff]
  %v3760 = vld [vmem:[%s8 + $0x50] sm:$0xff]
  %v3761 = vld [vmem:[%s8 + $0x58] sm:$0xff]
  %v3762 = vld [vmem:[%s8 + $0x60] sm:$0xff]
  %v3763 = vld [vmem:[%s8 + $0x68] sm:$0xff]
  %v3764 = vld [vmem:[%s8 + $0x70] sm:$0xff]
  %v3765 = vld [vmem:[%s8 + $0x78] sm:$0xff]
  %v3766 = vld [vmem:[%s8 + $0x80] sm:$0xff]
  %v3767 = vld [vmem:[%s8 + $0x88] sm:$0xff]
  %v3768 = vld [vmem:[%s8 + $0x90] sm:$0xff]
  %v3769 = vld [vmem:[%s8 + $0x98] sm:$0xff]
  %v3770 = vld [vmem:[%s8 + $0xa0] sm:$0xff]
  %v3771 = vld [vmem:[%s8 + $0xa8] sm:$0xff]
  %v3772 = vld [vmem:[%s8 + $0xb0] sm:$0xff]
  %v3773 = vld [vmem:[%s8 + $0xb8] sm:$0xff]
  %v3774 = vld [vmem:[%s8 + $0xc0] sm:$0xff]
  %v3775 = vld [vmem:[%s8 + $0xc8] sm:$0xff]
  %v3776 = vld [vmem:[%s8 + $0xd0] sm:$0xff]
  %v3777 = vld [vmem:[%s8 + $0xd8] sm:$0xff]
  %v3778 = vld [vmem:[%s8 + $0xe0] sm:$0xff]
  %v3779 = vld [vmem:[%s8 + $0xe8] sm:$0xff]
  %v3780 = vld [vmem:[%s8 + $0xf0] sm:$0xff]
  %v3781 = vld [vmem:[%s8 + $0xf8] sm:$0xff]
  %v3782 = vld [vmem:[%s8 + $0x100] sm:$0xff]
  %v3783 = vld [vmem:[%s8 + $0x108] sm:$0xff]
  %v3784 = vld [vmem:[%s8 + $0x110] sm:$0xff]
  %v3785 = vld [vmem:[%s8 + $0x118] sm:$0xff]
  %v3786 = vld [vmem:[%s8 + $0x120] sm:$0xff]
  %v3787 = vld [vmem:[%s8 + $0x128] sm:$0xff]
  %v3788 = vld [vmem:[%s8 + $0x130] sm:$0xff]
  %v3789 = vld [vmem:[%s8 + $0x138] sm:$0xff]
  %v3790 = vld [vmem:[%s8 + $0x140] sm:$0xff]
  %v3791 = vld [vmem:[%s8 + $0x148] sm:$0xff]
  %v3792 = vld [vmem:[%s8 + $0x150] sm:$0xff]
  %v3793 = vld [vmem:[%s8 + $0x158] sm:$0xff]
  %v3794 = vld [vmem:[%s8 + $0x160] sm:$0xff]
  %v3795 = vld [vmem:[%s8 + $0x168] sm:$0xff]
  %v3796 = vld [vmem:[%s8 + $0x170] sm:$0xff]
  %v3797 = vld [vmem:[%s8 + $0x178] sm:$0xff]
  %v3798 = vld [vmem:[%s8 + $0x180] sm:$0xff]
  %v3799 = vld [vmem:[%s8 + $0x188] sm:$0xff]
  %v3800 = vld [vmem:[%s8 + $0x190] sm:$0xff]
  %v3801 = vld [vmem:[%s8 + $0x198] sm:$0xff]
  %v3802 = vld [vmem:[%s8 + $0x1a0] sm:$0xff]
  %v3803 = vld [vmem:[%s8 + $0x1a8] sm:$0xff]
  %v3804 = vld [vmem:[%s8 + $0x1b0] sm:$0xff]
  %v3805 = vld [vmem:[%s8 + $0x1b8] sm:$0xff]
  %v3806 = vld [vmem:[%s8 + $0x1c0] sm:$0xff]
  %v3807 = vld [vmem:[%s8 + $0x1c8] sm:$0xff]
  %v3808 = vld [vmem:[%s8 + $0x1d0] sm:$0xff]
  %v3809 = vld [vmem:[%s8 + $0x1d8] sm:$0xff]
  %v3810 = vld [vmem:[%s8 + $0x1e0] sm:$0xff]
  %v3811 = vld [vmem:[%s8 + $0x1e8] sm:$0xff]
  %v3812 = vld [vmem:[%s8 + $0x1f0] sm:$0xff]
  %v3813 = vld [vmem:[%s8 + $0x1f8] sm:$0xff]
  %v3814 = vld [vmem:[%s9] sm:$0x3]
  %v3816 = vlaneseq
  %v3817 = vshrl.u32 %v3816, 7
  %v3818 = vsub.s32 0, %v3817
  %v3819 = vrot.slane %v3814, %v3818
  %v3820 = vlaneseq
  %v3821 = vshrl.u32 %v3820, 7
  %v3822 = vsub.s32 1, %v3821
  %v3823 = vrot.slane %v3814, %v3822
  %3826 = vmatprep.subr.mxu0 %v3781
  %3827 = vmatpush1.msra.mxu0 %v3780
  %3828 = vmatprep.subr.mxu0 %v3779
  %3829 = vmatpush1.msra.mxu0 %v3778
  %3830 = vmatprep.subr.mxu0 %v3777
  %3831 = vmatpush1.msra.mxu0 %v3776
  %3832 = vmatprep.subr.mxu0 %v3775
  %3833 = vmatpush1.msra.mxu0 %v3774
  %3834 = vmatprep.subr.mxu0 %v3773
  %3835 = vmatpush1.msra.mxu0 %v3772
  %3836 = vmatprep.subr.mxu0 %v3771
  %3837 = vmatpush1.msra.mxu0 %v3770
  %3838 = vmatprep.subr.mxu0 %v3769
  %3839 = vmatpush1.msra.mxu0 %v3768
  %3840 = vmatprep.subr.mxu0 %v3767
  %3841 = vmatpush1.msra.mxu0 %v3766
  %3842 = vmatprep.subr.mxu0 %v3765
  %3843 = vmatpush1.msra.mxu0 %v3764
  %3844 = vmatprep.subr.mxu0 %v3763
  %3845 = vmatpush1.msra.mxu0 %v3762
  %3846 = vmatprep.subr.mxu0 %v3761
  %3847 = vmatpush1.msra.mxu0 %v3760
  %3848 = vmatprep.subr.mxu0 %v3759
  %3849 = vmatpush1.msra.mxu0 %v3758
  %3850 = vmatprep.subr.mxu0 %v3757
  %3851 = vmatpush1.msra.mxu0 %v3756
  %3852 = vmatprep.subr.mxu0 %v3755
  %3853 = vmatpush1.msra.mxu0 %v3754
  %3854 = vmatprep.subr.mxu0 %v3753
  %3855 = vmatpush1.msra.mxu0 %v3752
  %3856 = vmatprep.subr.mxu0 %v3751
  %3857 = vmatpush1.msra.mxu0 %v3750
  %3858 = vmatprep.subr.mxu0 %v3813
  %3859 = vmatpush2.msra.mxu0 %v3812
  %3860 = vmatprep.subr.mxu0 %v3811
  %3861 = vmatpush2.msra.mxu0 %v3810
  %3862 = vmatprep.subr.mxu0 %v3809
  %3863 = vmatpush2.msra.mxu0 %v3808
  %3864 = vmatprep.subr.mxu0 %v3807
  %3865 = vmatpush2.msra.mxu0 %v3806
  %3866 = vmatprep.subr.mxu0 %v3805
  %3867 = vmatpush2.msra.mxu0 %v3804
  %3868 = vmatprep.subr.mxu0 %v3803
  %3869 = vmatpush2.msra.mxu0 %v3802
  %3870 = vmatprep.subr.mxu0 %v3801
  %3871 = vmatpush2.msra.mxu0 %v3800
  %3872 = vmatprep.subr.mxu0 %v3799
  %3873 = vmatpush2.msra.mxu0 %v3798
  %3874 = vmatprep.subr.mxu0 %v3797
  %3875 = vmatpush2.msra.mxu0 %v3796
  %3876 = vmatprep.subr.mxu0 %v3795
  %3877 = vmatpush2.msra.mxu0 %v3794
  %3878 = vmatprep.subr.mxu0 %v3793
  %3879 = vmatpush2.msra.mxu0 %v3792
  %3880 = vmatprep.subr.mxu0 %v3791
  %3881 = vmatpush2.msra.mxu0 %v3790
  %3882 = vmatprep.subr.mxu0 %v3789
  %3883 = vmatpush2.msra.mxu0 %v3788
  %3884 = vmatprep.subr.mxu0 %v3787
  %3885 = vmatpush2.msra.mxu0 %v3786
  %3886 = vmatprep.subr.mxu0 %v3785
  %3887 = vmatpush2.msra.mxu0 %v3784
  %3888 = vmatprep.subr.mxu0 %v3783
  %3889 = vmatpush2.msra.mxu0 %v3782
  %3890 = vmatprep.mubr.f32.mxu0 %v3748
  %3891 = vmatmul.mubr.f32.gmra.mxu0 %v3746
  %v3892 = vpop.f32.mrf.mxu0
  %v3893 = vadd.f32 %v3819, %v3892
  %v3894 = vpop.f32.mrf.mxu0
  %v3895 = vadd.f32 %v3823, %v3894
  %3896 = vdwg.mxu0
  %v3897 = vmax.f32 %v3893, 0.0
  %v3898 = vmax.f32 %v3895, 0.0
  %v3899 = vld [vmem:[%s10] sm:$0xff]
  %v3900 = vld [vmem:[%s10 + $0x8] sm:$0xff]
  %v3901 = vld [vmem:[%s10 + $0x10] sm:$0xff]
  %v3902 = vld [vmem:[%s10 + $0x18] sm:$0xff]
  %v3903 = vld [vmem:[%s10 + $0x20] sm:$0xff]
  %v3904 = vld [vmem:[%s10 + $0x28] sm:$0xff]
  %v3905 = vld [vmem:[%s10 + $0x30] sm:$0xff]
  %v3906 = vld [vmem:[%s10 + $0x38] sm:$0xff]
  %v3907 = vld [vmem:[%s10 + $0x40] sm:$0xff]
  %v3908 = vld [vmem:[%s10 + $0x48] sm:$0xff]
  %v3909 = vld [vmem:[%s10 + $0x50] sm:$0xff]
  %v3910 = vld [vmem:[%s10 + $0x58] sm:$0xff]
  %v3911 = vld [vmem:[%s10 + $0x60] sm:$0xff]
  %v3912 = vld [vmem:[%s10 + $0x68] sm:$0xff]
  %v3913 = vld [vmem:[%s10 + $0x70] sm:$0xff]
  %v3914 = vld [vmem:[%s10 + $0x78] sm:$0xff]
  %v3915 = vld [vmem:[%s10 + $0x80] sm:$0xff]
  %v3916 = vld [vmem:[%s10 + $0x88] sm:$0xff]
  %v3917 = vld [vmem:[%s10 + $0x90] sm:$0xff]
  %v3918 = vld [vmem:[%s10 + $0x98] sm:$0xff]
  %v3919 = vld [vmem:[%s10 + $0xa0] sm:$0xff]
  %v3920 = vld [vmem:[%s10 + $0xa8] sm:$0xff]
  %v3921 = vld [vmem:[%s10 + $0xb0] sm:$0xff]
  %v3922 = vld [vmem:[%s10 + $0xb8] sm:$0xff]
  %v3923 = vld [vmem:[%s10 + $0xc0] sm:$0xff]
  %v3924 = vld [vmem:[%s10 + $0xc8] sm:$0xff]
  %v3925 = vld [vmem:[%s10 + $0xd0] sm:$0xff]
  %v3926 = vld [vmem:[%s10 + $0xd8] sm:$0xff]
  %v3927 = vld [vmem:[%s10 + $0xe0] sm:$0xff]
  %v3928 = vld [vmem:[%s10 + $0xe8] sm:$0xff]
  %v3929 = vld [vmem:[%s10 + $0xf0] sm:$0xff]
  %v3930 = vld [vmem:[%s10 + $0xf8] sm:$0xff]
  %v3931 = vld [vmem:[%s11] sm:$0xff]
  %v3932 = vld [vmem:[%s11 + $0x8] sm:$0xff]
  %v3933 = vld [vmem:[%s11 + $0x10] sm:$0xff]
  %v3934 = vld [vmem:[%s11 + $0x18] sm:$0xff]
  %v3935 = vld [vmem:[%s11 + $0x20] sm:$0xff]
  %v3936 = vld [vmem:[%s11 + $0x28] sm:$0xff]
  %v3937 = vld [vmem:[%s11 + $0x30] sm:$0xff]
  %v3938 = vld [vmem:[%s11 + $0x38] sm:$0xff]
  %v3939 = vld [vmem:[%s11 + $0x40] sm:$0xff]
  %v3940 = vld [vmem:[%s11 + $0x48] sm:$0xff]
  %v3941 = vld [vmem:[%s11 + $0x50] sm:$0xff]
  %v3942 = vld [vmem:[%s11 + $0x58] sm:$0xff]
  %v3943 = vld [vmem:[%s11 + $0x60] sm:$0xff]
  %v3944 = vld [vmem:[%s11 + $0x68] sm:$0xff]
  %v3945 = vld [vmem:[%s11 + $0x70] sm:$0xff]
  %v3946 = vld [vmem:[%s11 + $0x78] sm:$0xff]
  %v3947 = vld [vmem:[%s11 + $0x80] sm:$0xff]
  %v3948 = vld [vmem:[%s11 + $0x88] sm:$0xff]
  %v3949 = vld [vmem:[%s11 + $0x90] sm:$0xff]
  %v3950 = vld [vmem:[%s11 + $0x98] sm:$0xff]
  %v3951 = vld [vmem:[%s11 + $0xa0] sm:$0xff]
  %v3952 = vld [vmem:[%s11 + $0xa8] sm:$0xff]
  %v3953 = vld [vmem:[%s11 + $0xb0] sm:$0xff]
  %v3954 = vld [vmem:[%s11 + $0xb8] sm:$0xff]
  %v3955 = vld [vmem:[%s11 + $0xc0] sm:$0xff]
  %v3956 = vld [vmem:[%s11 + $0xc8] sm:$0xff]
  %v3957 = vld [vmem:[%s11 + $0xd0] sm:$0xff]
  %v3958 = vld [vmem:[%s11 + $0xd8] sm:$0xff]
  %v3959 = vld [vmem:[%s11 + $0xe0] sm:$0xff]
  %v3960 = vld [vmem:[%s11 + $0xe8] sm:$0xff]
  %v3961 = vld [vmem:[%s11 + $0xf0] sm:$0x3f]
  %v3963 = vsel %vm3581, %v3282, 0
  %v3966 = vsel %vm3585, %v3961, 0
  %3968 = vmatprep.subr.mxu0 0.0
  %3969 = vmatpush1.msra.mxu0 %v3946
  %3970 = vmatprep.subr.mxu0 0.0
  %3971 = vmatpush1.msra.mxu0 %v3945
  %3972 = vmatprep.subr.mxu0 0.0
  %3973 = vmatpush1.msra.mxu0 %v3944
  %3974 = vmatprep.subr.mxu0 0.0
  %3975 = vmatpush1.msra.mxu0 %v3943
  %3976 = vmatprep.subr.mxu0 0.0
  %3977 = vmatpush1.msra.mxu0 %v3942
  %3978 = vmatprep.subr.mxu0 0.0
  %3979 = vmatpush1.msra.mxu0 %v3941
  %3980 = vmatprep.subr.mxu0 0.0
  %3981 = vmatpush1.msra.mxu0 %v3940
  %3982 = vmatprep.subr.mxu0 0.0
  %3983 = vmatpush1.msra.mxu0 %v3939
  %3984 = vmatprep.subr.mxu0 0.0
  %3985 = vmatpush1.msra.mxu0 %v3938
  %3986 = vmatprep.subr.mxu0 0.0
  %3987 = vmatpush1.msra.mxu0 %v3937
  %3988 = vmatprep.subr.mxu0 0.0
  %3989 = vmatpush1.msra.mxu0 %v3936
  %3990 = vmatprep.subr.mxu0 0.0
  %3991 = vmatpush1.msra.mxu0 %v3935
  %3992 = vmatprep.subr.mxu0 0.0
  %3993 = vmatpush1.msra.mxu0 %v3934
  %3994 = vmatprep.subr.mxu0 0.0
  %3995 = vmatpush1.msra.mxu0 %v3933
  %3996 = vmatprep.subr.mxu0 0.0
  %3997 = vmatpush1.msra.mxu0 %v3932
  %3998 = vmatprep.subr.mxu0 0.0
  %3999 = vmatpush1.msra.mxu0 %v3931
  %4000 = vmatprep.subr.mxu0 0.0
  %4001 = vmatpush2.msra.mxu0 0.0
  %4002 = vmatprep.subr.mxu0 0.0
  %4003 = vmatpush2.msra.mxu0 %v3966
  %4004 = vmatprep.subr.mxu0 0.0
  %4005 = vmatpush2.msra.mxu0 %v3960
  %4006 = vmatprep.subr.mxu0 0.0
  %4007 = vmatpush2.msra.mxu0 %v3959
  %4008 = vmatprep.subr.mxu0 0.0
  %4009 = vmatpush2.msra.mxu0 %v3958
  %4010 = vmatprep.subr.mxu0 0.0
  %4011 = vmatpush2.msra.mxu0 %v3957
  %4012 = vmatprep.subr.mxu0 0.0
  %4013 = vmatpush2.msra.mxu0 %v3956
  %4014 = vmatprep.subr.mxu0 0.0
  %4015 = vmatpush2.msra.mxu0 %v3955
  %4016 = vmatprep.subr.mxu0 0.0
  %4017 = vmatpush2.msra.mxu0 %v3954
  %4018 = vmatprep.subr.mxu0 0.0
  %4019 = vmatpush2.msra.mxu0 %v3953
  %4020 = vmatprep.subr.mxu0 0.0
  %4021 = vmatpush2.msra.mxu0 %v3952
  %4022 = vmatprep.subr.mxu0 0.0
  %4023 = vmatpush2.msra.mxu0 %v3951
  %4024 = vmatprep.subr.mxu0 0.0
  %4025 = vmatpush2.msra.mxu0 %v3950
  %4026 = vmatprep.subr.mxu0 0.0
  %4027 = vmatpush2.msra.mxu0 %v3949
  %4028 = vmatprep.subr.mxu0 0.0
  %4029 = vmatpush2.msra.mxu0 %v3948
  %4030 = vmatprep.subr.mxu0 0.0
  %4031 = vmatpush2.msra.mxu0 %v3947
  %4032 = vmatprep.mubr.f32.mxu0 %v3963
  %4033 = vmatmul.mubr.f32.gmra.mxu0 %v3280
  %v4034 = vpop.f32.mrf.mxu0
  %v4035 = vadd.f32 0.0, %v4034
  %v4036 = vpop.f32.mrf.mxu0
  %4037 = vdwg.mxu0
  %4038 = vmatprep.subr.mxu0 0.0
  %4039 = vmatpush1.msra.mxu0 %v3914
  %4040 = vmatprep.subr.mxu0 0.0
  %4041 = vmatpush1.msra.mxu0 %v3913
  %4042 = vmatprep.subr.mxu0 0.0
  %4043 = vmatpush1.msra.mxu0 %v3912
  %4044 = vmatprep.subr.mxu0 0.0
  %4045 = vmatpush1.msra.mxu0 %v3911
  %4046 = vmatprep.subr.mxu0 0.0
  %4047 = vmatpush1.msra.mxu0 %v3910
  %4048 = vmatprep.subr.mxu0 0.0
  %4049 = vmatpush1.msra.mxu0 %v3909
  %4050 = vmatprep.subr.mxu0 0.0
  %4051 = vmatpush1.msra.mxu0 %v3908
  %4052 = vmatprep.subr.mxu0 0.0
  %4053 = vmatpush1.msra.mxu0 %v3907
  %4054 = vmatprep.subr.mxu0 0.0
  %4055 = vmatpush1.msra.mxu0 %v3906
  %4056 = vmatprep.subr.mxu0 0.0
  %4057 = vmatpush1.msra.mxu0 %v3905
  %4058 = vmatprep.subr.mxu0 0.0
  %4059 = vmatpush1.msra.mxu0 %v3904
  %4060 = vmatprep.subr.mxu0 0.0
  %4061 = vmatpush1.msra.mxu0 %v3903
  %4062 = vmatprep.subr.mxu0 0.0
  %4063 = vmatpush1.msra.mxu0 %v3902
  %4064 = vmatprep.subr.mxu0 0.0
  %4065 = vmatpush1.msra.mxu0 %v3901
  %4066 = vmatprep.subr.mxu0 0.0
  %4067 = vmatpush1.msra.mxu0 %v3900
  %4068 = vmatprep.subr.mxu0 0.0
  %4069 = vmatpush1.msra.mxu0 %v3899
  %4070 = vmatprep.subr.mxu0 0.0
  %4071 = vmatpush2.msra.mxu0 %v3930
  %4072 = vmatprep.subr.mxu0 0.0
  %4073 = vmatpush2.msra.mxu0 %v3929
  %4074 = vmatprep.subr.mxu0 0.0
  %4075 = vmatpush2.msra.mxu0 %v3928
  %4076 = vmatprep.subr.mxu0 0.0
  %4077 = vmatpush2.msra.mxu0 %v3927
  %4078 = vmatprep.subr.mxu0 0.0
  %4079 = vmatpush2.msra.mxu0 %v3926
  %4080 = vmatprep.subr.mxu0 0.0
  %4081 = vmatpush2.msra.mxu0 %v3925
  %4082 = vmatprep.subr.mxu0 0.0
  %4083 = vmatpush2.msra.mxu0 %v3924
  %4084 = vmatprep.subr.mxu0 0.0
  %4085 = vmatpush2.msra.mxu0 %v3923
  %4086 = vmatprep.subr.mxu0 0.0
  %4087 = vmatpush2.msra.mxu0 %v3922
  %4088 = vmatprep.subr.mxu0 0.0
  %4089 = vmatpush2.msra.mxu0 %v3921
  %4090 = vmatprep.subr.mxu0 0.0
  %4091 = vmatpush2.msra.mxu0 %v3920
  %4092 = vmatprep.subr.mxu0 0.0
  %4093 = vmatpush2.msra.mxu0 %v3919
  %4094 = vmatprep.subr.mxu0 0.0
  %4095 = vmatpush2.msra.mxu0 %v3918
  %4096 = vmatprep.subr.mxu0 0.0
  %4097 = vmatpush2.msra.mxu0 %v3917
  %4098 = vmatprep.subr.mxu0 0.0
  %4099 = vmatpush2.msra.mxu0 %v3916
  %4100 = vmatprep.subr.mxu0 0.0
  %4101 = vmatpush2.msra.mxu0 %v3915
  %4102 = vmatprep.mubr.f32.mxu0 %v3898
  %4103 = vmatmul.mubr.f32.gmra.mxu0 %v3897
  %v4104 = vpop.f32.mrf.mxu0
  %v4105 = vadd.f32 %v4035, %v4104
  %v4106 = vpop.f32.mrf.mxu0
  %4107 = vdwg.mxu0
  %v4108 = vld [vmem:[%s12] sm:$0xff]
  %v4109 = vld [vmem:[%s12 + $0x8] sm:$0x3]
  %v4111 = vsel %vm3499, %v3286, 0
  %v4114 = vsel %vm3503, %v4109, 0
  %4116 = vmatprep.subr.mxu0 0.0
  %4117 = vmatpush1.msra.mxu0 0.0
  %4118 = vmatprep.subr.mxu0 0.0
  %4119 = vmatpush1.msra.mxu0 0.0
  %4120 = vmatprep.subr.mxu0 0.0
  %4121 = vmatpush1.msra.mxu0 0.0
  %4122 = vmatprep.subr.mxu0 0.0
  %4123 = vmatpush1.msra.mxu0 0.0
  %4124 = vmatprep.subr.mxu0 0.0
  %4125 = vmatpush1.msra.mxu0 0.0
  %4126 = vmatprep.subr.mxu0 0.0
  %4127 = vmatpush1.msra.mxu0 0.0
  %4128 = vmatprep.subr.mxu0 0.0
  %4129 = vmatpush1.msra.mxu0 0.0
  %4130 = vmatprep.subr.mxu0 0.0
  %4131 = vmatpush1.msra.mxu0 0.0
  %4132 = vmatprep.subr.mxu0 0.0
  %4133 = vmatpush1.msra.mxu0 0.0
  %4134 = vmatprep.subr.mxu0 0.0
  %4135 = vmatpush1.msra.mxu0 0.0
  %4136 = vmatprep.subr.mxu0 0.0
  %4137 = vmatpush1.msra.mxu0 0.0
  %4138 = vmatprep.subr.mxu0 0.0
  %4139 = vmatpush1.msra.mxu0 0.0
  %4140 = vmatprep.subr.mxu0 0.0
  %4141 = vmatpush1.msra.mxu0 0.0
  %4142 = vmatprep.subr.mxu0 0.0
  %4143 = vmatpush1.msra.mxu0 0.0
  %4144 = vmatprep.subr.mxu0 0.0
  %4145 = vmatpush1.msra.mxu0 %v4114
  %4146 = vmatprep.subr.mxu0 0.0
  %4147 = vmatpush1.msra.mxu0 %v4108
  %4148 = vmatprep.subr.mxu0 0.0
  %4149 = vmatpush2.msra.mxu0 0.0
  %4150 = vmatprep.subr.mxu0 0.0
  %4151 = vmatpush2.msra.mxu0 0.0
  %4152 = vmatprep.subr.mxu0 0.0
  %4153 = vmatpush2.msra.mxu0 0.0
  %4154 = vmatprep.subr.mxu0 0.0
  %4155 = vmatpush2.msra.mxu0 0.0
  %4156 = vmatprep.subr.mxu0 0.0
  %4157 = vmatpush2.msra.mxu0 0.0
  %4158 = vmatprep.subr.mxu0 0.0
  %4159 = vmatpush2.msra.mxu0 0.0
  %4160 = vmatprep.subr.mxu0 0.0
  %4161 = vmatpush2.msra.mxu0 0.0
  %4162 = vmatprep.subr.mxu0 0.0
  %4163 = vmatpush2.msra.mxu0 0.0
  %4164 = vmatprep.subr.mxu0 0.0
  %4165 = vmatpush2.msra.mxu0 0.0
  %4166 = vmatprep.subr.mxu0 0.0
  %4167 = vmatpush2.msra.mxu0 0.0
  %4168 = vmatprep.subr.mxu0 0.0
  %4169 = vmatpush2.msra.mxu0 0.0
  %4170 = vmatprep.subr.mxu0 0.0
  %4171 = vmatpush2.msra.mxu0 0.0
  %4172 = vmatprep.subr.mxu0 0.0
  %4173 = vmatpush2.msra.mxu0 0.0
  %4174 = vmatprep.subr.mxu0 0.0
  %4175 = vmatpush2.msra.mxu0 0.0
  %4176 = vmatprep.subr.mxu0 0.0
  %4177 = vmatpush2.msra.mxu0 0.0
  %4178 = vmatprep.subr.mxu0 0.0
  %4179 = vmatpush2.msra.mxu0 0.0
  %4180 = vmatprep.mubr.f32.mxu0 0.0
  %4181 = vmatmul.mubr.f32.gmra.mxu0 %v4111
  %v4182 = vpop.f32.mrf.mxu0
  %v4183 = vadd.f32 0.0, %v4182
  %v4184 = vpop.f32.mrf.mxu0
  %4185 = vdwg.mxu0
  %v4186 = vadd.f32 %v4105, %v4183
  %v4187 = vld [vmem:[%s13] sm:$0x1]
  %v4189 = vlaneseq
  %v4190 = vshrl.u32 %v4189, 7
  %v4191 = vsub.s32 0, %v4190
  %v4192 = vrot.slane %v4187, %v4191
  %v4194 = vadd.f32 %v4186, %v4192
  %v4195 = vmax.f32 %v4194, 0.0
  %v4196 = vld [vmem:[%s14] sm:$0xff]
  %v4197 = vld [vmem:[%s14 + $0x8] sm:$0xff]
  %v4198 = vld [vmem:[%s14 + $0x10] sm:$0xff]
  %v4199 = vld [vmem:[%s14 + $0x18] sm:$0xff]
  %v4200 = vld [vmem:[%s14 + $0x20] sm:$0xff]
  %v4201 = vld [vmem:[%s14 + $0x28] sm:$0xff]
  %v4202 = vld [vmem:[%s14 + $0x30] sm:$0xff]
  %v4203 = vld [vmem:[%s14 + $0x38] sm:$0xff]
  %v4204 = vld [vmem:[%s14 + $0x40] sm:$0xff]
  %v4205 = vld [vmem:[%s14 + $0x48] sm:$0xff]
  %v4206 = vld [vmem:[%s14 + $0x50] sm:$0xff]
  %v4207 = vld [vmem:[%s14 + $0x58] sm:$0xff]
  %v4208 = vld [vmem:[%s14 + $0x60] sm:$0xff]
  %v4209 = vld [vmem:[%s14 + $0x68] sm:$0xff]
  %v4210 = vld [vmem:[%s14 + $0x70] sm:$0xff]
  %v4211 = vld [vmem:[%s14 + $0x78] sm:$0xff]
  %v4212 = vld [vmem:[%s15] sm:$0x1]
  %v4214 = vlaneseq
  %v4215 = vshrl.u32 %v4214, 7
  %v4216 = vsub.s32 0, %v4215
  %v4217 = vrot.slane %v4212, %v4216
  %4219 = vmatprep.subr.mxu0 0.0
  %4220 = vmatpush1.msra.mxu0 %v4211
  %4221 = vmatprep.subr.mxu0 0.0
  %4222 = vmatpush1.msra.mxu0 %v4210
  %4223 = vmatprep.subr.mxu0 0.0
  %4224 = vmatpush1.msra.mxu0 %v4209
  %4225 = vmatprep.subr.mxu0 0.0
  %4226 = vmatpush1.msra.mxu0 %v4208
  %4227 = vmatprep.subr.mxu0 0.0
  %4228 = vmatpush1.msra.mxu0 %v4207
  %4229 = vmatprep.subr.mxu0 0.0
  %4230 = vmatpush1.msra.mxu0 %v4206
  %4231 = vmatprep.subr.mxu0 0.0
  %4232 = vmatpush1.msra.mxu0 %v4205
  %4233 = vmatprep.subr.mxu0 0.0
  %4234 = vmatpush1.msra.mxu0 %v4204
  %4235 = vmatprep.subr.mxu0 0.0
  %4236 = vmatpush1.msra.mxu0 %v4203
  %4237 = vmatprep.subr.mxu0 0.0
  %4238 = vmatpush1.msra.mxu0 %v4202
  %4239 = vmatprep.subr.mxu0 0.0
  %4240 = vmatpush1.msra.mxu0 %v4201
  %4241 = vmatprep.subr.mxu0 0.0
  %4242 = vmatpush1.msra.mxu0 %v4200
  %4243 = vmatprep.subr.mxu0 0.0
  %4244 = vmatpush1.msra.mxu0 %v4199
  %4245 = vmatprep.subr.mxu0 0.0
  %4246 = vmatpush1.msra.mxu0 %v4198
  %4247 = vmatprep.subr.mxu0 0.0
  %4248 = vmatpush1.msra.mxu0 %v4197
  %4249 = vmatprep.subr.mxu0 0.0
  %4250 = vmatpush1.msra.mxu0 %v4196
  %4251 = vmatprep.subr.mxu0 0.0
  %4252 = vmatpush2.msra.mxu0 0.0
  %4253 = vmatprep.subr.mxu0 0.0
  %4254 = vmatpush2.msra.mxu0 0.0
  %4255 = vmatprep.subr.mxu0 0.0
  %4256 = vmatpush2.msra.mxu0 0.0
  %4257 = vmatprep.subr.mxu0 0.0
  %4258 = vmatpush2.msra.mxu0 0.0
  %4259 = vmatprep.subr.mxu0 0.0
  %4260 = vmatpush2.msra.mxu0 0.0
  %4261 = vmatprep.subr.mxu0 0.0
  %4262 = vmatpush2.msra.mxu0 0.0
  %4263 = vmatprep.subr.mxu0 0.0
  %4264 = vmatpush2.msra.mxu0 0.0
  %4265 = vmatprep.subr.mxu0 0.0
  %4266 = vmatpush2.msra.mxu0 0.0
  %4267 = vmatprep.subr.mxu0 0.0
  %4268 = vmatpush2.msra.mxu0 0.0
  %4269 = vmatprep.subr.mxu0 0.0
  %4270 = vmatpush2.msra.mxu0 0.0
  %4271 = vmatprep.subr.mxu0 0.0
  %4272 = vmatpush2.msra.mxu0 0.0
  %4273 = vmatprep.subr.mxu0 0.0
  %4274 = vmatpush2.msra.mxu0 0.0
  %4275 = vmatprep.subr.mxu0 0.0
  %4276 = vmatpush2.msra.mxu0 0.0
  %4277 = vmatprep.subr.mxu0 0.0
  %4278 = vmatpush2.msra.mxu0 0.0
  %4279 = vmatprep.subr.mxu0 0.0
  %4280 = vmatpush2.msra.mxu0 0.0
  %4281 = vmatprep.subr.mxu0 0.0
  %4282 = vmatpush2.msra.mxu0 0.0
  %4283 = vmatprep.mubr.f32.mxu0 0.0
  %4284 = vmatmul.mubr.f32.gmra.mxu0 %v4195
  %v4285 = vpop.f32.mrf.mxu0
  %v4286 = vadd.f32 %v4217, %v4285
  %v4287 = vpop.f32.mrf.mxu0
  %4288 = vdwg.mxu0
  %4289 = vst.msk [vmem:[%s16] sm:$0xff] %vm3288, %v4286
  // Predicated region
  $region66: #{my_cnn_and_gnn2_forward.5} parent=0 // pred_check
    _
  $region67: #{my_cnn_and_gnn2_forward.5} parent=0 // pred_check_branch
    %4291 = sbr.rel (0) target = $region69
  $region68: #{my_cnn_and_gnn2_forward.5} parent=0 // pred_region
    _
  $region69: #{my_cnn_and_gnn2_forward.5} parent=0 // pred_fallthru
    _
  // Predicated region
  $region70: #{my_cnn_and_gnn2_forward.5} parent=0 // pred_check
    _
  $region71: #{my_cnn_and_gnn2_forward.5} parent=0 // pred_check_branch
    %4293 = sbr.rel (0) target = $region73
  $region72: #{my_cnn_and_gnn2_forward.5} parent=0 // pred_region
    _
  $region73: #{my_cnn_and_gnn2_forward.5} parent=0 // pred_fallthru
    _

</llo_original>
